<compile_context>
chip_gen: v6e
topology: v6e:2x2x1
jax: 0.10.0
libtpu: 0.0.40
codegen_flags: <defaults>
</compile_context>

<pallas_src>
import math
import functools

import jax
import jax.numpy as jnp
from jax.experimental import pallas as pl
from jax.experimental.pallas import tpu as pltpu


def _layernorm(x, w, b, eps=1e-5):
    mu = jnp.mean(x, axis=-1, keepdims=True)
    var = jnp.mean((x - mu) ** 2, axis=-1, keepdims=True)
    return (x - mu) * jax.lax.rsqrt(var + eps) * w + b


# ----------------------------------------------------------------------------
# Fused kernel: PE add + nlayers post-norm encoder layers + mean over L.
# Each grid step handles NB batch rows ([NB, L, D]) fully resident in VMEM.
# ----------------------------------------------------------------------------
def transformer_kernel(x_ref, pe_ref,
                       wqkv_ref, bqkv_ref,
                       wo_ref, bo_ref, ln1w_ref, ln1b_ref,
                       w1_ref, b1_ref, w2_ref, b2_ref,
                       ln2w_ref, ln2b_ref,
                       o_ref, *, nhead, nlayers):
    NB, L, D = x_ref.shape
    hd = D // nhead
    scale = 1.0 / math.sqrt(hd)
    R = NB * L

    # Positional encoding added along the N axis (pe broadcasts over dim 1),
    # exactly mirroring the PyTorch module's pe[:x.size(0)] add.
    x = x_ref[...] + pe_ref[...]                      # [NB, L, D]
    xf = x.reshape(R, D)                              # flattened activations

    for layer in range(nlayers):                      # static unroll over layers
        # ----- fused QKV projection (single MXU pass, pre-transposed weight) -
        qkv = jnp.dot(xf, wqkv_ref[layer],
                      preferred_element_type=jnp.float32) + bqkv_ref[layer]   # [R, 3D]
        q = qkv[:, 0 * D:1 * D]
        k = qkv[:, 1 * D:2 * D]
        v = qkv[:, 2 * D:3 * D]

        # ----- multi-head self attention, batched over the NB rows ----------
        ctx_heads = []
        for h in range(nhead):                        # static head loop
            qh = q[:, h * hd:(h + 1) * hd].reshape(NB, L, hd)
            kh = k[:, h * hd:(h + 1) * hd].reshape(NB, L, hd)
            vh = v[:, h * hd:(h + 1) * hd].reshape(NB, L, hd)
            s = jnp.einsum('bld,bmd->blm', qh, kh,
                           preferred_element_type=jnp.float32) * scale
            s = s - jnp.max(s, axis=-1, keepdims=True)
            p = jnp.exp(s)
            p = p * pl.reciprocal(jnp.sum(p, axis=-1, keepdims=True), approx=True)
            ctx_heads.append(jnp.einsum('blm,bmd->bld', p, vh,
                                        preferred_element_type=jnp.float32))
        ctx = jnp.concatenate(ctx_heads, axis=-1).reshape(R, D)
        # single fused output projection (bias added once in the epilogue)
        attn = jnp.dot(ctx, wo_ref[layer],
                       preferred_element_type=jnp.float32) + bo_ref[layer]

        # ----- residual + LayerNorm 1 (post-norm) ---------------------------
        h1n = _layernorm(xf + attn, ln1w_ref[layer], ln1b_ref[layer])

        # ----- feed-forward ---------------------------------------------------
        ff = jnp.dot(h1n, w1_ref[layer],
                     preferred_element_type=jnp.float32) + b1_ref[layer]
        ff = jnp.maximum(ff, 0.0)                     # ReLU
        ff = jnp.dot(ff, w2_ref[layer],
                     preferred_element_type=jnp.float32) + b2_ref[layer]

        # ----- residual + LayerNorm 2 -----------------------------------------
        xf = _layernorm(h1n + ff, ln2w_ref[layer], ln2b_ref[layer])

    # final torch.mean(output, dim=1)
    o_ref[...] = jnp.mean(xf.reshape(NB, L, D), axis=1, keepdims=True)   # [NB, 1, D]


# ----------------------------------------------------------------------------
# Wrapper: one pallas_call for the whole forward.
# ----------------------------------------------------------------------------
def transformer_inner_forward(src, params, nhead, *, n_blocks=2):
    N, L, D = src.shape
    nlayers = params["wq"].shape[0]
    d_hid = params["w1"].shape[-1]
    if N % n_blocks != 0:
        n_blocks = 1
    NB = N // n_blocks

    pe = positional_encoding(N, D)[:, None, :]        # [N, 1, D]

    # Fuse the three projection weights into one [D, 3D] operand per layer so
    # the kernel issues a single QKV matmul.
    wqkv = jnp.concatenate([params["wq"], params["wk"], params["wv"]], axis=-1)
    bqkv = jnp.concatenate([params["bq"], params["bk"], params["bv"]], axis=-1)

    def const(shape):
        return pl.BlockSpec(shape, lambda n, _s=shape: (0,) * len(_s))

    kernel = functools.partial(transformer_kernel, nhead=nhead, nlayers=nlayers)
    out = pl.pallas_call(
        kernel,
        out_shape=jax.ShapeDtypeStruct((N, 1, D), jnp.float32),
        grid=(n_blocks,),
        in_specs=[
            pl.BlockSpec((NB, L, D), lambda n: (n, 0, 0)),               # x block
            pl.BlockSpec((NB, 1, D), lambda n: (n, 0, 0)),               # pe block
            const((nlayers, D, 3 * D)), const((nlayers, 1, 3 * D)),      # Wqkv, bqkv
            const((nlayers, D, D)), const((nlayers, 1, D)),              # Wo, bo
            const((nlayers, 1, D)), const((nlayers, 1, D)),              # ln1 w, b
            const((nlayers, D, d_hid)), const((nlayers, 1, d_hid)),      # W1, b1
            const((nlayers, d_hid, D)), const((nlayers, 1, D)),          # W2, b2
            const((nlayers, 1, D)), const((nlayers, 1, D)),              # ln2 w, b
        ],
        out_specs=pl.BlockSpec((NB, 1, D), lambda n: (n, 0, 0)),
        compiler_params=pltpu.CompilerParams(
            dimension_semantics=("parallel",)),
    )(src, pe,
      wqkv, bqkv,
      params["wo"], params["bo"],
      params["ln1w"], params["ln1b"],
      params["w1"], params["b1"], params["w2"], params["b2"],
      params["ln2w"], params["ln2b"])
    return out[:, 0, :]                               # [N, D]


# ----------------------------------------------------------------------------
# Pure-JAX reference (same math, exact softmax) for correctness checking.
# ----------------------------------------------------------------------------
def reference_forward(src, params, nhead):
    N, L, D = src.shape
    nlayers = params["wq"].shape[0]
    hd = D // nhead
    x = src + positional_encoding(N, D)[:, None, :]
    for l in range(nlayers):
        q = x @ params["wq"][l] + params["bq"][l]
        k = x @ params["wk"][l] + params["bk"][l]
        v = x @ params["wv"][l] + params["bv"][l]
        qh = q.reshape(N, L, nhead, hd).transpose(0, 2, 1, 3)
        kh = k.reshape(N, L, nhead, hd).transpose(0, 2, 1, 3)
        vh = v.reshape(N, L, nhead, hd).transpose(0, 2, 1, 3)
        s = (qh @ kh.transpose(0, 1, 3, 2)) / math.sqrt(hd)
        p = jax.nn.softmax(s, axis=-1)
        ctx = (p @ vh).transpose(0, 2, 1, 3).reshape(N, L, D)
        attn = ctx @ params["wo"][l] + params["bo"][l]
        x = _layernorm(x + attn, params["ln1w"][l], params["ln1b"][l])
        ff = jnp.maximum(x @ params["w1"][l] + params["b1"][l], 0.0)
        ff = ff @ params["w2"][l] + params["b2"][l]
        x = _layernorm(x + ff, params["ln2w"][l], params["ln2b"][l])
    return jnp.mean(x, axis=1)


# ----------------------------------------------------------------------------
# Parameter init (stacked over layers, weights pre-transposed to [in, out]).
# ----------------------------------------------------------------------------
def init_params(key, nlayers, d_model, d_hid, scale=0.02):
    keys = jax.random.split(key, 6 * nlayers)
    f32 = jnp.float32

    def w(i, shape):
        return jax.random.normal(keys[i], shape, f32) * scale

    p = {
        "wq": jnp.stack([w(6 * l + 0, (d_model, d_model)) for l in range(nlayers)]),
        "wk": jnp.stack([w(6 * l + 1, (d_model, d_model)) for l in range(nlayers)]),
        "wv": jnp.stack([w(6 * l + 2, (d_model, d_model)) for l in range(nlayers)]),
        "wo": jnp.stack([w(6 * l + 3, (d_model, d_model)) for l in range(nlayers)]),
        "w1": jnp.stack([w(6 * l + 4, (d_model, d_hid)) for l in range(nlayers)]),
        "w2": jnp.stack([w(6 * l + 5, (d_hid, d_model)) for l in range(nlayers)]),
    }
    zD = jnp.zeros((nlayers, 1, d_model), f32)
    p.update(
        bq=zD, bk=zD, bv=zD, bo=zD, b2=zD,
        b1=jnp.zeros((nlayers, 1, d_hid), f32),
        ln1w=jnp.ones((nlayers, 1, d_model), f32), ln1b=zD,
        ln2w=jnp.ones((nlayers, 1, d_model), f32), ln2b=zD,
    )
    return p


def positional_encoding(n, d_model):
    pos = jnp.arange(n, dtype=jnp.float32)[:, None]
    div = jnp.exp(jnp.arange(0, d_model, 2, dtype=jnp.float32)
                  * (-math.log(10000.0) / d_model))
    pe = jnp.zeros((n, d_model), jnp.float32)
    pe = pe.at[:, 0::2].set(jnp.sin(pos * div))
    pe = pe.at[:, 1::2].set(jnp.cos(pos * div))
    return pe


if __name__ == "__main__":
    # Small shapes consistent with the module's forward.
    N, L = 8, 4                   # dim0, dim1
    d_model, nhead, d_hid, nlayers = 32, 4, 64, 2

    key = jax.random.PRNGKey(0)
    kx, kp = jax.random.split(key)
    src = jax.random.normal(kx, (N, L, d_model), dtype=jnp.float32)
    params = init_params(kp, nlayers, d_model, d_hid)

    out = transformer_inner_forward(src, params, nhead)
    out = jax.block_until_ready(out)
    assert out.shape == (N, d_model)
    assert bool(jnp.all(jnp.isfinite(out)))

    ref = reference_forward(src, params, nhead)
    assert bool(jnp.allclose(out, ref, atol=2e-2, rtol=2e-2))
    print("KERNEL_OK")
</pallas_src>

<mosaic_0001>
module attributes {stable_mosaic.version = 11 : i64} {
  func.func @transformer_kernel(%arg0: i32, %arg1: memref<4x4x32xf32, #tpu.memory_space<vmem>>, %arg2: memref<4x1x32xf32, #tpu.memory_space<vmem>>, %arg3: memref<2x32x96xf32, #tpu.memory_space<vmem>>, %arg4: memref<2x1x96xf32, #tpu.memory_space<vmem>>, %arg5: memref<2x32x32xf32, #tpu.memory_space<vmem>>, %arg6: memref<2x1x32xf32, #tpu.memory_space<vmem>>, %arg7: memref<2x1x32xf32, #tpu.memory_space<vmem>>, %arg8: memref<2x1x32xf32, #tpu.memory_space<vmem>>, %arg9: memref<2x32x64xf32, #tpu.memory_space<vmem>>, %arg10: memref<2x1x64xf32, #tpu.memory_space<vmem>>, %arg11: memref<2x64x32xf32, #tpu.memory_space<vmem>>, %arg12: memref<2x1x32xf32, #tpu.memory_space<vmem>>, %arg13: memref<2x1x32xf32, #tpu.memory_space<vmem>>, %arg14: memref<2x1x32xf32, #tpu.memory_space<vmem>>, %arg15: memref<4x1x32xf32, #tpu.memory_space<vmem>>) attributes {dimension_semantics = [#tpu.dimension_semantics<parallel>], iteration_bounds = array<i64: 2>, scalar_prefetch = 0 : i64, scratch_operands = 0 : i64, tpu.core_type = #tpu.core_type<tc>, window_params = [{transform_indices = @transform_0, window_bounds = array<i64: 4, 4, 32>}, {transform_indices = @transform_1, window_bounds = array<i64: 4, 1, 32>}, {pipeline_mode = #tpu.pipeline_mode<synchronous>, transform_indices = @transform_2, window_bounds = array<i64: 2, 32, 96>}, {pipeline_mode = #tpu.pipeline_mode<synchronous>, transform_indices = @transform_3, window_bounds = array<i64: 2, 1, 96>}, {pipeline_mode = #tpu.pipeline_mode<synchronous>, transform_indices = @transform_4, window_bounds = array<i64: 2, 32, 32>}, {pipeline_mode = #tpu.pipeline_mode<synchronous>, transform_indices = @transform_5, window_bounds = array<i64: 2, 1, 32>}, {pipeline_mode = #tpu.pipeline_mode<synchronous>, transform_indices = @transform_6, window_bounds = array<i64: 2, 1, 32>}, {pipeline_mode = #tpu.pipeline_mode<synchronous>, transform_indices = @transform_7, window_bounds = array<i64: 2, 1, 32>}, {pipeline_mode = #tpu.pipeline_mode<synchronous>, transform_indices = @transform_8, window_bounds = array<i64: 2, 32, 64>}, {pipeline_mode = #tpu.pipeline_mode<synchronous>, transform_indices = @transform_9, window_bounds = array<i64: 2, 1, 64>}, {pipeline_mode = #tpu.pipeline_mode<synchronous>, transform_indices = @transform_10, window_bounds = array<i64: 2, 64, 32>}, {pipeline_mode = #tpu.pipeline_mode<synchronous>, transform_indices = @transform_11, window_bounds = array<i64: 2, 1, 32>}, {pipeline_mode = #tpu.pipeline_mode<synchronous>, transform_indices = @transform_12, window_bounds = array<i64: 2, 1, 32>}, {pipeline_mode = #tpu.pipeline_mode<synchronous>, transform_indices = @transform_13, window_bounds = array<i64: 2, 1, 32>}, {transform_indices = @transform_14, window_bounds = array<i64: 4, 1, 32>}]} {
    %c0 = arith.constant 0 : index
    %c0_0 = arith.constant 0 : index
    %c0_1 = arith.constant 0 : index
    %0 = vector.load %arg1[%c0, %c0_0, %c0_1] : memref<4x4x32xf32, #tpu.memory_space<vmem>>, vector<4x4x32xf32>
    %c0_2 = arith.constant 0 : index
    %c0_3 = arith.constant 0 : index
    %c0_4 = arith.constant 0 : index
    %1 = vector.load %arg2[%c0_2, %c0_3, %c0_4] : memref<4x1x32xf32, #tpu.memory_space<vmem>>, vector<4x1x32xf32>
    %2 = vector.broadcast %1 : vector<4x1x32xf32> to vector<4x4x32xf32>
    %3 = arith.addf %0, %2 : vector<4x4x32xf32>
    %4 = vector.shape_cast %3 : vector<4x4x32xf32> to vector<16x32xf32>
    %c0_5 = arith.constant 0 : index
    %c0_6 = arith.constant 0 : index
    %c0_7 = arith.constant 0 : index
    %5 = vector.load %arg3[%c0_5, %c0_6, %c0_7] : memref<2x32x96xf32, #tpu.memory_space<vmem>>, vector<1x32x96xf32>
    %6 = vector.shape_cast %5 : vector<1x32x96xf32> to vector<32x96xf32>
    %cst = arith.constant dense<0.000000e+00> : vector<16x96xf32>
    %7 = tpu.matmul %4, %6, %cst {dimension_numbers = #tpu.dot_dimension_numbers<[1], [0], [0], [1], [0, 0, 1, 1], [], []>} : vector<16x32xf32>, vector<32x96xf32>, vector<16x96xf32> -> vector<16x96xf32>
    %c0_8 = arith.constant 0 : index
    %c0_9 = arith.constant 0 : index
    %c0_10 = arith.constant 0 : index
    %8 = vector.load %arg4[%c0_8, %c0_9, %c0_10] : memref<2x1x96xf32, #tpu.memory_space<vmem>>, vector<1x1x96xf32>
    %9 = vector.shape_cast %8 : vector<1x1x96xf32> to vector<1x96xf32>
    %10 = vector.broadcast %9 : vector<1x96xf32> to vector<16x96xf32>
    %11 = arith.addf %7, %10 : vector<16x96xf32>
    %12 = vector.extract_strided_slice %11 {offsets = [0, 0], sizes = [16, 32], strides = [1, 1]} : vector<16x96xf32> to vector<16x32xf32>
    %13 = vector.extract_strided_slice %11 {offsets = [0, 32], sizes = [16, 32], strides = [1, 1]} : vector<16x96xf32> to vector<16x32xf32>
    %14 = vector.extract_strided_slice %11 {offsets = [0, 64], sizes = [16, 32], strides = [1, 1]} : vector<16x96xf32> to vector<16x32xf32>
    %15 = vector.extract_strided_slice %12 {offsets = [0, 0], sizes = [16, 8], strides = [1, 1]} : vector<16x32xf32> to vector<16x8xf32>
    %16 = vector.shape_cast %15 : vector<16x8xf32> to vector<4x4x8xf32>
    %17 = vector.extract_strided_slice %13 {offsets = [0, 0], sizes = [16, 8], strides = [1, 1]} : vector<16x32xf32> to vector<16x8xf32>
    %18 = vector.shape_cast %17 : vector<16x8xf32> to vector<4x4x8xf32>
    %19 = vector.extract_strided_slice %14 {offsets = [0, 0], sizes = [16, 8], strides = [1, 1]} : vector<16x32xf32> to vector<16x8xf32>
    %20 = vector.shape_cast %19 : vector<16x8xf32> to vector<4x4x8xf32>
    "tpu.trace_start"() <{level = 10 : i32, message = "bld,bmd->blm"}> : () -> ()
    %cst_11 = arith.constant dense<0.000000e+00> : vector<4x4x4xf32>
    %21 = tpu.matmul %16, %18, %cst_11 {dimension_numbers = #tpu.dot_dimension_numbers<[2], [2], [1], [1], [0, 0, 0, 1, 1, 1], [0], [0]>} : vector<4x4x8xf32>, vector<4x4x8xf32>, vector<4x4x4xf32> -> vector<4x4x4xf32>
    "tpu.trace_stop"() : () -> ()
    %cst_12 = arith.constant 0.353553385 : f32
    %22 = vector.broadcast %cst_12 : f32 to vector<4x4x4xf32>
    %23 = arith.mulf %21, %22 : vector<4x4x4xf32>
    %cst_13 = arith.constant dense<0xFF800000> : vector<4x4xf32>
    %24 = vector.multi_reduction <maximumf>, %23, %cst_13 [2] : vector<4x4x4xf32> to vector<4x4xf32>
    %25 = vector.shape_cast %24 : vector<4x4xf32> to vector<4x4x1xf32>
    %26 = vector.broadcast %25 : vector<4x4x1xf32> to vector<4x4x4xf32>
    %27 = arith.subf %23, %26 : vector<4x4x4xf32>
    %28 = math.exp %27 : vector<4x4x4xf32>
    %cst_14 = arith.constant dense<0.000000e+00> : vector<4x4xf32>
    %29 = vector.multi_reduction <add>, %28, %cst_14 [2] : vector<4x4x4xf32> to vector<4x4xf32>
    %30 = vector.shape_cast %29 : vector<4x4xf32> to vector<4x4x1xf32>
    %31 = tpu.reciprocal %30 {approx = true} : vector<4x4x1xf32> -> vector<4x4x1xf32>
    %32 = vector.broadcast %31 : vector<4x4x1xf32> to vector<4x4x4xf32>
    %33 = arith.mulf %28, %32 : vector<4x4x4xf32>
    "tpu.trace_start"() <{level = 10 : i32, message = "blm,bmd->bld"}> : () -> ()
    %cst_15 = arith.constant dense<0.000000e+00> : vector<4x4x8xf32>
    %34 = tpu.matmul %33, %20, %cst_15 {dimension_numbers = #tpu.dot_dimension_numbers<[2], [1], [1], [2], [0, 0, 0, 1, 1, 2], [0], [0]>} : vector<4x4x4xf32>, vector<4x4x8xf32>, vector<4x4x8xf32> -> vector<4x4x8xf32>
    "tpu.trace_stop"() : () -> ()
    %35 = vector.extract_strided_slice %12 {offsets = [0, 8], sizes = [16, 8], strides = [1, 1]} : vector<16x32xf32> to vector<16x8xf32>
    %36 = vector.shape_cast %35 : vector<16x8xf32> to vector<4x4x8xf32>
    %37 = vector.extract_strided_slice %13 {offsets = [0, 8], sizes = [16, 8], strides = [1, 1]} : vector<16x32xf32> to vector<16x8xf32>
    %38 = vector.shape_cast %37 : vector<16x8xf32> to vector<4x4x8xf32>
    %39 = vector.extract_strided_slice %14 {offsets = [0, 8], sizes = [16, 8], strides = [1, 1]} : vector<16x32xf32> to vector<16x8xf32>
    %40 = vector.shape_cast %39 : vector<16x8xf32> to vector<4x4x8xf32>
    "tpu.trace_start"() <{level = 10 : i32, message = "bld,bmd->blm"}> : () -> ()
    %cst_16 = arith.constant dense<0.000000e+00> : vector<4x4x4xf32>
    %41 = tpu.matmul %36, %38, %cst_16 {dimension_numbers = #tpu.dot_dimension_numbers<[2], [2], [1], [1], [0, 0, 0, 1, 1, 1], [0], [0]>} : vector<4x4x8xf32>, vector<4x4x8xf32>, vector<4x4x4xf32> -> vector<4x4x4xf32>
    "tpu.trace_stop"() : () -> ()
    %cst_17 = arith.constant 0.353553385 : f32
    %42 = vector.broadcast %cst_17 : f32 to vector<4x4x4xf32>
    %43 = arith.mulf %41, %42 : vector<4x4x4xf32>
    %cst_18 = arith.constant dense<0xFF800000> : vector<4x4xf32>
    %44 = vector.multi_reduction <maximumf>, %43, %cst_18 [2] : vector<4x4x4xf32> to vector<4x4xf32>
    %45 = vector.shape_cast %44 : vector<4x4xf32> to vector<4x4x1xf32>
    %46 = vector.broadcast %45 : vector<4x4x1xf32> to vector<4x4x4xf32>
    %47 = arith.subf %43, %46 : vector<4x4x4xf32>
    %48 = math.exp %47 : vector<4x4x4xf32>
    %cst_19 = arith.constant dense<0.000000e+00> : vector<4x4xf32>
    %49 = vector.multi_reduction <add>, %48, %cst_19 [2] : vector<4x4x4xf32> to vector<4x4xf32>
    %50 = vector.shape_cast %49 : vector<4x4xf32> to vector<4x4x1xf32>
    %51 = tpu.reciprocal %50 {approx = true} : vector<4x4x1xf32> -> vector<4x4x1xf32>
    %52 = vector.broadcast %51 : vector<4x4x1xf32> to vector<4x4x4xf32>
    %53 = arith.mulf %48, %52 : vector<4x4x4xf32>
    "tpu.trace_start"() <{level = 10 : i32, message = "blm,bmd->bld"}> : () -> ()
    %cst_20 = arith.constant dense<0.000000e+00> : vector<4x4x8xf32>
    %54 = tpu.matmul %53, %40, %cst_20 {dimension_numbers = #tpu.dot_dimension_numbers<[2], [1], [1], [2], [0, 0, 0, 1, 1, 2], [0], [0]>} : vector<4x4x4xf32>, vector<4x4x8xf32>, vector<4x4x8xf32> -> vector<4x4x8xf32>
    "tpu.trace_stop"() : () -> ()
    %55 = vector.extract_strided_slice %12 {offsets = [0, 16], sizes = [16, 8], strides = [1, 1]} : vector<16x32xf32> to vector<16x8xf32>
    %56 = vector.shape_cast %55 : vector<16x8xf32> to vector<4x4x8xf32>
    %57 = vector.extract_strided_slice %13 {offsets = [0, 16], sizes = [16, 8], strides = [1, 1]} : vector<16x32xf32> to vector<16x8xf32>
    %58 = vector.shape_cast %57 : vector<16x8xf32> to vector<4x4x8xf32>
    %59 = vector.extract_strided_slice %14 {offsets = [0, 16], sizes = [16, 8], strides = [1, 1]} : vector<16x32xf32> to vector<16x8xf32>
    %60 = vector.shape_cast %59 : vector<16x8xf32> to vector<4x4x8xf32>
    "tpu.trace_start"() <{level = 10 : i32, message = "bld,bmd->blm"}> : () -> ()
    %cst_21 = arith.constant dense<0.000000e+00> : vector<4x4x4xf32>
    %61 = tpu.matmul %56, %58, %cst_21 {dimension_numbers = #tpu.dot_dimension_numbers<[2], [2], [1], [1], [0, 0, 0, 1, 1, 1], [0], [0]>} : vector<4x4x8xf32>, vector<4x4x8xf32>, vector<4x4x4xf32> -> vector<4x4x4xf32>
    "tpu.trace_stop"() : () -> ()
    %cst_22 = arith.constant 0.353553385 : f32
    %62 = vector.broadcast %cst_22 : f32 to vector<4x4x4xf32>
    %63 = arith.mulf %61, %62 : vector<4x4x4xf32>
    %cst_23 = arith.constant dense<0xFF800000> : vector<4x4xf32>
    %64 = vector.multi_reduction <maximumf>, %63, %cst_23 [2] : vector<4x4x4xf32> to vector<4x4xf32>
    %65 = vector.shape_cast %64 : vector<4x4xf32> to vector<4x4x1xf32>
    %66 = vector.broadcast %65 : vector<4x4x1xf32> to vector<4x4x4xf32>
    %67 = arith.subf %63, %66 : vector<4x4x4xf32>
    %68 = math.exp %67 : vector<4x4x4xf32>
    %cst_24 = arith.constant dense<0.000000e+00> : vector<4x4xf32>
    %69 = vector.multi_reduction <add>, %68, %cst_24 [2] : vector<4x4x4xf32> to vector<4x4xf32>
    %70 = vector.shape_cast %69 : vector<4x4xf32> to vector<4x4x1xf32>
    %71 = tpu.reciprocal %70 {approx = true} : vector<4x4x1xf32> -> vector<4x4x1xf32>
    %72 = vector.broadcast %71 : vector<4x4x1xf32> to vector<4x4x4xf32>
    %73 = arith.mulf %68, %72 : vector<4x4x4xf32>
    "tpu.trace_start"() <{level = 10 : i32, message = "blm,bmd->bld"}> : () -> ()
    %cst_25 = arith.constant dense<0.000000e+00> : vector<4x4x8xf32>
    %74 = tpu.matmul %73, %60, %cst_25 {dimension_numbers = #tpu.dot_dimension_numbers<[2], [1], [1], [2], [0, 0, 0, 1, 1, 2], [0], [0]>} : vector<4x4x4xf32>, vector<4x4x8xf32>, vector<4x4x8xf32> -> vector<4x4x8xf32>
    "tpu.trace_stop"() : () -> ()
    %75 = vector.extract_strided_slice %12 {offsets = [0, 24], sizes = [16, 8], strides = [1, 1]} : vector<16x32xf32> to vector<16x8xf32>
    %76 = vector.shape_cast %75 : vector<16x8xf32> to vector<4x4x8xf32>
    %77 = vector.extract_strided_slice %13 {offsets = [0, 24], sizes = [16, 8], strides = [1, 1]} : vector<16x32xf32> to vector<16x8xf32>
    %78 = vector.shape_cast %77 : vector<16x8xf32> to vector<4x4x8xf32>
    %79 = vector.extract_strided_slice %14 {offsets = [0, 24], sizes = [16, 8], strides = [1, 1]} : vector<16x32xf32> to vector<16x8xf32>
    %80 = vector.shape_cast %79 : vector<16x8xf32> to vector<4x4x8xf32>
    "tpu.trace_start"() <{level = 10 : i32, message = "bld,bmd->blm"}> : () -> ()
    %cst_26 = arith.constant dense<0.000000e+00> : vector<4x4x4xf32>
    %81 = tpu.matmul %76, %78, %cst_26 {dimension_numbers = #tpu.dot_dimension_numbers<[2], [2], [1], [1], [0, 0, 0, 1, 1, 1], [0], [0]>} : vector<4x4x8xf32>, vector<4x4x8xf32>, vector<4x4x4xf32> -> vector<4x4x4xf32>
    "tpu.trace_stop"() : () -> ()
    %cst_27 = arith.constant 0.353553385 : f32
    %82 = vector.broadcast %cst_27 : f32 to vector<4x4x4xf32>
    %83 = arith.mulf %81, %82 : vector<4x4x4xf32>
    %cst_28 = arith.constant dense<0xFF800000> : vector<4x4xf32>
    %84 = vector.multi_reduction <maximumf>, %83, %cst_28 [2] : vector<4x4x4xf32> to vector<4x4xf32>
    %85 = vector.shape_cast %84 : vector<4x4xf32> to vector<4x4x1xf32>
    %86 = vector.broadcast %85 : vector<4x4x1xf32> to vector<4x4x4xf32>
    %87 = arith.subf %83, %86 : vector<4x4x4xf32>
    %88 = math.exp %87 : vector<4x4x4xf32>
    %cst_29 = arith.constant dense<0.000000e+00> : vector<4x4xf32>
    %89 = vector.multi_reduction <add>, %88, %cst_29 [2] : vector<4x4x4xf32> to vector<4x4xf32>
    %90 = vector.shape_cast %89 : vector<4x4xf32> to vector<4x4x1xf32>
    %91 = tpu.reciprocal %90 {approx = true} : vector<4x4x1xf32> -> vector<4x4x1xf32>
    %92 = vector.broadcast %91 : vector<4x4x1xf32> to vector<4x4x4xf32>
    %93 = arith.mulf %88, %92 : vector<4x4x4xf32>
    "tpu.trace_start"() <{level = 10 : i32, message = "blm,bmd->bld"}> : () -> ()
    %cst_30 = arith.constant dense<0.000000e+00> : vector<4x4x8xf32>
    %94 = tpu.matmul %93, %80, %cst_30 {dimension_numbers = #tpu.dot_dimension_numbers<[2], [1], [1], [2], [0, 0, 0, 1, 1, 2], [0], [0]>} : vector<4x4x4xf32>, vector<4x4x8xf32>, vector<4x4x8xf32> -> vector<4x4x8xf32>
    "tpu.trace_stop"() : () -> ()
    %95 = tpu.concatenate %34, %54, %74, %94 in 2 : vector<4x4x8xf32>, vector<4x4x8xf32>, vector<4x4x8xf32>, vector<4x4x8xf32> -> vector<4x4x32xf32>
    %96 = vector.shape_cast %95 : vector<4x4x32xf32> to vector<16x32xf32>
    %c0_31 = arith.constant 0 : index
    %c0_32 = arith.constant 0 : index
    %c0_33 = arith.constant 0 : index
    %97 = vector.load %arg5[%c0_31, %c0_32, %c0_33] : memref<2x32x32xf32, #tpu.memory_space<vmem>>, vector<1x32x32xf32>
    %98 = vector.shape_cast %97 : vector<1x32x32xf32> to vector<32x32xf32>
    %cst_34 = arith.constant dense<0.000000e+00> : vector<16x32xf32>
    %99 = tpu.matmul %96, %98, %cst_34 {dimension_numbers = #tpu.dot_dimension_numbers<[1], [0], [0], [1], [0, 0, 1, 1], [], []>} : vector<16x32xf32>, vector<32x32xf32>, vector<16x32xf32> -> vector<16x32xf32>
    %c0_35 = arith.constant 0 : index
    %c0_36 = arith.constant 0 : index
    %c0_37 = arith.constant 0 : index
    %100 = vector.load %arg6[%c0_35, %c0_36, %c0_37] : memref<2x1x32xf32, #tpu.memory_space<vmem>>, vector<1x1x32xf32>
    %101 = vector.shape_cast %100 : vector<1x1x32xf32> to vector<1x32xf32>
    %102 = vector.broadcast %101 : vector<1x32xf32> to vector<16x32xf32>
    %103 = arith.addf %99, %102 : vector<16x32xf32>
    %104 = arith.addf %4, %103 : vector<16x32xf32>
    %c0_38 = arith.constant 0 : index
    %c0_39 = arith.constant 0 : index
    %c0_40 = arith.constant 0 : index
    %105 = vector.load %arg7[%c0_38, %c0_39, %c0_40] : memref<2x1x32xf32, #tpu.memory_space<vmem>>, vector<1x1x32xf32>
    %106 = vector.shape_cast %105 : vector<1x1x32xf32> to vector<1x32xf32>
    %c0_41 = arith.constant 0 : index
    %c0_42 = arith.constant 0 : index
    %c0_43 = arith.constant 0 : index
    %107 = vector.load %arg8[%c0_41, %c0_42, %c0_43] : memref<2x1x32xf32, #tpu.memory_space<vmem>>, vector<1x1x32xf32>
    %108 = vector.shape_cast %107 : vector<1x1x32xf32> to vector<1x32xf32>
    %cst_44 = arith.constant dense<0.000000e+00> : vector<16xf32>
    %109 = vector.multi_reduction <add>, %104, %cst_44 [1] : vector<16x32xf32> to vector<16xf32>
    %110 = vector.shape_cast %109 : vector<16xf32> to vector<16x1xf32>
    %cst_45 = arith.constant 3.200000e+01 : f32
    %111 = vector.broadcast %cst_45 : f32 to vector<16x1xf32>
    %112 = arith.divf %110, %111 : vector<16x1xf32>
    %113 = vector.broadcast %112 : vector<16x1xf32> to vector<16x32xf32>
    %114 = arith.subf %104, %113 : vector<16x32xf32>
    %115 = arith.mulf %114, %114 : vector<16x32xf32>
    %cst_46 = arith.constant dense<0.000000e+00> : vector<16xf32>
    %116 = vector.multi_reduction <add>, %115, %cst_46 [1] : vector<16x32xf32> to vector<16xf32>
    %117 = vector.shape_cast %116 : vector<16xf32> to vector<16x1xf32>
    %cst_47 = arith.constant 3.200000e+01 : f32
    %118 = vector.broadcast %cst_47 : f32 to vector<16x1xf32>
    %119 = arith.divf %117, %118 : vector<16x1xf32>
    %120 = vector.broadcast %112 : vector<16x1xf32> to vector<16x32xf32>
    %121 = arith.subf %104, %120 : vector<16x32xf32>
    %cst_48 = arith.constant 9.99999974E-6 : f32
    %122 = vector.broadcast %cst_48 : f32 to vector<16x1xf32>
    %123 = arith.addf %119, %122 : vector<16x1xf32>
    %124 = math.rsqrt %123 : vector<16x1xf32>
    %125 = vector.broadcast %124 : vector<16x1xf32> to vector<16x32xf32>
    %126 = arith.mulf %121, %125 : vector<16x32xf32>
    %127 = vector.broadcast %106 : vector<1x32xf32> to vector<16x32xf32>
    %128 = arith.mulf %126, %127 : vector<16x32xf32>
    %129 = vector.broadcast %108 : vector<1x32xf32> to vector<16x32xf32>
    %130 = arith.addf %128, %129 : vector<16x32xf32>
    %c0_49 = arith.constant 0 : index
    %c0_50 = arith.constant 0 : index
    %c0_51 = arith.constant 0 : index
    %131 = vector.load %arg9[%c0_49, %c0_50, %c0_51] : memref<2x32x64xf32, #tpu.memory_space<vmem>>, vector<1x32x64xf32>
    %132 = vector.shape_cast %131 : vector<1x32x64xf32> to vector<32x64xf32>
    %cst_52 = arith.constant dense<0.000000e+00> : vector<16x64xf32>
    %133 = tpu.matmul %130, %132, %cst_52 {dimension_numbers = #tpu.dot_dimension_numbers<[1], [0], [0], [1], [0, 0, 1, 1], [], []>} : vector<16x32xf32>, vector<32x64xf32>, vector<16x64xf32> -> vector<16x64xf32>
    %c0_53 = arith.constant 0 : index
    %c0_54 = arith.constant 0 : index
    %c0_55 = arith.constant 0 : index
    %134 = vector.load %arg10[%c0_53, %c0_54, %c0_55] : memref<2x1x64xf32, #tpu.memory_space<vmem>>, vector<1x1x64xf32>
    %135 = vector.shape_cast %134 : vector<1x1x64xf32> to vector<1x64xf32>
    %136 = vector.broadcast %135 : vector<1x64xf32> to vector<16x64xf32>
    %137 = arith.addf %133, %136 : vector<16x64xf32>
    %cst_56 = arith.constant 0.000000e+00 : f32
    %138 = vector.broadcast %cst_56 : f32 to vector<16x64xf32>
    %139 = arith.maximumf %137, %138 : vector<16x64xf32>
    %c0_57 = arith.constant 0 : index
    %c0_58 = arith.constant 0 : index
    %c0_59 = arith.constant 0 : index
    %140 = vector.load %arg11[%c0_57, %c0_58, %c0_59] : memref<2x64x32xf32, #tpu.memory_space<vmem>>, vector<1x64x32xf32>
    %141 = vector.shape_cast %140 : vector<1x64x32xf32> to vector<64x32xf32>
    %cst_60 = arith.constant dense<0.000000e+00> : vector<16x32xf32>
    %142 = tpu.matmul %139, %141, %cst_60 {dimension_numbers = #tpu.dot_dimension_numbers<[1], [0], [0], [1], [0, 0, 1, 1], [], []>} : vector<16x64xf32>, vector<64x32xf32>, vector<16x32xf32> -> vector<16x32xf32>
    %c0_61 = arith.constant 0 : index
    %c0_62 = arith.constant 0 : index
    %c0_63 = arith.constant 0 : index
    %143 = vector.load %arg12[%c0_61, %c0_62, %c0_63] : memref<2x1x32xf32, #tpu.memory_space<vmem>>, vector<1x1x32xf32>
    %144 = vector.shape_cast %143 : vector<1x1x32xf32> to vector<1x32xf32>
    %145 = vector.broadcast %144 : vector<1x32xf32> to vector<16x32xf32>
    %146 = arith.addf %142, %145 : vector<16x32xf32>
    %147 = arith.addf %130, %146 : vector<16x32xf32>
    %c0_64 = arith.constant 0 : index
    %c0_65 = arith.constant 0 : index
    %c0_66 = arith.constant 0 : index
    %148 = vector.load %arg13[%c0_64, %c0_65, %c0_66] : memref<2x1x32xf32, #tpu.memory_space<vmem>>, vector<1x1x32xf32>
    %149 = vector.shape_cast %148 : vector<1x1x32xf32> to vector<1x32xf32>
    %c0_67 = arith.constant 0 : index
    %c0_68 = arith.constant 0 : index
    %c0_69 = arith.constant 0 : index
    %150 = vector.load %arg14[%c0_67, %c0_68, %c0_69] : memref<2x1x32xf32, #tpu.memory_space<vmem>>, vector<1x1x32xf32>
    %151 = vector.shape_cast %150 : vector<1x1x32xf32> to vector<1x32xf32>
    %cst_70 = arith.constant dense<0.000000e+00> : vector<16xf32>
    %152 = vector.multi_reduction <add>, %147, %cst_70 [1] : vector<16x32xf32> to vector<16xf32>
    %153 = vector.shape_cast %152 : vector<16xf32> to vector<16x1xf32>
    %cst_71 = arith.constant 3.200000e+01 : f32
    %154 = vector.broadcast %cst_71 : f32 to vector<16x1xf32>
    %155 = arith.divf %153, %154 : vector<16x1xf32>
    %156 = vector.broadcast %155 : vector<16x1xf32> to vector<16x32xf32>
    %157 = arith.subf %147, %156 : vector<16x32xf32>
    %158 = arith.mulf %157, %157 : vector<16x32xf32>
    %cst_72 = arith.constant dense<0.000000e+00> : vector<16xf32>
    %159 = vector.multi_reduction <add>, %158, %cst_72 [1] : vector<16x32xf32> to vector<16xf32>
    %160 = vector.shape_cast %159 : vector<16xf32> to vector<16x1xf32>
    %cst_73 = arith.constant 3.200000e+01 : f32
    %161 = vector.broadcast %cst_73 : f32 to vector<16x1xf32>
    %162 = arith.divf %160, %161 : vector<16x1xf32>
    %163 = vector.broadcast %155 : vector<16x1xf32> to vector<16x32xf32>
    %164 = arith.subf %147, %163 : vector<16x32xf32>
    %cst_74 = arith.constant 9.99999974E-6 : f32
    %165 = vector.broadcast %cst_74 : f32 to vector<16x1xf32>
    %166 = arith.addf %162, %165 : vector<16x1xf32>
    %167 = math.rsqrt %166 : vector<16x1xf32>
    %168 = vector.broadcast %167 : vector<16x1xf32> to vector<16x32xf32>
    %169 = arith.mulf %164, %168 : vector<16x32xf32>
    %170 = vector.broadcast %149 : vector<1x32xf32> to vector<16x32xf32>
    %171 = arith.mulf %169, %170 : vector<16x32xf32>
    %172 = vector.broadcast %151 : vector<1x32xf32> to vector<16x32xf32>
    %173 = arith.addf %171, %172 : vector<16x32xf32>
    %c1 = arith.constant 1 : index
    %c0_75 = arith.constant 0 : index
    %c0_76 = arith.constant 0 : index
    %174 = vector.load %arg3[%c1, %c0_75, %c0_76] : memref<2x32x96xf32, #tpu.memory_space<vmem>>, vector<1x32x96xf32>
    %175 = vector.shape_cast %174 : vector<1x32x96xf32> to vector<32x96xf32>
    %cst_77 = arith.constant dense<0.000000e+00> : vector<16x96xf32>
    %176 = tpu.matmul %173, %175, %cst_77 {dimension_numbers = #tpu.dot_dimension_numbers<[1], [0], [0], [1], [0, 0, 1, 1], [], []>} : vector<16x32xf32>, vector<32x96xf32>, vector<16x96xf32> -> vector<16x96xf32>
    %c1_78 = arith.constant 1 : index
    %c0_79 = arith.constant 0 : index
    %c0_80 = arith.constant 0 : index
    %177 = vector.load %arg4[%c1_78, %c0_79, %c0_80] : memref<2x1x96xf32, #tpu.memory_space<vmem>>, vector<1x1x96xf32>
    %178 = vector.shape_cast %177 : vector<1x1x96xf32> to vector<1x96xf32>
    %179 = vector.broadcast %178 : vector<1x96xf32> to vector<16x96xf32>
    %180 = arith.addf %176, %179 : vector<16x96xf32>
    %181 = vector.extract_strided_slice %180 {offsets = [0, 0], sizes = [16, 32], strides = [1, 1]} : vector<16x96xf32> to vector<16x32xf32>
    %182 = vector.extract_strided_slice %180 {offsets = [0, 32], sizes = [16, 32], strides = [1, 1]} : vector<16x96xf32> to vector<16x32xf32>
    %183 = vector.extract_strided_slice %180 {offsets = [0, 64], sizes = [16, 32], strides = [1, 1]} : vector<16x96xf32> to vector<16x32xf32>
    %184 = vector.extract_strided_slice %181 {offsets = [0, 0], sizes = [16, 8], strides = [1, 1]} : vector<16x32xf32> to vector<16x8xf32>
    %185 = vector.shape_cast %184 : vector<16x8xf32> to vector<4x4x8xf32>
    %186 = vector.extract_strided_slice %182 {offsets = [0, 0], sizes = [16, 8], strides = [1, 1]} : vector<16x32xf32> to vector<16x8xf32>
    %187 = vector.shape_cast %186 : vector<16x8xf32> to vector<4x4x8xf32>
    %188 = vector.extract_strided_slice %183 {offsets = [0, 0], sizes = [16, 8], strides = [1, 1]} : vector<16x32xf32> to vector<16x8xf32>
    %189 = vector.shape_cast %188 : vector<16x8xf32> to vector<4x4x8xf32>
    "tpu.trace_start"() <{level = 10 : i32, message = "bld,bmd->blm"}> : () -> ()
    %cst_81 = arith.constant dense<0.000000e+00> : vector<4x4x4xf32>
    %190 = tpu.matmul %185, %187, %cst_81 {dimension_numbers = #tpu.dot_dimension_numbers<[2], [2], [1], [1], [0, 0, 0, 1, 1, 1], [0], [0]>} : vector<4x4x8xf32>, vector<4x4x8xf32>, vector<4x4x4xf32> -> vector<4x4x4xf32>
    "tpu.trace_stop"() : () -> ()
    %cst_82 = arith.constant 0.353553385 : f32
    %191 = vector.broadcast %cst_82 : f32 to vector<4x4x4xf32>
    %192 = arith.mulf %190, %191 : vector<4x4x4xf32>
    %cst_83 = arith.constant dense<0xFF800000> : vector<4x4xf32>
    %193 = vector.multi_reduction <maximumf>, %192, %cst_83 [2] : vector<4x4x4xf32> to vector<4x4xf32>
    %194 = vector.shape_cast %193 : vector<4x4xf32> to vector<4x4x1xf32>
    %195 = vector.broadcast %194 : vector<4x4x1xf32> to vector<4x4x4xf32>
    %196 = arith.subf %192, %195 : vector<4x4x4xf32>
    %197 = math.exp %196 : vector<4x4x4xf32>
    %cst_84 = arith.constant dense<0.000000e+00> : vector<4x4xf32>
    %198 = vector.multi_reduction <add>, %197, %cst_84 [2] : vector<4x4x4xf32> to vector<4x4xf32>
    %199 = vector.shape_cast %198 : vector<4x4xf32> to vector<4x4x1xf32>
    %200 = tpu.reciprocal %199 {approx = true} : vector<4x4x1xf32> -> vector<4x4x1xf32>
    %201 = vector.broadcast %200 : vector<4x4x1xf32> to vector<4x4x4xf32>
    %202 = arith.mulf %197, %201 : vector<4x4x4xf32>
    "tpu.trace_start"() <{level = 10 : i32, message = "blm,bmd->bld"}> : () -> ()
    %cst_85 = arith.constant dense<0.000000e+00> : vector<4x4x8xf32>
    %203 = tpu.matmul %202, %189, %cst_85 {dimension_numbers = #tpu.dot_dimension_numbers<[2], [1], [1], [2], [0, 0, 0, 1, 1, 2], [0], [0]>} : vector<4x4x4xf32>, vector<4x4x8xf32>, vector<4x4x8xf32> -> vector<4x4x8xf32>
    "tpu.trace_stop"() : () -> ()
    %204 = vector.extract_strided_slice %181 {offsets = [0, 8], sizes = [16, 8], strides = [1, 1]} : vector<16x32xf32> to vector<16x8xf32>
    %205 = vector.shape_cast %204 : vector<16x8xf32> to vector<4x4x8xf32>
    %206 = vector.extract_strided_slice %182 {offsets = [0, 8], sizes = [16, 8], strides = [1, 1]} : vector<16x32xf32> to vector<16x8xf32>
    %207 = vector.shape_cast %206 : vector<16x8xf32> to vector<4x4x8xf32>
    %208 = vector.extract_strided_slice %183 {offsets = [0, 8], sizes = [16, 8], strides = [1, 1]} : vector<16x32xf32> to vector<16x8xf32>
    %209 = vector.shape_cast %208 : vector<16x8xf32> to vector<4x4x8xf32>
    "tpu.trace_start"() <{level = 10 : i32, message = "bld,bmd->blm"}> : () -> ()
    %cst_86 = arith.constant dense<0.000000e+00> : vector<4x4x4xf32>
    %210 = tpu.matmul %205, %207, %cst_86 {dimension_numbers = #tpu.dot_dimension_numbers<[2], [2], [1], [1], [0, 0, 0, 1, 1, 1], [0], [0]>} : vector<4x4x8xf32>, vector<4x4x8xf32>, vector<4x4x4xf32> -> vector<4x4x4xf32>
    "tpu.trace_stop"() : () -> ()
    %cst_87 = arith.constant 0.353553385 : f32
    %211 = vector.broadcast %cst_87 : f32 to vector<4x4x4xf32>
    %212 = arith.mulf %210, %211 : vector<4x4x4xf32>
    %cst_88 = arith.constant dense<0xFF800000> : vector<4x4xf32>
    %213 = vector.multi_reduction <maximumf>, %212, %cst_88 [2] : vector<4x4x4xf32> to vector<4x4xf32>
    %214 = vector.shape_cast %213 : vector<4x4xf32> to vector<4x4x1xf32>
    %215 = vector.broadcast %214 : vector<4x4x1xf32> to vector<4x4x4xf32>
    %216 = arith.subf %212, %215 : vector<4x4x4xf32>
    %217 = math.exp %216 : vector<4x4x4xf32>
    %cst_89 = arith.constant dense<0.000000e+00> : vector<4x4xf32>
    %218 = vector.multi_reduction <add>, %217, %cst_89 [2] : vector<4x4x4xf32> to vector<4x4xf32>
    %219 = vector.shape_cast %218 : vector<4x4xf32> to vector<4x4x1xf32>
    %220 = tpu.reciprocal %219 {approx = true} : vector<4x4x1xf32> -> vector<4x4x1xf32>
    %221 = vector.broadcast %220 : vector<4x4x1xf32> to vector<4x4x4xf32>
    %222 = arith.mulf %217, %221 : vector<4x4x4xf32>
    "tpu.trace_start"() <{level = 10 : i32, message = "blm,bmd->bld"}> : () -> ()
    %cst_90 = arith.constant dense<0.000000e+00> : vector<4x4x8xf32>
    %223 = tpu.matmul %222, %209, %cst_90 {dimension_numbers = #tpu.dot_dimension_numbers<[2], [1], [1], [2], [0, 0, 0, 1, 1, 2], [0], [0]>} : vector<4x4x4xf32>, vector<4x4x8xf32>, vector<4x4x8xf32> -> vector<4x4x8xf32>
    "tpu.trace_stop"() : () -> ()
    %224 = vector.extract_strided_slice %181 {offsets = [0, 16], sizes = [16, 8], strides = [1, 1]} : vector<16x32xf32> to vector<16x8xf32>
    %225 = vector.shape_cast %224 : vector<16x8xf32> to vector<4x4x8xf32>
    %226 = vector.extract_strided_slice %182 {offsets = [0, 16], sizes = [16, 8], strides = [1, 1]} : vector<16x32xf32> to vector<16x8xf32>
    %227 = vector.shape_cast %226 : vector<16x8xf32> to vector<4x4x8xf32>
    %228 = vector.extract_strided_slice %183 {offsets = [0, 16], sizes = [16, 8], strides = [1, 1]} : vector<16x32xf32> to vector<16x8xf32>
    %229 = vector.shape_cast %228 : vector<16x8xf32> to vector<4x4x8xf32>
    "tpu.trace_start"() <{level = 10 : i32, message = "bld,bmd->blm"}> : () -> ()
    %cst_91 = arith.constant dense<0.000000e+00> : vector<4x4x4xf32>
    %230 = tpu.matmul %225, %227, %cst_91 {dimension_numbers = #tpu.dot_dimension_numbers<[2], [2], [1], [1], [0, 0, 0, 1, 1, 1], [0], [0]>} : vector<4x4x8xf32>, vector<4x4x8xf32>, vector<4x4x4xf32> -> vector<4x4x4xf32>
    "tpu.trace_stop"() : () -> ()
    %cst_92 = arith.constant 0.353553385 : f32
    %231 = vector.broadcast %cst_92 : f32 to vector<4x4x4xf32>
    %232 = arith.mulf %230, %231 : vector<4x4x4xf32>
    %cst_93 = arith.constant dense<0xFF800000> : vector<4x4xf32>
    %233 = vector.multi_reduction <maximumf>, %232, %cst_93 [2] : vector<4x4x4xf32> to vector<4x4xf32>
    %234 = vector.shape_cast %233 : vector<4x4xf32> to vector<4x4x1xf32>
    %235 = vector.broadcast %234 : vector<4x4x1xf32> to vector<4x4x4xf32>
    %236 = arith.subf %232, %235 : vector<4x4x4xf32>
    %237 = math.exp %236 : vector<4x4x4xf32>
    %cst_94 = arith.constant dense<0.000000e+00> : vector<4x4xf32>
    %238 = vector.multi_reduction <add>, %237, %cst_94 [2] : vector<4x4x4xf32> to vector<4x4xf32>
    %239 = vector.shape_cast %238 : vector<4x4xf32> to vector<4x4x1xf32>
    %240 = tpu.reciprocal %239 {approx = true} : vector<4x4x1xf32> -> vector<4x4x1xf32>
    %241 = vector.broadcast %240 : vector<4x4x1xf32> to vector<4x4x4xf32>
    %242 = arith.mulf %237, %241 : vector<4x4x4xf32>
    "tpu.trace_start"() <{level = 10 : i32, message = "blm,bmd->bld"}> : () -> ()
    %cst_95 = arith.constant dense<0.000000e+00> : vector<4x4x8xf32>
    %243 = tpu.matmul %242, %229, %cst_95 {dimension_numbers = #tpu.dot_dimension_numbers<[2], [1], [1], [2], [0, 0, 0, 1, 1, 2], [0], [0]>} : vector<4x4x4xf32>, vector<4x4x8xf32>, vector<4x4x8xf32> -> vector<4x4x8xf32>
    "tpu.trace_stop"() : () -> ()
    %244 = vector.extract_strided_slice %181 {offsets = [0, 24], sizes = [16, 8], strides = [1, 1]} : vector<16x32xf32> to vector<16x8xf32>
    %245 = vector.shape_cast %244 : vector<16x8xf32> to vector<4x4x8xf32>
    %246 = vector.extract_strided_slice %182 {offsets = [0, 24], sizes = [16, 8], strides = [1, 1]} : vector<16x32xf32> to vector<16x8xf32>
    %247 = vector.shape_cast %246 : vector<16x8xf32> to vector<4x4x8xf32>
    %248 = vector.extract_strided_slice %183 {offsets = [0, 24], sizes = [16, 8], strides = [1, 1]} : vector<16x32xf32> to vector<16x8xf32>
    %249 = vector.shape_cast %248 : vector<16x8xf32> to vector<4x4x8xf32>
    "tpu.trace_start"() <{level = 10 : i32, message = "bld,bmd->blm"}> : () -> ()
    %cst_96 = arith.constant dense<0.000000e+00> : vector<4x4x4xf32>
    %250 = tpu.matmul %245, %247, %cst_96 {dimension_numbers = #tpu.dot_dimension_numbers<[2], [2], [1], [1], [0, 0, 0, 1, 1, 1], [0], [0]>} : vector<4x4x8xf32>, vector<4x4x8xf32>, vector<4x4x4xf32> -> vector<4x4x4xf32>
    "tpu.trace_stop"() : () -> ()
    %cst_97 = arith.constant 0.353553385 : f32
    %251 = vector.broadcast %cst_97 : f32 to vector<4x4x4xf32>
    %252 = arith.mulf %250, %251 : vector<4x4x4xf32>
    %cst_98 = arith.constant dense<0xFF800000> : vector<4x4xf32>
    %253 = vector.multi_reduction <maximumf>, %252, %cst_98 [2] : vector<4x4x4xf32> to vector<4x4xf32>
    %254 = vector.shape_cast %253 : vector<4x4xf32> to vector<4x4x1xf32>
    %255 = vector.broadcast %254 : vector<4x4x1xf32> to vector<4x4x4xf32>
    %256 = arith.subf %252, %255 : vector<4x4x4xf32>
    %257 = math.exp %256 : vector<4x4x4xf32>
    %cst_99 = arith.constant dense<0.000000e+00> : vector<4x4xf32>
    %258 = vector.multi_reduction <add>, %257, %cst_99 [2] : vector<4x4x4xf32> to vector<4x4xf32>
    %259 = vector.shape_cast %258 : vector<4x4xf32> to vector<4x4x1xf32>
    %260 = tpu.reciprocal %259 {approx = true} : vector<4x4x1xf32> -> vector<4x4x1xf32>
    %261 = vector.broadcast %260 : vector<4x4x1xf32> to vector<4x4x4xf32>
    %262 = arith.mulf %257, %261 : vector<4x4x4xf32>
    "tpu.trace_start"() <{level = 10 : i32, message = "blm,bmd->bld"}> : () -> ()
    %cst_100 = arith.constant dense<0.000000e+00> : vector<4x4x8xf32>
    %263 = tpu.matmul %262, %249, %cst_100 {dimension_numbers = #tpu.dot_dimension_numbers<[2], [1], [1], [2], [0, 0, 0, 1, 1, 2], [0], [0]>} : vector<4x4x4xf32>, vector<4x4x8xf32>, vector<4x4x8xf32> -> vector<4x4x8xf32>
    "tpu.trace_stop"() : () -> ()
    %264 = tpu.concatenate %203, %223, %243, %263 in 2 : vector<4x4x8xf32>, vector<4x4x8xf32>, vector<4x4x8xf32>, vector<4x4x8xf32> -> vector<4x4x32xf32>
    %265 = vector.shape_cast %264 : vector<4x4x32xf32> to vector<16x32xf32>
    %c1_101 = arith.constant 1 : index
    %c0_102 = arith.constant 0 : index
    %c0_103 = arith.constant 0 : index
    %266 = vector.load %arg5[%c1_101, %c0_102, %c0_103] : memref<2x32x32xf32, #tpu.memory_space<vmem>>, vector<1x32x32xf32>
    %267 = vector.shape_cast %266 : vector<1x32x32xf32> to vector<32x32xf32>
    %cst_104 = arith.constant dense<0.000000e+00> : vector<16x32xf32>
    %268 = tpu.matmul %265, %267, %cst_104 {dimension_numbers = #tpu.dot_dimension_numbers<[1], [0], [0], [1], [0, 0, 1, 1], [], []>} : vector<16x32xf32>, vector<32x32xf32>, vector<16x32xf32> -> vector<16x32xf32>
    %c1_105 = arith.constant 1 : index
    %c0_106 = arith.constant 0 : index
    %c0_107 = arith.constant 0 : index
    %269 = vector.load %arg6[%c1_105, %c0_106, %c0_107] : memref<2x1x32xf32, #tpu.memory_space<vmem>>, vector<1x1x32xf32>
    %270 = vector.shape_cast %269 : vector<1x1x32xf32> to vector<1x32xf32>
    %271 = vector.broadcast %270 : vector<1x32xf32> to vector<16x32xf32>
    %272 = arith.addf %268, %271 : vector<16x32xf32>
    %273 = arith.addf %173, %272 : vector<16x32xf32>
    %c1_108 = arith.constant 1 : index
    %c0_109 = arith.constant 0 : index
    %c0_110 = arith.constant 0 : index
    %274 = vector.load %arg7[%c1_108, %c0_109, %c0_110] : memref<2x1x32xf32, #tpu.memory_space<vmem>>, vector<1x1x32xf32>
    %275 = vector.shape_cast %274 : vector<1x1x32xf32> to vector<1x32xf32>
    %c1_111 = arith.constant 1 : index
    %c0_112 = arith.constant 0 : index
    %c0_113 = arith.constant 0 : index
    %276 = vector.load %arg8[%c1_111, %c0_112, %c0_113] : memref<2x1x32xf32, #tpu.memory_space<vmem>>, vector<1x1x32xf32>
    %277 = vector.shape_cast %276 : vector<1x1x32xf32> to vector<1x32xf32>
    %cst_114 = arith.constant dense<0.000000e+00> : vector<16xf32>
    %278 = vector.multi_reduction <add>, %273, %cst_114 [1] : vector<16x32xf32> to vector<16xf32>
    %279 = vector.shape_cast %278 : vector<16xf32> to vector<16x1xf32>
    %cst_115 = arith.constant 3.200000e+01 : f32
    %280 = vector.broadcast %cst_115 : f32 to vector<16x1xf32>
    %281 = arith.divf %279, %280 : vector<16x1xf32>
    %282 = vector.broadcast %281 : vector<16x1xf32> to vector<16x32xf32>
    %283 = arith.subf %273, %282 : vector<16x32xf32>
    %284 = arith.mulf %283, %283 : vector<16x32xf32>
    %cst_116 = arith.constant dense<0.000000e+00> : vector<16xf32>
    %285 = vector.multi_reduction <add>, %284, %cst_116 [1] : vector<16x32xf32> to vector<16xf32>
    %286 = vector.shape_cast %285 : vector<16xf32> to vector<16x1xf32>
    %cst_117 = arith.constant 3.200000e+01 : f32
    %287 = vector.broadcast %cst_117 : f32 to vector<16x1xf32>
    %288 = arith.divf %286, %287 : vector<16x1xf32>
    %289 = vector.broadcast %281 : vector<16x1xf32> to vector<16x32xf32>
    %290 = arith.subf %273, %289 : vector<16x32xf32>
    %cst_118 = arith.constant 9.99999974E-6 : f32
    %291 = vector.broadcast %cst_118 : f32 to vector<16x1xf32>
    %292 = arith.addf %288, %291 : vector<16x1xf32>
    %293 = math.rsqrt %292 : vector<16x1xf32>
    %294 = vector.broadcast %293 : vector<16x1xf32> to vector<16x32xf32>
    %295 = arith.mulf %290, %294 : vector<16x32xf32>
    %296 = vector.broadcast %275 : vector<1x32xf32> to vector<16x32xf32>
    %297 = arith.mulf %295, %296 : vector<16x32xf32>
    %298 = vector.broadcast %277 : vector<1x32xf32> to vector<16x32xf32>
    %299 = arith.addf %297, %298 : vector<16x32xf32>
    %c1_119 = arith.constant 1 : index
    %c0_120 = arith.constant 0 : index
    %c0_121 = arith.constant 0 : index
    %300 = vector.load %arg9[%c1_119, %c0_120, %c0_121] : memref<2x32x64xf32, #tpu.memory_space<vmem>>, vector<1x32x64xf32>
    %301 = vector.shape_cast %300 : vector<1x32x64xf32> to vector<32x64xf32>
    %cst_122 = arith.constant dense<0.000000e+00> : vector<16x64xf32>
    %302 = tpu.matmul %299, %301, %cst_122 {dimension_numbers = #tpu.dot_dimension_numbers<[1], [0], [0], [1], [0, 0, 1, 1], [], []>} : vector<16x32xf32>, vector<32x64xf32>, vector<16x64xf32> -> vector<16x64xf32>
    %c1_123 = arith.constant 1 : index
    %c0_124 = arith.constant 0 : index
    %c0_125 = arith.constant 0 : index
    %303 = vector.load %arg10[%c1_123, %c0_124, %c0_125] : memref<2x1x64xf32, #tpu.memory_space<vmem>>, vector<1x1x64xf32>
    %304 = vector.shape_cast %303 : vector<1x1x64xf32> to vector<1x64xf32>
    %305 = vector.broadcast %304 : vector<1x64xf32> to vector<16x64xf32>
    %306 = arith.addf %302, %305 : vector<16x64xf32>
    %cst_126 = arith.constant 0.000000e+00 : f32
    %307 = vector.broadcast %cst_126 : f32 to vector<16x64xf32>
    %308 = arith.maximumf %306, %307 : vector<16x64xf32>
    %c1_127 = arith.constant 1 : index
    %c0_128 = arith.constant 0 : index
    %c0_129 = arith.constant 0 : index
    %309 = vector.load %arg11[%c1_127, %c0_128, %c0_129] : memref<2x64x32xf32, #tpu.memory_space<vmem>>, vector<1x64x32xf32>
    %310 = vector.shape_cast %309 : vector<1x64x32xf32> to vector<64x32xf32>
    %cst_130 = arith.constant dense<0.000000e+00> : vector<16x32xf32>
    %311 = tpu.matmul %308, %310, %cst_130 {dimension_numbers = #tpu.dot_dimension_numbers<[1], [0], [0], [1], [0, 0, 1, 1], [], []>} : vector<16x64xf32>, vector<64x32xf32>, vector<16x32xf32> -> vector<16x32xf32>
    %c1_131 = arith.constant 1 : index
    %c0_132 = arith.constant 0 : index
    %c0_133 = arith.constant 0 : index
    %312 = vector.load %arg12[%c1_131, %c0_132, %c0_133] : memref<2x1x32xf32, #tpu.memory_space<vmem>>, vector<1x1x32xf32>
    %313 = vector.shape_cast %312 : vector<1x1x32xf32> to vector<1x32xf32>
    %314 = vector.broadcast %313 : vector<1x32xf32> to vector<16x32xf32>
    %315 = arith.addf %311, %314 : vector<16x32xf32>
    %316 = arith.addf %299, %315 : vector<16x32xf32>
    %c1_134 = arith.constant 1 : index
    %c0_135 = arith.constant 0 : index
    %c0_136 = arith.constant 0 : index
    %317 = vector.load %arg13[%c1_134, %c0_135, %c0_136] : memref<2x1x32xf32, #tpu.memory_space<vmem>>, vector<1x1x32xf32>
    %318 = vector.shape_cast %317 : vector<1x1x32xf32> to vector<1x32xf32>
    %c1_137 = arith.constant 1 : index
    %c0_138 = arith.constant 0 : index
    %c0_139 = arith.constant 0 : index
    %319 = vector.load %arg14[%c1_137, %c0_138, %c0_139] : memref<2x1x32xf32, #tpu.memory_space<vmem>>, vector<1x1x32xf32>
    %320 = vector.shape_cast %319 : vector<1x1x32xf32> to vector<1x32xf32>
    %cst_140 = arith.constant dense<0.000000e+00> : vector<16xf32>
    %321 = vector.multi_reduction <add>, %316, %cst_140 [1] : vector<16x32xf32> to vector<16xf32>
    %322 = vector.shape_cast %321 : vector<16xf32> to vector<16x1xf32>
    %cst_141 = arith.constant 3.200000e+01 : f32
    %323 = vector.broadcast %cst_141 : f32 to vector<16x1xf32>
    %324 = arith.divf %322, %323 : vector<16x1xf32>
    %325 = vector.broadcast %324 : vector<16x1xf32> to vector<16x32xf32>
    %326 = arith.subf %316, %325 : vector<16x32xf32>
    %327 = arith.mulf %326, %326 : vector<16x32xf32>
    %cst_142 = arith.constant dense<0.000000e+00> : vector<16xf32>
    %328 = vector.multi_reduction <add>, %327, %cst_142 [1] : vector<16x32xf32> to vector<16xf32>
    %329 = vector.shape_cast %328 : vector<16xf32> to vector<16x1xf32>
    %cst_143 = arith.constant 3.200000e+01 : f32
    %330 = vector.broadcast %cst_143 : f32 to vector<16x1xf32>
    %331 = arith.divf %329, %330 : vector<16x1xf32>
    %332 = vector.broadcast %324 : vector<16x1xf32> to vector<16x32xf32>
    %333 = arith.subf %316, %332 : vector<16x32xf32>
    %cst_144 = arith.constant 9.99999974E-6 : f32
    %334 = vector.broadcast %cst_144 : f32 to vector<16x1xf32>
    %335 = arith.addf %331, %334 : vector<16x1xf32>
    %336 = math.rsqrt %335 : vector<16x1xf32>
    %337 = vector.broadcast %336 : vector<16x1xf32> to vector<16x32xf32>
    %338 = arith.mulf %333, %337 : vector<16x32xf32>
    %339 = vector.broadcast %318 : vector<1x32xf32> to vector<16x32xf32>
    %340 = arith.mulf %338, %339 : vector<16x32xf32>
    %341 = vector.broadcast %320 : vector<1x32xf32> to vector<16x32xf32>
    %342 = arith.addf %340, %341 : vector<16x32xf32>
    %343 = vector.shape_cast %342 : vector<16x32xf32> to vector<4x4x32xf32>
    %cst_145 = arith.constant dense<0.000000e+00> : vector<4x32xf32>
    %344 = vector.multi_reduction <add>, %343, %cst_145 [1] : vector<4x4x32xf32> to vector<4x32xf32>
    %345 = vector.shape_cast %344 : vector<4x32xf32> to vector<4x1x32xf32>
    %cst_146 = arith.constant 4.000000e+00 : f32
    %346 = vector.broadcast %cst_146 : f32 to vector<4x1x32xf32>
    %347 = arith.divf %345, %346 : vector<4x1x32xf32>
    %c0_147 = arith.constant 0 : index
    %c0_148 = arith.constant 0 : index
    %c0_149 = arith.constant 0 : index
    %348 = vector.load %arg15[%c0_147, %c0_148, %c0_149] : memref<4x1x32xf32, #tpu.memory_space<vmem>>, vector<4x1x32xf32>
    tpu.vector_store %arg15[%c0_147, %c0_148, %c0_149], %347 {strides = array<i32>} : memref<4x1x32xf32, #tpu.memory_space<vmem>>, vector<4x1x32xf32>,
    return
  }
  func.func @transform_0(%arg0: i32) -> (i32, i32, i32) {
    %c0_i32 = arith.constant 0 : i32
    %c0_i32_0 = arith.constant 0 : i32
    %c0_i32_1 = arith.constant 0 : i32
    return %arg0, %c0_i32, %c0_i32_0 : i32, i32, i32
  }
  func.func @transform_1(%arg0: i32) -> (i32, i32, i32) {
    %c0_i32 = arith.constant 0 : i32
    %c0_i32_0 = arith.constant 0 : i32
    %c0_i32_1 = arith.constant 0 : i32
    return %arg0, %c0_i32, %c0_i32_0 : i32, i32, i32
  }
  func.func @transform_2(%arg0: i32) -> (i32, i32, i32) {
    %c0_i32 = arith.constant 0 : i32
    %c0_i32_0 = arith.constant 0 : i32
    %c0_i32_1 = arith.constant 0 : i32
    %c0_i32_2 = arith.constant 0 : i32
    return %c0_i32, %c0_i32_0, %c0_i32_1 : i32, i32, i32
  }
  func.func @transform_3(%arg0: i32) -> (i32, i32, i32) {
    %c0_i32 = arith.constant 0 : i32
    %c0_i32_0 = arith.constant 0 : i32
    %c0_i32_1 = arith.constant 0 : i32
    %c0_i32_2 = arith.constant 0 : i32
    return %c0_i32, %c0_i32_0, %c0_i32_1 : i32, i32, i32
  }
  func.func @transform_4(%arg0: i32) -> (i32, i32, i32) {
    %c0_i32 = arith.constant 0 : i32
    %c0_i32_0 = arith.constant 0 : i32
    %c0_i32_1 = arith.constant 0 : i32
    %c0_i32_2 = arith.constant 0 : i32
    return %c0_i32, %c0_i32_0, %c0_i32_1 : i32, i32, i32
  }
  func.func @transform_5(%arg0: i32) -> (i32, i32, i32) {
    %c0_i32 = arith.constant 0 : i32
    %c0_i32_0 = arith.constant 0 : i32
    %c0_i32_1 = arith.constant 0 : i32
    %c0_i32_2 = arith.constant 0 : i32
    return %c0_i32, %c0_i32_0, %c0_i32_1 : i32, i32, i32
  }
  func.func @transform_6(%arg0: i32) -> (i32, i32, i32) {
    %c0_i32 = arith.constant 0 : i32
    %c0_i32_0 = arith.constant 0 : i32
    %c0_i32_1 = arith.constant 0 : i32
    %c0_i32_2 = arith.constant 0 : i32
    return %c0_i32, %c0_i32_0, %c0_i32_1 : i32, i32, i32
  }
  func.func @transform_7(%arg0: i32) -> (i32, i32, i32) {
    %c0_i32 = arith.constant 0 : i32
    %c0_i32_0 = arith.constant 0 : i32
    %c0_i32_1 = arith.constant 0 : i32
    %c0_i32_2 = arith.constant 0 : i32
    return %c0_i32, %c0_i32_0, %c0_i32_1 : i32, i32, i32
  }
  func.func @transform_8(%arg0: i32) -> (i32, i32, i32) {
    %c0_i32 = arith.constant 0 : i32
    %c0_i32_0 = arith.constant 0 : i32
    %c0_i32_1 = arith.constant 0 : i32
    %c0_i32_2 = arith.constant 0 : i32
    return %c0_i32, %c0_i32_0, %c0_i32_1 : i32, i32, i32
  }
  func.func @transform_9(%arg0: i32) -> (i32, i32, i32) {
    %c0_i32 = arith.constant 0 : i32
    %c0_i32_0 = arith.constant 0 : i32
    %c0_i32_1 = arith.constant 0 : i32
    %c0_i32_2 = arith.constant 0 : i32
    return %c0_i32, %c0_i32_0, %c0_i32_1 : i32, i32, i32
  }
  func.func @transform_10(%arg0: i32) -> (i32, i32, i32) {
    %c0_i32 = arith.constant 0 : i32
    %c0_i32_0 = arith.constant 0 : i32
    %c0_i32_1 = arith.constant 0 : i32
    %c0_i32_2 = arith.constant 0 : i32
    return %c0_i32, %c0_i32_0, %c0_i32_1 : i32, i32, i32
  }
  func.func @transform_11(%arg0: i32) -> (i32, i32, i32) {
    %c0_i32 = arith.constant 0 : i32
    %c0_i32_0 = arith.constant 0 : i32
    %c0_i32_1 = arith.constant 0 : i32
    %c0_i32_2 = arith.constant 0 : i32
    return %c0_i32, %c0_i32_0, %c0_i32_1 : i32, i32, i32
  }
  func.func @transform_12(%arg0: i32) -> (i32, i32, i32) {
    %c0_i32 = arith.constant 0 : i32
    %c0_i32_0 = arith.constant 0 : i32
    %c0_i32_1 = arith.constant 0 : i32
    %c0_i32_2 = arith.constant 0 : i32
    return %c0_i32, %c0_i32_0, %c0_i32_1 : i32, i32, i32
  }
  func.func @transform_13(%arg0: i32) -> (i32, i32, i32) {
    %c0_i32 = arith.constant 0 : i32
    %c0_i32_0 = arith.constant 0 : i32
    %c0_i32_1 = arith.constant 0 : i32
    %c0_i32_2 = arith.constant 0 : i32
    return %c0_i32, %c0_i32_0, %c0_i32_1 : i32, i32, i32
  }
  func.func @transform_14(%arg0: i32) -> (i32, i32, i32) {
    %c0_i32 = arith.constant 0 : i32
    %c0_i32_0 = arith.constant 0 : i32
    %c0_i32_1 = arith.constant 0 : i32
    return %arg0, %c0_i32, %c0_i32_0 : i32, i32, i32
  }
}

</mosaic_0001>

<llo_original>
// kernel: tpu_custom_call.1
$region0: #{tpu_custom_call.1}
  #allocation0 [shape = 'u32[]', space=smem, size = 0x4, offset = 0x4, fixed_abs, tag = 'smem constant byte address 0x4 - core index']
  #allocation1 [shape = 'u32[144,128]{1,0:T(1,128)}', space=vmem, size = 0x12000, scoped, tag = 'internal scratch']
  %s0 = inlined_call_operand.hbm [shape: f32[8,4,32], index: 0, kind: input, shape index: {}]
  %s1 = inlined_call_operand.hbm [shape: f32[8,1,32], index: 1, kind: input, shape index: {}]
  %s2 = inlined_call_operand.vmem [shape: f32[2,32,96], index: 2, kind: input, shape index: {}]
  %s3 = inlined_call_operand.vmem [shape: f32[2,1,96], index: 3, kind: input, shape index: {}]
  %s4 = inlined_call_operand.vmem [shape: f32[2,32,32], index: 4, kind: input, shape index: {}]
  %s5 = inlined_call_operand.vmem [shape: f32[2,1,32], index: 5, kind: input, shape index: {}]
  %s6 = inlined_call_operand.vmem [shape: f32[2,1,32], index: 6, kind: input, shape index: {}]
  %s7 = inlined_call_operand.vmem [shape: f32[2,1,32], index: 7, kind: input, shape index: {}]
  %s8 = inlined_call_operand.vmem [shape: f32[2,32,64], index: 8, kind: input, shape index: {}]
  %s9 = inlined_call_operand.vmem [shape: f32[2,1,64], index: 9, kind: input, shape index: {}]
  %s10 = inlined_call_operand.vmem [shape: f32[2,64,32], index: 10, kind: input, shape index: {}]
  %s11 = inlined_call_operand.vmem [shape: f32[2,1,32], index: 11, kind: input, shape index: {}]
  %s12 = inlined_call_operand.vmem [shape: f32[2,1,32], index: 12, kind: input, shape index: {}]
  %s13 = inlined_call_operand.vmem [shape: f32[2,1,32], index: 13, kind: input, shape index: {}]
  %s14 = inlined_call_operand.hbm [shape: f32[8,1,32], index: 14, kind: output, shape index: {}]
  %s15 = sld [smem:[#allocation0]]
  $region97: #{tpu_custom_call.1} parent=0
    _
  %s17 = ssub.s32 1, %s15
  %s18 = scalar_select 0, %s17, %s15
  $region1: #{tpu_custom_call.1} parent=0
    #allocation2 [shape = 'u8[16384]{0}', space=vmem, size = 0x4000, scoped, tag = 'input window, operand 0']
    #allocation3 [shape = 's32[2]{0}', space=sflag, size = 0x8, scoped, tag = 'scoped memory for tpu_custom_call.1']
    #allocation4 [shape = 's32[2]{0}', space=sflag, size = 0x8, scoped, tag = 'scoped memory for tpu_custom_call.1']
    #allocation5 [shape = 'u8[4096]{0}', space=vmem, size = 0x1000, scoped, tag = 'input window, operand 1']
    #allocation6 [shape = 's32[2]{0}', space=sflag, size = 0x8, scoped, tag = 'scoped memory for tpu_custom_call.1']
    #allocation7 [shape = 'u8[4096]{0}', space=vmem, size = 0x1000, scoped, tag = 'output window, operand 0']
    %19 = vsyncpa [#allocation3], 0
    %s20 = scalar_lea.sflag [#allocation3], 1
    %21 = vsyncpa %s20, 0
    %22 = vsyncpa [#allocation6], 0
    %s23 = scalar_lea.sflag [#allocation6], 1
    %24 = vsyncpa %s23, 0
    %25 = vsyncpa [#allocation4], 0
    %s26 = scalar_lea.sflag [#allocation4], 1
    %27 = vsyncpa %s26, 0
    loop: start=0, step=1, limit=4
    $region2: #{tpu_custom_call.1} parent=1 // loop_pre_header
      _
    $region3: #{tpu_custom_call.1} parent=1 // loop_header
      %s29 = sphi 0, %s33
      %p30 = scmp.ge.s32.totalorder %s29, 4
      %s39 = sphi 0, %s41
      %s42 = sphi 0, %s39
      %s43 = sphi 0, %s42
      %s59 = sphi 0, %s43
      %s65 = sphi 0, %s67
      %s68 = sphi 0, %s65
      %s69 = sphi 0, %s68
      %s85 = sphi 0, %s69
      %s89 = sphi 0, %s89
      %s91 = sphi 0, %s89
      %s92 = sphi 0, %s91
      %s106 = sphi 0, %s92
      %s110 = sphi 0, %s110
      %s112 = sphi 0, %s110
      %s113 = sphi 0, %s112
      %s127 = sphi 0, %s113
      %s131 = sphi 0, %s131
      %s133 = sphi 0, %s131
      %s134 = sphi 0, %s133
      %s148 = sphi 0, %s134
      %s152 = sphi 0, %s152
      %s154 = sphi 0, %s152
      %s155 = sphi 0, %s154
      %s169 = sphi 0, %s155
      %s173 = sphi 0, %s173
      %s175 = sphi 0, %s173
      %s176 = sphi 0, %s175
      %s190 = sphi 0, %s176
      %s194 = sphi 0, %s194
      %s196 = sphi 0, %s194
      %s197 = sphi 0, %s196
      %s211 = sphi 0, %s197
      %s215 = sphi 0, %s215
      %s217 = sphi 0, %s215
      %s218 = sphi 0, %s217
      %s232 = sphi 0, %s218
      %s236 = sphi 0, %s236
      %s238 = sphi 0, %s236
      %s239 = sphi 0, %s238
      %s253 = sphi 0, %s239
      %s257 = sphi 0, %s257
      %s259 = sphi 0, %s257
      %s260 = sphi 0, %s259
      %s274 = sphi 0, %s260
      %s278 = sphi 0, %s278
      %s280 = sphi 0, %s278
      %s281 = sphi 0, %s280
      %s295 = sphi 0, %s281
      %s299 = sphi 0, %s299
      %s301 = sphi 0, %s299
      %s302 = sphi 0, %s301
      %s316 = sphi 0, %s302
      %s320 = sphi 0, %s320
      %s322 = sphi 0, %s320
      %s323 = sphi 0, %s322
      %s337 = sphi 0, %s323
      %s343 = sphi 0, %s345
      %s346 = sphi 0, %s343
      %s347 = sphi 0, %s346
      %s363 = sphi 0, %s347
    $region4: #{tpu_custom_call.1} parent=1 // loop_header_branch
      %32 = sbr.rel (%p30) target = $region8
    $region5: #{tpu_custom_call.1} parent=1 // loop_body
      %s34 = ssub.s32 %s29, 1
      %s35 = ssub.s32 %s29, 2
      %s36 = sadd.s32 %s29, 1
      %s37 = ssub.s32 %s29, %s36
      %p38 = scmp.eq.s32.totalorder %s37, 0
      %s40 = sadd.s32 %s39, 1
      %s41 = scalar_select %p38, %s39, %s40
      %p44 = pneg %p38
      %p45 = scmp.eq.s32.totalorder %s29, 1
      %p46 = por %p44, %p45
      %p47 = scmp.ne.s32.totalorder %s39, %s42
      %p48 = scmp.eq.s32.totalorder %s29, 0
      %p49 = por %p47, %p48
      %p50 = scmp.ne.s32.totalorder %s39, %s42
      %p51 = scmp.eq.s32.totalorder %s34, 1
      %p52 = por %p50, %p51
      %p53 = scmp.ne.s32.totalorder %s42, %s43
      %p54 = scmp.eq.s32.totalorder %s34, 0
      %p55 = por %p53, %p54
      %p56 = scmp.ne.s32.totalorder %s42, %s43
      %p57 = scmp.eq.s32.totalorder %s35, 1
      %p58 = por %p56, %p57
      %p60 = scmp.ne.s32.totalorder %s43, %s59
      %p61 = scmp.eq.s32.totalorder %s35, 0
      %p62 = por %p60, %p61
      %s63 = ssub.s32 %s29, %s36
      %p64 = scmp.eq.s32.totalorder %s63, 0
      %s66 = sadd.s32 %s65, 1
      %s67 = scalar_select %p64, %s65, %s66
      %p70 = pneg %p64
      %p71 = scmp.eq.s32.totalorder %s29, 1
      %p72 = por %p70, %p71
      %p73 = scmp.ne.s32.totalorder %s65, %s68
      %p74 = scmp.eq.s32.totalorder %s29, 0
      %p75 = por %p73, %p74
      %p76 = scmp.ne.s32.totalorder %s65, %s68
      %p77 = scmp.eq.s32.totalorder %s34, 1
      %p78 = por %p76, %p77
      %p79 = scmp.ne.s32.totalorder %s68, %s69
      %p80 = scmp.eq.s32.totalorder %s34, 0
      %p81 = por %p79, %p80
      %p82 = scmp.ne.s32.totalorder %s68, %s69
      %p83 = scmp.eq.s32.totalorder %s35, 1
      %p84 = por %p82, %p83
      %p86 = scmp.ne.s32.totalorder %s69, %s85
      %p87 = scmp.eq.s32.totalorder %s35, 0
      %p88 = por %p86, %p87
      %s90 = sadd.s32 %s89, 1
      %p93 = scmp.eq.s32.totalorder %s29, 1
      %p94 = scmp.ne.s32.totalorder %s89, %s91
      %p95 = scmp.eq.s32.totalorder %s29, 0
      %p96 = por %p94, %p95
      %p97 = scmp.ne.s32.totalorder %s89, %s91
      %p98 = scmp.eq.s32.totalorder %s34, 1
      %p99 = por %p97, %p98
      %p100 = scmp.ne.s32.totalorder %s91, %s92
      %p101 = scmp.eq.s32.totalorder %s34, 0
      %p102 = por %p100, %p101
      %p103 = scmp.ne.s32.totalorder %s91, %s92
      %p104 = scmp.eq.s32.totalorder %s35, 1
      %p105 = por %p103, %p104
      %p107 = scmp.ne.s32.totalorder %s92, %s106
      %p108 = scmp.eq.s32.totalorder %s35, 0
      %p109 = por %p107, %p108
      %s111 = sadd.s32 %s110, 1
      %p114 = scmp.eq.s32.totalorder %s29, 1
      %p115 = scmp.ne.s32.totalorder %s110, %s112
      %p116 = scmp.eq.s32.totalorder %s29, 0
      %p117 = por %p115, %p116
      %p118 = scmp.ne.s32.totalorder %s110, %s112
      %p119 = scmp.eq.s32.totalorder %s34, 1
      %p120 = por %p118, %p119
      %p121 = scmp.ne.s32.totalorder %s112, %s113
      %p122 = scmp.eq.s32.totalorder %s34, 0
      %p123 = por %p121, %p122
      %p124 = scmp.ne.s32.totalorder %s112, %s113
      %p125 = scmp.eq.s32.totalorder %s35, 1
      %p126 = por %p124, %p125
      %p128 = scmp.ne.s32.totalorder %s113, %s127
      %p129 = scmp.eq.s32.totalorder %s35, 0
      %p130 = por %p128, %p129
      %s132 = sadd.s32 %s131, 1
      %p135 = scmp.eq.s32.totalorder %s29, 1
      %p136 = scmp.ne.s32.totalorder %s131, %s133
      %p137 = scmp.eq.s32.totalorder %s29, 0
      %p138 = por %p136, %p137
      %p139 = scmp.ne.s32.totalorder %s131, %s133
      %p140 = scmp.eq.s32.totalorder %s34, 1
      %p141 = por %p139, %p140
      %p142 = scmp.ne.s32.totalorder %s133, %s134
      %p143 = scmp.eq.s32.totalorder %s34, 0
      %p144 = por %p142, %p143
      %p145 = scmp.ne.s32.totalorder %s133, %s134
      %p146 = scmp.eq.s32.totalorder %s35, 1
      %p147 = por %p145, %p146
      %p149 = scmp.ne.s32.totalorder %s134, %s148
      %p150 = scmp.eq.s32.totalorder %s35, 0
      %p151 = por %p149, %p150
      %s153 = sadd.s32 %s152, 1
      %p156 = scmp.eq.s32.totalorder %s29, 1
      %p157 = scmp.ne.s32.totalorder %s152, %s154
      %p158 = scmp.eq.s32.totalorder %s29, 0
      %p159 = por %p157, %p158
      %p160 = scmp.ne.s32.totalorder %s152, %s154
      %p161 = scmp.eq.s32.totalorder %s34, 1
      %p162 = por %p160, %p161
      %p163 = scmp.ne.s32.totalorder %s154, %s155
      %p164 = scmp.eq.s32.totalorder %s34, 0
      %p165 = por %p163, %p164
      %p166 = scmp.ne.s32.totalorder %s154, %s155
      %p167 = scmp.eq.s32.totalorder %s35, 1
      %p168 = por %p166, %p167
      %p170 = scmp.ne.s32.totalorder %s155, %s169
      %p171 = scmp.eq.s32.totalorder %s35, 0
      %p172 = por %p170, %p171
      %s174 = sadd.s32 %s173, 1
      %p177 = scmp.eq.s32.totalorder %s29, 1
      %p178 = scmp.ne.s32.totalorder %s173, %s175
      %p179 = scmp.eq.s32.totalorder %s29, 0
      %p180 = por %p178, %p179
      %p181 = scmp.ne.s32.totalorder %s173, %s175
      %p182 = scmp.eq.s32.totalorder %s34, 1
      %p183 = por %p181, %p182
      %p184 = scmp.ne.s32.totalorder %s175, %s176
      %p185 = scmp.eq.s32.totalorder %s34, 0
      %p186 = por %p184, %p185
      %p187 = scmp.ne.s32.totalorder %s175, %s176
      %p188 = scmp.eq.s32.totalorder %s35, 1
      %p189 = por %p187, %p188
      %p191 = scmp.ne.s32.totalorder %s176, %s190
      %p192 = scmp.eq.s32.totalorder %s35, 0
      %p193 = por %p191, %p192
      %s195 = sadd.s32 %s194, 1
      %p198 = scmp.eq.s32.totalorder %s29, 1
      %p199 = scmp.ne.s32.totalorder %s194, %s196
      %p200 = scmp.eq.s32.totalorder %s29, 0
      %p201 = por %p199, %p200
      %p202 = scmp.ne.s32.totalorder %s194, %s196
      %p203 = scmp.eq.s32.totalorder %s34, 1
      %p204 = por %p202, %p203
      %p205 = scmp.ne.s32.totalorder %s196, %s197
      %p206 = scmp.eq.s32.totalorder %s34, 0
      %p207 = por %p205, %p206
      %p208 = scmp.ne.s32.totalorder %s196, %s197
      %p209 = scmp.eq.s32.totalorder %s35, 1
      %p210 = por %p208, %p209
      %p212 = scmp.ne.s32.totalorder %s197, %s211
      %p213 = scmp.eq.s32.totalorder %s35, 0
      %p214 = por %p212, %p213
      %s216 = sadd.s32 %s215, 1
      %p219 = scmp.eq.s32.totalorder %s29, 1
      %p220 = scmp.ne.s32.totalorder %s215, %s217
      %p221 = scmp.eq.s32.totalorder %s29, 0
      %p222 = por %p220, %p221
      %p223 = scmp.ne.s32.totalorder %s215, %s217
      %p224 = scmp.eq.s32.totalorder %s34, 1
      %p225 = por %p223, %p224
      %p226 = scmp.ne.s32.totalorder %s217, %s218
      %p227 = scmp.eq.s32.totalorder %s34, 0
      %p228 = por %p226, %p227
      %p229 = scmp.ne.s32.totalorder %s217, %s218
      %p230 = scmp.eq.s32.totalorder %s35, 1
      %p231 = por %p229, %p230
      %p233 = scmp.ne.s32.totalorder %s218, %s232
      %p234 = scmp.eq.s32.totalorder %s35, 0
      %p235 = por %p233, %p234
      %s237 = sadd.s32 %s236, 1
      %p240 = scmp.eq.s32.totalorder %s29, 1
      %p241 = scmp.ne.s32.totalorder %s236, %s238
      %p242 = scmp.eq.s32.totalorder %s29, 0
      %p243 = por %p241, %p242
      %p244 = scmp.ne.s32.totalorder %s236, %s238
      %p245 = scmp.eq.s32.totalorder %s34, 1
      %p246 = por %p244, %p245
      %p247 = scmp.ne.s32.totalorder %s238, %s239
      %p248 = scmp.eq.s32.totalorder %s34, 0
      %p249 = por %p247, %p248
      %p250 = scmp.ne.s32.totalorder %s238, %s239
      %p251 = scmp.eq.s32.totalorder %s35, 1
      %p252 = por %p250, %p251
      %p254 = scmp.ne.s32.totalorder %s239, %s253
      %p255 = scmp.eq.s32.totalorder %s35, 0
      %p256 = por %p254, %p255
      %s258 = sadd.s32 %s257, 1
      %p261 = scmp.eq.s32.totalorder %s29, 1
      %p262 = scmp.ne.s32.totalorder %s257, %s259
      %p263 = scmp.eq.s32.totalorder %s29, 0
      %p264 = por %p262, %p263
      %p265 = scmp.ne.s32.totalorder %s257, %s259
      %p266 = scmp.eq.s32.totalorder %s34, 1
      %p267 = por %p265, %p266
      %p268 = scmp.ne.s32.totalorder %s259, %s260
      %p269 = scmp.eq.s32.totalorder %s34, 0
      %p270 = por %p268, %p269
      %p271 = scmp.ne.s32.totalorder %s259, %s260
      %p272 = scmp.eq.s32.totalorder %s35, 1
      %p273 = por %p271, %p272
      %p275 = scmp.ne.s32.totalorder %s260, %s274
      %p276 = scmp.eq.s32.totalorder %s35, 0
      %p277 = por %p275, %p276
      %s279 = sadd.s32 %s278, 1
      %p282 = scmp.eq.s32.totalorder %s29, 1
      %p283 = scmp.ne.s32.totalorder %s278, %s280
      %p284 = scmp.eq.s32.totalorder %s29, 0
      %p285 = por %p283, %p284
      %p286 = scmp.ne.s32.totalorder %s278, %s280
      %p287 = scmp.eq.s32.totalorder %s34, 1
      %p288 = por %p286, %p287
      %p289 = scmp.ne.s32.totalorder %s280, %s281
      %p290 = scmp.eq.s32.totalorder %s34, 0
      %p291 = por %p289, %p290
      %p292 = scmp.ne.s32.totalorder %s280, %s281
      %p293 = scmp.eq.s32.totalorder %s35, 1
      %p294 = por %p292, %p293
      %p296 = scmp.ne.s32.totalorder %s281, %s295
      %p297 = scmp.eq.s32.totalorder %s35, 0
      %p298 = por %p296, %p297
      %s300 = sadd.s32 %s299, 1
      %p303 = scmp.eq.s32.totalorder %s29, 1
      %p304 = scmp.ne.s32.totalorder %s299, %s301
      %p305 = scmp.eq.s32.totalorder %s29, 0
      %p306 = por %p304, %p305
      %p307 = scmp.ne.s32.totalorder %s299, %s301
      %p308 = scmp.eq.s32.totalorder %s34, 1
      %p309 = por %p307, %p308
      %p310 = scmp.ne.s32.totalorder %s301, %s302
      %p311 = scmp.eq.s32.totalorder %s34, 0
      %p312 = por %p310, %p311
      %p313 = scmp.ne.s32.totalorder %s301, %s302
      %p314 = scmp.eq.s32.totalorder %s35, 1
      %p315 = por %p313, %p314
      %p317 = scmp.ne.s32.totalorder %s302, %s316
      %p318 = scmp.eq.s32.totalorder %s35, 0
      %p319 = por %p317, %p318
      %s321 = sadd.s32 %s320, 1
      %p324 = scmp.eq.s32.totalorder %s29, 1
      %p325 = scmp.ne.s32.totalorder %s320, %s322
      %p326 = scmp.eq.s32.totalorder %s29, 0
      %p327 = por %p325, %p326
      %p328 = scmp.ne.s32.totalorder %s320, %s322
      %p329 = scmp.eq.s32.totalorder %s34, 1
      %p330 = por %p328, %p329
      %p331 = scmp.ne.s32.totalorder %s322, %s323
      %p332 = scmp.eq.s32.totalorder %s34, 0
      %p333 = por %p331, %p332
      %p334 = scmp.ne.s32.totalorder %s322, %s323
      %p335 = scmp.eq.s32.totalorder %s35, 1
      %p336 = por %p334, %p335
      %p338 = scmp.ne.s32.totalorder %s323, %s337
      %p339 = scmp.eq.s32.totalorder %s35, 0
      %p340 = por %p338, %p339
      %s341 = ssub.s32 %s29, %s36
      %p342 = scmp.eq.s32.totalorder %s341, 0
      %s344 = sadd.s32 %s343, 1
      %s345 = scalar_select %p342, %s343, %s344
      %p348 = pneg %p342
      %p349 = scmp.eq.s32.totalorder %s29, 1
      %p350 = por %p348, %p349
      %p351 = scmp.ne.s32.totalorder %s343, %s346
      %p352 = scmp.eq.s32.totalorder %s29, 0
      %p353 = por %p351, %p352
      %p354 = scmp.ne.s32.totalorder %s343, %s346
      %p355 = scmp.eq.s32.totalorder %s34, 1
      %p356 = por %p354, %p355
      %p357 = scmp.ne.s32.totalorder %s346, %s347
      %p358 = scmp.eq.s32.totalorder %s34, 0
      %p359 = por %p357, %p358
      %p360 = scmp.ne.s32.totalorder %s346, %s347
      %p361 = scmp.eq.s32.totalorder %s35, 1
      %p362 = por %p360, %p361
      %p364 = scmp.ne.s32.totalorder %s347, %s363
      %p365 = scmp.eq.s32.totalorder %s35, 0
      %p366 = por %p364, %p365
      %p367 = scmp.le.s32.totalorder 1, %s29
      %p368 = scmp.lt.s32.totalorder %s29, 3
      %p369 = pnand %p367, %p368
      %p370 = pneg %p369
      // Predicated region
      $region9: #{tpu_custom_call.1} parent=5 // pred_check
        _
      $region10: #{tpu_custom_call.1} parent=5 // pred_check_branch
        %372 = sbr.rel (%p369) target = $region12
      $region11: #{tpu_custom_call.1} parent=5 // pred_region
        %s373 = ssub.s32 %s29, 1
        // Predicated region
        $region13: #{tpu_custom_call.1} parent=11 // pred_check
          %p374 = pneg %p102
        $region14: #{tpu_custom_call.1} parent=11 // pred_check_branch
          %376 = sbr.rel (%p374) target = $region16
        $region15: #{tpu_custom_call.1} parent=11 // pred_region
          _
        $region16: #{tpu_custom_call.1} parent=11 // pred_fallthru
          _
        // Predicated region
        $region17: #{tpu_custom_call.1} parent=11 // pred_check
          %p377 = pneg %p123
        $region18: #{tpu_custom_call.1} parent=11 // pred_check_branch
          %379 = sbr.rel (%p377) target = $region20
        $region19: #{tpu_custom_call.1} parent=11 // pred_region
          _
        $region20: #{tpu_custom_call.1} parent=11 // pred_fallthru
          _
        // Predicated region
        $region21: #{tpu_custom_call.1} parent=11 // pred_check
          %p380 = pneg %p144
        $region22: #{tpu_custom_call.1} parent=11 // pred_check_branch
          %382 = sbr.rel (%p380) target = $region24
        $region23: #{tpu_custom_call.1} parent=11 // pred_region
          _
        $region24: #{tpu_custom_call.1} parent=11 // pred_fallthru
          _
        // Predicated region
        $region25: #{tpu_custom_call.1} parent=11 // pred_check
          %p383 = pneg %p165
        $region26: #{tpu_custom_call.1} parent=11 // pred_check_branch
          %385 = sbr.rel (%p383) target = $region28
        $region27: #{tpu_custom_call.1} parent=11 // pred_region
          _
        $region28: #{tpu_custom_call.1} parent=11 // pred_fallthru
          _
        // Predicated region
        $region29: #{tpu_custom_call.1} parent=11 // pred_check
          %p386 = pneg %p186
        $region30: #{tpu_custom_call.1} parent=11 // pred_check_branch
          %388 = sbr.rel (%p386) target = $region32
        $region31: #{tpu_custom_call.1} parent=11 // pred_region
          _
        $region32: #{tpu_custom_call.1} parent=11 // pred_fallthru
          _
        // Predicated region
        $region33: #{tpu_custom_call.1} parent=11 // pred_check
          %p389 = pneg %p207
        $region34: #{tpu_custom_call.1} parent=11 // pred_check_branch
          %391 = sbr.rel (%p389) target = $region36
        $region35: #{tpu_custom_call.1} parent=11 // pred_region
          _
        $region36: #{tpu_custom_call.1} parent=11 // pred_fallthru
          _
        // Predicated region
        $region37: #{tpu_custom_call.1} parent=11 // pred_check
          %p392 = pneg %p228
        $region38: #{tpu_custom_call.1} parent=11 // pred_check_branch
          %394 = sbr.rel (%p392) target = $region40
        $region39: #{tpu_custom_call.1} parent=11 // pred_region
          _
        $region40: #{tpu_custom_call.1} parent=11 // pred_fallthru
          _
        // Predicated region
        $region41: #{tpu_custom_call.1} parent=11 // pred_check
          %p395 = pneg %p249
        $region42: #{tpu_custom_call.1} parent=11 // pred_check_branch
          %397 = sbr.rel (%p395) target = $region44
        $region43: #{tpu_custom_call.1} parent=11 // pred_region
          _
        $region44: #{tpu_custom_call.1} parent=11 // pred_fallthru
          _
        // Predicated region
        $region45: #{tpu_custom_call.1} parent=11 // pred_check
          %p398 = pneg %p270
        $region46: #{tpu_custom_call.1} parent=11 // pred_check_branch
          %400 = sbr.rel (%p398) target = $region48
        $region47: #{tpu_custom_call.1} parent=11 // pred_region
          _
        $region48: #{tpu_custom_call.1} parent=11 // pred_fallthru
          _
        // Predicated region
        $region49: #{tpu_custom_call.1} parent=11 // pred_check
          %p401 = pneg %p291
        $region50: #{tpu_custom_call.1} parent=11 // pred_check_branch
          %403 = sbr.rel (%p401) target = $region52
        $region51: #{tpu_custom_call.1} parent=11 // pred_region
          _
        $region52: #{tpu_custom_call.1} parent=11 // pred_fallthru
          _
        // Predicated region
        $region53: #{tpu_custom_call.1} parent=11 // pred_check
          %p404 = pneg %p312
        $region54: #{tpu_custom_call.1} parent=11 // pred_check_branch
          %406 = sbr.rel (%p404) target = $region56
        $region55: #{tpu_custom_call.1} parent=11 // pred_region
          _
        $region56: #{tpu_custom_call.1} parent=11 // pred_fallthru
          _
        // Predicated region
        $region57: #{tpu_custom_call.1} parent=11 // pred_check
          %p407 = pneg %p333
        $region58: #{tpu_custom_call.1} parent=11 // pred_check_branch
          %409 = sbr.rel (%p407) target = $region60
        $region59: #{tpu_custom_call.1} parent=11 // pred_region
          _
        $region60: #{tpu_custom_call.1} parent=11 // pred_fallthru
          _
      $region12: #{tpu_custom_call.1} parent=5 // pred_fallthru
        _
      %p410 = scmp.lt.s32.totalorder %s29, 2
      // Predicated region
      $region61: #{tpu_custom_call.1} parent=5 // pred_check
        %p411 = pneg %p410
      $region62: #{tpu_custom_call.1} parent=5 // pred_check_branch
        %413 = sbr.rel (%p411) target = $region64
      $region63: #{tpu_custom_call.1} parent=5 // pred_region
        // Predicated region
        $region65: #{tpu_custom_call.1} parent=63 // pred_check
          %p414 = pneg %p49
        $region66: #{tpu_custom_call.1} parent=63 // pred_check_branch
          %416 = sbr.rel (%p414) target = $region68
        $region67: #{tpu_custom_call.1} parent=63 // pred_region
          %s417 = sand.u32 %s39, 1
          %s418 = scalar_lea.sflag [#allocation3], %s417
          %s419 = sand.u32 %s39, 1
          %s420 = smul.addr %s419, 16
          %s421 = scalar_lea.vmem [#allocation2], %s420
          %s422 = smul.u32 4, %s29
          %s424 = ssub.s32 256, 256
          %425 = vsyncadd %s418, %s424
          %s426 = smul.addr %s422, 64
          %s427 = scalar_lea.hbm %s0, %s426
          %s428 = sshll.u32 %s421, 4
          %s429 = int_to_ptr.vmem [resolvable:$true] %s428
          %434 = dma.hbm_to_vmem [thread:$0]  %s427, 256, %s429, %s418, 64, 64, 4
        $region68: #{tpu_custom_call.1} parent=63 // pred_fallthru
          _
        // Predicated region
        $region69: #{tpu_custom_call.1} parent=63 // pred_check
          %p435 = pneg %p75
        $region70: #{tpu_custom_call.1} parent=63 // pred_check_branch
          %437 = sbr.rel (%p435) target = $region72
        $region71: #{tpu_custom_call.1} parent=63 // pred_region
          %s438 = sand.u32 %s65, 1
          %s439 = scalar_lea.sflag [#allocation6], %s438
          %s440 = sand.u32 %s65, 1
          %s441 = smul.addr %s440, 4
          %s442 = scalar_lea.vmem [#allocation5], %s441
          %s443 = smul.u32 4, %s29
          %s445 = ssub.s32 64, 64
          %446 = vsyncadd %s439, %s445
          %s447 = smul.addr %s443, 16
          %s448 = scalar_lea.hbm %s1, %s447
          %s449 = sshll.u32 %s442, 4
          %s450 = int_to_ptr.vmem [resolvable:$true] %s449
          %455 = dma.hbm_to_vmem [thread:$0]  %s448, 64, %s450, %s439, 16, 16, 1
        $region72: #{tpu_custom_call.1} parent=63 // pred_fallthru
          _
      $region64: #{tpu_custom_call.1} parent=5 // pred_fallthru
        _
      %p456 = scmp.le.s32.totalorder 1, %s29
      %p457 = scmp.lt.s32.totalorder %s29, 3
      %p458 = pnand %p456, %p457
      %p459 = pneg %p458
      // Predicated region
      $region73: #{tpu_custom_call.1} parent=5 // pred_check
        _
      $region74: #{tpu_custom_call.1} parent=5 // pred_check_branch
        %461 = sbr.rel (%p458) target = $region76
      $region75: #{tpu_custom_call.1} parent=5 // pred_region
        %s462 = ssub.s32 %s29, 1
        %s463 = sand.u32 %s42, 1
        %s464 = scalar_lea.sflag [#allocation3], %s463
        %s465 = sand.u32 %s42, 1
        %s466 = smul.addr %s465, 16
        %s467 = scalar_lea.vmem [#allocation2], %s466
        // Predicated region
        $region77: #{tpu_custom_call.1} parent=75 // pred_check
          %p468 = pneg %p55
        $region78: #{tpu_custom_call.1} parent=75 // pred_check_branch
          %470 = sbr.rel (%p468) target = $region80
        $region79: #{tpu_custom_call.1} parent=75 // pred_region
          %471 = dma.done %s464, 256
        $region80: #{tpu_custom_call.1} parent=75 // pred_fallthru
          _
        %s472 = sand.u32 %s68, 1
        %s473 = scalar_lea.sflag [#allocation6], %s472
        %s474 = sand.u32 %s68, 1
        %s475 = smul.addr %s474, 4
        %s476 = scalar_lea.vmem [#allocation5], %s475
        // Predicated region
        $region81: #{tpu_custom_call.1} parent=75 // pred_check
          %p477 = pneg %p81
        $region82: #{tpu_custom_call.1} parent=75 // pred_check_branch
          %479 = sbr.rel (%p477) target = $region84
        $region83: #{tpu_custom_call.1} parent=75 // pred_region
          %480 = dma.done %s473, 64
        $region84: #{tpu_custom_call.1} parent=75 // pred_fallthru
          _
        %s481 = sand.u32 %s42, 1
        %s482 = scalar_lea.sflag [#allocation3], %s481
        %s483 = sand.u32 %s42, 1
        %s484 = smul.addr %s483, 16
        %s485 = scalar_lea.vmem [#allocation2], %s484
        %p486 = pneg %p55
        %p487 = pneg %p52
        %s488 = sand.u32 %s68, 1
        %s489 = scalar_lea.sflag [#allocation6], %s488
        %s490 = sand.u32 %s68, 1
        %s491 = smul.addr %s490, 4
        %s492 = scalar_lea.vmem [#allocation5], %s491
        %p493 = pneg %p81
        %p494 = pneg %p78
        %p495 = pneg %p102
        %p496 = pneg %p99
        %p497 = pneg %p123
        %p498 = pneg %p120
        %p499 = pneg %p144
        %p500 = pneg %p141
        %p501 = pneg %p165
        %p502 = pneg %p162
        %p503 = pneg %p186
        %p504 = pneg %p183
        %p505 = pneg %p207
        %p506 = pneg %p204
        %p507 = pneg %p228
        %p508 = pneg %p225
        %p509 = pneg %p249
        %p510 = pneg %p246
        %p511 = pneg %p270
        %p512 = pneg %p267
        %p513 = pneg %p291
        %p514 = pneg %p288
        %p515 = pneg %p312
        %p516 = pneg %p309
        %p517 = pneg %p333
        %p518 = pneg %p330
        %p519 = pneg %p359
        %p520 = pneg %p356
        %s521 = sand.u32 %s346, 1
        %s522 = scalar_lea.sflag [#allocation4], %s521
        %s523 = sand.u32 %s346, 1
        %s524 = smul.addr %s523, 4
        %s525 = scalar_lea.vmem [#allocation7], %s524
        %s526 = smul.u32 4, %s34
        %s527 = smul.u32 4, %s34
        %s528 = smul.u32 4, %s34
        %v529 = vld [vmem:[%s467] sm:$0xf]
        %v530 = vld [vmem:[%s467 + $0x4] sm:$0xf]
        %v531 = vld [vmem:[%s467 + $0x8] sm:$0xf]
        %v532 = vld [vmem:[%s467 + $0xc] sm:$0xf]
        %v533 = vld [vmem:[%s476] sm:$0x1]
        %v534 = vld [vmem:[%s476 + $0x1] sm:$0x1]
        %v535 = vld [vmem:[%s476 + $0x2] sm:$0x1]
        %v536 = vld [vmem:[%s476 + $0x3] sm:$0x1]
        %v541 = vlaneseq
        %v542 = vshrl.u32 %v541, 7
        %v543 = vsub.s32 0, %v542
        %v544 = vrot.slane %v533, %v543
        %v545 = vlaneseq
        %v546 = vshrl.u32 %v545, 7
        %v547 = vsub.s32 0, %v546
        %v548 = vrot.slane %v534, %v547
        %v549 = vlaneseq
        %v550 = vshrl.u32 %v549, 7
        %v551 = vsub.s32 0, %v550
        %v552 = vrot.slane %v535, %v551
        %v553 = vlaneseq
        %v554 = vshrl.u32 %v553, 7
        %v555 = vsub.s32 0, %v554
        %v556 = vrot.slane %v536, %v555
        %v561 = vadd.f32 %v529, %v544
        %v562 = vadd.f32 %v530, %v548
        %v563 = vadd.f32 %v531, %v552
        %v564 = vadd.f32 %v532, %v556
        %v565 = vld [vmem:[%s2] sm:$0xff]
        %v566 = vld [vmem:[%s2 + $0x8] sm:$0xff]
        %v567 = vld [vmem:[%s2 + $0x10] sm:$0xff]
        %v568 = vld [vmem:[%s2 + $0x18] sm:$0xff]
        %v569 = vld [vmem:[%s3] sm:$0x1]
        %v571 = vlaneseq
        %v572 = vshrl.u32 %v571, 7
        %v573 = vsub.s32 0, %v572
        %v574 = vrot.slane %v569, %v573
        %v580 = vcombine.low %v561, %v562
        %v581 = vcombine.low %v563, %v564
        %vm582 = vcmask 261120
        %v583 = vsel %vm582, %v580, 0
        %v585 = vsel %vm582, %v581, 0
        %587 = vmatprep.subr.mxu0 0.0
        %588 = vmatpush1.msra.mxu0 0.0
        %589 = vmatprep.subr.mxu0 0.0
        %590 = vmatpush1.msra.mxu0 0.0
        %591 = vmatprep.subr.mxu0 0.0
        %592 = vmatpush1.msra.mxu0 0.0
        %593 = vmatprep.subr.mxu0 0.0
        %594 = vmatpush1.msra.mxu0 0.0
        %595 = vmatprep.subr.mxu0 0.0
        %596 = vmatpush1.msra.mxu0 0.0
        %597 = vmatprep.subr.mxu0 0.0
        %598 = vmatpush1.msra.mxu0 0.0
        %599 = vmatprep.subr.mxu0 0.0
        %600 = vmatpush1.msra.mxu0 0.0
        %601 = vmatprep.subr.mxu0 0.0
        %602 = vmatpush1.msra.mxu0 0.0
        %603 = vmatprep.subr.mxu0 0.0
        %604 = vmatpush1.msra.mxu0 0.0
        %605 = vmatprep.subr.mxu0 0.0
        %606 = vmatpush1.msra.mxu0 0.0
        %607 = vmatprep.subr.mxu0 0.0
        %608 = vmatpush1.msra.mxu0 0.0
        %609 = vmatprep.subr.mxu0 0.0
        %610 = vmatpush1.msra.mxu0 0.0
        %611 = vmatprep.subr.mxu0 0.0
        %612 = vmatpush1.msra.mxu0 %v568
        %613 = vmatprep.subr.mxu0 0.0
        %614 = vmatpush1.msra.mxu0 %v567
        %615 = vmatprep.subr.mxu0 0.0
        %616 = vmatpush1.msra.mxu0 %v566
        %617 = vmatprep.subr.mxu0 0.0
        %618 = vmatpush1.msra.mxu0 %v565
        %619 = vmatprep.subr.mxu0 0.0
        %620 = vmatpush2.msra.mxu0 0.0
        %621 = vmatprep.subr.mxu0 0.0
        %622 = vmatpush2.msra.mxu0 0.0
        %623 = vmatprep.subr.mxu0 0.0
        %624 = vmatpush2.msra.mxu0 0.0
        %625 = vmatprep.subr.mxu0 0.0
        %626 = vmatpush2.msra.mxu0 0.0
        %627 = vmatprep.subr.mxu0 0.0
        %628 = vmatpush2.msra.mxu0 0.0
        %629 = vmatprep.subr.mxu0 0.0
        %630 = vmatpush2.msra.mxu0 0.0
        %631 = vmatprep.subr.mxu0 0.0
        %632 = vmatpush2.msra.mxu0 0.0
        %633 = vmatprep.subr.mxu0 0.0
        %634 = vmatpush2.msra.mxu0 0.0
        %635 = vmatprep.subr.mxu0 0.0
        %636 = vmatpush2.msra.mxu0 0.0
        %637 = vmatprep.subr.mxu0 0.0
        %638 = vmatpush2.msra.mxu0 0.0
        %639 = vmatprep.subr.mxu0 0.0
        %640 = vmatpush2.msra.mxu0 0.0
        %641 = vmatprep.subr.mxu0 0.0
        %642 = vmatpush2.msra.mxu0 0.0
        %643 = vmatprep.subr.mxu0 0.0
        %644 = vmatpush2.msra.mxu0 0.0
        %645 = vmatprep.subr.mxu0 0.0
        %646 = vmatpush2.msra.mxu0 0.0
        %647 = vmatprep.subr.mxu0 0.0
        %648 = vmatpush2.msra.mxu0 0.0
        %649 = vmatprep.subr.mxu0 0.0
        %650 = vmatpush2.msra.mxu0 0.0
        %651 = vmatprep.mubr.f32.mxu0 0.0
        %652 = vmatmul.mubr.f32.gmra.mxu0 %v583
        %v653 = vpop.f32.mrf.mxu0
        %v654 = vadd.f32 %v574, %v653
        %v655 = vpop.f32.mrf.mxu0
        %656 = vmatprep.mubr.f32.mxu0 0.0
        %657 = vmatmul.mubr.f32.gmra.mxu0 %v585
        %v658 = vpop.f32.mrf.mxu0
        %v659 = vadd.f32 %v574, %v658
        %v660 = vpop.f32.mrf.mxu0
        %661 = vdwg.mxu0
        %v664 = vcombine.high %v654, %v654
        %v665 = vcombine.high %v659, %v659
        %666 = vrot.lane.b32.xlu0 %v654, 96
        %v667 = vpop.permute.xlu0 %666
        %vm668 = vcmask 64512
        %v669 = vsel %vm668, %v654, 0
        %v671 = vsel %vm668, %v667, 0
        %673 = vmatprep.subr.mxu0 0.0
        %674 = vmatpush1.xpose.msra.mxu0 0.0
        %675 = vmatprep.subr.mxu0 0.0
        %676 = vmatpush1.xpose.msra.mxu0 0.0
        %677 = vmatprep.subr.mxu0 0.0
        %678 = vmatpush1.xpose.msra.mxu0 0.0
        %679 = vmatprep.subr.mxu0 0.0
        %680 = vmatpush1.xpose.msra.mxu0 0.0
        %681 = vmatprep.subr.mxu0 0.0
        %682 = vmatpush1.xpose.msra.mxu0 0.0
        %683 = vmatprep.subr.mxu0 0.0
        %684 = vmatpush1.xpose.msra.mxu0 0.0
        %685 = vmatprep.subr.mxu0 0.0
        %686 = vmatpush1.xpose.msra.mxu0 0.0
        %687 = vmatprep.subr.mxu0 0.0
        %688 = vmatpush1.xpose.msra.mxu0 0.0
        %689 = vmatprep.subr.mxu0 0.0
        %690 = vmatpush1.xpose.msra.mxu0 0.0
        %691 = vmatprep.subr.mxu0 0.0
        %692 = vmatpush1.xpose.msra.mxu0 0.0
        %693 = vmatprep.subr.mxu0 0.0
        %694 = vmatpush1.xpose.msra.mxu0 0.0
        %695 = vmatprep.subr.mxu0 0.0
        %696 = vmatpush1.xpose.msra.mxu0 0.0
        %697 = vmatprep.subr.mxu0 0.0
        %698 = vmatpush1.xpose.msra.mxu0 0.0
        %699 = vmatprep.subr.mxu0 0.0
        %700 = vmatpush1.xpose.msra.mxu0 0.0
        %701 = vmatprep.subr.mxu0 0.0
        %702 = vmatpush1.xpose.msra.mxu0 0.0
        %703 = vmatprep.subr.mxu0 0.0
        %704 = vmatpush1.xpose.msra.mxu0 %v671
        %705 = vmatprep.subr.mxu0 0.0
        %706 = vmatpush2.xpose.msra.mxu0 0.0
        %707 = vmatprep.subr.mxu0 0.0
        %708 = vmatpush2.xpose.msra.mxu0 0.0
        %709 = vmatprep.subr.mxu0 0.0
        %710 = vmatpush2.xpose.msra.mxu0 0.0
        %711 = vmatprep.subr.mxu0 0.0
        %712 = vmatpush2.xpose.msra.mxu0 0.0
        %713 = vmatprep.subr.mxu0 0.0
        %714 = vmatpush2.xpose.msra.mxu0 0.0
        %715 = vmatprep.subr.mxu0 0.0
        %716 = vmatpush2.xpose.msra.mxu0 0.0
        %717 = vmatprep.subr.mxu0 0.0
        %718 = vmatpush2.xpose.msra.mxu0 0.0
        %719 = vmatprep.subr.mxu0 0.0
        %720 = vmatpush2.xpose.msra.mxu0 0.0
        %721 = vmatprep.subr.mxu0 0.0
        %722 = vmatpush2.xpose.msra.mxu0 0.0
        %723 = vmatprep.subr.mxu0 0.0
        %724 = vmatpush2.xpose.msra.mxu0 0.0
        %725 = vmatprep.subr.mxu0 0.0
        %726 = vmatpush2.xpose.msra.mxu0 0.0
        %727 = vmatprep.subr.mxu0 0.0
        %728 = vmatpush2.xpose.msra.mxu0 0.0
        %729 = vmatprep.subr.mxu0 0.0
        %730 = vmatpush2.xpose.msra.mxu0 0.0
        %731 = vmatprep.subr.mxu0 0.0
        %732 = vmatpush2.xpose.msra.mxu0 0.0
        %733 = vmatprep.subr.mxu0 0.0
        %734 = vmatpush2.xpose.msra.mxu0 0.0
        %735 = vmatprep.subr.mxu0 0.0
        %736 = vmatpush2.xpose.msra.mxu0 0.0
        %737 = vmatprep.mubr.f32.mxu0 0.0
        %738 = vmatmul.mubr.f32.gmra.mxu0 %v669
        %v739 = vpop.f32.mrf.mxu0
        %v740 = vadd.f32 0.0, %v739
        %v741 = vpop.f32.mrf.mxu0
        %742 = vdwg.mxu0
        %743 = vrot.lane.b32.xlu0 %v664, 96
        %v744 = vpop.permute.xlu0 %743
        %v745 = vsel %vm668, %v664, 0
        %v747 = vsel %vm668, %v744, 0
        %749 = vmatprep.subr.mxu0 0.0
        %750 = vmatpush1.xpose.msra.mxu0 0.0
        %751 = vmatprep.subr.mxu0 0.0
        %752 = vmatpush1.xpose.msra.mxu0 0.0
        %753 = vmatprep.subr.mxu0 0.0
        %754 = vmatpush1.xpose.msra.mxu0 0.0
        %755 = vmatprep.subr.mxu0 0.0
        %756 = vmatpush1.xpose.msra.mxu0 0.0
        %757 = vmatprep.subr.mxu0 0.0
        %758 = vmatpush1.xpose.msra.mxu0 0.0
        %759 = vmatprep.subr.mxu0 0.0
        %760 = vmatpush1.xpose.msra.mxu0 0.0
        %761 = vmatprep.subr.mxu0 0.0
        %762 = vmatpush1.xpose.msra.mxu0 0.0
        %763 = vmatprep.subr.mxu0 0.0
        %764 = vmatpush1.xpose.msra.mxu0 0.0
        %765 = vmatprep.subr.mxu0 0.0
        %766 = vmatpush1.xpose.msra.mxu0 0.0
        %767 = vmatprep.subr.mxu0 0.0
        %768 = vmatpush1.xpose.msra.mxu0 0.0
        %769 = vmatprep.subr.mxu0 0.0
        %770 = vmatpush1.xpose.msra.mxu0 0.0
        %771 = vmatprep.subr.mxu0 0.0
        %772 = vmatpush1.xpose.msra.mxu0 0.0
        %773 = vmatprep.subr.mxu0 0.0
        %774 = vmatpush1.xpose.msra.mxu0 0.0
        %775 = vmatprep.subr.mxu0 0.0
        %776 = vmatpush1.xpose.msra.mxu0 0.0
        %777 = vmatprep.subr.mxu0 0.0
        %778 = vmatpush1.xpose.msra.mxu0 0.0
        %779 = vmatprep.subr.mxu0 0.0
        %780 = vmatpush1.xpose.msra.mxu0 %v747
        %781 = vmatprep.subr.mxu0 0.0
        %782 = vmatpush2.xpose.msra.mxu0 0.0
        %783 = vmatprep.subr.mxu0 0.0
        %784 = vmatpush2.xpose.msra.mxu0 0.0
        %785 = vmatprep.subr.mxu0 0.0
        %786 = vmatpush2.xpose.msra.mxu0 0.0
        %787 = vmatprep.subr.mxu0 0.0
        %788 = vmatpush2.xpose.msra.mxu0 0.0
        %789 = vmatprep.subr.mxu0 0.0
        %790 = vmatpush2.xpose.msra.mxu0 0.0
        %791 = vmatprep.subr.mxu0 0.0
        %792 = vmatpush2.xpose.msra.mxu0 0.0
        %793 = vmatprep.subr.mxu0 0.0
        %794 = vmatpush2.xpose.msra.mxu0 0.0
        %795 = vmatprep.subr.mxu0 0.0
        %796 = vmatpush2.xpose.msra.mxu0 0.0
        %797 = vmatprep.subr.mxu0 0.0
        %798 = vmatpush2.xpose.msra.mxu0 0.0
        %799 = vmatprep.subr.mxu0 0.0
        %800 = vmatpush2.xpose.msra.mxu0 0.0
        %801 = vmatprep.subr.mxu0 0.0
        %802 = vmatpush2.xpose.msra.mxu0 0.0
        %803 = vmatprep.subr.mxu0 0.0
        %804 = vmatpush2.xpose.msra.mxu0 0.0
        %805 = vmatprep.subr.mxu0 0.0
        %806 = vmatpush2.xpose.msra.mxu0 0.0
        %807 = vmatprep.subr.mxu0 0.0
        %808 = vmatpush2.xpose.msra.mxu0 0.0
        %809 = vmatprep.subr.mxu0 0.0
        %810 = vmatpush2.xpose.msra.mxu0 0.0
        %811 = vmatprep.subr.mxu0 0.0
        %812 = vmatpush2.xpose.msra.mxu0 0.0
        %813 = vmatprep.mubr.f32.mxu0 0.0
        %814 = vmatmul.mubr.f32.gmra.mxu0 %v745
        %v815 = vpop.f32.mrf.mxu0
        %v816 = vadd.f32 0.0, %v815
        %v817 = vpop.f32.mrf.mxu0
        %818 = vdwg.mxu0
        %819 = vrot.lane.b32.xlu0 %v659, 96
        %v820 = vpop.permute.xlu0 %819
        %v821 = vsel %vm668, %v659, 0
        %v823 = vsel %vm668, %v820, 0
        %825 = vmatprep.subr.mxu0 0.0
        %826 = vmatpush1.xpose.msra.mxu0 0.0
        %827 = vmatprep.subr.mxu0 0.0
        %828 = vmatpush1.xpose.msra.mxu0 0.0
        %829 = vmatprep.subr.mxu0 0.0
        %830 = vmatpush1.xpose.msra.mxu0 0.0
        %831 = vmatprep.subr.mxu0 0.0
        %832 = vmatpush1.xpose.msra.mxu0 0.0
        %833 = vmatprep.subr.mxu0 0.0
        %834 = vmatpush1.xpose.msra.mxu0 0.0
        %835 = vmatprep.subr.mxu0 0.0
        %836 = vmatpush1.xpose.msra.mxu0 0.0
        %837 = vmatprep.subr.mxu0 0.0
        %838 = vmatpush1.xpose.msra.mxu0 0.0
        %839 = vmatprep.subr.mxu0 0.0
        %840 = vmatpush1.xpose.msra.mxu0 0.0
        %841 = vmatprep.subr.mxu0 0.0
        %842 = vmatpush1.xpose.msra.mxu0 0.0
        %843 = vmatprep.subr.mxu0 0.0
        %844 = vmatpush1.xpose.msra.mxu0 0.0
        %845 = vmatprep.subr.mxu0 0.0
        %846 = vmatpush1.xpose.msra.mxu0 0.0
        %847 = vmatprep.subr.mxu0 0.0
        %848 = vmatpush1.xpose.msra.mxu0 0.0
        %849 = vmatprep.subr.mxu0 0.0
        %850 = vmatpush1.xpose.msra.mxu0 0.0
        %851 = vmatprep.subr.mxu0 0.0
        %852 = vmatpush1.xpose.msra.mxu0 0.0
        %853 = vmatprep.subr.mxu0 0.0
        %854 = vmatpush1.xpose.msra.mxu0 0.0
        %855 = vmatprep.subr.mxu0 0.0
        %856 = vmatpush1.xpose.msra.mxu0 %v823
        %857 = vmatprep.subr.mxu0 0.0
        %858 = vmatpush2.xpose.msra.mxu0 0.0
        %859 = vmatprep.subr.mxu0 0.0
        %860 = vmatpush2.xpose.msra.mxu0 0.0
        %861 = vmatprep.subr.mxu0 0.0
        %862 = vmatpush2.xpose.msra.mxu0 0.0
        %863 = vmatprep.subr.mxu0 0.0
        %864 = vmatpush2.xpose.msra.mxu0 0.0
        %865 = vmatprep.subr.mxu0 0.0
        %866 = vmatpush2.xpose.msra.mxu0 0.0
        %867 = vmatprep.subr.mxu0 0.0
        %868 = vmatpush2.xpose.msra.mxu0 0.0
        %869 = vmatprep.subr.mxu0 0.0
        %870 = vmatpush2.xpose.msra.mxu0 0.0
        %871 = vmatprep.subr.mxu0 0.0
        %872 = vmatpush2.xpose.msra.mxu0 0.0
        %873 = vmatprep.subr.mxu0 0.0
        %874 = vmatpush2.xpose.msra.mxu0 0.0
        %875 = vmatprep.subr.mxu0 0.0
        %876 = vmatpush2.xpose.msra.mxu0 0.0
        %877 = vmatprep.subr.mxu0 0.0
        %878 = vmatpush2.xpose.msra.mxu0 0.0
        %879 = vmatprep.subr.mxu0 0.0
        %880 = vmatpush2.xpose.msra.mxu0 0.0
        %881 = vmatprep.subr.mxu0 0.0
        %882 = vmatpush2.xpose.msra.mxu0 0.0
        %883 = vmatprep.subr.mxu0 0.0
        %884 = vmatpush2.xpose.msra.mxu0 0.0
        %885 = vmatprep.subr.mxu0 0.0
        %886 = vmatpush2.xpose.msra.mxu0 0.0
        %887 = vmatprep.subr.mxu0 0.0
        %888 = vmatpush2.xpose.msra.mxu0 0.0
        %889 = vmatprep.mubr.f32.mxu0 0.0
        %890 = vmatmul.mubr.f32.gmra.mxu0 %v821
        %v891 = vpop.f32.mrf.mxu0
        %v892 = vadd.f32 0.0, %v891
        %v893 = vpop.f32.mrf.mxu0
        %894 = vdwg.mxu0
        %895 = vrot.lane.b32.xlu0 %v665, 96
        %v896 = vpop.permute.xlu0 %895
        %v897 = vsel %vm668, %v665, 0
        %v899 = vsel %vm668, %v896, 0
        %901 = vmatprep.subr.mxu0 0.0
        %902 = vmatpush1.xpose.msra.mxu0 0.0
        %903 = vmatprep.subr.mxu0 0.0
        %904 = vmatpush1.xpose.msra.mxu0 0.0
        %905 = vmatprep.subr.mxu0 0.0
        %906 = vmatpush1.xpose.msra.mxu0 0.0
        %907 = vmatprep.subr.mxu0 0.0
        %908 = vmatpush1.xpose.msra.mxu0 0.0
        %909 = vmatprep.subr.mxu0 0.0
        %910 = vmatpush1.xpose.msra.mxu0 0.0
        %911 = vmatprep.subr.mxu0 0.0
        %912 = vmatpush1.xpose.msra.mxu0 0.0
        %913 = vmatprep.subr.mxu0 0.0
        %914 = vmatpush1.xpose.msra.mxu0 0.0
        %915 = vmatprep.subr.mxu0 0.0
        %916 = vmatpush1.xpose.msra.mxu0 0.0
        %917 = vmatprep.subr.mxu0 0.0
        %918 = vmatpush1.xpose.msra.mxu0 0.0
        %919 = vmatprep.subr.mxu0 0.0
        %920 = vmatpush1.xpose.msra.mxu0 0.0
        %921 = vmatprep.subr.mxu0 0.0
        %922 = vmatpush1.xpose.msra.mxu0 0.0
        %923 = vmatprep.subr.mxu0 0.0
        %924 = vmatpush1.xpose.msra.mxu0 0.0
        %925 = vmatprep.subr.mxu0 0.0
        %926 = vmatpush1.xpose.msra.mxu0 0.0
        %927 = vmatprep.subr.mxu0 0.0
        %928 = vmatpush1.xpose.msra.mxu0 0.0
        %929 = vmatprep.subr.mxu0 0.0
        %930 = vmatpush1.xpose.msra.mxu0 0.0
        %931 = vmatprep.subr.mxu0 0.0
        %932 = vmatpush1.xpose.msra.mxu0 %v899
        %933 = vmatprep.subr.mxu0 0.0
        %934 = vmatpush2.xpose.msra.mxu0 0.0
        %935 = vmatprep.subr.mxu0 0.0
        %936 = vmatpush2.xpose.msra.mxu0 0.0
        %937 = vmatprep.subr.mxu0 0.0
        %938 = vmatpush2.xpose.msra.mxu0 0.0
        %939 = vmatprep.subr.mxu0 0.0
        %940 = vmatpush2.xpose.msra.mxu0 0.0
        %941 = vmatprep.subr.mxu0 0.0
        %942 = vmatpush2.xpose.msra.mxu0 0.0
        %943 = vmatprep.subr.mxu0 0.0
        %944 = vmatpush2.xpose.msra.mxu0 0.0
        %945 = vmatprep.subr.mxu0 0.0
        %946 = vmatpush2.xpose.msra.mxu0 0.0
        %947 = vmatprep.subr.mxu0 0.0
        %948 = vmatpush2.xpose.msra.mxu0 0.0
        %949 = vmatprep.subr.mxu0 0.0
        %950 = vmatpush2.xpose.msra.mxu0 0.0
        %951 = vmatprep.subr.mxu0 0.0
        %952 = vmatpush2.xpose.msra.mxu0 0.0
        %953 = vmatprep.subr.mxu0 0.0
        %954 = vmatpush2.xpose.msra.mxu0 0.0
        %955 = vmatprep.subr.mxu0 0.0
        %956 = vmatpush2.xpose.msra.mxu0 0.0
        %957 = vmatprep.subr.mxu0 0.0
        %958 = vmatpush2.xpose.msra.mxu0 0.0
        %959 = vmatprep.subr.mxu0 0.0
        %960 = vmatpush2.xpose.msra.mxu0 0.0
        %961 = vmatprep.subr.mxu0 0.0
        %962 = vmatpush2.xpose.msra.mxu0 0.0
        %963 = vmatprep.subr.mxu0 0.0
        %964 = vmatpush2.xpose.msra.mxu0 0.0
        %965 = vmatprep.mubr.f32.mxu0 0.0
        %966 = vmatmul.mubr.f32.gmra.mxu0 %v897
        %v967 = vpop.f32.mrf.mxu0
        %v968 = vadd.f32 0.0, %v967
        %v969 = vpop.f32.mrf.mxu0
        %970 = vdwg.mxu0
        %v971 = vmul.f32 %v740, 0.35355338
        %v972 = vmul.f32 %v816, 0.35355338
        %v973 = vmul.f32 %v892, 0.35355338
        %v974 = vmul.f32 %v968, 0.35355338
        %vm975 = vcmask 27648
        %v976 = vsel %vm975, %v971, -inf
        %977 = vmax.xlane.f32.xlu0 %v976
        %v978 = vpop.xlane.xlu0 %977
        %v979 = vsel %vm975, %v972, -inf
        %980 = vmax.xlane.f32.xlu0 %v979
        %v981 = vpop.xlane.xlu0 %980
        %v982 = vsel %vm975, %v973, -inf
        %983 = vmax.xlane.f32.xlu0 %v982
        %v984 = vpop.xlane.xlu0 %983
        %v985 = vsel %vm975, %v974, -inf
        %986 = vmax.xlane.f32.xlu0 %v985
        %v987 = vpop.xlane.xlu0 %986
        %v988 = vsub.f32 %v971, %v978
        %v989 = vsub.f32 %v972, %v981
        %v990 = vsub.f32 %v973, %v984
        %v991 = vsub.f32 %v974, %v987
        %v992 = vmul.f32 %v988, 1.442695
        %v993 = vpow.pop %v992
        %v994 = vmul.f32 %v989, 1.442695
        %v995 = vpow.pop %v994
        %v996 = vmul.f32 %v990, 1.442695
        %v997 = vpow.pop %v996
        %v998 = vmul.f32 %v991, 1.442695
        %v999 = vpow.pop %v998
        %v1000 = vsel %vm975, %v993, 0.0
        %1001 = vadd.xlane.f32.xlu0 %v1000
        %v1002 = vpop.xlane.xlu0 %1001
        %v1003 = vsel %vm975, %v995, 0.0
        %1004 = vadd.xlane.f32.xlu0 %v1003
        %v1005 = vpop.xlane.xlu0 %1004
        %v1006 = vsel %vm975, %v997, 0.0
        %1007 = vadd.xlane.f32.xlu0 %v1006
        %v1008 = vpop.xlane.xlu0 %1007
        %v1009 = vsel %vm975, %v999, 0.0
        %1010 = vadd.xlane.f32.xlu0 %v1009
        %v1011 = vpop.xlane.xlu0 %1010
        %v1012 = vrcp.pop %v1002
        %v1013 = vrcp.pop %v1005
        %v1014 = vrcp.pop %v1008
        %v1015 = vrcp.pop %v1011
        %v1016 = vmul.f32 %v993, %v1012
        %v1017 = vmul.f32 %v995, %v1013
        %v1018 = vmul.f32 %v997, %v1014
        %v1019 = vmul.f32 %v999, %v1015
        %1020 = vrot.lane.b32.xlu0 %v654, 64
        %v1021 = vpop.permute.xlu0 %1020
        %vm1022 = vcmask 31744
        %v1024 = vsel %vm1022, %v1016, 0
        %vm1026 = vcmask 1043456
        %v1027 = vsel %vm1026, %v1021, 0
        %1029 = vmatprep.subr.mxu0 0.0
        %1030 = vmatpush1.msra.mxu0 0.0
        %1031 = vmatprep.subr.mxu0 0.0
        %1032 = vmatpush1.msra.mxu0 0.0
        %1033 = vmatprep.subr.mxu0 0.0
        %1034 = vmatpush1.msra.mxu0 0.0
        %1035 = vmatprep.subr.mxu0 0.0
        %1036 = vmatpush1.msra.mxu0 0.0
        %1037 = vmatprep.subr.mxu0 0.0
        %1038 = vmatpush1.msra.mxu0 0.0
        %1039 = vmatprep.subr.mxu0 0.0
        %1040 = vmatpush1.msra.mxu0 0.0
        %1041 = vmatprep.subr.mxu0 0.0
        %1042 = vmatpush1.msra.mxu0 0.0
        %1043 = vmatprep.subr.mxu0 0.0
        %1044 = vmatpush1.msra.mxu0 0.0
        %1045 = vmatprep.subr.mxu0 0.0
        %1046 = vmatpush1.msra.mxu0 0.0
        %1047 = vmatprep.subr.mxu0 0.0
        %1048 = vmatpush1.msra.mxu0 0.0
        %1049 = vmatprep.subr.mxu0 0.0
        %1050 = vmatpush1.msra.mxu0 0.0
        %1051 = vmatprep.subr.mxu0 0.0
        %1052 = vmatpush1.msra.mxu0 0.0
        %1053 = vmatprep.subr.mxu0 0.0
        %1054 = vmatpush1.msra.mxu0 0.0
        %1055 = vmatprep.subr.mxu0 0.0
        %1056 = vmatpush1.msra.mxu0 0.0
        %1057 = vmatprep.subr.mxu0 0.0
        %1058 = vmatpush1.msra.mxu0 0.0
        %1059 = vmatprep.subr.mxu0 0.0
        %1060 = vmatpush1.msra.mxu0 %v1027
        %1061 = vmatprep.subr.mxu0 0.0
        %1062 = vmatpush2.msra.mxu0 0.0
        %1063 = vmatprep.subr.mxu0 0.0
        %1064 = vmatpush2.msra.mxu0 0.0
        %1065 = vmatprep.subr.mxu0 0.0
        %1066 = vmatpush2.msra.mxu0 0.0
        %1067 = vmatprep.subr.mxu0 0.0
        %1068 = vmatpush2.msra.mxu0 0.0
        %1069 = vmatprep.subr.mxu0 0.0
        %1070 = vmatpush2.msra.mxu0 0.0
        %1071 = vmatprep.subr.mxu0 0.0
        %1072 = vmatpush2.msra.mxu0 0.0
        %1073 = vmatprep.subr.mxu0 0.0
        %1074 = vmatpush2.msra.mxu0 0.0
        %1075 = vmatprep.subr.mxu0 0.0
        %1076 = vmatpush2.msra.mxu0 0.0
        %1077 = vmatprep.subr.mxu0 0.0
        %1078 = vmatpush2.msra.mxu0 0.0
        %1079 = vmatprep.subr.mxu0 0.0
        %1080 = vmatpush2.msra.mxu0 0.0
        %1081 = vmatprep.subr.mxu0 0.0
        %1082 = vmatpush2.msra.mxu0 0.0
        %1083 = vmatprep.subr.mxu0 0.0
        %1084 = vmatpush2.msra.mxu0 0.0
        %1085 = vmatprep.subr.mxu0 0.0
        %1086 = vmatpush2.msra.mxu0 0.0
        %1087 = vmatprep.subr.mxu0 0.0
        %1088 = vmatpush2.msra.mxu0 0.0
        %1089 = vmatprep.subr.mxu0 0.0
        %1090 = vmatpush2.msra.mxu0 0.0
        %1091 = vmatprep.subr.mxu0 0.0
        %1092 = vmatpush2.msra.mxu0 0.0
        %1093 = vmatprep.mubr.f32.mxu0 0.0
        %1094 = vmatmul.mubr.f32.gmra.mxu0 %v1024
        %v1095 = vpop.f32.mrf.mxu0
        %v1096 = vadd.f32 0.0, %v1095
        %v1097 = vpop.f32.mrf.mxu0
        %1098 = vdwg.mxu0
        %1099 = vrot.lane.b32.xlu0 %v664, 64
        %v1100 = vpop.permute.xlu0 %1099
        %v1102 = vsel %vm1022, %v1017, 0
        %v1104 = vsel %vm1026, %v1100, 0
        %1106 = vmatprep.subr.mxu0 0.0
        %1107 = vmatpush1.msra.mxu0 0.0
        %1108 = vmatprep.subr.mxu0 0.0
        %1109 = vmatpush1.msra.mxu0 0.0
        %1110 = vmatprep.subr.mxu0 0.0
        %1111 = vmatpush1.msra.mxu0 0.0
        %1112 = vmatprep.subr.mxu0 0.0
        %1113 = vmatpush1.msra.mxu0 0.0
        %1114 = vmatprep.subr.mxu0 0.0
        %1115 = vmatpush1.msra.mxu0 0.0
        %1116 = vmatprep.subr.mxu0 0.0
        %1117 = vmatpush1.msra.mxu0 0.0
        %1118 = vmatprep.subr.mxu0 0.0
        %1119 = vmatpush1.msra.mxu0 0.0
        %1120 = vmatprep.subr.mxu0 0.0
        %1121 = vmatpush1.msra.mxu0 0.0
        %1122 = vmatprep.subr.mxu0 0.0
        %1123 = vmatpush1.msra.mxu0 0.0
        %1124 = vmatprep.subr.mxu0 0.0
        %1125 = vmatpush1.msra.mxu0 0.0
        %1126 = vmatprep.subr.mxu0 0.0
        %1127 = vmatpush1.msra.mxu0 0.0
        %1128 = vmatprep.subr.mxu0 0.0
        %1129 = vmatpush1.msra.mxu0 0.0
        %1130 = vmatprep.subr.mxu0 0.0
        %1131 = vmatpush1.msra.mxu0 0.0
        %1132 = vmatprep.subr.mxu0 0.0
        %1133 = vmatpush1.msra.mxu0 0.0
        %1134 = vmatprep.subr.mxu0 0.0
        %1135 = vmatpush1.msra.mxu0 0.0
        %1136 = vmatprep.subr.mxu0 0.0
        %1137 = vmatpush1.msra.mxu0 %v1104
        %1138 = vmatprep.subr.mxu0 0.0
        %1139 = vmatpush2.msra.mxu0 0.0
        %1140 = vmatprep.subr.mxu0 0.0
        %1141 = vmatpush2.msra.mxu0 0.0
        %1142 = vmatprep.subr.mxu0 0.0
        %1143 = vmatpush2.msra.mxu0 0.0
        %1144 = vmatprep.subr.mxu0 0.0
        %1145 = vmatpush2.msra.mxu0 0.0
        %1146 = vmatprep.subr.mxu0 0.0
        %1147 = vmatpush2.msra.mxu0 0.0
        %1148 = vmatprep.subr.mxu0 0.0
        %1149 = vmatpush2.msra.mxu0 0.0
        %1150 = vmatprep.subr.mxu0 0.0
        %1151 = vmatpush2.msra.mxu0 0.0
        %1152 = vmatprep.subr.mxu0 0.0
        %1153 = vmatpush2.msra.mxu0 0.0
        %1154 = vmatprep.subr.mxu0 0.0
        %1155 = vmatpush2.msra.mxu0 0.0
        %1156 = vmatprep.subr.mxu0 0.0
        %1157 = vmatpush2.msra.mxu0 0.0
        %1158 = vmatprep.subr.mxu0 0.0
        %1159 = vmatpush2.msra.mxu0 0.0
        %1160 = vmatprep.subr.mxu0 0.0
        %1161 = vmatpush2.msra.mxu0 0.0
        %1162 = vmatprep.subr.mxu0 0.0
        %1163 = vmatpush2.msra.mxu0 0.0
        %1164 = vmatprep.subr.mxu0 0.0
        %1165 = vmatpush2.msra.mxu0 0.0
        %1166 = vmatprep.subr.mxu0 0.0
        %1167 = vmatpush2.msra.mxu0 0.0
        %1168 = vmatprep.subr.mxu0 0.0
        %1169 = vmatpush2.msra.mxu0 0.0
        %1170 = vmatprep.mubr.f32.mxu0 0.0
        %1171 = vmatmul.mubr.f32.gmra.mxu0 %v1102
        %v1172 = vpop.f32.mrf.mxu0
        %v1173 = vadd.f32 0.0, %v1172
        %v1174 = vpop.f32.mrf.mxu0
        %1175 = vdwg.mxu0
        %1176 = vrot.lane.b32.xlu0 %v659, 64
        %v1177 = vpop.permute.xlu0 %1176
        %v1179 = vsel %vm1022, %v1018, 0
        %v1181 = vsel %vm1026, %v1177, 0
        %1183 = vmatprep.subr.mxu0 0.0
        %1184 = vmatpush1.msra.mxu0 0.0
        %1185 = vmatprep.subr.mxu0 0.0
        %1186 = vmatpush1.msra.mxu0 0.0
        %1187 = vmatprep.subr.mxu0 0.0
        %1188 = vmatpush1.msra.mxu0 0.0
        %1189 = vmatprep.subr.mxu0 0.0
        %1190 = vmatpush1.msra.mxu0 0.0
        %1191 = vmatprep.subr.mxu0 0.0
        %1192 = vmatpush1.msra.mxu0 0.0
        %1193 = vmatprep.subr.mxu0 0.0
        %1194 = vmatpush1.msra.mxu0 0.0
        %1195 = vmatprep.subr.mxu0 0.0
        %1196 = vmatpush1.msra.mxu0 0.0
        %1197 = vmatprep.subr.mxu0 0.0
        %1198 = vmatpush1.msra.mxu0 0.0
        %1199 = vmatprep.subr.mxu0 0.0
        %1200 = vmatpush1.msra.mxu0 0.0
        %1201 = vmatprep.subr.mxu0 0.0
        %1202 = vmatpush1.msra.mxu0 0.0
        %1203 = vmatprep.subr.mxu0 0.0
        %1204 = vmatpush1.msra.mxu0 0.0
        %1205 = vmatprep.subr.mxu0 0.0
        %1206 = vmatpush1.msra.mxu0 0.0
        %1207 = vmatprep.subr.mxu0 0.0
        %1208 = vmatpush1.msra.mxu0 0.0
        %1209 = vmatprep.subr.mxu0 0.0
        %1210 = vmatpush1.msra.mxu0 0.0
        %1211 = vmatprep.subr.mxu0 0.0
        %1212 = vmatpush1.msra.mxu0 0.0
        %1213 = vmatprep.subr.mxu0 0.0
        %1214 = vmatpush1.msra.mxu0 %v1181
        %1215 = vmatprep.subr.mxu0 0.0
        %1216 = vmatpush2.msra.mxu0 0.0
        %1217 = vmatprep.subr.mxu0 0.0
        %1218 = vmatpush2.msra.mxu0 0.0
        %1219 = vmatprep.subr.mxu0 0.0
        %1220 = vmatpush2.msra.mxu0 0.0
        %1221 = vmatprep.subr.mxu0 0.0
        %1222 = vmatpush2.msra.mxu0 0.0
        %1223 = vmatprep.subr.mxu0 0.0
        %1224 = vmatpush2.msra.mxu0 0.0
        %1225 = vmatprep.subr.mxu0 0.0
        %1226 = vmatpush2.msra.mxu0 0.0
        %1227 = vmatprep.subr.mxu0 0.0
        %1228 = vmatpush2.msra.mxu0 0.0
        %1229 = vmatprep.subr.mxu0 0.0
        %1230 = vmatpush2.msra.mxu0 0.0
        %1231 = vmatprep.subr.mxu0 0.0
        %1232 = vmatpush2.msra.mxu0 0.0
        %1233 = vmatprep.subr.mxu0 0.0
        %1234 = vmatpush2.msra.mxu0 0.0
        %1235 = vmatprep.subr.mxu0 0.0
        %1236 = vmatpush2.msra.mxu0 0.0
        %1237 = vmatprep.subr.mxu0 0.0
        %1238 = vmatpush2.msra.mxu0 0.0
        %1239 = vmatprep.subr.mxu0 0.0
        %1240 = vmatpush2.msra.mxu0 0.0
        %1241 = vmatprep.subr.mxu0 0.0
        %1242 = vmatpush2.msra.mxu0 0.0
        %1243 = vmatprep.subr.mxu0 0.0
        %1244 = vmatpush2.msra.mxu0 0.0
        %1245 = vmatprep.subr.mxu0 0.0
        %1246 = vmatpush2.msra.mxu0 0.0
        %1247 = vmatprep.mubr.f32.mxu0 0.0
        %1248 = vmatmul.mubr.f32.gmra.mxu0 %v1179
        %v1249 = vpop.f32.mrf.mxu0
        %v1250 = vadd.f32 0.0, %v1249
        %v1251 = vpop.f32.mrf.mxu0
        %1252 = vdwg.mxu0
        %1253 = vrot.lane.b32.xlu0 %v665, 64
        %v1254 = vpop.permute.xlu0 %1253
        %v1256 = vsel %vm1022, %v1019, 0
        %v1258 = vsel %vm1026, %v1254, 0
        %1260 = vmatprep.subr.mxu0 0.0
        %1261 = vmatpush1.msra.mxu0 0.0
        %1262 = vmatprep.subr.mxu0 0.0
        %1263 = vmatpush1.msra.mxu0 0.0
        %1264 = vmatprep.subr.mxu0 0.0
        %1265 = vmatpush1.msra.mxu0 0.0
        %1266 = vmatprep.subr.mxu0 0.0
        %1267 = vmatpush1.msra.mxu0 0.0
        %1268 = vmatprep.subr.mxu0 0.0
        %1269 = vmatpush1.msra.mxu0 0.0
        %1270 = vmatprep.subr.mxu0 0.0
        %1271 = vmatpush1.msra.mxu0 0.0
        %1272 = vmatprep.subr.mxu0 0.0
        %1273 = vmatpush1.msra.mxu0 0.0
        %1274 = vmatprep.subr.mxu0 0.0
        %1275 = vmatpush1.msra.mxu0 0.0
        %1276 = vmatprep.subr.mxu0 0.0
        %1277 = vmatpush1.msra.mxu0 0.0
        %1278 = vmatprep.subr.mxu0 0.0
        %1279 = vmatpush1.msra.mxu0 0.0
        %1280 = vmatprep.subr.mxu0 0.0
        %1281 = vmatpush1.msra.mxu0 0.0
        %1282 = vmatprep.subr.mxu0 0.0
        %1283 = vmatpush1.msra.mxu0 0.0
        %1284 = vmatprep.subr.mxu0 0.0
        %1285 = vmatpush1.msra.mxu0 0.0
        %1286 = vmatprep.subr.mxu0 0.0
        %1287 = vmatpush1.msra.mxu0 0.0
        %1288 = vmatprep.subr.mxu0 0.0
        %1289 = vmatpush1.msra.mxu0 0.0
        %1290 = vmatprep.subr.mxu0 0.0
        %1291 = vmatpush1.msra.mxu0 %v1258
        %1292 = vmatprep.subr.mxu0 0.0
        %1293 = vmatpush2.msra.mxu0 0.0
        %1294 = vmatprep.subr.mxu0 0.0
        %1295 = vmatpush2.msra.mxu0 0.0
        %1296 = vmatprep.subr.mxu0 0.0
        %1297 = vmatpush2.msra.mxu0 0.0
        %1298 = vmatprep.subr.mxu0 0.0
        %1299 = vmatpush2.msra.mxu0 0.0
        %1300 = vmatprep.subr.mxu0 0.0
        %1301 = vmatpush2.msra.mxu0 0.0
        %1302 = vmatprep.subr.mxu0 0.0
        %1303 = vmatpush2.msra.mxu0 0.0
        %1304 = vmatprep.subr.mxu0 0.0
        %1305 = vmatpush2.msra.mxu0 0.0
        %1306 = vmatprep.subr.mxu0 0.0
        %1307 = vmatpush2.msra.mxu0 0.0
        %1308 = vmatprep.subr.mxu0 0.0
        %1309 = vmatpush2.msra.mxu0 0.0
        %1310 = vmatprep.subr.mxu0 0.0
        %1311 = vmatpush2.msra.mxu0 0.0
        %1312 = vmatprep.subr.mxu0 0.0
        %1313 = vmatpush2.msra.mxu0 0.0
        %1314 = vmatprep.subr.mxu0 0.0
        %1315 = vmatpush2.msra.mxu0 0.0
        %1316 = vmatprep.subr.mxu0 0.0
        %1317 = vmatpush2.msra.mxu0 0.0
        %1318 = vmatprep.subr.mxu0 0.0
        %1319 = vmatpush2.msra.mxu0 0.0
        %1320 = vmatprep.subr.mxu0 0.0
        %1321 = vmatpush2.msra.mxu0 0.0
        %1322 = vmatprep.subr.mxu0 0.0
        %1323 = vmatpush2.msra.mxu0 0.0
        %1324 = vmatprep.mubr.f32.mxu0 0.0
        %1325 = vmatmul.mubr.f32.gmra.mxu0 %v1256
        %v1326 = vpop.f32.mrf.mxu0
        %v1327 = vadd.f32 0.0, %v1326
        %v1328 = vpop.f32.mrf.mxu0
        %1329 = vdwg.mxu0
        %1330 = vrot.lane.b32.xlu0 %v654, 120
        %v1331 = vpop.permute.xlu0 %1330
        %1332 = vrot.lane.b32.xlu0 %v654, 88
        %v1333 = vpop.permute.xlu0 %1332
        %v1334 = vsel %vm668, %v1331, 0
        %v1336 = vsel %vm668, %v1333, 0
        %1338 = vmatprep.subr.mxu0 0.0
        %1339 = vmatpush1.xpose.msra.mxu0 0.0
        %1340 = vmatprep.subr.mxu0 0.0
        %1341 = vmatpush1.xpose.msra.mxu0 0.0
        %1342 = vmatprep.subr.mxu0 0.0
        %1343 = vmatpush1.xpose.msra.mxu0 0.0
        %1344 = vmatprep.subr.mxu0 0.0
        %1345 = vmatpush1.xpose.msra.mxu0 0.0
        %1346 = vmatprep.subr.mxu0 0.0
        %1347 = vmatpush1.xpose.msra.mxu0 0.0
        %1348 = vmatprep.subr.mxu0 0.0
        %1349 = vmatpush1.xpose.msra.mxu0 0.0
        %1350 = vmatprep.subr.mxu0 0.0
        %1351 = vmatpush1.xpose.msra.mxu0 0.0
        %1352 = vmatprep.subr.mxu0 0.0
        %1353 = vmatpush1.xpose.msra.mxu0 0.0
        %1354 = vmatprep.subr.mxu0 0.0
        %1355 = vmatpush1.xpose.msra.mxu0 0.0
        %1356 = vmatprep.subr.mxu0 0.0
        %1357 = vmatpush1.xpose.msra.mxu0 0.0
        %1358 = vmatprep.subr.mxu0 0.0
        %1359 = vmatpush1.xpose.msra.mxu0 0.0
        %1360 = vmatprep.subr.mxu0 0.0
        %1361 = vmatpush1.xpose.msra.mxu0 0.0
        %1362 = vmatprep.subr.mxu0 0.0
        %1363 = vmatpush1.xpose.msra.mxu0 0.0
        %1364 = vmatprep.subr.mxu0 0.0
        %1365 = vmatpush1.xpose.msra.mxu0 0.0
        %1366 = vmatprep.subr.mxu0 0.0
        %1367 = vmatpush1.xpose.msra.mxu0 0.0
        %1368 = vmatprep.subr.mxu0 0.0
        %1369 = vmatpush1.xpose.msra.mxu0 %v1336
        %1370 = vmatprep.subr.mxu0 0.0
        %1371 = vmatpush2.xpose.msra.mxu0 0.0
        %1372 = vmatprep.subr.mxu0 0.0
        %1373 = vmatpush2.xpose.msra.mxu0 0.0
        %1374 = vmatprep.subr.mxu0 0.0
        %1375 = vmatpush2.xpose.msra.mxu0 0.0
        %1376 = vmatprep.subr.mxu0 0.0
        %1377 = vmatpush2.xpose.msra.mxu0 0.0
        %1378 = vmatprep.subr.mxu0 0.0
        %1379 = vmatpush2.xpose.msra.mxu0 0.0
        %1380 = vmatprep.subr.mxu0 0.0
        %1381 = vmatpush2.xpose.msra.mxu0 0.0
        %1382 = vmatprep.subr.mxu0 0.0
        %1383 = vmatpush2.xpose.msra.mxu0 0.0
        %1384 = vmatprep.subr.mxu0 0.0
        %1385 = vmatpush2.xpose.msra.mxu0 0.0
        %1386 = vmatprep.subr.mxu0 0.0
        %1387 = vmatpush2.xpose.msra.mxu0 0.0
        %1388 = vmatprep.subr.mxu0 0.0
        %1389 = vmatpush2.xpose.msra.mxu0 0.0
        %1390 = vmatprep.subr.mxu0 0.0
        %1391 = vmatpush2.xpose.msra.mxu0 0.0
        %1392 = vmatprep.subr.mxu0 0.0
        %1393 = vmatpush2.xpose.msra.mxu0 0.0
        %1394 = vmatprep.subr.mxu0 0.0
        %1395 = vmatpush2.xpose.msra.mxu0 0.0
        %1396 = vmatprep.subr.mxu0 0.0
        %1397 = vmatpush2.xpose.msra.mxu0 0.0
        %1398 = vmatprep.subr.mxu0 0.0
        %1399 = vmatpush2.xpose.msra.mxu0 0.0
        %1400 = vmatprep.subr.mxu0 0.0
        %1401 = vmatpush2.xpose.msra.mxu0 0.0
        %1402 = vmatprep.mubr.f32.mxu0 0.0
        %1403 = vmatmul.mubr.f32.gmra.mxu0 %v1334
        %v1404 = vpop.f32.mrf.mxu0
        %v1405 = vadd.f32 0.0, %v1404
        %v1406 = vpop.f32.mrf.mxu0
        %1407 = vdwg.mxu0
        %1408 = vrot.lane.b32.xlu0 %v664, 120
        %v1409 = vpop.permute.xlu0 %1408
        %1410 = vrot.lane.b32.xlu0 %v664, 88
        %v1411 = vpop.permute.xlu0 %1410
        %v1412 = vsel %vm668, %v1409, 0
        %v1414 = vsel %vm668, %v1411, 0
        %1416 = vmatprep.subr.mxu0 0.0
        %1417 = vmatpush1.xpose.msra.mxu0 0.0
        %1418 = vmatprep.subr.mxu0 0.0
        %1419 = vmatpush1.xpose.msra.mxu0 0.0
        %1420 = vmatprep.subr.mxu0 0.0
        %1421 = vmatpush1.xpose.msra.mxu0 0.0
        %1422 = vmatprep.subr.mxu0 0.0
        %1423 = vmatpush1.xpose.msra.mxu0 0.0
        %1424 = vmatprep.subr.mxu0 0.0
        %1425 = vmatpush1.xpose.msra.mxu0 0.0
        %1426 = vmatprep.subr.mxu0 0.0
        %1427 = vmatpush1.xpose.msra.mxu0 0.0
        %1428 = vmatprep.subr.mxu0 0.0
        %1429 = vmatpush1.xpose.msra.mxu0 0.0
        %1430 = vmatprep.subr.mxu0 0.0
        %1431 = vmatpush1.xpose.msra.mxu0 0.0
        %1432 = vmatprep.subr.mxu0 0.0
        %1433 = vmatpush1.xpose.msra.mxu0 0.0
        %1434 = vmatprep.subr.mxu0 0.0
        %1435 = vmatpush1.xpose.msra.mxu0 0.0
        %1436 = vmatprep.subr.mxu0 0.0
        %1437 = vmatpush1.xpose.msra.mxu0 0.0
        %1438 = vmatprep.subr.mxu0 0.0
        %1439 = vmatpush1.xpose.msra.mxu0 0.0
        %1440 = vmatprep.subr.mxu0 0.0
        %1441 = vmatpush1.xpose.msra.mxu0 0.0
        %1442 = vmatprep.subr.mxu0 0.0
        %1443 = vmatpush1.xpose.msra.mxu0 0.0
        %1444 = vmatprep.subr.mxu0 0.0
        %1445 = vmatpush1.xpose.msra.mxu0 0.0
        %1446 = vmatprep.subr.mxu0 0.0
        %1447 = vmatpush1.xpose.msra.mxu0 %v1414
        %1448 = vmatprep.subr.mxu0 0.0
        %1449 = vmatpush2.xpose.msra.mxu0 0.0
        %1450 = vmatprep.subr.mxu0 0.0
        %1451 = vmatpush2.xpose.msra.mxu0 0.0
        %1452 = vmatprep.subr.mxu0 0.0
        %1453 = vmatpush2.xpose.msra.mxu0 0.0
        %1454 = vmatprep.subr.mxu0 0.0
        %1455 = vmatpush2.xpose.msra.mxu0 0.0
        %1456 = vmatprep.subr.mxu0 0.0
        %1457 = vmatpush2.xpose.msra.mxu0 0.0
        %1458 = vmatprep.subr.mxu0 0.0
        %1459 = vmatpush2.xpose.msra.mxu0 0.0
        %1460 = vmatprep.subr.mxu0 0.0
        %1461 = vmatpush2.xpose.msra.mxu0 0.0
        %1462 = vmatprep.subr.mxu0 0.0
        %1463 = vmatpush2.xpose.msra.mxu0 0.0
        %1464 = vmatprep.subr.mxu0 0.0
        %1465 = vmatpush2.xpose.msra.mxu0 0.0
        %1466 = vmatprep.subr.mxu0 0.0
        %1467 = vmatpush2.xpose.msra.mxu0 0.0
        %1468 = vmatprep.subr.mxu0 0.0
        %1469 = vmatpush2.xpose.msra.mxu0 0.0
        %1470 = vmatprep.subr.mxu0 0.0
        %1471 = vmatpush2.xpose.msra.mxu0 0.0
        %1472 = vmatprep.subr.mxu0 0.0
        %1473 = vmatpush2.xpose.msra.mxu0 0.0
        %1474 = vmatprep.subr.mxu0 0.0
        %1475 = vmatpush2.xpose.msra.mxu0 0.0
        %1476 = vmatprep.subr.mxu0 0.0
        %1477 = vmatpush2.xpose.msra.mxu0 0.0
        %1478 = vmatprep.subr.mxu0 0.0
        %1479 = vmatpush2.xpose.msra.mxu0 0.0
        %1480 = vmatprep.mubr.f32.mxu0 0.0
        %1481 = vmatmul.mubr.f32.gmra.mxu0 %v1412
        %v1482 = vpop.f32.mrf.mxu0
        %v1483 = vadd.f32 0.0, %v1482
        %v1484 = vpop.f32.mrf.mxu0
        %1485 = vdwg.mxu0
        %1486 = vrot.lane.b32.xlu0 %v659, 120
        %v1487 = vpop.permute.xlu0 %1486
        %1488 = vrot.lane.b32.xlu0 %v659, 88
        %v1489 = vpop.permute.xlu0 %1488
        %v1490 = vsel %vm668, %v1487, 0
        %v1492 = vsel %vm668, %v1489, 0
        %1494 = vmatprep.subr.mxu0 0.0
        %1495 = vmatpush1.xpose.msra.mxu0 0.0
        %1496 = vmatprep.subr.mxu0 0.0
        %1497 = vmatpush1.xpose.msra.mxu0 0.0
        %1498 = vmatprep.subr.mxu0 0.0
        %1499 = vmatpush1.xpose.msra.mxu0 0.0
        %1500 = vmatprep.subr.mxu0 0.0
        %1501 = vmatpush1.xpose.msra.mxu0 0.0
        %1502 = vmatprep.subr.mxu0 0.0
        %1503 = vmatpush1.xpose.msra.mxu0 0.0
        %1504 = vmatprep.subr.mxu0 0.0
        %1505 = vmatpush1.xpose.msra.mxu0 0.0
        %1506 = vmatprep.subr.mxu0 0.0
        %1507 = vmatpush1.xpose.msra.mxu0 0.0
        %1508 = vmatprep.subr.mxu0 0.0
        %1509 = vmatpush1.xpose.msra.mxu0 0.0
        %1510 = vmatprep.subr.mxu0 0.0
        %1511 = vmatpush1.xpose.msra.mxu0 0.0
        %1512 = vmatprep.subr.mxu0 0.0
        %1513 = vmatpush1.xpose.msra.mxu0 0.0
        %1514 = vmatprep.subr.mxu0 0.0
        %1515 = vmatpush1.xpose.msra.mxu0 0.0
        %1516 = vmatprep.subr.mxu0 0.0
        %1517 = vmatpush1.xpose.msra.mxu0 0.0
        %1518 = vmatprep.subr.mxu0 0.0
        %1519 = vmatpush1.xpose.msra.mxu0 0.0
        %1520 = vmatprep.subr.mxu0 0.0
        %1521 = vmatpush1.xpose.msra.mxu0 0.0
        %1522 = vmatprep.subr.mxu0 0.0
        %1523 = vmatpush1.xpose.msra.mxu0 0.0
        %1524 = vmatprep.subr.mxu0 0.0
        %1525 = vmatpush1.xpose.msra.mxu0 %v1492
        %1526 = vmatprep.subr.mxu0 0.0
        %1527 = vmatpush2.xpose.msra.mxu0 0.0
        %1528 = vmatprep.subr.mxu0 0.0
        %1529 = vmatpush2.xpose.msra.mxu0 0.0
        %1530 = vmatprep.subr.mxu0 0.0
        %1531 = vmatpush2.xpose.msra.mxu0 0.0
        %1532 = vmatprep.subr.mxu0 0.0
        %1533 = vmatpush2.xpose.msra.mxu0 0.0
        %1534 = vmatprep.subr.mxu0 0.0
        %1535 = vmatpush2.xpose.msra.mxu0 0.0
        %1536 = vmatprep.subr.mxu0 0.0
        %1537 = vmatpush2.xpose.msra.mxu0 0.0
        %1538 = vmatprep.subr.mxu0 0.0
        %1539 = vmatpush2.xpose.msra.mxu0 0.0
        %1540 = vmatprep.subr.mxu0 0.0
        %1541 = vmatpush2.xpose.msra.mxu0 0.0
        %1542 = vmatprep.subr.mxu0 0.0
        %1543 = vmatpush2.xpose.msra.mxu0 0.0
        %1544 = vmatprep.subr.mxu0 0.0
        %1545 = vmatpush2.xpose.msra.mxu0 0.0
        %1546 = vmatprep.subr.mxu0 0.0
        %1547 = vmatpush2.xpose.msra.mxu0 0.0
        %1548 = vmatprep.subr.mxu0 0.0
        %1549 = vmatpush2.xpose.msra.mxu0 0.0
        %1550 = vmatprep.subr.mxu0 0.0
        %1551 = vmatpush2.xpose.msra.mxu0 0.0
        %1552 = vmatprep.subr.mxu0 0.0
        %1553 = vmatpush2.xpose.msra.mxu0 0.0
        %1554 = vmatprep.subr.mxu0 0.0
        %1555 = vmatpush2.xpose.msra.mxu0 0.0
        %1556 = vmatprep.subr.mxu0 0.0
        %1557 = vmatpush2.xpose.msra.mxu0 0.0
        %1558 = vmatprep.mubr.f32.mxu0 0.0
        %1559 = vmatmul.mubr.f32.gmra.mxu0 %v1490
        %v1560 = vpop.f32.mrf.mxu0
        %v1561 = vadd.f32 0.0, %v1560
        %v1562 = vpop.f32.mrf.mxu0
        %1563 = vdwg.mxu0
        %1564 = vrot.lane.b32.xlu0 %v665, 120
        %v1565 = vpop.permute.xlu0 %1564
        %1566 = vrot.lane.b32.xlu0 %v665, 88
        %v1567 = vpop.permute.xlu0 %1566
        %v1568 = vsel %vm668, %v1565, 0
        %v1570 = vsel %vm668, %v1567, 0
        %1572 = vmatprep.subr.mxu0 0.0
        %1573 = vmatpush1.xpose.msra.mxu0 0.0
        %1574 = vmatprep.subr.mxu0 0.0
        %1575 = vmatpush1.xpose.msra.mxu0 0.0
        %1576 = vmatprep.subr.mxu0 0.0
        %1577 = vmatpush1.xpose.msra.mxu0 0.0
        %1578 = vmatprep.subr.mxu0 0.0
        %1579 = vmatpush1.xpose.msra.mxu0 0.0
        %1580 = vmatprep.subr.mxu0 0.0
        %1581 = vmatpush1.xpose.msra.mxu0 0.0
        %1582 = vmatprep.subr.mxu0 0.0
        %1583 = vmatpush1.xpose.msra.mxu0 0.0
        %1584 = vmatprep.subr.mxu0 0.0
        %1585 = vmatpush1.xpose.msra.mxu0 0.0
        %1586 = vmatprep.subr.mxu0 0.0
        %1587 = vmatpush1.xpose.msra.mxu0 0.0
        %1588 = vmatprep.subr.mxu0 0.0
        %1589 = vmatpush1.xpose.msra.mxu0 0.0
        %1590 = vmatprep.subr.mxu0 0.0
        %1591 = vmatpush1.xpose.msra.mxu0 0.0
        %1592 = vmatprep.subr.mxu0 0.0
        %1593 = vmatpush1.xpose.msra.mxu0 0.0
        %1594 = vmatprep.subr.mxu0 0.0
        %1595 = vmatpush1.xpose.msra.mxu0 0.0
        %1596 = vmatprep.subr.mxu0 0.0
        %1597 = vmatpush1.xpose.msra.mxu0 0.0
        %1598 = vmatprep.subr.mxu0 0.0
        %1599 = vmatpush1.xpose.msra.mxu0 0.0
        %1600 = vmatprep.subr.mxu0 0.0
        %1601 = vmatpush1.xpose.msra.mxu0 0.0
        %1602 = vmatprep.subr.mxu0 0.0
        %1603 = vmatpush1.xpose.msra.mxu0 %v1570
        %1604 = vmatprep.subr.mxu0 0.0
        %1605 = vmatpush2.xpose.msra.mxu0 0.0
        %1606 = vmatprep.subr.mxu0 0.0
        %1607 = vmatpush2.xpose.msra.mxu0 0.0
        %1608 = vmatprep.subr.mxu0 0.0
        %1609 = vmatpush2.xpose.msra.mxu0 0.0
        %1610 = vmatprep.subr.mxu0 0.0
        %1611 = vmatpush2.xpose.msra.mxu0 0.0
        %1612 = vmatprep.subr.mxu0 0.0
        %1613 = vmatpush2.xpose.msra.mxu0 0.0
        %1614 = vmatprep.subr.mxu0 0.0
        %1615 = vmatpush2.xpose.msra.mxu0 0.0
        %1616 = vmatprep.subr.mxu0 0.0
        %1617 = vmatpush2.xpose.msra.mxu0 0.0
        %1618 = vmatprep.subr.mxu0 0.0
        %1619 = vmatpush2.xpose.msra.mxu0 0.0
        %1620 = vmatprep.subr.mxu0 0.0
        %1621 = vmatpush2.xpose.msra.mxu0 0.0
        %1622 = vmatprep.subr.mxu0 0.0
        %1623 = vmatpush2.xpose.msra.mxu0 0.0
        %1624 = vmatprep.subr.mxu0 0.0
        %1625 = vmatpush2.xpose.msra.mxu0 0.0
        %1626 = vmatprep.subr.mxu0 0.0
        %1627 = vmatpush2.xpose.msra.mxu0 0.0
        %1628 = vmatprep.subr.mxu0 0.0
        %1629 = vmatpush2.xpose.msra.mxu0 0.0
        %1630 = vmatprep.subr.mxu0 0.0
        %1631 = vmatpush2.xpose.msra.mxu0 0.0
        %1632 = vmatprep.subr.mxu0 0.0
        %1633 = vmatpush2.xpose.msra.mxu0 0.0
        %1634 = vmatprep.subr.mxu0 0.0
        %1635 = vmatpush2.xpose.msra.mxu0 0.0
        %1636 = vmatprep.mubr.f32.mxu0 0.0
        %1637 = vmatmul.mubr.f32.gmra.mxu0 %v1568
        %v1638 = vpop.f32.mrf.mxu0
        %v1639 = vadd.f32 0.0, %v1638
        %v1640 = vpop.f32.mrf.mxu0
        %1641 = vdwg.mxu0
        %v1642 = vmul.f32 %v1405, 0.35355338
        %v1643 = vmul.f32 %v1483, 0.35355338
        %v1644 = vmul.f32 %v1561, 0.35355338
        %v1645 = vmul.f32 %v1639, 0.35355338
        %v1646 = vsel %vm975, %v1642, -inf
        %1647 = vmax.xlane.f32.xlu0 %v1646
        %v1648 = vpop.xlane.xlu0 %1647
        %v1649 = vsel %vm975, %v1643, -inf
        %1650 = vmax.xlane.f32.xlu0 %v1649
        %v1651 = vpop.xlane.xlu0 %1650
        %v1652 = vsel %vm975, %v1644, -inf
        %1653 = vmax.xlane.f32.xlu0 %v1652
        %v1654 = vpop.xlane.xlu0 %1653
        %v1655 = vsel %vm975, %v1645, -inf
        %1656 = vmax.xlane.f32.xlu0 %v1655
        %v1657 = vpop.xlane.xlu0 %1656
        %v1658 = vsub.f32 %v1642, %v1648
        %v1659 = vsub.f32 %v1643, %v1651
        %v1660 = vsub.f32 %v1644, %v1654
        %v1661 = vsub.f32 %v1645, %v1657
        %v1662 = vmul.f32 %v1658, 1.442695
        %v1663 = vpow.pop %v1662
        %v1664 = vmul.f32 %v1659, 1.442695
        %v1665 = vpow.pop %v1664
        %v1666 = vmul.f32 %v1660, 1.442695
        %v1667 = vpow.pop %v1666
        %v1668 = vmul.f32 %v1661, 1.442695
        %v1669 = vpow.pop %v1668
        %v1670 = vsel %vm975, %v1663, 0.0
        %1671 = vadd.xlane.f32.xlu0 %v1670
        %v1672 = vpop.xlane.xlu0 %1671
        %v1673 = vsel %vm975, %v1665, 0.0
        %1674 = vadd.xlane.f32.xlu0 %v1673
        %v1675 = vpop.xlane.xlu0 %1674
        %v1676 = vsel %vm975, %v1667, 0.0
        %1677 = vadd.xlane.f32.xlu0 %v1676
        %v1678 = vpop.xlane.xlu0 %1677
        %v1679 = vsel %vm975, %v1669, 0.0
        %1680 = vadd.xlane.f32.xlu0 %v1679
        %v1681 = vpop.xlane.xlu0 %1680
        %v1682 = vrcp.pop %v1672
        %v1683 = vrcp.pop %v1675
        %v1684 = vrcp.pop %v1678
        %v1685 = vrcp.pop %v1681
        %v1686 = vmul.f32 %v1663, %v1682
        %v1687 = vmul.f32 %v1665, %v1683
        %v1688 = vmul.f32 %v1667, %v1684
        %v1689 = vmul.f32 %v1669, %v1685
        %1690 = vrot.lane.b32.xlu0 %v654, 56
        %v1691 = vpop.permute.xlu0 %1690
        %v1693 = vsel %vm1022, %v1686, 0
        %v1695 = vsel %vm1026, %v1691, 0
        %1697 = vmatprep.subr.mxu0 0.0
        %1698 = vmatpush1.msra.mxu0 0.0
        %1699 = vmatprep.subr.mxu0 0.0
        %1700 = vmatpush1.msra.mxu0 0.0
        %1701 = vmatprep.subr.mxu0 0.0
        %1702 = vmatpush1.msra.mxu0 0.0
        %1703 = vmatprep.subr.mxu0 0.0
        %1704 = vmatpush1.msra.mxu0 0.0
        %1705 = vmatprep.subr.mxu0 0.0
        %1706 = vmatpush1.msra.mxu0 0.0
        %1707 = vmatprep.subr.mxu0 0.0
        %1708 = vmatpush1.msra.mxu0 0.0
        %1709 = vmatprep.subr.mxu0 0.0
        %1710 = vmatpush1.msra.mxu0 0.0
        %1711 = vmatprep.subr.mxu0 0.0
        %1712 = vmatpush1.msra.mxu0 0.0
        %1713 = vmatprep.subr.mxu0 0.0
        %1714 = vmatpush1.msra.mxu0 0.0
        %1715 = vmatprep.subr.mxu0 0.0
        %1716 = vmatpush1.msra.mxu0 0.0
        %1717 = vmatprep.subr.mxu0 0.0
        %1718 = vmatpush1.msra.mxu0 0.0
        %1719 = vmatprep.subr.mxu0 0.0
        %1720 = vmatpush1.msra.mxu0 0.0
        %1721 = vmatprep.subr.mxu0 0.0
        %1722 = vmatpush1.msra.mxu0 0.0
        %1723 = vmatprep.subr.mxu0 0.0
        %1724 = vmatpush1.msra.mxu0 0.0
        %1725 = vmatprep.subr.mxu0 0.0
        %1726 = vmatpush1.msra.mxu0 0.0
        %1727 = vmatprep.subr.mxu0 0.0
        %1728 = vmatpush1.msra.mxu0 %v1695
        %1729 = vmatprep.subr.mxu0 0.0
        %1730 = vmatpush2.msra.mxu0 0.0
        %1731 = vmatprep.subr.mxu0 0.0
        %1732 = vmatpush2.msra.mxu0 0.0
        %1733 = vmatprep.subr.mxu0 0.0
        %1734 = vmatpush2.msra.mxu0 0.0
        %1735 = vmatprep.subr.mxu0 0.0
        %1736 = vmatpush2.msra.mxu0 0.0
        %1737 = vmatprep.subr.mxu0 0.0
        %1738 = vmatpush2.msra.mxu0 0.0
        %1739 = vmatprep.subr.mxu0 0.0
        %1740 = vmatpush2.msra.mxu0 0.0
        %1741 = vmatprep.subr.mxu0 0.0
        %1742 = vmatpush2.msra.mxu0 0.0
        %1743 = vmatprep.subr.mxu0 0.0
        %1744 = vmatpush2.msra.mxu0 0.0
        %1745 = vmatprep.subr.mxu0 0.0
        %1746 = vmatpush2.msra.mxu0 0.0
        %1747 = vmatprep.subr.mxu0 0.0
        %1748 = vmatpush2.msra.mxu0 0.0
        %1749 = vmatprep.subr.mxu0 0.0
        %1750 = vmatpush2.msra.mxu0 0.0
        %1751 = vmatprep.subr.mxu0 0.0
        %1752 = vmatpush2.msra.mxu0 0.0
        %1753 = vmatprep.subr.mxu0 0.0
        %1754 = vmatpush2.msra.mxu0 0.0
        %1755 = vmatprep.subr.mxu0 0.0
        %1756 = vmatpush2.msra.mxu0 0.0
        %1757 = vmatprep.subr.mxu0 0.0
        %1758 = vmatpush2.msra.mxu0 0.0
        %1759 = vmatprep.subr.mxu0 0.0
        %1760 = vmatpush2.msra.mxu0 0.0
        %1761 = vmatprep.mubr.f32.mxu0 0.0
        %1762 = vmatmul.mubr.f32.gmra.mxu0 %v1693
        %v1763 = vpop.f32.mrf.mxu0
        %v1764 = vadd.f32 0.0, %v1763
        %v1765 = vpop.f32.mrf.mxu0
        %1766 = vdwg.mxu0
        %1767 = vrot.lane.b32.xlu0 %v664, 56
        %v1768 = vpop.permute.xlu0 %1767
        %v1770 = vsel %vm1022, %v1687, 0
        %v1772 = vsel %vm1026, %v1768, 0
        %1774 = vmatprep.subr.mxu0 0.0
        %1775 = vmatpush1.msra.mxu0 0.0
        %1776 = vmatprep.subr.mxu0 0.0
        %1777 = vmatpush1.msra.mxu0 0.0
        %1778 = vmatprep.subr.mxu0 0.0
        %1779 = vmatpush1.msra.mxu0 0.0
        %1780 = vmatprep.subr.mxu0 0.0
        %1781 = vmatpush1.msra.mxu0 0.0
        %1782 = vmatprep.subr.mxu0 0.0
        %1783 = vmatpush1.msra.mxu0 0.0
        %1784 = vmatprep.subr.mxu0 0.0
        %1785 = vmatpush1.msra.mxu0 0.0
        %1786 = vmatprep.subr.mxu0 0.0
        %1787 = vmatpush1.msra.mxu0 0.0
        %1788 = vmatprep.subr.mxu0 0.0
        %1789 = vmatpush1.msra.mxu0 0.0
        %1790 = vmatprep.subr.mxu0 0.0
        %1791 = vmatpush1.msra.mxu0 0.0
        %1792 = vmatprep.subr.mxu0 0.0
        %1793 = vmatpush1.msra.mxu0 0.0
        %1794 = vmatprep.subr.mxu0 0.0
        %1795 = vmatpush1.msra.mxu0 0.0
        %1796 = vmatprep.subr.mxu0 0.0
        %1797 = vmatpush1.msra.mxu0 0.0
        %1798 = vmatprep.subr.mxu0 0.0
        %1799 = vmatpush1.msra.mxu0 0.0
        %1800 = vmatprep.subr.mxu0 0.0
        %1801 = vmatpush1.msra.mxu0 0.0
        %1802 = vmatprep.subr.mxu0 0.0
        %1803 = vmatpush1.msra.mxu0 0.0
        %1804 = vmatprep.subr.mxu0 0.0
        %1805 = vmatpush1.msra.mxu0 %v1772
        %1806 = vmatprep.subr.mxu0 0.0
        %1807 = vmatpush2.msra.mxu0 0.0
        %1808 = vmatprep.subr.mxu0 0.0
        %1809 = vmatpush2.msra.mxu0 0.0
        %1810 = vmatprep.subr.mxu0 0.0
        %1811 = vmatpush2.msra.mxu0 0.0
        %1812 = vmatprep.subr.mxu0 0.0
        %1813 = vmatpush2.msra.mxu0 0.0
        %1814 = vmatprep.subr.mxu0 0.0
        %1815 = vmatpush2.msra.mxu0 0.0
        %1816 = vmatprep.subr.mxu0 0.0
        %1817 = vmatpush2.msra.mxu0 0.0
        %1818 = vmatprep.subr.mxu0 0.0
        %1819 = vmatpush2.msra.mxu0 0.0
        %1820 = vmatprep.subr.mxu0 0.0
        %1821 = vmatpush2.msra.mxu0 0.0
        %1822 = vmatprep.subr.mxu0 0.0
        %1823 = vmatpush2.msra.mxu0 0.0
        %1824 = vmatprep.subr.mxu0 0.0
        %1825 = vmatpush2.msra.mxu0 0.0
        %1826 = vmatprep.subr.mxu0 0.0
        %1827 = vmatpush2.msra.mxu0 0.0
        %1828 = vmatprep.subr.mxu0 0.0
        %1829 = vmatpush2.msra.mxu0 0.0
        %1830 = vmatprep.subr.mxu0 0.0
        %1831 = vmatpush2.msra.mxu0 0.0
        %1832 = vmatprep.subr.mxu0 0.0
        %1833 = vmatpush2.msra.mxu0 0.0
        %1834 = vmatprep.subr.mxu0 0.0
        %1835 = vmatpush2.msra.mxu0 0.0
        %1836 = vmatprep.subr.mxu0 0.0
        %1837 = vmatpush2.msra.mxu0 0.0
        %1838 = vmatprep.mubr.f32.mxu0 0.0
        %1839 = vmatmul.mubr.f32.gmra.mxu0 %v1770
        %v1840 = vpop.f32.mrf.mxu0
        %v1841 = vadd.f32 0.0, %v1840
        %v1842 = vpop.f32.mrf.mxu0
        %1843 = vdwg.mxu0
        %1844 = vrot.lane.b32.xlu0 %v659, 56
        %v1845 = vpop.permute.xlu0 %1844
        %v1847 = vsel %vm1022, %v1688, 0
        %v1849 = vsel %vm1026, %v1845, 0
        %1851 = vmatprep.subr.mxu0 0.0
        %1852 = vmatpush1.msra.mxu0 0.0
        %1853 = vmatprep.subr.mxu0 0.0
        %1854 = vmatpush1.msra.mxu0 0.0
        %1855 = vmatprep.subr.mxu0 0.0
        %1856 = vmatpush1.msra.mxu0 0.0
        %1857 = vmatprep.subr.mxu0 0.0
        %1858 = vmatpush1.msra.mxu0 0.0
        %1859 = vmatprep.subr.mxu0 0.0
        %1860 = vmatpush1.msra.mxu0 0.0
        %1861 = vmatprep.subr.mxu0 0.0
        %1862 = vmatpush1.msra.mxu0 0.0
        %1863 = vmatprep.subr.mxu0 0.0
        %1864 = vmatpush1.msra.mxu0 0.0
        %1865 = vmatprep.subr.mxu0 0.0
        %1866 = vmatpush1.msra.mxu0 0.0
        %1867 = vmatprep.subr.mxu0 0.0
        %1868 = vmatpush1.msra.mxu0 0.0
        %1869 = vmatprep.subr.mxu0 0.0
        %1870 = vmatpush1.msra.mxu0 0.0
        %1871 = vmatprep.subr.mxu0 0.0
        %1872 = vmatpush1.msra.mxu0 0.0
        %1873 = vmatprep.subr.mxu0 0.0
        %1874 = vmatpush1.msra.mxu0 0.0
        %1875 = vmatprep.subr.mxu0 0.0
        %1876 = vmatpush1.msra.mxu0 0.0
        %1877 = vmatprep.subr.mxu0 0.0
        %1878 = vmatpush1.msra.mxu0 0.0
        %1879 = vmatprep.subr.mxu0 0.0
        %1880 = vmatpush1.msra.mxu0 0.0
        %1881 = vmatprep.subr.mxu0 0.0
        %1882 = vmatpush1.msra.mxu0 %v1849
        %1883 = vmatprep.subr.mxu0 0.0
        %1884 = vmatpush2.msra.mxu0 0.0
        %1885 = vmatprep.subr.mxu0 0.0
        %1886 = vmatpush2.msra.mxu0 0.0
        %1887 = vmatprep.subr.mxu0 0.0
        %1888 = vmatpush2.msra.mxu0 0.0
        %1889 = vmatprep.subr.mxu0 0.0
        %1890 = vmatpush2.msra.mxu0 0.0
        %1891 = vmatprep.subr.mxu0 0.0
        %1892 = vmatpush2.msra.mxu0 0.0
        %1893 = vmatprep.subr.mxu0 0.0
        %1894 = vmatpush2.msra.mxu0 0.0
        %1895 = vmatprep.subr.mxu0 0.0
        %1896 = vmatpush2.msra.mxu0 0.0
        %1897 = vmatprep.subr.mxu0 0.0
        %1898 = vmatpush2.msra.mxu0 0.0
        %1899 = vmatprep.subr.mxu0 0.0
        %1900 = vmatpush2.msra.mxu0 0.0
        %1901 = vmatprep.subr.mxu0 0.0
        %1902 = vmatpush2.msra.mxu0 0.0
        %1903 = vmatprep.subr.mxu0 0.0
        %1904 = vmatpush2.msra.mxu0 0.0
        %1905 = vmatprep.subr.mxu0 0.0
        %1906 = vmatpush2.msra.mxu0 0.0
        %1907 = vmatprep.subr.mxu0 0.0
        %1908 = vmatpush2.msra.mxu0 0.0
        %1909 = vmatprep.subr.mxu0 0.0
        %1910 = vmatpush2.msra.mxu0 0.0
        %1911 = vmatprep.subr.mxu0 0.0
        %1912 = vmatpush2.msra.mxu0 0.0
        %1913 = vmatprep.subr.mxu0 0.0
        %1914 = vmatpush2.msra.mxu0 0.0
        %1915 = vmatprep.mubr.f32.mxu0 0.0
        %1916 = vmatmul.mubr.f32.gmra.mxu0 %v1847
        %v1917 = vpop.f32.mrf.mxu0
        %v1918 = vadd.f32 0.0, %v1917
        %v1919 = vpop.f32.mrf.mxu0
        %1920 = vdwg.mxu0
        %1921 = vrot.lane.b32.xlu0 %v665, 56
        %v1922 = vpop.permute.xlu0 %1921
        %v1924 = vsel %vm1022, %v1689, 0
        %v1926 = vsel %vm1026, %v1922, 0
        %1928 = vmatprep.subr.mxu0 0.0
        %1929 = vmatpush1.msra.mxu0 0.0
        %1930 = vmatprep.subr.mxu0 0.0
        %1931 = vmatpush1.msra.mxu0 0.0
        %1932 = vmatprep.subr.mxu0 0.0
        %1933 = vmatpush1.msra.mxu0 0.0
        %1934 = vmatprep.subr.mxu0 0.0
        %1935 = vmatpush1.msra.mxu0 0.0
        %1936 = vmatprep.subr.mxu0 0.0
        %1937 = vmatpush1.msra.mxu0 0.0
        %1938 = vmatprep.subr.mxu0 0.0
        %1939 = vmatpush1.msra.mxu0 0.0
        %1940 = vmatprep.subr.mxu0 0.0
        %1941 = vmatpush1.msra.mxu0 0.0
        %1942 = vmatprep.subr.mxu0 0.0
        %1943 = vmatpush1.msra.mxu0 0.0
        %1944 = vmatprep.subr.mxu0 0.0
        %1945 = vmatpush1.msra.mxu0 0.0
        %1946 = vmatprep.subr.mxu0 0.0
        %1947 = vmatpush1.msra.mxu0 0.0
        %1948 = vmatprep.subr.mxu0 0.0
        %1949 = vmatpush1.msra.mxu0 0.0
        %1950 = vmatprep.subr.mxu0 0.0
        %1951 = vmatpush1.msra.mxu0 0.0
        %1952 = vmatprep.subr.mxu0 0.0
        %1953 = vmatpush1.msra.mxu0 0.0
        %1954 = vmatprep.subr.mxu0 0.0
        %1955 = vmatpush1.msra.mxu0 0.0
        %1956 = vmatprep.subr.mxu0 0.0
        %1957 = vmatpush1.msra.mxu0 0.0
        %1958 = vmatprep.subr.mxu0 0.0
        %1959 = vmatpush1.msra.mxu0 %v1926
        %1960 = vmatprep.subr.mxu0 0.0
        %1961 = vmatpush2.msra.mxu0 0.0
        %1962 = vmatprep.subr.mxu0 0.0
        %1963 = vmatpush2.msra.mxu0 0.0
        %1964 = vmatprep.subr.mxu0 0.0
        %1965 = vmatpush2.msra.mxu0 0.0
        %1966 = vmatprep.subr.mxu0 0.0
        %1967 = vmatpush2.msra.mxu0 0.0
        %1968 = vmatprep.subr.mxu0 0.0
        %1969 = vmatpush2.msra.mxu0 0.0
        %1970 = vmatprep.subr.mxu0 0.0
        %1971 = vmatpush2.msra.mxu0 0.0
        %1972 = vmatprep.subr.mxu0 0.0
        %1973 = vmatpush2.msra.mxu0 0.0
        %1974 = vmatprep.subr.mxu0 0.0
        %1975 = vmatpush2.msra.mxu0 0.0
        %1976 = vmatprep.subr.mxu0 0.0
        %1977 = vmatpush2.msra.mxu0 0.0
        %1978 = vmatprep.subr.mxu0 0.0
        %1979 = vmatpush2.msra.mxu0 0.0
        %1980 = vmatprep.subr.mxu0 0.0
        %1981 = vmatpush2.msra.mxu0 0.0
        %1982 = vmatprep.subr.mxu0 0.0
        %1983 = vmatpush2.msra.mxu0 0.0
        %1984 = vmatprep.subr.mxu0 0.0
        %1985 = vmatpush2.msra.mxu0 0.0
        %1986 = vmatprep.subr.mxu0 0.0
        %1987 = vmatpush2.msra.mxu0 0.0
        %1988 = vmatprep.subr.mxu0 0.0
        %1989 = vmatpush2.msra.mxu0 0.0
        %1990 = vmatprep.subr.mxu0 0.0
        %1991 = vmatpush2.msra.mxu0 0.0
        %1992 = vmatprep.mubr.f32.mxu0 0.0
        %1993 = vmatmul.mubr.f32.gmra.mxu0 %v1924
        %v1994 = vpop.f32.mrf.mxu0
        %v1995 = vadd.f32 0.0, %v1994
        %v1996 = vpop.f32.mrf.mxu0
        %1997 = vdwg.mxu0
        %1998 = vrot.lane.b32.xlu0 %v654, 112
        %v1999 = vpop.permute.xlu0 %1998
        %2000 = vrot.lane.b32.xlu0 %v654, 80
        %v2001 = vpop.permute.xlu0 %2000
        %v2002 = vsel %vm668, %v1999, 0
        %v2004 = vsel %vm668, %v2001, 0
        %2006 = vmatprep.subr.mxu0 0.0
        %2007 = vmatpush1.xpose.msra.mxu0 0.0
        %2008 = vmatprep.subr.mxu0 0.0
        %2009 = vmatpush1.xpose.msra.mxu0 0.0
        %2010 = vmatprep.subr.mxu0 0.0
        %2011 = vmatpush1.xpose.msra.mxu0 0.0
        %2012 = vmatprep.subr.mxu0 0.0
        %2013 = vmatpush1.xpose.msra.mxu0 0.0
        %2014 = vmatprep.subr.mxu0 0.0
        %2015 = vmatpush1.xpose.msra.mxu0 0.0
        %2016 = vmatprep.subr.mxu0 0.0
        %2017 = vmatpush1.xpose.msra.mxu0 0.0
        %2018 = vmatprep.subr.mxu0 0.0
        %2019 = vmatpush1.xpose.msra.mxu0 0.0
        %2020 = vmatprep.subr.mxu0 0.0
        %2021 = vmatpush1.xpose.msra.mxu0 0.0
        %2022 = vmatprep.subr.mxu0 0.0
        %2023 = vmatpush1.xpose.msra.mxu0 0.0
        %2024 = vmatprep.subr.mxu0 0.0
        %2025 = vmatpush1.xpose.msra.mxu0 0.0
        %2026 = vmatprep.subr.mxu0 0.0
        %2027 = vmatpush1.xpose.msra.mxu0 0.0
        %2028 = vmatprep.subr.mxu0 0.0
        %2029 = vmatpush1.xpose.msra.mxu0 0.0
        %2030 = vmatprep.subr.mxu0 0.0
        %2031 = vmatpush1.xpose.msra.mxu0 0.0
        %2032 = vmatprep.subr.mxu0 0.0
        %2033 = vmatpush1.xpose.msra.mxu0 0.0
        %2034 = vmatprep.subr.mxu0 0.0
        %2035 = vmatpush1.xpose.msra.mxu0 0.0
        %2036 = vmatprep.subr.mxu0 0.0
        %2037 = vmatpush1.xpose.msra.mxu0 %v2004
        %2038 = vmatprep.subr.mxu0 0.0
        %2039 = vmatpush2.xpose.msra.mxu0 0.0
        %2040 = vmatprep.subr.mxu0 0.0
        %2041 = vmatpush2.xpose.msra.mxu0 0.0
        %2042 = vmatprep.subr.mxu0 0.0
        %2043 = vmatpush2.xpose.msra.mxu0 0.0
        %2044 = vmatprep.subr.mxu0 0.0
        %2045 = vmatpush2.xpose.msra.mxu0 0.0
        %2046 = vmatprep.subr.mxu0 0.0
        %2047 = vmatpush2.xpose.msra.mxu0 0.0
        %2048 = vmatprep.subr.mxu0 0.0
        %2049 = vmatpush2.xpose.msra.mxu0 0.0
        %2050 = vmatprep.subr.mxu0 0.0
        %2051 = vmatpush2.xpose.msra.mxu0 0.0
        %2052 = vmatprep.subr.mxu0 0.0
        %2053 = vmatpush2.xpose.msra.mxu0 0.0
        %2054 = vmatprep.subr.mxu0 0.0
        %2055 = vmatpush2.xpose.msra.mxu0 0.0
        %2056 = vmatprep.subr.mxu0 0.0
        %2057 = vmatpush2.xpose.msra.mxu0 0.0
        %2058 = vmatprep.subr.mxu0 0.0
        %2059 = vmatpush2.xpose.msra.mxu0 0.0
        %2060 = vmatprep.subr.mxu0 0.0
        %2061 = vmatpush2.xpose.msra.mxu0 0.0
        %2062 = vmatprep.subr.mxu0 0.0
        %2063 = vmatpush2.xpose.msra.mxu0 0.0
        %2064 = vmatprep.subr.mxu0 0.0
        %2065 = vmatpush2.xpose.msra.mxu0 0.0
        %2066 = vmatprep.subr.mxu0 0.0
        %2067 = vmatpush2.xpose.msra.mxu0 0.0
        %2068 = vmatprep.subr.mxu0 0.0
        %2069 = vmatpush2.xpose.msra.mxu0 0.0
        %2070 = vmatprep.mubr.f32.mxu0 0.0
        %2071 = vmatmul.mubr.f32.gmra.mxu0 %v2002
        %v2072 = vpop.f32.mrf.mxu0
        %v2073 = vadd.f32 0.0, %v2072
        %v2074 = vpop.f32.mrf.mxu0
        %2075 = vdwg.mxu0
        %2076 = vrot.lane.b32.xlu0 %v664, 112
        %v2077 = vpop.permute.xlu0 %2076
        %2078 = vrot.lane.b32.xlu0 %v664, 80
        %v2079 = vpop.permute.xlu0 %2078
        %v2080 = vsel %vm668, %v2077, 0
        %v2082 = vsel %vm668, %v2079, 0
        %2084 = vmatprep.subr.mxu0 0.0
        %2085 = vmatpush1.xpose.msra.mxu0 0.0
        %2086 = vmatprep.subr.mxu0 0.0
        %2087 = vmatpush1.xpose.msra.mxu0 0.0
        %2088 = vmatprep.subr.mxu0 0.0
        %2089 = vmatpush1.xpose.msra.mxu0 0.0
        %2090 = vmatprep.subr.mxu0 0.0
        %2091 = vmatpush1.xpose.msra.mxu0 0.0
        %2092 = vmatprep.subr.mxu0 0.0
        %2093 = vmatpush1.xpose.msra.mxu0 0.0
        %2094 = vmatprep.subr.mxu0 0.0
        %2095 = vmatpush1.xpose.msra.mxu0 0.0
        %2096 = vmatprep.subr.mxu0 0.0
        %2097 = vmatpush1.xpose.msra.mxu0 0.0
        %2098 = vmatprep.subr.mxu0 0.0
        %2099 = vmatpush1.xpose.msra.mxu0 0.0
        %2100 = vmatprep.subr.mxu0 0.0
        %2101 = vmatpush1.xpose.msra.mxu0 0.0
        %2102 = vmatprep.subr.mxu0 0.0
        %2103 = vmatpush1.xpose.msra.mxu0 0.0
        %2104 = vmatprep.subr.mxu0 0.0
        %2105 = vmatpush1.xpose.msra.mxu0 0.0
        %2106 = vmatprep.subr.mxu0 0.0
        %2107 = vmatpush1.xpose.msra.mxu0 0.0
        %2108 = vmatprep.subr.mxu0 0.0
        %2109 = vmatpush1.xpose.msra.mxu0 0.0
        %2110 = vmatprep.subr.mxu0 0.0
        %2111 = vmatpush1.xpose.msra.mxu0 0.0
        %2112 = vmatprep.subr.mxu0 0.0
        %2113 = vmatpush1.xpose.msra.mxu0 0.0
        %2114 = vmatprep.subr.mxu0 0.0
        %2115 = vmatpush1.xpose.msra.mxu0 %v2082
        %2116 = vmatprep.subr.mxu0 0.0
        %2117 = vmatpush2.xpose.msra.mxu0 0.0
        %2118 = vmatprep.subr.mxu0 0.0
        %2119 = vmatpush2.xpose.msra.mxu0 0.0
        %2120 = vmatprep.subr.mxu0 0.0
        %2121 = vmatpush2.xpose.msra.mxu0 0.0
        %2122 = vmatprep.subr.mxu0 0.0
        %2123 = vmatpush2.xpose.msra.mxu0 0.0
        %2124 = vmatprep.subr.mxu0 0.0
        %2125 = vmatpush2.xpose.msra.mxu0 0.0
        %2126 = vmatprep.subr.mxu0 0.0
        %2127 = vmatpush2.xpose.msra.mxu0 0.0
        %2128 = vmatprep.subr.mxu0 0.0
        %2129 = vmatpush2.xpose.msra.mxu0 0.0
        %2130 = vmatprep.subr.mxu0 0.0
        %2131 = vmatpush2.xpose.msra.mxu0 0.0
        %2132 = vmatprep.subr.mxu0 0.0
        %2133 = vmatpush2.xpose.msra.mxu0 0.0
        %2134 = vmatprep.subr.mxu0 0.0
        %2135 = vmatpush2.xpose.msra.mxu0 0.0
        %2136 = vmatprep.subr.mxu0 0.0
        %2137 = vmatpush2.xpose.msra.mxu0 0.0
        %2138 = vmatprep.subr.mxu0 0.0
        %2139 = vmatpush2.xpose.msra.mxu0 0.0
        %2140 = vmatprep.subr.mxu0 0.0
        %2141 = vmatpush2.xpose.msra.mxu0 0.0
        %2142 = vmatprep.subr.mxu0 0.0
        %2143 = vmatpush2.xpose.msra.mxu0 0.0
        %2144 = vmatprep.subr.mxu0 0.0
        %2145 = vmatpush2.xpose.msra.mxu0 0.0
        %2146 = vmatprep.subr.mxu0 0.0
        %2147 = vmatpush2.xpose.msra.mxu0 0.0
        %2148 = vmatprep.mubr.f32.mxu0 0.0
        %2149 = vmatmul.mubr.f32.gmra.mxu0 %v2080
        %v2150 = vpop.f32.mrf.mxu0
        %v2151 = vadd.f32 0.0, %v2150
        %v2152 = vpop.f32.mrf.mxu0
        %2153 = vdwg.mxu0
        %2154 = vrot.lane.b32.xlu0 %v659, 112
        %v2155 = vpop.permute.xlu0 %2154
        %2156 = vrot.lane.b32.xlu0 %v659, 80
        %v2157 = vpop.permute.xlu0 %2156
        %v2158 = vsel %vm668, %v2155, 0
        %v2160 = vsel %vm668, %v2157, 0
        %2162 = vmatprep.subr.mxu0 0.0
        %2163 = vmatpush1.xpose.msra.mxu0 0.0
        %2164 = vmatprep.subr.mxu0 0.0
        %2165 = vmatpush1.xpose.msra.mxu0 0.0
        %2166 = vmatprep.subr.mxu0 0.0
        %2167 = vmatpush1.xpose.msra.mxu0 0.0
        %2168 = vmatprep.subr.mxu0 0.0
        %2169 = vmatpush1.xpose.msra.mxu0 0.0
        %2170 = vmatprep.subr.mxu0 0.0
        %2171 = vmatpush1.xpose.msra.mxu0 0.0
        %2172 = vmatprep.subr.mxu0 0.0
        %2173 = vmatpush1.xpose.msra.mxu0 0.0
        %2174 = vmatprep.subr.mxu0 0.0
        %2175 = vmatpush1.xpose.msra.mxu0 0.0
        %2176 = vmatprep.subr.mxu0 0.0
        %2177 = vmatpush1.xpose.msra.mxu0 0.0
        %2178 = vmatprep.subr.mxu0 0.0
        %2179 = vmatpush1.xpose.msra.mxu0 0.0
        %2180 = vmatprep.subr.mxu0 0.0
        %2181 = vmatpush1.xpose.msra.mxu0 0.0
        %2182 = vmatprep.subr.mxu0 0.0
        %2183 = vmatpush1.xpose.msra.mxu0 0.0
        %2184 = vmatprep.subr.mxu0 0.0
        %2185 = vmatpush1.xpose.msra.mxu0 0.0
        %2186 = vmatprep.subr.mxu0 0.0
        %2187 = vmatpush1.xpose.msra.mxu0 0.0
        %2188 = vmatprep.subr.mxu0 0.0
        %2189 = vmatpush1.xpose.msra.mxu0 0.0
        %2190 = vmatprep.subr.mxu0 0.0
        %2191 = vmatpush1.xpose.msra.mxu0 0.0
        %2192 = vmatprep.subr.mxu0 0.0
        %2193 = vmatpush1.xpose.msra.mxu0 %v2160
        %2194 = vmatprep.subr.mxu0 0.0
        %2195 = vmatpush2.xpose.msra.mxu0 0.0
        %2196 = vmatprep.subr.mxu0 0.0
        %2197 = vmatpush2.xpose.msra.mxu0 0.0
        %2198 = vmatprep.subr.mxu0 0.0
        %2199 = vmatpush2.xpose.msra.mxu0 0.0
        %2200 = vmatprep.subr.mxu0 0.0
        %2201 = vmatpush2.xpose.msra.mxu0 0.0
        %2202 = vmatprep.subr.mxu0 0.0
        %2203 = vmatpush2.xpose.msra.mxu0 0.0
        %2204 = vmatprep.subr.mxu0 0.0
        %2205 = vmatpush2.xpose.msra.mxu0 0.0
        %2206 = vmatprep.subr.mxu0 0.0
        %2207 = vmatpush2.xpose.msra.mxu0 0.0
        %2208 = vmatprep.subr.mxu0 0.0
        %2209 = vmatpush2.xpose.msra.mxu0 0.0
        %2210 = vmatprep.subr.mxu0 0.0
        %2211 = vmatpush2.xpose.msra.mxu0 0.0
        %2212 = vmatprep.subr.mxu0 0.0
        %2213 = vmatpush2.xpose.msra.mxu0 0.0
        %2214 = vmatprep.subr.mxu0 0.0
        %2215 = vmatpush2.xpose.msra.mxu0 0.0
        %2216 = vmatprep.subr.mxu0 0.0
        %2217 = vmatpush2.xpose.msra.mxu0 0.0
        %2218 = vmatprep.subr.mxu0 0.0
        %2219 = vmatpush2.xpose.msra.mxu0 0.0
        %2220 = vmatprep.subr.mxu0 0.0
        %2221 = vmatpush2.xpose.msra.mxu0 0.0
        %2222 = vmatprep.subr.mxu0 0.0
        %2223 = vmatpush2.xpose.msra.mxu0 0.0
        %2224 = vmatprep.subr.mxu0 0.0
        %2225 = vmatpush2.xpose.msra.mxu0 0.0
        %2226 = vmatprep.mubr.f32.mxu0 0.0
        %2227 = vmatmul.mubr.f32.gmra.mxu0 %v2158
        %v2228 = vpop.f32.mrf.mxu0
        %v2229 = vadd.f32 0.0, %v2228
        %v2230 = vpop.f32.mrf.mxu0
        %2231 = vdwg.mxu0
        %2232 = vrot.lane.b32.xlu0 %v665, 112
        %v2233 = vpop.permute.xlu0 %2232
        %2234 = vrot.lane.b32.xlu0 %v665, 80
        %v2235 = vpop.permute.xlu0 %2234
        %v2236 = vsel %vm668, %v2233, 0
        %v2238 = vsel %vm668, %v2235, 0
        %2240 = vmatprep.subr.mxu0 0.0
        %2241 = vmatpush1.xpose.msra.mxu0 0.0
        %2242 = vmatprep.subr.mxu0 0.0
        %2243 = vmatpush1.xpose.msra.mxu0 0.0
        %2244 = vmatprep.subr.mxu0 0.0
        %2245 = vmatpush1.xpose.msra.mxu0 0.0
        %2246 = vmatprep.subr.mxu0 0.0
        %2247 = vmatpush1.xpose.msra.mxu0 0.0
        %2248 = vmatprep.subr.mxu0 0.0
        %2249 = vmatpush1.xpose.msra.mxu0 0.0
        %2250 = vmatprep.subr.mxu0 0.0
        %2251 = vmatpush1.xpose.msra.mxu0 0.0
        %2252 = vmatprep.subr.mxu0 0.0
        %2253 = vmatpush1.xpose.msra.mxu0 0.0
        %2254 = vmatprep.subr.mxu0 0.0
        %2255 = vmatpush1.xpose.msra.mxu0 0.0
        %2256 = vmatprep.subr.mxu0 0.0
        %2257 = vmatpush1.xpose.msra.mxu0 0.0
        %2258 = vmatprep.subr.mxu0 0.0
        %2259 = vmatpush1.xpose.msra.mxu0 0.0
        %2260 = vmatprep.subr.mxu0 0.0
        %2261 = vmatpush1.xpose.msra.mxu0 0.0
        %2262 = vmatprep.subr.mxu0 0.0
        %2263 = vmatpush1.xpose.msra.mxu0 0.0
        %2264 = vmatprep.subr.mxu0 0.0
        %2265 = vmatpush1.xpose.msra.mxu0 0.0
        %2266 = vmatprep.subr.mxu0 0.0
        %2267 = vmatpush1.xpose.msra.mxu0 0.0
        %2268 = vmatprep.subr.mxu0 0.0
        %2269 = vmatpush1.xpose.msra.mxu0 0.0
        %2270 = vmatprep.subr.mxu0 0.0
        %2271 = vmatpush1.xpose.msra.mxu0 %v2238
        %2272 = vmatprep.subr.mxu0 0.0
        %2273 = vmatpush2.xpose.msra.mxu0 0.0
        %2274 = vmatprep.subr.mxu0 0.0
        %2275 = vmatpush2.xpose.msra.mxu0 0.0
        %2276 = vmatprep.subr.mxu0 0.0
        %2277 = vmatpush2.xpose.msra.mxu0 0.0
        %2278 = vmatprep.subr.mxu0 0.0
        %2279 = vmatpush2.xpose.msra.mxu0 0.0
        %2280 = vmatprep.subr.mxu0 0.0
        %2281 = vmatpush2.xpose.msra.mxu0 0.0
        %2282 = vmatprep.subr.mxu0 0.0
        %2283 = vmatpush2.xpose.msra.mxu0 0.0
        %2284 = vmatprep.subr.mxu0 0.0
        %2285 = vmatpush2.xpose.msra.mxu0 0.0
        %2286 = vmatprep.subr.mxu0 0.0
        %2287 = vmatpush2.xpose.msra.mxu0 0.0
        %2288 = vmatprep.subr.mxu0 0.0
        %2289 = vmatpush2.xpose.msra.mxu0 0.0
        %2290 = vmatprep.subr.mxu0 0.0
        %2291 = vmatpush2.xpose.msra.mxu0 0.0
        %2292 = vmatprep.subr.mxu0 0.0
        %2293 = vmatpush2.xpose.msra.mxu0 0.0
        %2294 = vmatprep.subr.mxu0 0.0
        %2295 = vmatpush2.xpose.msra.mxu0 0.0
        %2296 = vmatprep.subr.mxu0 0.0
        %2297 = vmatpush2.xpose.msra.mxu0 0.0
        %2298 = vmatprep.subr.mxu0 0.0
        %2299 = vmatpush2.xpose.msra.mxu0 0.0
        %2300 = vmatprep.subr.mxu0 0.0
        %2301 = vmatpush2.xpose.msra.mxu0 0.0
        %2302 = vmatprep.subr.mxu0 0.0
        %2303 = vmatpush2.xpose.msra.mxu0 0.0
        %2304 = vmatprep.mubr.f32.mxu0 0.0
        %2305 = vmatmul.mubr.f32.gmra.mxu0 %v2236
        %v2306 = vpop.f32.mrf.mxu0
        %v2307 = vadd.f32 0.0, %v2306
        %v2308 = vpop.f32.mrf.mxu0
        %2309 = vdwg.mxu0
        %v2310 = vmul.f32 %v2073, 0.35355338
        %v2311 = vmul.f32 %v2151, 0.35355338
        %v2312 = vmul.f32 %v2229, 0.35355338
        %v2313 = vmul.f32 %v2307, 0.35355338
        %v2314 = vsel %vm975, %v2310, -inf
        %2315 = vmax.xlane.f32.xlu0 %v2314
        %v2316 = vpop.xlane.xlu0 %2315
        %v2317 = vsel %vm975, %v2311, -inf
        %2318 = vmax.xlane.f32.xlu0 %v2317
        %v2319 = vpop.xlane.xlu0 %2318
        %v2320 = vsel %vm975, %v2312, -inf
        %2321 = vmax.xlane.f32.xlu0 %v2320
        %v2322 = vpop.xlane.xlu0 %2321
        %v2323 = vsel %vm975, %v2313, -inf
        %2324 = vmax.xlane.f32.xlu0 %v2323
        %v2325 = vpop.xlane.xlu0 %2324
        %v2326 = vsub.f32 %v2310, %v2316
        %v2327 = vsub.f32 %v2311, %v2319
        %v2328 = vsub.f32 %v2312, %v2322
        %v2329 = vsub.f32 %v2313, %v2325
        %v2330 = vmul.f32 %v2326, 1.442695
        %v2331 = vpow.pop %v2330
        %v2332 = vmul.f32 %v2327, 1.442695
        %v2333 = vpow.pop %v2332
        %v2334 = vmul.f32 %v2328, 1.442695
        %v2335 = vpow.pop %v2334
        %v2336 = vmul.f32 %v2329, 1.442695
        %v2337 = vpow.pop %v2336
        %v2338 = vsel %vm975, %v2331, 0.0
        %2339 = vadd.xlane.f32.xlu0 %v2338
        %v2340 = vpop.xlane.xlu0 %2339
        %v2341 = vsel %vm975, %v2333, 0.0
        %2342 = vadd.xlane.f32.xlu0 %v2341
        %v2343 = vpop.xlane.xlu0 %2342
        %v2344 = vsel %vm975, %v2335, 0.0
        %2345 = vadd.xlane.f32.xlu0 %v2344
        %v2346 = vpop.xlane.xlu0 %2345
        %v2347 = vsel %vm975, %v2337, 0.0
        %2348 = vadd.xlane.f32.xlu0 %v2347
        %v2349 = vpop.xlane.xlu0 %2348
        %v2350 = vrcp.pop %v2340
        %v2351 = vrcp.pop %v2343
        %v2352 = vrcp.pop %v2346
        %v2353 = vrcp.pop %v2349
        %v2354 = vmul.f32 %v2331, %v2350
        %v2355 = vmul.f32 %v2333, %v2351
        %v2356 = vmul.f32 %v2335, %v2352
        %v2357 = vmul.f32 %v2337, %v2353
        %2358 = vrot.lane.b32.xlu0 %v654, 48
        %v2359 = vpop.permute.xlu0 %2358
        %v2361 = vsel %vm1022, %v2354, 0
        %v2363 = vsel %vm1026, %v2359, 0
        %2365 = vmatprep.subr.mxu0 0.0
        %2366 = vmatpush1.msra.mxu0 0.0
        %2367 = vmatprep.subr.mxu0 0.0
        %2368 = vmatpush1.msra.mxu0 0.0
        %2369 = vmatprep.subr.mxu0 0.0
        %2370 = vmatpush1.msra.mxu0 0.0
        %2371 = vmatprep.subr.mxu0 0.0
        %2372 = vmatpush1.msra.mxu0 0.0
        %2373 = vmatprep.subr.mxu0 0.0
        %2374 = vmatpush1.msra.mxu0 0.0
        %2375 = vmatprep.subr.mxu0 0.0
        %2376 = vmatpush1.msra.mxu0 0.0
        %2377 = vmatprep.subr.mxu0 0.0
        %2378 = vmatpush1.msra.mxu0 0.0
        %2379 = vmatprep.subr.mxu0 0.0
        %2380 = vmatpush1.msra.mxu0 0.0
        %2381 = vmatprep.subr.mxu0 0.0
        %2382 = vmatpush1.msra.mxu0 0.0
        %2383 = vmatprep.subr.mxu0 0.0
        %2384 = vmatpush1.msra.mxu0 0.0
        %2385 = vmatprep.subr.mxu0 0.0
        %2386 = vmatpush1.msra.mxu0 0.0
        %2387 = vmatprep.subr.mxu0 0.0
        %2388 = vmatpush1.msra.mxu0 0.0
        %2389 = vmatprep.subr.mxu0 0.0
        %2390 = vmatpush1.msra.mxu0 0.0
        %2391 = vmatprep.subr.mxu0 0.0
        %2392 = vmatpush1.msra.mxu0 0.0
        %2393 = vmatprep.subr.mxu0 0.0
        %2394 = vmatpush1.msra.mxu0 0.0
        %2395 = vmatprep.subr.mxu0 0.0
        %2396 = vmatpush1.msra.mxu0 %v2363
        %2397 = vmatprep.subr.mxu0 0.0
        %2398 = vmatpush2.msra.mxu0 0.0
        %2399 = vmatprep.subr.mxu0 0.0
        %2400 = vmatpush2.msra.mxu0 0.0
        %2401 = vmatprep.subr.mxu0 0.0
        %2402 = vmatpush2.msra.mxu0 0.0
        %2403 = vmatprep.subr.mxu0 0.0
        %2404 = vmatpush2.msra.mxu0 0.0
        %2405 = vmatprep.subr.mxu0 0.0
        %2406 = vmatpush2.msra.mxu0 0.0
        %2407 = vmatprep.subr.mxu0 0.0
        %2408 = vmatpush2.msra.mxu0 0.0
        %2409 = vmatprep.subr.mxu0 0.0
        %2410 = vmatpush2.msra.mxu0 0.0
        %2411 = vmatprep.subr.mxu0 0.0
        %2412 = vmatpush2.msra.mxu0 0.0
        %2413 = vmatprep.subr.mxu0 0.0
        %2414 = vmatpush2.msra.mxu0 0.0
        %2415 = vmatprep.subr.mxu0 0.0
        %2416 = vmatpush2.msra.mxu0 0.0
        %2417 = vmatprep.subr.mxu0 0.0
        %2418 = vmatpush2.msra.mxu0 0.0
        %2419 = vmatprep.subr.mxu0 0.0
        %2420 = vmatpush2.msra.mxu0 0.0
        %2421 = vmatprep.subr.mxu0 0.0
        %2422 = vmatpush2.msra.mxu0 0.0
        %2423 = vmatprep.subr.mxu0 0.0
        %2424 = vmatpush2.msra.mxu0 0.0
        %2425 = vmatprep.subr.mxu0 0.0
        %2426 = vmatpush2.msra.mxu0 0.0
        %2427 = vmatprep.subr.mxu0 0.0
        %2428 = vmatpush2.msra.mxu0 0.0
        %2429 = vmatprep.mubr.f32.mxu0 0.0
        %2430 = vmatmul.mubr.f32.gmra.mxu0 %v2361
        %v2431 = vpop.f32.mrf.mxu0
        %v2432 = vadd.f32 0.0, %v2431
        %v2433 = vpop.f32.mrf.mxu0
        %2434 = vdwg.mxu0
        %2435 = vrot.lane.b32.xlu0 %v664, 48
        %v2436 = vpop.permute.xlu0 %2435
        %v2438 = vsel %vm1022, %v2355, 0
        %v2440 = vsel %vm1026, %v2436, 0
        %2442 = vmatprep.subr.mxu0 0.0
        %2443 = vmatpush1.msra.mxu0 0.0
        %2444 = vmatprep.subr.mxu0 0.0
        %2445 = vmatpush1.msra.mxu0 0.0
        %2446 = vmatprep.subr.mxu0 0.0
        %2447 = vmatpush1.msra.mxu0 0.0
        %2448 = vmatprep.subr.mxu0 0.0
        %2449 = vmatpush1.msra.mxu0 0.0
        %2450 = vmatprep.subr.mxu0 0.0
        %2451 = vmatpush1.msra.mxu0 0.0
        %2452 = vmatprep.subr.mxu0 0.0
        %2453 = vmatpush1.msra.mxu0 0.0
        %2454 = vmatprep.subr.mxu0 0.0
        %2455 = vmatpush1.msra.mxu0 0.0
        %2456 = vmatprep.subr.mxu0 0.0
        %2457 = vmatpush1.msra.mxu0 0.0
        %2458 = vmatprep.subr.mxu0 0.0
        %2459 = vmatpush1.msra.mxu0 0.0
        %2460 = vmatprep.subr.mxu0 0.0
        %2461 = vmatpush1.msra.mxu0 0.0
        %2462 = vmatprep.subr.mxu0 0.0
        %2463 = vmatpush1.msra.mxu0 0.0
        %2464 = vmatprep.subr.mxu0 0.0
        %2465 = vmatpush1.msra.mxu0 0.0
        %2466 = vmatprep.subr.mxu0 0.0
        %2467 = vmatpush1.msra.mxu0 0.0
        %2468 = vmatprep.subr.mxu0 0.0
        %2469 = vmatpush1.msra.mxu0 0.0
        %2470 = vmatprep.subr.mxu0 0.0
        %2471 = vmatpush1.msra.mxu0 0.0
        %2472 = vmatprep.subr.mxu0 0.0
        %2473 = vmatpush1.msra.mxu0 %v2440
        %2474 = vmatprep.subr.mxu0 0.0
        %2475 = vmatpush2.msra.mxu0 0.0
        %2476 = vmatprep.subr.mxu0 0.0
        %2477 = vmatpush2.msra.mxu0 0.0
        %2478 = vmatprep.subr.mxu0 0.0
        %2479 = vmatpush2.msra.mxu0 0.0
        %2480 = vmatprep.subr.mxu0 0.0
        %2481 = vmatpush2.msra.mxu0 0.0
        %2482 = vmatprep.subr.mxu0 0.0
        %2483 = vmatpush2.msra.mxu0 0.0
        %2484 = vmatprep.subr.mxu0 0.0
        %2485 = vmatpush2.msra.mxu0 0.0
        %2486 = vmatprep.subr.mxu0 0.0
        %2487 = vmatpush2.msra.mxu0 0.0
        %2488 = vmatprep.subr.mxu0 0.0
        %2489 = vmatpush2.msra.mxu0 0.0
        %2490 = vmatprep.subr.mxu0 0.0
        %2491 = vmatpush2.msra.mxu0 0.0
        %2492 = vmatprep.subr.mxu0 0.0
        %2493 = vmatpush2.msra.mxu0 0.0
        %2494 = vmatprep.subr.mxu0 0.0
        %2495 = vmatpush2.msra.mxu0 0.0
        %2496 = vmatprep.subr.mxu0 0.0
        %2497 = vmatpush2.msra.mxu0 0.0
        %2498 = vmatprep.subr.mxu0 0.0
        %2499 = vmatpush2.msra.mxu0 0.0
        %2500 = vmatprep.subr.mxu0 0.0
        %2501 = vmatpush2.msra.mxu0 0.0
        %2502 = vmatprep.subr.mxu0 0.0
        %2503 = vmatpush2.msra.mxu0 0.0
        %2504 = vmatprep.subr.mxu0 0.0
        %2505 = vmatpush2.msra.mxu0 0.0
        %2506 = vmatprep.mubr.f32.mxu0 0.0
        %2507 = vmatmul.mubr.f32.gmra.mxu0 %v2438
        %v2508 = vpop.f32.mrf.mxu0
        %v2509 = vadd.f32 0.0, %v2508
        %v2510 = vpop.f32.mrf.mxu0
        %2511 = vdwg.mxu0
        %2512 = vrot.lane.b32.xlu0 %v659, 48
        %v2513 = vpop.permute.xlu0 %2512
        %v2515 = vsel %vm1022, %v2356, 0
        %v2517 = vsel %vm1026, %v2513, 0
        %2519 = vmatprep.subr.mxu0 0.0
        %2520 = vmatpush1.msra.mxu0 0.0
        %2521 = vmatprep.subr.mxu0 0.0
        %2522 = vmatpush1.msra.mxu0 0.0
        %2523 = vmatprep.subr.mxu0 0.0
        %2524 = vmatpush1.msra.mxu0 0.0
        %2525 = vmatprep.subr.mxu0 0.0
        %2526 = vmatpush1.msra.mxu0 0.0
        %2527 = vmatprep.subr.mxu0 0.0
        %2528 = vmatpush1.msra.mxu0 0.0
        %2529 = vmatprep.subr.mxu0 0.0
        %2530 = vmatpush1.msra.mxu0 0.0
        %2531 = vmatprep.subr.mxu0 0.0
        %2532 = vmatpush1.msra.mxu0 0.0
        %2533 = vmatprep.subr.mxu0 0.0
        %2534 = vmatpush1.msra.mxu0 0.0
        %2535 = vmatprep.subr.mxu0 0.0
        %2536 = vmatpush1.msra.mxu0 0.0
        %2537 = vmatprep.subr.mxu0 0.0
        %2538 = vmatpush1.msra.mxu0 0.0
        %2539 = vmatprep.subr.mxu0 0.0
        %2540 = vmatpush1.msra.mxu0 0.0
        %2541 = vmatprep.subr.mxu0 0.0
        %2542 = vmatpush1.msra.mxu0 0.0
        %2543 = vmatprep.subr.mxu0 0.0
        %2544 = vmatpush1.msra.mxu0 0.0
        %2545 = vmatprep.subr.mxu0 0.0
        %2546 = vmatpush1.msra.mxu0 0.0
        %2547 = vmatprep.subr.mxu0 0.0
        %2548 = vmatpush1.msra.mxu0 0.0
        %2549 = vmatprep.subr.mxu0 0.0
        %2550 = vmatpush1.msra.mxu0 %v2517
        %2551 = vmatprep.subr.mxu0 0.0
        %2552 = vmatpush2.msra.mxu0 0.0
        %2553 = vmatprep.subr.mxu0 0.0
        %2554 = vmatpush2.msra.mxu0 0.0
        %2555 = vmatprep.subr.mxu0 0.0
        %2556 = vmatpush2.msra.mxu0 0.0
        %2557 = vmatprep.subr.mxu0 0.0
        %2558 = vmatpush2.msra.mxu0 0.0
        %2559 = vmatprep.subr.mxu0 0.0
        %2560 = vmatpush2.msra.mxu0 0.0
        %2561 = vmatprep.subr.mxu0 0.0
        %2562 = vmatpush2.msra.mxu0 0.0
        %2563 = vmatprep.subr.mxu0 0.0
        %2564 = vmatpush2.msra.mxu0 0.0
        %2565 = vmatprep.subr.mxu0 0.0
        %2566 = vmatpush2.msra.mxu0 0.0
        %2567 = vmatprep.subr.mxu0 0.0
        %2568 = vmatpush2.msra.mxu0 0.0
        %2569 = vmatprep.subr.mxu0 0.0
        %2570 = vmatpush2.msra.mxu0 0.0
        %2571 = vmatprep.subr.mxu0 0.0
        %2572 = vmatpush2.msra.mxu0 0.0
        %2573 = vmatprep.subr.mxu0 0.0
        %2574 = vmatpush2.msra.mxu0 0.0
        %2575 = vmatprep.subr.mxu0 0.0
        %2576 = vmatpush2.msra.mxu0 0.0
        %2577 = vmatprep.subr.mxu0 0.0
        %2578 = vmatpush2.msra.mxu0 0.0
        %2579 = vmatprep.subr.mxu0 0.0
        %2580 = vmatpush2.msra.mxu0 0.0
        %2581 = vmatprep.subr.mxu0 0.0
        %2582 = vmatpush2.msra.mxu0 0.0
        %2583 = vmatprep.mubr.f32.mxu0 0.0
        %2584 = vmatmul.mubr.f32.gmra.mxu0 %v2515
        %v2585 = vpop.f32.mrf.mxu0
        %v2586 = vadd.f32 0.0, %v2585
        %v2587 = vpop.f32.mrf.mxu0
        %2588 = vdwg.mxu0
        %2589 = vrot.lane.b32.xlu0 %v665, 48
        %v2590 = vpop.permute.xlu0 %2589
        %v2592 = vsel %vm1022, %v2357, 0
        %v2594 = vsel %vm1026, %v2590, 0
        %2596 = vmatprep.subr.mxu0 0.0
        %2597 = vmatpush1.msra.mxu0 0.0
        %2598 = vmatprep.subr.mxu0 0.0
        %2599 = vmatpush1.msra.mxu0 0.0
        %2600 = vmatprep.subr.mxu0 0.0
        %2601 = vmatpush1.msra.mxu0 0.0
        %2602 = vmatprep.subr.mxu0 0.0
        %2603 = vmatpush1.msra.mxu0 0.0
        %2604 = vmatprep.subr.mxu0 0.0
        %2605 = vmatpush1.msra.mxu0 0.0
        %2606 = vmatprep.subr.mxu0 0.0
        %2607 = vmatpush1.msra.mxu0 0.0
        %2608 = vmatprep.subr.mxu0 0.0
        %2609 = vmatpush1.msra.mxu0 0.0
        %2610 = vmatprep.subr.mxu0 0.0
        %2611 = vmatpush1.msra.mxu0 0.0
        %2612 = vmatprep.subr.mxu0 0.0
        %2613 = vmatpush1.msra.mxu0 0.0
        %2614 = vmatprep.subr.mxu0 0.0
        %2615 = vmatpush1.msra.mxu0 0.0
        %2616 = vmatprep.subr.mxu0 0.0
        %2617 = vmatpush1.msra.mxu0 0.0
        %2618 = vmatprep.subr.mxu0 0.0
        %2619 = vmatpush1.msra.mxu0 0.0
        %2620 = vmatprep.subr.mxu0 0.0
        %2621 = vmatpush1.msra.mxu0 0.0
        %2622 = vmatprep.subr.mxu0 0.0
        %2623 = vmatpush1.msra.mxu0 0.0
        %2624 = vmatprep.subr.mxu0 0.0
        %2625 = vmatpush1.msra.mxu0 0.0
        %2626 = vmatprep.subr.mxu0 0.0
        %2627 = vmatpush1.msra.mxu0 %v2594
        %2628 = vmatprep.subr.mxu0 0.0
        %2629 = vmatpush2.msra.mxu0 0.0
        %2630 = vmatprep.subr.mxu0 0.0
        %2631 = vmatpush2.msra.mxu0 0.0
        %2632 = vmatprep.subr.mxu0 0.0
        %2633 = vmatpush2.msra.mxu0 0.0
        %2634 = vmatprep.subr.mxu0 0.0
        %2635 = vmatpush2.msra.mxu0 0.0
        %2636 = vmatprep.subr.mxu0 0.0
        %2637 = vmatpush2.msra.mxu0 0.0
        %2638 = vmatprep.subr.mxu0 0.0
        %2639 = vmatpush2.msra.mxu0 0.0
        %2640 = vmatprep.subr.mxu0 0.0
        %2641 = vmatpush2.msra.mxu0 0.0
        %2642 = vmatprep.subr.mxu0 0.0
        %2643 = vmatpush2.msra.mxu0 0.0
        %2644 = vmatprep.subr.mxu0 0.0
        %2645 = vmatpush2.msra.mxu0 0.0
        %2646 = vmatprep.subr.mxu0 0.0
        %2647 = vmatpush2.msra.mxu0 0.0
        %2648 = vmatprep.subr.mxu0 0.0
        %2649 = vmatpush2.msra.mxu0 0.0
        %2650 = vmatprep.subr.mxu0 0.0
        %2651 = vmatpush2.msra.mxu0 0.0
        %2652 = vmatprep.subr.mxu0 0.0
        %2653 = vmatpush2.msra.mxu0 0.0
        %2654 = vmatprep.subr.mxu0 0.0
        %2655 = vmatpush2.msra.mxu0 0.0
        %2656 = vmatprep.subr.mxu0 0.0
        %2657 = vmatpush2.msra.mxu0 0.0
        %2658 = vmatprep.subr.mxu0 0.0
        %2659 = vmatpush2.msra.mxu0 0.0
        %2660 = vmatprep.mubr.f32.mxu0 0.0
        %2661 = vmatmul.mubr.f32.gmra.mxu0 %v2592
        %v2662 = vpop.f32.mrf.mxu0
        %v2663 = vadd.f32 0.0, %v2662
        %v2664 = vpop.f32.mrf.mxu0
        %2665 = vdwg.mxu0
        %2666 = vrot.lane.b32.xlu0 %v654, 104
        %v2667 = vpop.permute.xlu0 %2666
        %2668 = vrot.lane.b32.xlu0 %v654, 72
        %v2669 = vpop.permute.xlu0 %2668
        %v2670 = vsel %vm668, %v2667, 0
        %v2672 = vsel %vm668, %v2669, 0
        %2674 = vmatprep.subr.mxu0 0.0
        %2675 = vmatpush1.xpose.msra.mxu0 0.0
        %2676 = vmatprep.subr.mxu0 0.0
        %2677 = vmatpush1.xpose.msra.mxu0 0.0
        %2678 = vmatprep.subr.mxu0 0.0
        %2679 = vmatpush1.xpose.msra.mxu0 0.0
        %2680 = vmatprep.subr.mxu0 0.0
        %2681 = vmatpush1.xpose.msra.mxu0 0.0
        %2682 = vmatprep.subr.mxu0 0.0
        %2683 = vmatpush1.xpose.msra.mxu0 0.0
        %2684 = vmatprep.subr.mxu0 0.0
        %2685 = vmatpush1.xpose.msra.mxu0 0.0
        %2686 = vmatprep.subr.mxu0 0.0
        %2687 = vmatpush1.xpose.msra.mxu0 0.0
        %2688 = vmatprep.subr.mxu0 0.0
        %2689 = vmatpush1.xpose.msra.mxu0 0.0
        %2690 = vmatprep.subr.mxu0 0.0
        %2691 = vmatpush1.xpose.msra.mxu0 0.0
        %2692 = vmatprep.subr.mxu0 0.0
        %2693 = vmatpush1.xpose.msra.mxu0 0.0
        %2694 = vmatprep.subr.mxu0 0.0
        %2695 = vmatpush1.xpose.msra.mxu0 0.0
        %2696 = vmatprep.subr.mxu0 0.0
        %2697 = vmatpush1.xpose.msra.mxu0 0.0
        %2698 = vmatprep.subr.mxu0 0.0
        %2699 = vmatpush1.xpose.msra.mxu0 0.0
        %2700 = vmatprep.subr.mxu0 0.0
        %2701 = vmatpush1.xpose.msra.mxu0 0.0
        %2702 = vmatprep.subr.mxu0 0.0
        %2703 = vmatpush1.xpose.msra.mxu0 0.0
        %2704 = vmatprep.subr.mxu0 0.0
        %2705 = vmatpush1.xpose.msra.mxu0 %v2672
        %2706 = vmatprep.subr.mxu0 0.0
        %2707 = vmatpush2.xpose.msra.mxu0 0.0
        %2708 = vmatprep.subr.mxu0 0.0
        %2709 = vmatpush2.xpose.msra.mxu0 0.0
        %2710 = vmatprep.subr.mxu0 0.0
        %2711 = vmatpush2.xpose.msra.mxu0 0.0
        %2712 = vmatprep.subr.mxu0 0.0
        %2713 = vmatpush2.xpose.msra.mxu0 0.0
        %2714 = vmatprep.subr.mxu0 0.0
        %2715 = vmatpush2.xpose.msra.mxu0 0.0
        %2716 = vmatprep.subr.mxu0 0.0
        %2717 = vmatpush2.xpose.msra.mxu0 0.0
        %2718 = vmatprep.subr.mxu0 0.0
        %2719 = vmatpush2.xpose.msra.mxu0 0.0
        %2720 = vmatprep.subr.mxu0 0.0
        %2721 = vmatpush2.xpose.msra.mxu0 0.0
        %2722 = vmatprep.subr.mxu0 0.0
        %2723 = vmatpush2.xpose.msra.mxu0 0.0
        %2724 = vmatprep.subr.mxu0 0.0
        %2725 = vmatpush2.xpose.msra.mxu0 0.0
        %2726 = vmatprep.subr.mxu0 0.0
        %2727 = vmatpush2.xpose.msra.mxu0 0.0
        %2728 = vmatprep.subr.mxu0 0.0
        %2729 = vmatpush2.xpose.msra.mxu0 0.0
        %2730 = vmatprep.subr.mxu0 0.0
        %2731 = vmatpush2.xpose.msra.mxu0 0.0
        %2732 = vmatprep.subr.mxu0 0.0
        %2733 = vmatpush2.xpose.msra.mxu0 0.0
        %2734 = vmatprep.subr.mxu0 0.0
        %2735 = vmatpush2.xpose.msra.mxu0 0.0
        %2736 = vmatprep.subr.mxu0 0.0
        %2737 = vmatpush2.xpose.msra.mxu0 0.0
        %2738 = vmatprep.mubr.f32.mxu0 0.0
        %2739 = vmatmul.mubr.f32.gmra.mxu0 %v2670
        %v2740 = vpop.f32.mrf.mxu0
        %v2741 = vadd.f32 0.0, %v2740
        %v2742 = vpop.f32.mrf.mxu0
        %2743 = vdwg.mxu0
        %2744 = vrot.lane.b32.xlu0 %v664, 104
        %v2745 = vpop.permute.xlu0 %2744
        %2746 = vrot.lane.b32.xlu0 %v664, 72
        %v2747 = vpop.permute.xlu0 %2746
        %v2748 = vsel %vm668, %v2745, 0
        %v2750 = vsel %vm668, %v2747, 0
        %2752 = vmatprep.subr.mxu0 0.0
        %2753 = vmatpush1.xpose.msra.mxu0 0.0
        %2754 = vmatprep.subr.mxu0 0.0
        %2755 = vmatpush1.xpose.msra.mxu0 0.0
        %2756 = vmatprep.subr.mxu0 0.0
        %2757 = vmatpush1.xpose.msra.mxu0 0.0
        %2758 = vmatprep.subr.mxu0 0.0
        %2759 = vmatpush1.xpose.msra.mxu0 0.0
        %2760 = vmatprep.subr.mxu0 0.0
        %2761 = vmatpush1.xpose.msra.mxu0 0.0
        %2762 = vmatprep.subr.mxu0 0.0
        %2763 = vmatpush1.xpose.msra.mxu0 0.0
        %2764 = vmatprep.subr.mxu0 0.0
        %2765 = vmatpush1.xpose.msra.mxu0 0.0
        %2766 = vmatprep.subr.mxu0 0.0
        %2767 = vmatpush1.xpose.msra.mxu0 0.0
        %2768 = vmatprep.subr.mxu0 0.0
        %2769 = vmatpush1.xpose.msra.mxu0 0.0
        %2770 = vmatprep.subr.mxu0 0.0
        %2771 = vmatpush1.xpose.msra.mxu0 0.0
        %2772 = vmatprep.subr.mxu0 0.0
        %2773 = vmatpush1.xpose.msra.mxu0 0.0
        %2774 = vmatprep.subr.mxu0 0.0
        %2775 = vmatpush1.xpose.msra.mxu0 0.0
        %2776 = vmatprep.subr.mxu0 0.0
        %2777 = vmatpush1.xpose.msra.mxu0 0.0
        %2778 = vmatprep.subr.mxu0 0.0
        %2779 = vmatpush1.xpose.msra.mxu0 0.0
        %2780 = vmatprep.subr.mxu0 0.0
        %2781 = vmatpush1.xpose.msra.mxu0 0.0
        %2782 = vmatprep.subr.mxu0 0.0
        %2783 = vmatpush1.xpose.msra.mxu0 %v2750
        %2784 = vmatprep.subr.mxu0 0.0
        %2785 = vmatpush2.xpose.msra.mxu0 0.0
        %2786 = vmatprep.subr.mxu0 0.0
        %2787 = vmatpush2.xpose.msra.mxu0 0.0
        %2788 = vmatprep.subr.mxu0 0.0
        %2789 = vmatpush2.xpose.msra.mxu0 0.0
        %2790 = vmatprep.subr.mxu0 0.0
        %2791 = vmatpush2.xpose.msra.mxu0 0.0
        %2792 = vmatprep.subr.mxu0 0.0
        %2793 = vmatpush2.xpose.msra.mxu0 0.0
        %2794 = vmatprep.subr.mxu0 0.0
        %2795 = vmatpush2.xpose.msra.mxu0 0.0
        %2796 = vmatprep.subr.mxu0 0.0
        %2797 = vmatpush2.xpose.msra.mxu0 0.0
        %2798 = vmatprep.subr.mxu0 0.0
        %2799 = vmatpush2.xpose.msra.mxu0 0.0
        %2800 = vmatprep.subr.mxu0 0.0
        %2801 = vmatpush2.xpose.msra.mxu0 0.0
        %2802 = vmatprep.subr.mxu0 0.0
        %2803 = vmatpush2.xpose.msra.mxu0 0.0
        %2804 = vmatprep.subr.mxu0 0.0
        %2805 = vmatpush2.xpose.msra.mxu0 0.0
        %2806 = vmatprep.subr.mxu0 0.0
        %2807 = vmatpush2.xpose.msra.mxu0 0.0
        %2808 = vmatprep.subr.mxu0 0.0
        %2809 = vmatpush2.xpose.msra.mxu0 0.0
        %2810 = vmatprep.subr.mxu0 0.0
        %2811 = vmatpush2.xpose.msra.mxu0 0.0
        %2812 = vmatprep.subr.mxu0 0.0
        %2813 = vmatpush2.xpose.msra.mxu0 0.0
        %2814 = vmatprep.subr.mxu0 0.0
        %2815 = vmatpush2.xpose.msra.mxu0 0.0
        %2816 = vmatprep.mubr.f32.mxu0 0.0
        %2817 = vmatmul.mubr.f32.gmra.mxu0 %v2748
        %v2818 = vpop.f32.mrf.mxu0
        %v2819 = vadd.f32 0.0, %v2818
        %v2820 = vpop.f32.mrf.mxu0
        %2821 = vdwg.mxu0
        %2822 = vrot.lane.b32.xlu0 %v659, 104
        %v2823 = vpop.permute.xlu0 %2822
        %2824 = vrot.lane.b32.xlu0 %v659, 72
        %v2825 = vpop.permute.xlu0 %2824
        %v2826 = vsel %vm668, %v2823, 0
        %v2828 = vsel %vm668, %v2825, 0
        %2830 = vmatprep.subr.mxu0 0.0
        %2831 = vmatpush1.xpose.msra.mxu0 0.0
        %2832 = vmatprep.subr.mxu0 0.0
        %2833 = vmatpush1.xpose.msra.mxu0 0.0
        %2834 = vmatprep.subr.mxu0 0.0
        %2835 = vmatpush1.xpose.msra.mxu0 0.0
        %2836 = vmatprep.subr.mxu0 0.0
        %2837 = vmatpush1.xpose.msra.mxu0 0.0
        %2838 = vmatprep.subr.mxu0 0.0
        %2839 = vmatpush1.xpose.msra.mxu0 0.0
        %2840 = vmatprep.subr.mxu0 0.0
        %2841 = vmatpush1.xpose.msra.mxu0 0.0
        %2842 = vmatprep.subr.mxu0 0.0
        %2843 = vmatpush1.xpose.msra.mxu0 0.0
        %2844 = vmatprep.subr.mxu0 0.0
        %2845 = vmatpush1.xpose.msra.mxu0 0.0
        %2846 = vmatprep.subr.mxu0 0.0
        %2847 = vmatpush1.xpose.msra.mxu0 0.0
        %2848 = vmatprep.subr.mxu0 0.0
        %2849 = vmatpush1.xpose.msra.mxu0 0.0
        %2850 = vmatprep.subr.mxu0 0.0
        %2851 = vmatpush1.xpose.msra.mxu0 0.0
        %2852 = vmatprep.subr.mxu0 0.0
        %2853 = vmatpush1.xpose.msra.mxu0 0.0
        %2854 = vmatprep.subr.mxu0 0.0
        %2855 = vmatpush1.xpose.msra.mxu0 0.0
        %2856 = vmatprep.subr.mxu0 0.0
        %2857 = vmatpush1.xpose.msra.mxu0 0.0
        %2858 = vmatprep.subr.mxu0 0.0
        %2859 = vmatpush1.xpose.msra.mxu0 0.0
        %2860 = vmatprep.subr.mxu0 0.0
        %2861 = vmatpush1.xpose.msra.mxu0 %v2828
        %2862 = vmatprep.subr.mxu0 0.0
        %2863 = vmatpush2.xpose.msra.mxu0 0.0
        %2864 = vmatprep.subr.mxu0 0.0
        %2865 = vmatpush2.xpose.msra.mxu0 0.0
        %2866 = vmatprep.subr.mxu0 0.0
        %2867 = vmatpush2.xpose.msra.mxu0 0.0
        %2868 = vmatprep.subr.mxu0 0.0
        %2869 = vmatpush2.xpose.msra.mxu0 0.0
        %2870 = vmatprep.subr.mxu0 0.0
        %2871 = vmatpush2.xpose.msra.mxu0 0.0
        %2872 = vmatprep.subr.mxu0 0.0
        %2873 = vmatpush2.xpose.msra.mxu0 0.0
        %2874 = vmatprep.subr.mxu0 0.0
        %2875 = vmatpush2.xpose.msra.mxu0 0.0
        %2876 = vmatprep.subr.mxu0 0.0
        %2877 = vmatpush2.xpose.msra.mxu0 0.0
        %2878 = vmatprep.subr.mxu0 0.0
        %2879 = vmatpush2.xpose.msra.mxu0 0.0
        %2880 = vmatprep.subr.mxu0 0.0
        %2881 = vmatpush2.xpose.msra.mxu0 0.0
        %2882 = vmatprep.subr.mxu0 0.0
        %2883 = vmatpush2.xpose.msra.mxu0 0.0
        %2884 = vmatprep.subr.mxu0 0.0
        %2885 = vmatpush2.xpose.msra.mxu0 0.0
        %2886 = vmatprep.subr.mxu0 0.0
        %2887 = vmatpush2.xpose.msra.mxu0 0.0
        %2888 = vmatprep.subr.mxu0 0.0
        %2889 = vmatpush2.xpose.msra.mxu0 0.0
        %2890 = vmatprep.subr.mxu0 0.0
        %2891 = vmatpush2.xpose.msra.mxu0 0.0
        %2892 = vmatprep.subr.mxu0 0.0
        %2893 = vmatpush2.xpose.msra.mxu0 0.0
        %2894 = vmatprep.mubr.f32.mxu0 0.0
        %2895 = vmatmul.mubr.f32.gmra.mxu0 %v2826
        %v2896 = vpop.f32.mrf.mxu0
        %v2897 = vadd.f32 0.0, %v2896
        %v2898 = vpop.f32.mrf.mxu0
        %2899 = vdwg.mxu0
        %2900 = vrot.lane.b32.xlu0 %v665, 104
        %v2901 = vpop.permute.xlu0 %2900
        %2902 = vrot.lane.b32.xlu0 %v665, 72
        %v2903 = vpop.permute.xlu0 %2902
        %v2904 = vsel %vm668, %v2901, 0
        %v2906 = vsel %vm668, %v2903, 0
        %2908 = vmatprep.subr.mxu0 0.0
        %2909 = vmatpush1.xpose.msra.mxu0 0.0
        %2910 = vmatprep.subr.mxu0 0.0
        %2911 = vmatpush1.xpose.msra.mxu0 0.0
        %2912 = vmatprep.subr.mxu0 0.0
        %2913 = vmatpush1.xpose.msra.mxu0 0.0
        %2914 = vmatprep.subr.mxu0 0.0
        %2915 = vmatpush1.xpose.msra.mxu0 0.0
        %2916 = vmatprep.subr.mxu0 0.0
        %2917 = vmatpush1.xpose.msra.mxu0 0.0
        %2918 = vmatprep.subr.mxu0 0.0
        %2919 = vmatpush1.xpose.msra.mxu0 0.0
        %2920 = vmatprep.subr.mxu0 0.0
        %2921 = vmatpush1.xpose.msra.mxu0 0.0
        %2922 = vmatprep.subr.mxu0 0.0
        %2923 = vmatpush1.xpose.msra.mxu0 0.0
        %2924 = vmatprep.subr.mxu0 0.0
        %2925 = vmatpush1.xpose.msra.mxu0 0.0
        %2926 = vmatprep.subr.mxu0 0.0
        %2927 = vmatpush1.xpose.msra.mxu0 0.0
        %2928 = vmatprep.subr.mxu0 0.0
        %2929 = vmatpush1.xpose.msra.mxu0 0.0
        %2930 = vmatprep.subr.mxu0 0.0
        %2931 = vmatpush1.xpose.msra.mxu0 0.0
        %2932 = vmatprep.subr.mxu0 0.0
        %2933 = vmatpush1.xpose.msra.mxu0 0.0
        %2934 = vmatprep.subr.mxu0 0.0
        %2935 = vmatpush1.xpose.msra.mxu0 0.0
        %2936 = vmatprep.subr.mxu0 0.0
        %2937 = vmatpush1.xpose.msra.mxu0 0.0
        %2938 = vmatprep.subr.mxu0 0.0
        %2939 = vmatpush1.xpose.msra.mxu0 %v2906
        %2940 = vmatprep.subr.mxu0 0.0
        %2941 = vmatpush2.xpose.msra.mxu0 0.0
        %2942 = vmatprep.subr.mxu0 0.0
        %2943 = vmatpush2.xpose.msra.mxu0 0.0
        %2944 = vmatprep.subr.mxu0 0.0
        %2945 = vmatpush2.xpose.msra.mxu0 0.0
        %2946 = vmatprep.subr.mxu0 0.0
        %2947 = vmatpush2.xpose.msra.mxu0 0.0
        %2948 = vmatprep.subr.mxu0 0.0
        %2949 = vmatpush2.xpose.msra.mxu0 0.0
        %2950 = vmatprep.subr.mxu0 0.0
        %2951 = vmatpush2.xpose.msra.mxu0 0.0
        %2952 = vmatprep.subr.mxu0 0.0
        %2953 = vmatpush2.xpose.msra.mxu0 0.0
        %2954 = vmatprep.subr.mxu0 0.0
        %2955 = vmatpush2.xpose.msra.mxu0 0.0
        %2956 = vmatprep.subr.mxu0 0.0
        %2957 = vmatpush2.xpose.msra.mxu0 0.0
        %2958 = vmatprep.subr.mxu0 0.0
        %2959 = vmatpush2.xpose.msra.mxu0 0.0
        %2960 = vmatprep.subr.mxu0 0.0
        %2961 = vmatpush2.xpose.msra.mxu0 0.0
        %2962 = vmatprep.subr.mxu0 0.0
        %2963 = vmatpush2.xpose.msra.mxu0 0.0
        %2964 = vmatprep.subr.mxu0 0.0
        %2965 = vmatpush2.xpose.msra.mxu0 0.0
        %2966 = vmatprep.subr.mxu0 0.0
        %2967 = vmatpush2.xpose.msra.mxu0 0.0
        %2968 = vmatprep.subr.mxu0 0.0
        %2969 = vmatpush2.xpose.msra.mxu0 0.0
        %2970 = vmatprep.subr.mxu0 0.0
        %2971 = vmatpush2.xpose.msra.mxu0 0.0
        %2972 = vmatprep.mubr.f32.mxu0 0.0
        %2973 = vmatmul.mubr.f32.gmra.mxu0 %v2904
        %v2974 = vpop.f32.mrf.mxu0
        %v2975 = vadd.f32 0.0, %v2974
        %v2976 = vpop.f32.mrf.mxu0
        %2977 = vdwg.mxu0
        %v2978 = vmul.f32 %v2741, 0.35355338
        %v2979 = vmul.f32 %v2819, 0.35355338
        %v2980 = vmul.f32 %v2897, 0.35355338
        %v2981 = vmul.f32 %v2975, 0.35355338
        %v2982 = vsel %vm975, %v2978, -inf
        %2983 = vmax.xlane.f32.xlu0 %v2982
        %v2984 = vpop.xlane.xlu0 %2983
        %v2985 = vsel %vm975, %v2979, -inf
        %2986 = vmax.xlane.f32.xlu0 %v2985
        %v2987 = vpop.xlane.xlu0 %2986
        %v2988 = vsel %vm975, %v2980, -inf
        %2989 = vmax.xlane.f32.xlu0 %v2988
        %v2990 = vpop.xlane.xlu0 %2989
        %v2991 = vsel %vm975, %v2981, -inf
        %2992 = vmax.xlane.f32.xlu0 %v2991
        %v2993 = vpop.xlane.xlu0 %2992
        %v2994 = vsub.f32 %v2978, %v2984
        %v2995 = vsub.f32 %v2979, %v2987
        %v2996 = vsub.f32 %v2980, %v2990
        %v2997 = vsub.f32 %v2981, %v2993
        %v2998 = vmul.f32 %v2994, 1.442695
        %v2999 = vpow.pop %v2998
        %v3000 = vmul.f32 %v2995, 1.442695
        %v3001 = vpow.pop %v3000
        %v3002 = vmul.f32 %v2996, 1.442695
        %v3003 = vpow.pop %v3002
        %v3004 = vmul.f32 %v2997, 1.442695
        %v3005 = vpow.pop %v3004
        %v3006 = vsel %vm975, %v2999, 0.0
        %3007 = vadd.xlane.f32.xlu0 %v3006
        %v3008 = vpop.xlane.xlu0 %3007
        %v3009 = vsel %vm975, %v3001, 0.0
        %3010 = vadd.xlane.f32.xlu0 %v3009
        %v3011 = vpop.xlane.xlu0 %3010
        %v3012 = vsel %vm975, %v3003, 0.0
        %3013 = vadd.xlane.f32.xlu0 %v3012
        %v3014 = vpop.xlane.xlu0 %3013
        %v3015 = vsel %vm975, %v3005, 0.0
        %3016 = vadd.xlane.f32.xlu0 %v3015
        %v3017 = vpop.xlane.xlu0 %3016
        %v3018 = vrcp.pop %v3008
        %v3019 = vrcp.pop %v3011
        %v3020 = vrcp.pop %v3014
        %v3021 = vrcp.pop %v3017
        %v3022 = vmul.f32 %v2999, %v3018
        %v3023 = vmul.f32 %v3001, %v3019
        %v3024 = vmul.f32 %v3003, %v3020
        %v3025 = vmul.f32 %v3005, %v3021
        %3026 = vrot.lane.b32.xlu0 %v654, 40
        %v3027 = vpop.permute.xlu0 %3026
        %v3029 = vsel %vm1022, %v3022, 0
        %v3031 = vsel %vm1026, %v3027, 0
        %3033 = vmatprep.subr.mxu0 0.0
        %3034 = vmatpush1.msra.mxu0 0.0
        %3035 = vmatprep.subr.mxu0 0.0
        %3036 = vmatpush1.msra.mxu0 0.0
        %3037 = vmatprep.subr.mxu0 0.0
        %3038 = vmatpush1.msra.mxu0 0.0
        %3039 = vmatprep.subr.mxu0 0.0
        %3040 = vmatpush1.msra.mxu0 0.0
        %3041 = vmatprep.subr.mxu0 0.0
        %3042 = vmatpush1.msra.mxu0 0.0
        %3043 = vmatprep.subr.mxu0 0.0
        %3044 = vmatpush1.msra.mxu0 0.0
        %3045 = vmatprep.subr.mxu0 0.0
        %3046 = vmatpush1.msra.mxu0 0.0
        %3047 = vmatprep.subr.mxu0 0.0
        %3048 = vmatpush1.msra.mxu0 0.0
        %3049 = vmatprep.subr.mxu0 0.0
        %3050 = vmatpush1.msra.mxu0 0.0
        %3051 = vmatprep.subr.mxu0 0.0
        %3052 = vmatpush1.msra.mxu0 0.0
        %3053 = vmatprep.subr.mxu0 0.0
        %3054 = vmatpush1.msra.mxu0 0.0
        %3055 = vmatprep.subr.mxu0 0.0
        %3056 = vmatpush1.msra.mxu0 0.0
        %3057 = vmatprep.subr.mxu0 0.0
        %3058 = vmatpush1.msra.mxu0 0.0
        %3059 = vmatprep.subr.mxu0 0.0
        %3060 = vmatpush1.msra.mxu0 0.0
        %3061 = vmatprep.subr.mxu0 0.0
        %3062 = vmatpush1.msra.mxu0 0.0
        %3063 = vmatprep.subr.mxu0 0.0
        %3064 = vmatpush1.msra.mxu0 %v3031
        %3065 = vmatprep.subr.mxu0 0.0
        %3066 = vmatpush2.msra.mxu0 0.0
        %3067 = vmatprep.subr.mxu0 0.0
        %3068 = vmatpush2.msra.mxu0 0.0
        %3069 = vmatprep.subr.mxu0 0.0
        %3070 = vmatpush2.msra.mxu0 0.0
        %3071 = vmatprep.subr.mxu0 0.0
        %3072 = vmatpush2.msra.mxu0 0.0
        %3073 = vmatprep.subr.mxu0 0.0
        %3074 = vmatpush2.msra.mxu0 0.0
        %3075 = vmatprep.subr.mxu0 0.0
        %3076 = vmatpush2.msra.mxu0 0.0
        %3077 = vmatprep.subr.mxu0 0.0
        %3078 = vmatpush2.msra.mxu0 0.0
        %3079 = vmatprep.subr.mxu0 0.0
        %3080 = vmatpush2.msra.mxu0 0.0
        %3081 = vmatprep.subr.mxu0 0.0
        %3082 = vmatpush2.msra.mxu0 0.0
        %3083 = vmatprep.subr.mxu0 0.0
        %3084 = vmatpush2.msra.mxu0 0.0
        %3085 = vmatprep.subr.mxu0 0.0
        %3086 = vmatpush2.msra.mxu0 0.0
        %3087 = vmatprep.subr.mxu0 0.0
        %3088 = vmatpush2.msra.mxu0 0.0
        %3089 = vmatprep.subr.mxu0 0.0
        %3090 = vmatpush2.msra.mxu0 0.0
        %3091 = vmatprep.subr.mxu0 0.0
        %3092 = vmatpush2.msra.mxu0 0.0
        %3093 = vmatprep.subr.mxu0 0.0
        %3094 = vmatpush2.msra.mxu0 0.0
        %3095 = vmatprep.subr.mxu0 0.0
        %3096 = vmatpush2.msra.mxu0 0.0
        %3097 = vmatprep.mubr.f32.mxu0 0.0
        %3098 = vmatmul.mubr.f32.gmra.mxu0 %v3029
        %v3099 = vpop.f32.mrf.mxu0
        %v3100 = vadd.f32 0.0, %v3099
        %v3101 = vpop.f32.mrf.mxu0
        %3102 = vdwg.mxu0
        %3103 = vrot.lane.b32.xlu0 %v664, 40
        %v3104 = vpop.permute.xlu0 %3103
        %v3106 = vsel %vm1022, %v3023, 0
        %v3108 = vsel %vm1026, %v3104, 0
        %3110 = vmatprep.subr.mxu0 0.0
        %3111 = vmatpush1.msra.mxu0 0.0
        %3112 = vmatprep.subr.mxu0 0.0
        %3113 = vmatpush1.msra.mxu0 0.0
        %3114 = vmatprep.subr.mxu0 0.0
        %3115 = vmatpush1.msra.mxu0 0.0
        %3116 = vmatprep.subr.mxu0 0.0
        %3117 = vmatpush1.msra.mxu0 0.0
        %3118 = vmatprep.subr.mxu0 0.0
        %3119 = vmatpush1.msra.mxu0 0.0
        %3120 = vmatprep.subr.mxu0 0.0
        %3121 = vmatpush1.msra.mxu0 0.0
        %3122 = vmatprep.subr.mxu0 0.0
        %3123 = vmatpush1.msra.mxu0 0.0
        %3124 = vmatprep.subr.mxu0 0.0
        %3125 = vmatpush1.msra.mxu0 0.0
        %3126 = vmatprep.subr.mxu0 0.0
        %3127 = vmatpush1.msra.mxu0 0.0
        %3128 = vmatprep.subr.mxu0 0.0
        %3129 = vmatpush1.msra.mxu0 0.0
        %3130 = vmatprep.subr.mxu0 0.0
        %3131 = vmatpush1.msra.mxu0 0.0
        %3132 = vmatprep.subr.mxu0 0.0
        %3133 = vmatpush1.msra.mxu0 0.0
        %3134 = vmatprep.subr.mxu0 0.0
        %3135 = vmatpush1.msra.mxu0 0.0
        %3136 = vmatprep.subr.mxu0 0.0
        %3137 = vmatpush1.msra.mxu0 0.0
        %3138 = vmatprep.subr.mxu0 0.0
        %3139 = vmatpush1.msra.mxu0 0.0
        %3140 = vmatprep.subr.mxu0 0.0
        %3141 = vmatpush1.msra.mxu0 %v3108
        %3142 = vmatprep.subr.mxu0 0.0
        %3143 = vmatpush2.msra.mxu0 0.0
        %3144 = vmatprep.subr.mxu0 0.0
        %3145 = vmatpush2.msra.mxu0 0.0
        %3146 = vmatprep.subr.mxu0 0.0
        %3147 = vmatpush2.msra.mxu0 0.0
        %3148 = vmatprep.subr.mxu0 0.0
        %3149 = vmatpush2.msra.mxu0 0.0
        %3150 = vmatprep.subr.mxu0 0.0
        %3151 = vmatpush2.msra.mxu0 0.0
        %3152 = vmatprep.subr.mxu0 0.0
        %3153 = vmatpush2.msra.mxu0 0.0
        %3154 = vmatprep.subr.mxu0 0.0
        %3155 = vmatpush2.msra.mxu0 0.0
        %3156 = vmatprep.subr.mxu0 0.0
        %3157 = vmatpush2.msra.mxu0 0.0
        %3158 = vmatprep.subr.mxu0 0.0
        %3159 = vmatpush2.msra.mxu0 0.0
        %3160 = vmatprep.subr.mxu0 0.0
        %3161 = vmatpush2.msra.mxu0 0.0
        %3162 = vmatprep.subr.mxu0 0.0
        %3163 = vmatpush2.msra.mxu0 0.0
        %3164 = vmatprep.subr.mxu0 0.0
        %3165 = vmatpush2.msra.mxu0 0.0
        %3166 = vmatprep.subr.mxu0 0.0
        %3167 = vmatpush2.msra.mxu0 0.0
        %3168 = vmatprep.subr.mxu0 0.0
        %3169 = vmatpush2.msra.mxu0 0.0
        %3170 = vmatprep.subr.mxu0 0.0
        %3171 = vmatpush2.msra.mxu0 0.0
        %3172 = vmatprep.subr.mxu0 0.0
        %3173 = vmatpush2.msra.mxu0 0.0
        %3174 = vmatprep.mubr.f32.mxu0 0.0
        %3175 = vmatmul.mubr.f32.gmra.mxu0 %v3106
        %v3176 = vpop.f32.mrf.mxu0
        %v3177 = vadd.f32 0.0, %v3176
        %v3178 = vpop.f32.mrf.mxu0
        %3179 = vdwg.mxu0
        %3180 = vrot.lane.b32.xlu0 %v659, 40
        %v3181 = vpop.permute.xlu0 %3180
        %v3183 = vsel %vm1022, %v3024, 0
        %v3185 = vsel %vm1026, %v3181, 0
        %3187 = vmatprep.subr.mxu0 0.0
        %3188 = vmatpush1.msra.mxu0 0.0
        %3189 = vmatprep.subr.mxu0 0.0
        %3190 = vmatpush1.msra.mxu0 0.0
        %3191 = vmatprep.subr.mxu0 0.0
        %3192 = vmatpush1.msra.mxu0 0.0
        %3193 = vmatprep.subr.mxu0 0.0
        %3194 = vmatpush1.msra.mxu0 0.0
        %3195 = vmatprep.subr.mxu0 0.0
        %3196 = vmatpush1.msra.mxu0 0.0
        %3197 = vmatprep.subr.mxu0 0.0
        %3198 = vmatpush1.msra.mxu0 0.0
        %3199 = vmatprep.subr.mxu0 0.0
        %3200 = vmatpush1.msra.mxu0 0.0
        %3201 = vmatprep.subr.mxu0 0.0
        %3202 = vmatpush1.msra.mxu0 0.0
        %3203 = vmatprep.subr.mxu0 0.0
        %3204 = vmatpush1.msra.mxu0 0.0
        %3205 = vmatprep.subr.mxu0 0.0
        %3206 = vmatpush1.msra.mxu0 0.0
        %3207 = vmatprep.subr.mxu0 0.0
        %3208 = vmatpush1.msra.mxu0 0.0
        %3209 = vmatprep.subr.mxu0 0.0
        %3210 = vmatpush1.msra.mxu0 0.0
        %3211 = vmatprep.subr.mxu0 0.0
        %3212 = vmatpush1.msra.mxu0 0.0
        %3213 = vmatprep.subr.mxu0 0.0
        %3214 = vmatpush1.msra.mxu0 0.0
        %3215 = vmatprep.subr.mxu0 0.0
        %3216 = vmatpush1.msra.mxu0 0.0
        %3217 = vmatprep.subr.mxu0 0.0
        %3218 = vmatpush1.msra.mxu0 %v3185
        %3219 = vmatprep.subr.mxu0 0.0
        %3220 = vmatpush2.msra.mxu0 0.0
        %3221 = vmatprep.subr.mxu0 0.0
        %3222 = vmatpush2.msra.mxu0 0.0
        %3223 = vmatprep.subr.mxu0 0.0
        %3224 = vmatpush2.msra.mxu0 0.0
        %3225 = vmatprep.subr.mxu0 0.0
        %3226 = vmatpush2.msra.mxu0 0.0
        %3227 = vmatprep.subr.mxu0 0.0
        %3228 = vmatpush2.msra.mxu0 0.0
        %3229 = vmatprep.subr.mxu0 0.0
        %3230 = vmatpush2.msra.mxu0 0.0
        %3231 = vmatprep.subr.mxu0 0.0
        %3232 = vmatpush2.msra.mxu0 0.0
        %3233 = vmatprep.subr.mxu0 0.0
        %3234 = vmatpush2.msra.mxu0 0.0
        %3235 = vmatprep.subr.mxu0 0.0
        %3236 = vmatpush2.msra.mxu0 0.0
        %3237 = vmatprep.subr.mxu0 0.0
        %3238 = vmatpush2.msra.mxu0 0.0
        %3239 = vmatprep.subr.mxu0 0.0
        %3240 = vmatpush2.msra.mxu0 0.0
        %3241 = vmatprep.subr.mxu0 0.0
        %3242 = vmatpush2.msra.mxu0 0.0
        %3243 = vmatprep.subr.mxu0 0.0
        %3244 = vmatpush2.msra.mxu0 0.0
        %3245 = vmatprep.subr.mxu0 0.0
        %3246 = vmatpush2.msra.mxu0 0.0
        %3247 = vmatprep.subr.mxu0 0.0
        %3248 = vmatpush2.msra.mxu0 0.0
        %3249 = vmatprep.subr.mxu0 0.0
        %3250 = vmatpush2.msra.mxu0 0.0
        %3251 = vmatprep.mubr.f32.mxu0 0.0
        %3252 = vmatmul.mubr.f32.gmra.mxu0 %v3183
        %v3253 = vpop.f32.mrf.mxu0
        %v3254 = vadd.f32 0.0, %v3253
        %v3255 = vpop.f32.mrf.mxu0
        %3256 = vdwg.mxu0
        %3257 = vrot.lane.b32.xlu0 %v665, 40
        %v3258 = vpop.permute.xlu0 %3257
        %v3260 = vsel %vm1022, %v3025, 0
        %v3262 = vsel %vm1026, %v3258, 0
        %3264 = vmatprep.subr.mxu0 0.0
        %3265 = vmatpush1.msra.mxu0 0.0
        %3266 = vmatprep.subr.mxu0 0.0
        %3267 = vmatpush1.msra.mxu0 0.0
        %3268 = vmatprep.subr.mxu0 0.0
        %3269 = vmatpush1.msra.mxu0 0.0
        %3270 = vmatprep.subr.mxu0 0.0
        %3271 = vmatpush1.msra.mxu0 0.0
        %3272 = vmatprep.subr.mxu0 0.0
        %3273 = vmatpush1.msra.mxu0 0.0
        %3274 = vmatprep.subr.mxu0 0.0
        %3275 = vmatpush1.msra.mxu0 0.0
        %3276 = vmatprep.subr.mxu0 0.0
        %3277 = vmatpush1.msra.mxu0 0.0
        %3278 = vmatprep.subr.mxu0 0.0
        %3279 = vmatpush1.msra.mxu0 0.0
        %3280 = vmatprep.subr.mxu0 0.0
        %3281 = vmatpush1.msra.mxu0 0.0
        %3282 = vmatprep.subr.mxu0 0.0
        %3283 = vmatpush1.msra.mxu0 0.0
        %3284 = vmatprep.subr.mxu0 0.0
        %3285 = vmatpush1.msra.mxu0 0.0
        %3286 = vmatprep.subr.mxu0 0.0
        %3287 = vmatpush1.msra.mxu0 0.0
        %3288 = vmatprep.subr.mxu0 0.0
        %3289 = vmatpush1.msra.mxu0 0.0
        %3290 = vmatprep.subr.mxu0 0.0
        %3291 = vmatpush1.msra.mxu0 0.0
        %3292 = vmatprep.subr.mxu0 0.0
        %3293 = vmatpush1.msra.mxu0 0.0
        %3294 = vmatprep.subr.mxu0 0.0
        %3295 = vmatpush1.msra.mxu0 %v3262
        %3296 = vmatprep.subr.mxu0 0.0
        %3297 = vmatpush2.msra.mxu0 0.0
        %3298 = vmatprep.subr.mxu0 0.0
        %3299 = vmatpush2.msra.mxu0 0.0
        %3300 = vmatprep.subr.mxu0 0.0
        %3301 = vmatpush2.msra.mxu0 0.0
        %3302 = vmatprep.subr.mxu0 0.0
        %3303 = vmatpush2.msra.mxu0 0.0
        %3304 = vmatprep.subr.mxu0 0.0
        %3305 = vmatpush2.msra.mxu0 0.0
        %3306 = vmatprep.subr.mxu0 0.0
        %3307 = vmatpush2.msra.mxu0 0.0
        %3308 = vmatprep.subr.mxu0 0.0
        %3309 = vmatpush2.msra.mxu0 0.0
        %3310 = vmatprep.subr.mxu0 0.0
        %3311 = vmatpush2.msra.mxu0 0.0
        %3312 = vmatprep.subr.mxu0 0.0
        %3313 = vmatpush2.msra.mxu0 0.0
        %3314 = vmatprep.subr.mxu0 0.0
        %3315 = vmatpush2.msra.mxu0 0.0
        %3316 = vmatprep.subr.mxu0 0.0
        %3317 = vmatpush2.msra.mxu0 0.0
        %3318 = vmatprep.subr.mxu0 0.0
        %3319 = vmatpush2.msra.mxu0 0.0
        %3320 = vmatprep.subr.mxu0 0.0
        %3321 = vmatpush2.msra.mxu0 0.0
        %3322 = vmatprep.subr.mxu0 0.0
        %3323 = vmatpush2.msra.mxu0 0.0
        %3324 = vmatprep.subr.mxu0 0.0
        %3325 = vmatpush2.msra.mxu0 0.0
        %3326 = vmatprep.subr.mxu0 0.0
        %3327 = vmatpush2.msra.mxu0 0.0
        %3328 = vmatprep.mubr.f32.mxu0 0.0
        %3329 = vmatmul.mubr.f32.gmra.mxu0 %v3260
        %v3330 = vpop.f32.mrf.mxu0
        %v3331 = vadd.f32 0.0, %v3330
        %v3332 = vpop.f32.mrf.mxu0
        %3333 = vdwg.mxu0
        %3338 = vrot.lane.b32.xlu0 %v1764, 8
        %v3339 = vpop.permute.xlu0 %3338
        %3340 = vrot.lane.b32.xlu0 %v1841, 8
        %v3341 = vpop.permute.xlu0 %3340
        %3342 = vrot.lane.b32.xlu0 %v1918, 8
        %v3343 = vpop.permute.xlu0 %3342
        %3344 = vrot.lane.b32.xlu0 %v1995, 8
        %v3345 = vpop.permute.xlu0 %3344
        %3354 = vrot.lane.b32.xlu0 %v2432, 16
        %v3355 = vpop.permute.xlu0 %3354
        %3356 = vrot.lane.b32.xlu0 %v2509, 16
        %v3357 = vpop.permute.xlu0 %3356
        %3358 = vrot.lane.b32.xlu0 %v2586, 16
        %v3359 = vpop.permute.xlu0 %3358
        %3360 = vrot.lane.b32.xlu0 %v2663, 16
        %v3361 = vpop.permute.xlu0 %3360
        %3370 = vrot.lane.b32.xlu0 %v3100, 24
        %v3371 = vpop.permute.xlu0 %3370
        %3372 = vrot.lane.b32.xlu0 %v3177, 24
        %v3373 = vpop.permute.xlu0 %3372
        %3374 = vrot.lane.b32.xlu0 %v3254, 24
        %v3375 = vpop.permute.xlu0 %3374
        %3376 = vrot.lane.b32.xlu0 %v3331, 24
        %v3377 = vpop.permute.xlu0 %3376
        %v3382 = vsel %vm668, %v1096, %v3339
        %v3383 = vsel %vm668, %v1173, %v3341
        %v3384 = vsel %vm668, %v1250, %v3343
        %v3385 = vsel %vm668, %v1327, %v3345
        %vm3386 = vcmask 130048
        %v3387 = vsel %vm3386, %v3382, %v3355
        %v3388 = vsel %vm3386, %v3383, %v3357
        %v3389 = vsel %vm3386, %v3384, %v3359
        %v3390 = vsel %vm3386, %v3385, %v3361
        %vm3391 = vcmask 195584
        %v3392 = vsel %vm3391, %v3387, %v3371
        %v3393 = vsel %vm3391, %v3388, %v3373
        %v3394 = vsel %vm3391, %v3389, %v3375
        %v3395 = vsel %vm3391, %v3390, %v3377
        %v3396 = vld [vmem:[%s4] sm:$0xff]
        %v3397 = vld [vmem:[%s4 + $0x8] sm:$0xff]
        %v3398 = vld [vmem:[%s4 + $0x10] sm:$0xff]
        %v3399 = vld [vmem:[%s4 + $0x18] sm:$0xff]
        %v3400 = vld [vmem:[%s5] sm:$0x1]
        %v3402 = vlaneseq
        %v3403 = vshrl.u32 %v3402, 7
        %v3404 = vsub.s32 0, %v3403
        %v3405 = vrot.slane %v3400, %v3404
        %v3411 = vcombine.low %v3392, %v3393
        %v3412 = vcombine.low %v3394, %v3395
        %v3413 = vsel %vm582, %v3411, 0
        %v3415 = vsel %vm582, %v3412, 0
        %3417 = vmatprep.subr.mxu0 0.0
        %3418 = vmatpush1.msra.mxu0 0.0
        %3419 = vmatprep.subr.mxu0 0.0
        %3420 = vmatpush1.msra.mxu0 0.0
        %3421 = vmatprep.subr.mxu0 0.0
        %3422 = vmatpush1.msra.mxu0 0.0
        %3423 = vmatprep.subr.mxu0 0.0
        %3424 = vmatpush1.msra.mxu0 0.0
        %3425 = vmatprep.subr.mxu0 0.0
        %3426 = vmatpush1.msra.mxu0 0.0
        %3427 = vmatprep.subr.mxu0 0.0
        %3428 = vmatpush1.msra.mxu0 0.0
        %3429 = vmatprep.subr.mxu0 0.0
        %3430 = vmatpush1.msra.mxu0 0.0
        %3431 = vmatprep.subr.mxu0 0.0
        %3432 = vmatpush1.msra.mxu0 0.0
        %3433 = vmatprep.subr.mxu0 0.0
        %3434 = vmatpush1.msra.mxu0 0.0
        %3435 = vmatprep.subr.mxu0 0.0
        %3436 = vmatpush1.msra.mxu0 0.0
        %3437 = vmatprep.subr.mxu0 0.0
        %3438 = vmatpush1.msra.mxu0 0.0
        %3439 = vmatprep.subr.mxu0 0.0
        %3440 = vmatpush1.msra.mxu0 0.0
        %3441 = vmatprep.subr.mxu0 0.0
        %3442 = vmatpush1.msra.mxu0 %v3399
        %3443 = vmatprep.subr.mxu0 0.0
        %3444 = vmatpush1.msra.mxu0 %v3398
        %3445 = vmatprep.subr.mxu0 0.0
        %3446 = vmatpush1.msra.mxu0 %v3397
        %3447 = vmatprep.subr.mxu0 0.0
        %3448 = vmatpush1.msra.mxu0 %v3396
        %3449 = vmatprep.subr.mxu0 0.0
        %3450 = vmatpush2.msra.mxu0 0.0
        %3451 = vmatprep.subr.mxu0 0.0
        %3452 = vmatpush2.msra.mxu0 0.0
        %3453 = vmatprep.subr.mxu0 0.0
        %3454 = vmatpush2.msra.mxu0 0.0
        %3455 = vmatprep.subr.mxu0 0.0
        %3456 = vmatpush2.msra.mxu0 0.0
        %3457 = vmatprep.subr.mxu0 0.0
        %3458 = vmatpush2.msra.mxu0 0.0
        %3459 = vmatprep.subr.mxu0 0.0
        %3460 = vmatpush2.msra.mxu0 0.0
        %3461 = vmatprep.subr.mxu0 0.0
        %3462 = vmatpush2.msra.mxu0 0.0
        %3463 = vmatprep.subr.mxu0 0.0
        %3464 = vmatpush2.msra.mxu0 0.0
        %3465 = vmatprep.subr.mxu0 0.0
        %3466 = vmatpush2.msra.mxu0 0.0
        %3467 = vmatprep.subr.mxu0 0.0
        %3468 = vmatpush2.msra.mxu0 0.0
        %3469 = vmatprep.subr.mxu0 0.0
        %3470 = vmatpush2.msra.mxu0 0.0
        %3471 = vmatprep.subr.mxu0 0.0
        %3472 = vmatpush2.msra.mxu0 0.0
        %3473 = vmatprep.subr.mxu0 0.0
        %3474 = vmatpush2.msra.mxu0 0.0
        %3475 = vmatprep.subr.mxu0 0.0
        %3476 = vmatpush2.msra.mxu0 0.0
        %3477 = vmatprep.subr.mxu0 0.0
        %3478 = vmatpush2.msra.mxu0 0.0
        %3479 = vmatprep.subr.mxu0 0.0
        %3480 = vmatpush2.msra.mxu0 0.0
        %3481 = vmatprep.mubr.f32.mxu0 0.0
        %3482 = vmatmul.mubr.f32.gmra.mxu0 %v3413
        %v3483 = vpop.f32.mrf.mxu0
        %v3484 = vadd.f32 %v3405, %v3483
        %v3485 = vpop.f32.mrf.mxu0
        %3486 = vmatprep.mubr.f32.mxu0 0.0
        %3487 = vmatmul.mubr.f32.gmra.mxu0 %v3415
        %v3488 = vpop.f32.mrf.mxu0
        %v3489 = vadd.f32 %v3405, %v3488
        %v3490 = vpop.f32.mrf.mxu0
        %3491 = vdwg.mxu0
        %v3494 = vcombine.high %v3484, %v3484
        %v3495 = vcombine.high %v3489, %v3489
        %v3498 = vadd.f32 %v561, %v3484
        %v3499 = vadd.f32 %v562, %v3494
        %v3500 = vadd.f32 %v563, %v3489
        %v3501 = vadd.f32 %v564, %v3495
        %v3502 = vld [vmem:[%s6] sm:$0x1]
        %v3503 = vld [vmem:[%s7] sm:$0x1]
        %v3508 = vcombine.low %v3498, %v3499
        %v3509 = vcombine.low %v3500, %v3501
        %v3512 = vsel %vm582, %v3508, 0.0
        %3513 = vadd.xlane.f32.xlu0 %v3512
        %v3514 = vpop.xlane.xlu0 %3513
        %v3515 = vsel %vm582, %v3509, 0.0
        %3516 = vadd.xlane.f32.xlu0 %v3515
        %v3517 = vpop.xlane.xlu0 %3516
        %v3518 = vrcp.pop 32.0
        %v3519 = vmul.f32 %v3514, %v3518
        %v3520 = vmul.f32 %v3517, %v3518
        %v3524 = vunpack.c.l.s4 839922192
        %v3525 = vunpack.c.0.s8 %v3524
        %v3526 = vlaneseq
        %v3527 = vshrl.u32 %v3526, 7
        %v3528 = vsub.s32 %v3525, %v3527
        %v3529 = vrot.slane %v3519, %v3528
        %v3531 = vunpack.c.l.s4 1985246804
        %v3532 = vunpack.c.0.s8 %v3531
        %v3533 = vlaneseq
        %v3534 = vshrl.u32 %v3533, 7
        %v3535 = vsub.s32 %v3532, %v3534
        %v3536 = vrot.slane %v3519, %v3535
        %v3538 = vunpack.c.l.s4 839922192
        %v3539 = vunpack.c.0.s8 %v3538
        %v3540 = vlaneseq
        %v3541 = vshrl.u32 %v3540, 7
        %v3542 = vsub.s32 %v3539, %v3541
        %v3543 = vrot.slane %v3520, %v3542
        %v3545 = vunpack.c.l.s4 1985246804
        %v3546 = vunpack.c.0.s8 %v3545
        %v3547 = vlaneseq
        %v3548 = vshrl.u32 %v3547, 7
        %v3549 = vsub.s32 %v3546, %v3548
        %v3550 = vrot.slane %v3520, %v3549
        %v3555 = vsub.f32 %v3498, %v3529
        %v3556 = vsub.f32 %v3499, %v3536
        %v3557 = vsub.f32 %v3500, %v3543
        %v3558 = vsub.f32 %v3501, %v3550
        %v3559 = vmul.f32 %v3555, %v3555
        %v3560 = vmul.f32 %v3556, %v3556
        %v3561 = vmul.f32 %v3557, %v3557
        %v3562 = vmul.f32 %v3558, %v3558
        %v3567 = vcombine.low %v3559, %v3560
        %v3568 = vcombine.low %v3561, %v3562
        %v3571 = vsel %vm582, %v3567, 0.0
        %3572 = vadd.xlane.f32.xlu0 %v3571
        %v3573 = vpop.xlane.xlu0 %3572
        %v3574 = vsel %vm582, %v3568, 0.0
        %3575 = vadd.xlane.f32.xlu0 %v3574
        %v3576 = vpop.xlane.xlu0 %3575
        %v3577 = vmul.f32 %v3573, %v3518
        %v3578 = vmul.f32 %v3576, %v3518
        %v3579 = vadd.f32 %v3577, 1e-05
        %v3580 = vadd.f32 %v3578, 1e-05
        %v3581 = vrsqrt.pop %v3579
        %v3582 = vrsqrt.pop %v3580
        %v3586 = vunpack.c.l.s4 839922192
        %v3587 = vunpack.c.0.s8 %v3586
        %v3588 = vlaneseq
        %v3589 = vshrl.u32 %v3588, 7
        %v3590 = vsub.s32 %v3587, %v3589
        %v3591 = vrot.slane %v3581, %v3590
        %v3593 = vunpack.c.l.s4 1985246804
        %v3594 = vunpack.c.0.s8 %v3593
        %v3595 = vlaneseq
        %v3596 = vshrl.u32 %v3595, 7
        %v3597 = vsub.s32 %v3594, %v3596
        %v3598 = vrot.slane %v3581, %v3597
        %v3600 = vunpack.c.l.s4 839922192
        %v3601 = vunpack.c.0.s8 %v3600
        %v3602 = vlaneseq
        %v3603 = vshrl.u32 %v3602, 7
        %v3604 = vsub.s32 %v3601, %v3603
        %v3605 = vrot.slane %v3582, %v3604
        %v3607 = vunpack.c.l.s4 1985246804
        %v3608 = vunpack.c.0.s8 %v3607
        %v3609 = vlaneseq
        %v3610 = vshrl.u32 %v3609, 7
        %v3611 = vsub.s32 %v3608, %v3610
        %v3612 = vrot.slane %v3582, %v3611
        %v3617 = vmul.f32 %v3555, %v3591
        %v3618 = vmul.f32 %v3556, %v3598
        %v3619 = vmul.f32 %v3557, %v3605
        %v3620 = vmul.f32 %v3558, %v3612
        %v3622 = vlaneseq
        %v3623 = vshrl.u32 %v3622, 7
        %v3624 = vsub.s32 0, %v3623
        %v3625 = vrot.slane %v3502, %v3624
        %v3627 = vcombine.high %v3625, %v3625
        %v3629 = vmul.f32 %v3617, %v3625
        %v3630 = vmul.f32 %v3618, %v3627
        %v3631 = vmul.f32 %v3619, %v3625
        %v3632 = vmul.f32 %v3620, %v3627
        %v3634 = vlaneseq
        %v3635 = vshrl.u32 %v3634, 7
        %v3636 = vsub.s32 0, %v3635
        %v3637 = vrot.slane %v3503, %v3636
        %v3639 = vcombine.high %v3637, %v3637
        %v3641 = vadd.f32 %v3629, %v3637
        %v3642 = vadd.f32 %v3630, %v3639
        %v3643 = vadd.f32 %v3631, %v3637
        %v3644 = vadd.f32 %v3632, %v3639
        %v3645 = vld [vmem:[%s8] sm:$0xff]
        %v3646 = vld [vmem:[%s8 + $0x8] sm:$0xff]
        %v3647 = vld [vmem:[%s8 + $0x10] sm:$0xff]
        %v3648 = vld [vmem:[%s8 + $0x18] sm:$0xff]
        %v3649 = vld [vmem:[%s9] sm:$0x1]
        %v3651 = vlaneseq
        %v3652 = vshrl.u32 %v3651, 7
        %v3653 = vsub.s32 0, %v3652
        %v3654 = vrot.slane %v3649, %v3653
        %v3660 = vcombine.low %v3641, %v3642
        %v3661 = vcombine.low %v3643, %v3644
        %v3662 = vsel %vm582, %v3660, 0
        %v3664 = vsel %vm582, %v3661, 0
        %3666 = vmatprep.subr.mxu0 0.0
        %3667 = vmatpush1.msra.mxu0 0.0
        %3668 = vmatprep.subr.mxu0 0.0
        %3669 = vmatpush1.msra.mxu0 0.0
        %3670 = vmatprep.subr.mxu0 0.0
        %3671 = vmatpush1.msra.mxu0 0.0
        %3672 = vmatprep.subr.mxu0 0.0
        %3673 = vmatpush1.msra.mxu0 0.0
        %3674 = vmatprep.subr.mxu0 0.0
        %3675 = vmatpush1.msra.mxu0 0.0
        %3676 = vmatprep.subr.mxu0 0.0
        %3677 = vmatpush1.msra.mxu0 0.0
        %3678 = vmatprep.subr.mxu0 0.0
        %3679 = vmatpush1.msra.mxu0 0.0
        %3680 = vmatprep.subr.mxu0 0.0
        %3681 = vmatpush1.msra.mxu0 0.0
        %3682 = vmatprep.subr.mxu0 0.0
        %3683 = vmatpush1.msra.mxu0 0.0
        %3684 = vmatprep.subr.mxu0 0.0
        %3685 = vmatpush1.msra.mxu0 0.0
        %3686 = vmatprep.subr.mxu0 0.0
        %3687 = vmatpush1.msra.mxu0 0.0
        %3688 = vmatprep.subr.mxu0 0.0
        %3689 = vmatpush1.msra.mxu0 0.0
        %3690 = vmatprep.subr.mxu0 0.0
        %3691 = vmatpush1.msra.mxu0 %v3648
        %3692 = vmatprep.subr.mxu0 0.0
        %3693 = vmatpush1.msra.mxu0 %v3647
        %3694 = vmatprep.subr.mxu0 0.0
        %3695 = vmatpush1.msra.mxu0 %v3646
        %3696 = vmatprep.subr.mxu0 0.0
        %3697 = vmatpush1.msra.mxu0 %v3645
        %3698 = vmatprep.subr.mxu0 0.0
        %3699 = vmatpush2.msra.mxu0 0.0
        %3700 = vmatprep.subr.mxu0 0.0
        %3701 = vmatpush2.msra.mxu0 0.0
        %3702 = vmatprep.subr.mxu0 0.0
        %3703 = vmatpush2.msra.mxu0 0.0
        %3704 = vmatprep.subr.mxu0 0.0
        %3705 = vmatpush2.msra.mxu0 0.0
        %3706 = vmatprep.subr.mxu0 0.0
        %3707 = vmatpush2.msra.mxu0 0.0
        %3708 = vmatprep.subr.mxu0 0.0
        %3709 = vmatpush2.msra.mxu0 0.0
        %3710 = vmatprep.subr.mxu0 0.0
        %3711 = vmatpush2.msra.mxu0 0.0
        %3712 = vmatprep.subr.mxu0 0.0
        %3713 = vmatpush2.msra.mxu0 0.0
        %3714 = vmatprep.subr.mxu0 0.0
        %3715 = vmatpush2.msra.mxu0 0.0
        %3716 = vmatprep.subr.mxu0 0.0
        %3717 = vmatpush2.msra.mxu0 0.0
        %3718 = vmatprep.subr.mxu0 0.0
        %3719 = vmatpush2.msra.mxu0 0.0
        %3720 = vmatprep.subr.mxu0 0.0
        %3721 = vmatpush2.msra.mxu0 0.0
        %3722 = vmatprep.subr.mxu0 0.0
        %3723 = vmatpush2.msra.mxu0 0.0
        %3724 = vmatprep.subr.mxu0 0.0
        %3725 = vmatpush2.msra.mxu0 0.0
        %3726 = vmatprep.subr.mxu0 0.0
        %3727 = vmatpush2.msra.mxu0 0.0
        %3728 = vmatprep.subr.mxu0 0.0
        %3729 = vmatpush2.msra.mxu0 0.0
        %3730 = vmatprep.mubr.f32.mxu0 0.0
        %3731 = vmatmul.mubr.f32.gmra.mxu0 %v3662
        %v3732 = vpop.f32.mrf.mxu0
        %v3733 = vadd.f32 %v3654, %v3732
        %v3734 = vpop.f32.mrf.mxu0
        %3735 = vmatprep.mubr.f32.mxu0 0.0
        %3736 = vmatmul.mubr.f32.gmra.mxu0 %v3664
        %v3737 = vpop.f32.mrf.mxu0
        %v3738 = vadd.f32 %v3654, %v3737
        %v3739 = vpop.f32.mrf.mxu0
        %3740 = vdwg.mxu0
        %v3741 = vmax.f32 %v3733, 0.0
        %v3742 = vmax.f32 %v3738, 0.0
        %v3743 = vld [vmem:[%s10] sm:$0xff]
        %v3744 = vld [vmem:[%s10 + $0x8] sm:$0xff]
        %v3745 = vld [vmem:[%s10 + $0x10] sm:$0xff]
        %v3746 = vld [vmem:[%s10 + $0x18] sm:$0xff]
        %v3747 = vld [vmem:[%s10 + $0x20] sm:$0xff]
        %v3748 = vld [vmem:[%s10 + $0x28] sm:$0xff]
        %v3749 = vld [vmem:[%s10 + $0x30] sm:$0xff]
        %v3750 = vld [vmem:[%s10 + $0x38] sm:$0xff]
        %v3751 = vld [vmem:[%s11] sm:$0x1]
        %v3753 = vlaneseq
        %v3754 = vshrl.u32 %v3753, 7
        %v3755 = vsub.s32 0, %v3754
        %v3756 = vrot.slane %v3751, %v3755
        %vm3758 = vcmask 523264
        %v3760 = vsel %vm3758, %v3741, 0
        %v3763 = vsel %vm3758, %v3742, 0
        %3765 = vmatprep.subr.mxu0 0.0
        %3766 = vmatpush1.msra.mxu0 0.0
        %3767 = vmatprep.subr.mxu0 0.0
        %3768 = vmatpush1.msra.mxu0 0.0
        %3769 = vmatprep.subr.mxu0 0.0
        %3770 = vmatpush1.msra.mxu0 0.0
        %3771 = vmatprep.subr.mxu0 0.0
        %3772 = vmatpush1.msra.mxu0 0.0
        %3773 = vmatprep.subr.mxu0 0.0
        %3774 = vmatpush1.msra.mxu0 0.0
        %3775 = vmatprep.subr.mxu0 0.0
        %3776 = vmatpush1.msra.mxu0 0.0
        %3777 = vmatprep.subr.mxu0 0.0
        %3778 = vmatpush1.msra.mxu0 0.0
        %3779 = vmatprep.subr.mxu0 0.0
        %3780 = vmatpush1.msra.mxu0 0.0
        %3781 = vmatprep.subr.mxu0 0.0
        %3782 = vmatpush1.msra.mxu0 %v3750
        %3783 = vmatprep.subr.mxu0 0.0
        %3784 = vmatpush1.msra.mxu0 %v3749
        %3785 = vmatprep.subr.mxu0 0.0
        %3786 = vmatpush1.msra.mxu0 %v3748
        %3787 = vmatprep.subr.mxu0 0.0
        %3788 = vmatpush1.msra.mxu0 %v3747
        %3789 = vmatprep.subr.mxu0 0.0
        %3790 = vmatpush1.msra.mxu0 %v3746
        %3791 = vmatprep.subr.mxu0 0.0
        %3792 = vmatpush1.msra.mxu0 %v3745
        %3793 = vmatprep.subr.mxu0 0.0
        %3794 = vmatpush1.msra.mxu0 %v3744
        %3795 = vmatprep.subr.mxu0 0.0
        %3796 = vmatpush1.msra.mxu0 %v3743
        %3797 = vmatprep.subr.mxu0 0.0
        %3798 = vmatpush2.msra.mxu0 0.0
        %3799 = vmatprep.subr.mxu0 0.0
        %3800 = vmatpush2.msra.mxu0 0.0
        %3801 = vmatprep.subr.mxu0 0.0
        %3802 = vmatpush2.msra.mxu0 0.0
        %3803 = vmatprep.subr.mxu0 0.0
        %3804 = vmatpush2.msra.mxu0 0.0
        %3805 = vmatprep.subr.mxu0 0.0
        %3806 = vmatpush2.msra.mxu0 0.0
        %3807 = vmatprep.subr.mxu0 0.0
        %3808 = vmatpush2.msra.mxu0 0.0
        %3809 = vmatprep.subr.mxu0 0.0
        %3810 = vmatpush2.msra.mxu0 0.0
        %3811 = vmatprep.subr.mxu0 0.0
        %3812 = vmatpush2.msra.mxu0 0.0
        %3813 = vmatprep.subr.mxu0 0.0
        %3814 = vmatpush2.msra.mxu0 0.0
        %3815 = vmatprep.subr.mxu0 0.0
        %3816 = vmatpush2.msra.mxu0 0.0
        %3817 = vmatprep.subr.mxu0 0.0
        %3818 = vmatpush2.msra.mxu0 0.0
        %3819 = vmatprep.subr.mxu0 0.0
        %3820 = vmatpush2.msra.mxu0 0.0
        %3821 = vmatprep.subr.mxu0 0.0
        %3822 = vmatpush2.msra.mxu0 0.0
        %3823 = vmatprep.subr.mxu0 0.0
        %3824 = vmatpush2.msra.mxu0 0.0
        %3825 = vmatprep.subr.mxu0 0.0
        %3826 = vmatpush2.msra.mxu0 0.0
        %3827 = vmatprep.subr.mxu0 0.0
        %3828 = vmatpush2.msra.mxu0 0.0
        %3829 = vmatprep.mubr.f32.mxu0 0.0
        %3830 = vmatmul.mubr.f32.gmra.mxu0 %v3760
        %v3831 = vpop.f32.mrf.mxu0
        %v3832 = vadd.f32 %v3756, %v3831
        %v3833 = vpop.f32.mrf.mxu0
        %3834 = vmatprep.mubr.f32.mxu0 0.0
        %3835 = vmatmul.mubr.f32.gmra.mxu0 %v3763
        %v3836 = vpop.f32.mrf.mxu0
        %v3837 = vadd.f32 %v3756, %v3836
        %v3838 = vpop.f32.mrf.mxu0
        %3839 = vdwg.mxu0
        %v3842 = vcombine.high %v3832, %v3832
        %v3843 = vcombine.high %v3837, %v3837
        %v3846 = vadd.f32 %v3641, %v3832
        %v3847 = vadd.f32 %v3642, %v3842
        %v3848 = vadd.f32 %v3643, %v3837
        %v3849 = vadd.f32 %v3644, %v3843
        %v3850 = vld [vmem:[%s12] sm:$0x1]
        %v3851 = vld [vmem:[%s13] sm:$0x1]
        %v3856 = vcombine.low %v3846, %v3847
        %v3857 = vcombine.low %v3848, %v3849
        %v3860 = vsel %vm582, %v3856, 0.0
        %3861 = vadd.xlane.f32.xlu0 %v3860
        %v3862 = vpop.xlane.xlu0 %3861
        %v3863 = vsel %vm582, %v3857, 0.0
        %3864 = vadd.xlane.f32.xlu0 %v3863
        %v3865 = vpop.xlane.xlu0 %3864
        %v3866 = vmul.f32 %v3862, %v3518
        %v3867 = vmul.f32 %v3865, %v3518
        %v3871 = vunpack.c.l.s4 839922192
        %v3872 = vunpack.c.0.s8 %v3871
        %v3873 = vlaneseq
        %v3874 = vshrl.u32 %v3873, 7
        %v3875 = vsub.s32 %v3872, %v3874
        %v3876 = vrot.slane %v3866, %v3875
        %v3878 = vunpack.c.l.s4 1985246804
        %v3879 = vunpack.c.0.s8 %v3878
        %v3880 = vlaneseq
        %v3881 = vshrl.u32 %v3880, 7
        %v3882 = vsub.s32 %v3879, %v3881
        %v3883 = vrot.slane %v3866, %v3882
        %v3885 = vunpack.c.l.s4 839922192
        %v3886 = vunpack.c.0.s8 %v3885
        %v3887 = vlaneseq
        %v3888 = vshrl.u32 %v3887, 7
        %v3889 = vsub.s32 %v3886, %v3888
        %v3890 = vrot.slane %v3867, %v3889
        %v3892 = vunpack.c.l.s4 1985246804
        %v3893 = vunpack.c.0.s8 %v3892
        %v3894 = vlaneseq
        %v3895 = vshrl.u32 %v3894, 7
        %v3896 = vsub.s32 %v3893, %v3895
        %v3897 = vrot.slane %v3867, %v3896
        %v3902 = vsub.f32 %v3846, %v3876
        %v3903 = vsub.f32 %v3847, %v3883
        %v3904 = vsub.f32 %v3848, %v3890
        %v3905 = vsub.f32 %v3849, %v3897
        %v3906 = vmul.f32 %v3902, %v3902
        %v3907 = vmul.f32 %v3903, %v3903
        %v3908 = vmul.f32 %v3904, %v3904
        %v3909 = vmul.f32 %v3905, %v3905
        %v3914 = vcombine.low %v3906, %v3907
        %v3915 = vcombine.low %v3908, %v3909
        %v3918 = vsel %vm582, %v3914, 0.0
        %3919 = vadd.xlane.f32.xlu0 %v3918
        %v3920 = vpop.xlane.xlu0 %3919
        %v3921 = vsel %vm582, %v3915, 0.0
        %3922 = vadd.xlane.f32.xlu0 %v3921
        %v3923 = vpop.xlane.xlu0 %3922
        %v3924 = vmul.f32 %v3920, %v3518
        %v3925 = vmul.f32 %v3923, %v3518
        %v3926 = vadd.f32 %v3924, 1e-05
        %v3927 = vadd.f32 %v3925, 1e-05
        %v3928 = vrsqrt.pop %v3926
        %v3929 = vrsqrt.pop %v3927
        %v3933 = vunpack.c.l.s4 839922192
        %v3934 = vunpack.c.0.s8 %v3933
        %v3935 = vlaneseq
        %v3936 = vshrl.u32 %v3935, 7
        %v3937 = vsub.s32 %v3934, %v3936
        %v3938 = vrot.slane %v3928, %v3937
        %v3940 = vunpack.c.l.s4 1985246804
        %v3941 = vunpack.c.0.s8 %v3940
        %v3942 = vlaneseq
        %v3943 = vshrl.u32 %v3942, 7
        %v3944 = vsub.s32 %v3941, %v3943
        %v3945 = vrot.slane %v3928, %v3944
        %v3947 = vunpack.c.l.s4 839922192
        %v3948 = vunpack.c.0.s8 %v3947
        %v3949 = vlaneseq
        %v3950 = vshrl.u32 %v3949, 7
        %v3951 = vsub.s32 %v3948, %v3950
        %v3952 = vrot.slane %v3929, %v3951
        %v3954 = vunpack.c.l.s4 1985246804
        %v3955 = vunpack.c.0.s8 %v3954
        %v3956 = vlaneseq
        %v3957 = vshrl.u32 %v3956, 7
        %v3958 = vsub.s32 %v3955, %v3957
        %v3959 = vrot.slane %v3929, %v3958
        %v3964 = vmul.f32 %v3902, %v3938
        %v3965 = vmul.f32 %v3903, %v3945
        %v3966 = vmul.f32 %v3904, %v3952
        %v3967 = vmul.f32 %v3905, %v3959
        %v3969 = vlaneseq
        %v3970 = vshrl.u32 %v3969, 7
        %v3971 = vsub.s32 0, %v3970
        %v3972 = vrot.slane %v3850, %v3971
        %v3974 = vcombine.high %v3972, %v3972
        %v3976 = vmul.f32 %v3964, %v3972
        %v3977 = vmul.f32 %v3965, %v3974
        %v3978 = vmul.f32 %v3966, %v3972
        %v3979 = vmul.f32 %v3967, %v3974
        %v3981 = vlaneseq
        %v3982 = vshrl.u32 %v3981, 7
        %v3983 = vsub.s32 0, %v3982
        %v3984 = vrot.slane %v3851, %v3983
        %v3986 = vcombine.high %v3984, %v3984
        %v3988 = vadd.f32 %v3976, %v3984
        %v3989 = vadd.f32 %v3977, %v3986
        %v3990 = vadd.f32 %v3978, %v3984
        %v3991 = vadd.f32 %v3979, %v3986
        %s3992 = scalar_lea.vmem %s2, 32
        %v3993 = vld [vmem:[%s3992] sm:$0xff]
        %v3994 = vld [vmem:[%s3992 + $0x8] sm:$0xff]
        %v3995 = vld [vmem:[%s3992 + $0x10] sm:$0xff]
        %v3996 = vld [vmem:[%s3992 + $0x18] sm:$0xff]
        %s3997 = scalar_lea.vmem %s3, 1
        %v3998 = vld [vmem:[%s3997] sm:$0x1]
        %v4000 = vlaneseq
        %v4001 = vshrl.u32 %v4000, 7
        %v4002 = vsub.s32 0, %v4001
        %v4003 = vrot.slane %v3998, %v4002
        %v4009 = vcombine.low %v3988, %v3989
        %v4010 = vcombine.low %v3990, %v3991
        %v4011 = vsel %vm582, %v4009, 0
        %v4013 = vsel %vm582, %v4010, 0
        %4015 = vmatprep.subr.mxu0 0.0
        %4016 = vmatpush1.msra.mxu0 0.0
        %4017 = vmatprep.subr.mxu0 0.0
        %4018 = vmatpush1.msra.mxu0 0.0
        %4019 = vmatprep.subr.mxu0 0.0
        %4020 = vmatpush1.msra.mxu0 0.0
        %4021 = vmatprep.subr.mxu0 0.0
        %4022 = vmatpush1.msra.mxu0 0.0
        %4023 = vmatprep.subr.mxu0 0.0
        %4024 = vmatpush1.msra.mxu0 0.0
        %4025 = vmatprep.subr.mxu0 0.0
        %4026 = vmatpush1.msra.mxu0 0.0
        %4027 = vmatprep.subr.mxu0 0.0
        %4028 = vmatpush1.msra.mxu0 0.0
        %4029 = vmatprep.subr.mxu0 0.0
        %4030 = vmatpush1.msra.mxu0 0.0
        %4031 = vmatprep.subr.mxu0 0.0
        %4032 = vmatpush1.msra.mxu0 0.0
        %4033 = vmatprep.subr.mxu0 0.0
        %4034 = vmatpush1.msra.mxu0 0.0
        %4035 = vmatprep.subr.mxu0 0.0
        %4036 = vmatpush1.msra.mxu0 0.0
        %4037 = vmatprep.subr.mxu0 0.0
        %4038 = vmatpush1.msra.mxu0 0.0
        %4039 = vmatprep.subr.mxu0 0.0
        %4040 = vmatpush1.msra.mxu0 %v3996
        %4041 = vmatprep.subr.mxu0 0.0
        %4042 = vmatpush1.msra.mxu0 %v3995
        %4043 = vmatprep.subr.mxu0 0.0
        %4044 = vmatpush1.msra.mxu0 %v3994
        %4045 = vmatprep.subr.mxu0 0.0
        %4046 = vmatpush1.msra.mxu0 %v3993
        %4047 = vmatprep.subr.mxu0 0.0
        %4048 = vmatpush2.msra.mxu0 0.0
        %4049 = vmatprep.subr.mxu0 0.0
        %4050 = vmatpush2.msra.mxu0 0.0
        %4051 = vmatprep.subr.mxu0 0.0
        %4052 = vmatpush2.msra.mxu0 0.0
        %4053 = vmatprep.subr.mxu0 0.0
        %4054 = vmatpush2.msra.mxu0 0.0
        %4055 = vmatprep.subr.mxu0 0.0
        %4056 = vmatpush2.msra.mxu0 0.0
        %4057 = vmatprep.subr.mxu0 0.0
        %4058 = vmatpush2.msra.mxu0 0.0
        %4059 = vmatprep.subr.mxu0 0.0
        %4060 = vmatpush2.msra.mxu0 0.0
        %4061 = vmatprep.subr.mxu0 0.0
        %4062 = vmatpush2.msra.mxu0 0.0
        %4063 = vmatprep.subr.mxu0 0.0
        %4064 = vmatpush2.msra.mxu0 0.0
        %4065 = vmatprep.subr.mxu0 0.0
        %4066 = vmatpush2.msra.mxu0 0.0
        %4067 = vmatprep.subr.mxu0 0.0
        %4068 = vmatpush2.msra.mxu0 0.0
        %4069 = vmatprep.subr.mxu0 0.0
        %4070 = vmatpush2.msra.mxu0 0.0
        %4071 = vmatprep.subr.mxu0 0.0
        %4072 = vmatpush2.msra.mxu0 0.0
        %4073 = vmatprep.subr.mxu0 0.0
        %4074 = vmatpush2.msra.mxu0 0.0
        %4075 = vmatprep.subr.mxu0 0.0
        %4076 = vmatpush2.msra.mxu0 0.0
        %4077 = vmatprep.subr.mxu0 0.0
        %4078 = vmatpush2.msra.mxu0 0.0
        %4079 = vmatprep.mubr.f32.mxu0 0.0
        %4080 = vmatmul.mubr.f32.gmra.mxu0 %v4011
        %v4081 = vpop.f32.mrf.mxu0
        %v4082 = vadd.f32 %v4003, %v4081
        %v4083 = vpop.f32.mrf.mxu0
        %4084 = vmatprep.mubr.f32.mxu0 0.0
        %4085 = vmatmul.mubr.f32.gmra.mxu0 %v4013
        %v4086 = vpop.f32.mrf.mxu0
        %v4087 = vadd.f32 %v4003, %v4086
        %v4088 = vpop.f32.mrf.mxu0
        %4089 = vdwg.mxu0
        %v4092 = vcombine.high %v4082, %v4082
        %v4093 = vcombine.high %v4087, %v4087
        %4094 = vrot.lane.b32.xlu0 %v4082, 96
        %v4095 = vpop.permute.xlu0 %4094
        %v4096 = vsel %vm668, %v4082, 0
        %v4098 = vsel %vm668, %v4095, 0
        %4100 = vmatprep.subr.mxu0 0.0
        %4101 = vmatpush1.xpose.msra.mxu0 0.0
        %4102 = vmatprep.subr.mxu0 0.0
        %4103 = vmatpush1.xpose.msra.mxu0 0.0
        %4104 = vmatprep.subr.mxu0 0.0
        %4105 = vmatpush1.xpose.msra.mxu0 0.0
        %4106 = vmatprep.subr.mxu0 0.0
        %4107 = vmatpush1.xpose.msra.mxu0 0.0
        %4108 = vmatprep.subr.mxu0 0.0
        %4109 = vmatpush1.xpose.msra.mxu0 0.0
        %4110 = vmatprep.subr.mxu0 0.0
        %4111 = vmatpush1.xpose.msra.mxu0 0.0
        %4112 = vmatprep.subr.mxu0 0.0
        %4113 = vmatpush1.xpose.msra.mxu0 0.0
        %4114 = vmatprep.subr.mxu0 0.0
        %4115 = vmatpush1.xpose.msra.mxu0 0.0
        %4116 = vmatprep.subr.mxu0 0.0
        %4117 = vmatpush1.xpose.msra.mxu0 0.0
        %4118 = vmatprep.subr.mxu0 0.0
        %4119 = vmatpush1.xpose.msra.mxu0 0.0
        %4120 = vmatprep.subr.mxu0 0.0
        %4121 = vmatpush1.xpose.msra.mxu0 0.0
        %4122 = vmatprep.subr.mxu0 0.0
        %4123 = vmatpush1.xpose.msra.mxu0 0.0
        %4124 = vmatprep.subr.mxu0 0.0
        %4125 = vmatpush1.xpose.msra.mxu0 0.0
        %4126 = vmatprep.subr.mxu0 0.0
        %4127 = vmatpush1.xpose.msra.mxu0 0.0
        %4128 = vmatprep.subr.mxu0 0.0
        %4129 = vmatpush1.xpose.msra.mxu0 0.0
        %4130 = vmatprep.subr.mxu0 0.0
        %4131 = vmatpush1.xpose.msra.mxu0 %v4098
        %4132 = vmatprep.subr.mxu0 0.0
        %4133 = vmatpush2.xpose.msra.mxu0 0.0
        %4134 = vmatprep.subr.mxu0 0.0
        %4135 = vmatpush2.xpose.msra.mxu0 0.0
        %4136 = vmatprep.subr.mxu0 0.0
        %4137 = vmatpush2.xpose.msra.mxu0 0.0
        %4138 = vmatprep.subr.mxu0 0.0
        %4139 = vmatpush2.xpose.msra.mxu0 0.0
        %4140 = vmatprep.subr.mxu0 0.0
        %4141 = vmatpush2.xpose.msra.mxu0 0.0
        %4142 = vmatprep.subr.mxu0 0.0
        %4143 = vmatpush2.xpose.msra.mxu0 0.0
        %4144 = vmatprep.subr.mxu0 0.0
        %4145 = vmatpush2.xpose.msra.mxu0 0.0
        %4146 = vmatprep.subr.mxu0 0.0
        %4147 = vmatpush2.xpose.msra.mxu0 0.0
        %4148 = vmatprep.subr.mxu0 0.0
        %4149 = vmatpush2.xpose.msra.mxu0 0.0
        %4150 = vmatprep.subr.mxu0 0.0
        %4151 = vmatpush2.xpose.msra.mxu0 0.0
        %4152 = vmatprep.subr.mxu0 0.0
        %4153 = vmatpush2.xpose.msra.mxu0 0.0
        %4154 = vmatprep.subr.mxu0 0.0
        %4155 = vmatpush2.xpose.msra.mxu0 0.0
        %4156 = vmatprep.subr.mxu0 0.0
        %4157 = vmatpush2.xpose.msra.mxu0 0.0
        %4158 = vmatprep.subr.mxu0 0.0
        %4159 = vmatpush2.xpose.msra.mxu0 0.0
        %4160 = vmatprep.subr.mxu0 0.0
        %4161 = vmatpush2.xpose.msra.mxu0 0.0
        %4162 = vmatprep.subr.mxu0 0.0
        %4163 = vmatpush2.xpose.msra.mxu0 0.0
        %4164 = vmatprep.mubr.f32.mxu0 0.0
        %4165 = vmatmul.mubr.f32.gmra.mxu0 %v4096
        %v4166 = vpop.f32.mrf.mxu0
        %v4167 = vadd.f32 0.0, %v4166
        %v4168 = vpop.f32.mrf.mxu0
        %4169 = vdwg.mxu0
        %4170 = vrot.lane.b32.xlu0 %v4092, 96
        %v4171 = vpop.permute.xlu0 %4170
        %v4172 = vsel %vm668, %v4092, 0
        %v4174 = vsel %vm668, %v4171, 0
        %4176 = vmatprep.subr.mxu0 0.0
        %4177 = vmatpush1.xpose.msra.mxu0 0.0
        %4178 = vmatprep.subr.mxu0 0.0
        %4179 = vmatpush1.xpose.msra.mxu0 0.0
        %4180 = vmatprep.subr.mxu0 0.0
        %4181 = vmatpush1.xpose.msra.mxu0 0.0
        %4182 = vmatprep.subr.mxu0 0.0
        %4183 = vmatpush1.xpose.msra.mxu0 0.0
        %4184 = vmatprep.subr.mxu0 0.0
        %4185 = vmatpush1.xpose.msra.mxu0 0.0
        %4186 = vmatprep.subr.mxu0 0.0
        %4187 = vmatpush1.xpose.msra.mxu0 0.0
        %4188 = vmatprep.subr.mxu0 0.0
        %4189 = vmatpush1.xpose.msra.mxu0 0.0
        %4190 = vmatprep.subr.mxu0 0.0
        %4191 = vmatpush1.xpose.msra.mxu0 0.0
        %4192 = vmatprep.subr.mxu0 0.0
        %4193 = vmatpush1.xpose.msra.mxu0 0.0
        %4194 = vmatprep.subr.mxu0 0.0
        %4195 = vmatpush1.xpose.msra.mxu0 0.0
        %4196 = vmatprep.subr.mxu0 0.0
        %4197 = vmatpush1.xpose.msra.mxu0 0.0
        %4198 = vmatprep.subr.mxu0 0.0
        %4199 = vmatpush1.xpose.msra.mxu0 0.0
        %4200 = vmatprep.subr.mxu0 0.0
        %4201 = vmatpush1.xpose.msra.mxu0 0.0
        %4202 = vmatprep.subr.mxu0 0.0
        %4203 = vmatpush1.xpose.msra.mxu0 0.0
        %4204 = vmatprep.subr.mxu0 0.0
        %4205 = vmatpush1.xpose.msra.mxu0 0.0
        %4206 = vmatprep.subr.mxu0 0.0
        %4207 = vmatpush1.xpose.msra.mxu0 %v4174
        %4208 = vmatprep.subr.mxu0 0.0
        %4209 = vmatpush2.xpose.msra.mxu0 0.0
        %4210 = vmatprep.subr.mxu0 0.0
        %4211 = vmatpush2.xpose.msra.mxu0 0.0
        %4212 = vmatprep.subr.mxu0 0.0
        %4213 = vmatpush2.xpose.msra.mxu0 0.0
        %4214 = vmatprep.subr.mxu0 0.0
        %4215 = vmatpush2.xpose.msra.mxu0 0.0
        %4216 = vmatprep.subr.mxu0 0.0
        %4217 = vmatpush2.xpose.msra.mxu0 0.0
        %4218 = vmatprep.subr.mxu0 0.0
        %4219 = vmatpush2.xpose.msra.mxu0 0.0
        %4220 = vmatprep.subr.mxu0 0.0
        %4221 = vmatpush2.xpose.msra.mxu0 0.0
        %4222 = vmatprep.subr.mxu0 0.0
        %4223 = vmatpush2.xpose.msra.mxu0 0.0
        %4224 = vmatprep.subr.mxu0 0.0
        %4225 = vmatpush2.xpose.msra.mxu0 0.0
        %4226 = vmatprep.subr.mxu0 0.0
        %4227 = vmatpush2.xpose.msra.mxu0 0.0
        %4228 = vmatprep.subr.mxu0 0.0
        %4229 = vmatpush2.xpose.msra.mxu0 0.0
        %4230 = vmatprep.subr.mxu0 0.0
        %4231 = vmatpush2.xpose.msra.mxu0 0.0
        %4232 = vmatprep.subr.mxu0 0.0
        %4233 = vmatpush2.xpose.msra.mxu0 0.0
        %4234 = vmatprep.subr.mxu0 0.0
        %4235 = vmatpush2.xpose.msra.mxu0 0.0
        %4236 = vmatprep.subr.mxu0 0.0
        %4237 = vmatpush2.xpose.msra.mxu0 0.0
        %4238 = vmatprep.subr.mxu0 0.0
        %4239 = vmatpush2.xpose.msra.mxu0 0.0
        %4240 = vmatprep.mubr.f32.mxu0 0.0
        %4241 = vmatmul.mubr.f32.gmra.mxu0 %v4172
        %v4242 = vpop.f32.mrf.mxu0
        %v4243 = vadd.f32 0.0, %v4242
        %v4244 = vpop.f32.mrf.mxu0
        %4245 = vdwg.mxu0
        %4246 = vrot.lane.b32.xlu0 %v4087, 96
        %v4247 = vpop.permute.xlu0 %4246
        %v4248 = vsel %vm668, %v4087, 0
        %v4250 = vsel %vm668, %v4247, 0
        %4252 = vmatprep.subr.mxu0 0.0
        %4253 = vmatpush1.xpose.msra.mxu0 0.0
        %4254 = vmatprep.subr.mxu0 0.0
        %4255 = vmatpush1.xpose.msra.mxu0 0.0
        %4256 = vmatprep.subr.mxu0 0.0
        %4257 = vmatpush1.xpose.msra.mxu0 0.0
        %4258 = vmatprep.subr.mxu0 0.0
        %4259 = vmatpush1.xpose.msra.mxu0 0.0
        %4260 = vmatprep.subr.mxu0 0.0
        %4261 = vmatpush1.xpose.msra.mxu0 0.0
        %4262 = vmatprep.subr.mxu0 0.0
        %4263 = vmatpush1.xpose.msra.mxu0 0.0
        %4264 = vmatprep.subr.mxu0 0.0
        %4265 = vmatpush1.xpose.msra.mxu0 0.0
        %4266 = vmatprep.subr.mxu0 0.0
        %4267 = vmatpush1.xpose.msra.mxu0 0.0
        %4268 = vmatprep.subr.mxu0 0.0
        %4269 = vmatpush1.xpose.msra.mxu0 0.0
        %4270 = vmatprep.subr.mxu0 0.0
        %4271 = vmatpush1.xpose.msra.mxu0 0.0
        %4272 = vmatprep.subr.mxu0 0.0
        %4273 = vmatpush1.xpose.msra.mxu0 0.0
        %4274 = vmatprep.subr.mxu0 0.0
        %4275 = vmatpush1.xpose.msra.mxu0 0.0
        %4276 = vmatprep.subr.mxu0 0.0
        %4277 = vmatpush1.xpose.msra.mxu0 0.0
        %4278 = vmatprep.subr.mxu0 0.0
        %4279 = vmatpush1.xpose.msra.mxu0 0.0
        %4280 = vmatprep.subr.mxu0 0.0
        %4281 = vmatpush1.xpose.msra.mxu0 0.0
        %4282 = vmatprep.subr.mxu0 0.0
        %4283 = vmatpush1.xpose.msra.mxu0 %v4250
        %4284 = vmatprep.subr.mxu0 0.0
        %4285 = vmatpush2.xpose.msra.mxu0 0.0
        %4286 = vmatprep.subr.mxu0 0.0
        %4287 = vmatpush2.xpose.msra.mxu0 0.0
        %4288 = vmatprep.subr.mxu0 0.0
        %4289 = vmatpush2.xpose.msra.mxu0 0.0
        %4290 = vmatprep.subr.mxu0 0.0
        %4291 = vmatpush2.xpose.msra.mxu0 0.0
        %4292 = vmatprep.subr.mxu0 0.0
        %4293 = vmatpush2.xpose.msra.mxu0 0.0
        %4294 = vmatprep.subr.mxu0 0.0
        %4295 = vmatpush2.xpose.msra.mxu0 0.0
        %4296 = vmatprep.subr.mxu0 0.0
        %4297 = vmatpush2.xpose.msra.mxu0 0.0
        %4298 = vmatprep.subr.mxu0 0.0
        %4299 = vmatpush2.xpose.msra.mxu0 0.0
        %4300 = vmatprep.subr.mxu0 0.0
        %4301 = vmatpush2.xpose.msra.mxu0 0.0
        %4302 = vmatprep.subr.mxu0 0.0
        %4303 = vmatpush2.xpose.msra.mxu0 0.0
        %4304 = vmatprep.subr.mxu0 0.0
        %4305 = vmatpush2.xpose.msra.mxu0 0.0
        %4306 = vmatprep.subr.mxu0 0.0
        %4307 = vmatpush2.xpose.msra.mxu0 0.0
        %4308 = vmatprep.subr.mxu0 0.0
        %4309 = vmatpush2.xpose.msra.mxu0 0.0
        %4310 = vmatprep.subr.mxu0 0.0
        %4311 = vmatpush2.xpose.msra.mxu0 0.0
        %4312 = vmatprep.subr.mxu0 0.0
        %4313 = vmatpush2.xpose.msra.mxu0 0.0
        %4314 = vmatprep.subr.mxu0 0.0
        %4315 = vmatpush2.xpose.msra.mxu0 0.0
        %4316 = vmatprep.mubr.f32.mxu0 0.0
        %4317 = vmatmul.mubr.f32.gmra.mxu0 %v4248
        %v4318 = vpop.f32.mrf.mxu0
        %v4319 = vadd.f32 0.0, %v4318
        %v4320 = vpop.f32.mrf.mxu0
        %4321 = vdwg.mxu0
        %4322 = vrot.lane.b32.xlu0 %v4093, 96
        %v4323 = vpop.permute.xlu0 %4322
        %v4324 = vsel %vm668, %v4093, 0
        %v4326 = vsel %vm668, %v4323, 0
        %4328 = vmatprep.subr.mxu0 0.0
        %4329 = vmatpush1.xpose.msra.mxu0 0.0
        %4330 = vmatprep.subr.mxu0 0.0
        %4331 = vmatpush1.xpose.msra.mxu0 0.0
        %4332 = vmatprep.subr.mxu0 0.0
        %4333 = vmatpush1.xpose.msra.mxu0 0.0
        %4334 = vmatprep.subr.mxu0 0.0
        %4335 = vmatpush1.xpose.msra.mxu0 0.0
        %4336 = vmatprep.subr.mxu0 0.0
        %4337 = vmatpush1.xpose.msra.mxu0 0.0
        %4338 = vmatprep.subr.mxu0 0.0
        %4339 = vmatpush1.xpose.msra.mxu0 0.0
        %4340 = vmatprep.subr.mxu0 0.0
        %4341 = vmatpush1.xpose.msra.mxu0 0.0
        %4342 = vmatprep.subr.mxu0 0.0
        %4343 = vmatpush1.xpose.msra.mxu0 0.0
        %4344 = vmatprep.subr.mxu0 0.0
        %4345 = vmatpush1.xpose.msra.mxu0 0.0
        %4346 = vmatprep.subr.mxu0 0.0
        %4347 = vmatpush1.xpose.msra.mxu0 0.0
        %4348 = vmatprep.subr.mxu0 0.0
        %4349 = vmatpush1.xpose.msra.mxu0 0.0
        %4350 = vmatprep.subr.mxu0 0.0
        %4351 = vmatpush1.xpose.msra.mxu0 0.0
        %4352 = vmatprep.subr.mxu0 0.0
        %4353 = vmatpush1.xpose.msra.mxu0 0.0
        %4354 = vmatprep.subr.mxu0 0.0
        %4355 = vmatpush1.xpose.msra.mxu0 0.0
        %4356 = vmatprep.subr.mxu0 0.0
        %4357 = vmatpush1.xpose.msra.mxu0 0.0
        %4358 = vmatprep.subr.mxu0 0.0
        %4359 = vmatpush1.xpose.msra.mxu0 %v4326
        %4360 = vmatprep.subr.mxu0 0.0
        %4361 = vmatpush2.xpose.msra.mxu0 0.0
        %4362 = vmatprep.subr.mxu0 0.0
        %4363 = vmatpush2.xpose.msra.mxu0 0.0
        %4364 = vmatprep.subr.mxu0 0.0
        %4365 = vmatpush2.xpose.msra.mxu0 0.0
        %4366 = vmatprep.subr.mxu0 0.0
        %4367 = vmatpush2.xpose.msra.mxu0 0.0
        %4368 = vmatprep.subr.mxu0 0.0
        %4369 = vmatpush2.xpose.msra.mxu0 0.0
        %4370 = vmatprep.subr.mxu0 0.0
        %4371 = vmatpush2.xpose.msra.mxu0 0.0
        %4372 = vmatprep.subr.mxu0 0.0
        %4373 = vmatpush2.xpose.msra.mxu0 0.0
        %4374 = vmatprep.subr.mxu0 0.0
        %4375 = vmatpush2.xpose.msra.mxu0 0.0
        %4376 = vmatprep.subr.mxu0 0.0
        %4377 = vmatpush2.xpose.msra.mxu0 0.0
        %4378 = vmatprep.subr.mxu0 0.0
        %4379 = vmatpush2.xpose.msra.mxu0 0.0
        %4380 = vmatprep.subr.mxu0 0.0
        %4381 = vmatpush2.xpose.msra.mxu0 0.0
        %4382 = vmatprep.subr.mxu0 0.0
        %4383 = vmatpush2.xpose.msra.mxu0 0.0
        %4384 = vmatprep.subr.mxu0 0.0
        %4385 = vmatpush2.xpose.msra.mxu0 0.0
        %4386 = vmatprep.subr.mxu0 0.0
        %4387 = vmatpush2.xpose.msra.mxu0 0.0
        %4388 = vmatprep.subr.mxu0 0.0
        %4389 = vmatpush2.xpose.msra.mxu0 0.0
        %4390 = vmatprep.subr.mxu0 0.0
        %4391 = vmatpush2.xpose.msra.mxu0 0.0
        %4392 = vmatprep.mubr.f32.mxu0 0.0
        %4393 = vmatmul.mubr.f32.gmra.mxu0 %v4324
        %v4394 = vpop.f32.mrf.mxu0
        %v4395 = vadd.f32 0.0, %v4394
        %v4396 = vpop.f32.mrf.mxu0
        %4397 = vdwg.mxu0
        %v4398 = vmul.f32 %v4167, 0.35355338
        %v4399 = vmul.f32 %v4243, 0.35355338
        %v4400 = vmul.f32 %v4319, 0.35355338
        %v4401 = vmul.f32 %v4395, 0.35355338
        %v4402 = vsel %vm975, %v4398, -inf
        %4403 = vmax.xlane.f32.xlu0 %v4402
        %v4404 = vpop.xlane.xlu0 %4403
        %v4405 = vsel %vm975, %v4399, -inf
        %4406 = vmax.xlane.f32.xlu0 %v4405
        %v4407 = vpop.xlane.xlu0 %4406
        %v4408 = vsel %vm975, %v4400, -inf
        %4409 = vmax.xlane.f32.xlu0 %v4408
        %v4410 = vpop.xlane.xlu0 %4409
        %v4411 = vsel %vm975, %v4401, -inf
        %4412 = vmax.xlane.f32.xlu0 %v4411
        %v4413 = vpop.xlane.xlu0 %4412
        %v4414 = vsub.f32 %v4398, %v4404
        %v4415 = vsub.f32 %v4399, %v4407
        %v4416 = vsub.f32 %v4400, %v4410
        %v4417 = vsub.f32 %v4401, %v4413
        %v4418 = vmul.f32 %v4414, 1.442695
        %v4419 = vpow.pop %v4418
        %v4420 = vmul.f32 %v4415, 1.442695
        %v4421 = vpow.pop %v4420
        %v4422 = vmul.f32 %v4416, 1.442695
        %v4423 = vpow.pop %v4422
        %v4424 = vmul.f32 %v4417, 1.442695
        %v4425 = vpow.pop %v4424
        %v4426 = vsel %vm975, %v4419, 0.0
        %4427 = vadd.xlane.f32.xlu0 %v4426
        %v4428 = vpop.xlane.xlu0 %4427
        %v4429 = vsel %vm975, %v4421, 0.0
        %4430 = vadd.xlane.f32.xlu0 %v4429
        %v4431 = vpop.xlane.xlu0 %4430
        %v4432 = vsel %vm975, %v4423, 0.0
        %4433 = vadd.xlane.f32.xlu0 %v4432
        %v4434 = vpop.xlane.xlu0 %4433
        %v4435 = vsel %vm975, %v4425, 0.0
        %4436 = vadd.xlane.f32.xlu0 %v4435
        %v4437 = vpop.xlane.xlu0 %4436
        %v4438 = vrcp.pop %v4428
        %v4439 = vrcp.pop %v4431
        %v4440 = vrcp.pop %v4434
        %v4441 = vrcp.pop %v4437
        %v4442 = vmul.f32 %v4419, %v4438
        %v4443 = vmul.f32 %v4421, %v4439
        %v4444 = vmul.f32 %v4423, %v4440
        %v4445 = vmul.f32 %v4425, %v4441
        %4446 = vrot.lane.b32.xlu0 %v4082, 64
        %v4447 = vpop.permute.xlu0 %4446
        %v4449 = vsel %vm1022, %v4442, 0
        %v4451 = vsel %vm1026, %v4447, 0
        %4453 = vmatprep.subr.mxu0 0.0
        %4454 = vmatpush1.msra.mxu0 0.0
        %4455 = vmatprep.subr.mxu0 0.0
        %4456 = vmatpush1.msra.mxu0 0.0
        %4457 = vmatprep.subr.mxu0 0.0
        %4458 = vmatpush1.msra.mxu0 0.0
        %4459 = vmatprep.subr.mxu0 0.0
        %4460 = vmatpush1.msra.mxu0 0.0
        %4461 = vmatprep.subr.mxu0 0.0
        %4462 = vmatpush1.msra.mxu0 0.0
        %4463 = vmatprep.subr.mxu0 0.0
        %4464 = vmatpush1.msra.mxu0 0.0
        %4465 = vmatprep.subr.mxu0 0.0
        %4466 = vmatpush1.msra.mxu0 0.0
        %4467 = vmatprep.subr.mxu0 0.0
        %4468 = vmatpush1.msra.mxu0 0.0
        %4469 = vmatprep.subr.mxu0 0.0
        %4470 = vmatpush1.msra.mxu0 0.0
        %4471 = vmatprep.subr.mxu0 0.0
        %4472 = vmatpush1.msra.mxu0 0.0
        %4473 = vmatprep.subr.mxu0 0.0
        %4474 = vmatpush1.msra.mxu0 0.0
        %4475 = vmatprep.subr.mxu0 0.0
        %4476 = vmatpush1.msra.mxu0 0.0
        %4477 = vmatprep.subr.mxu0 0.0
        %4478 = vmatpush1.msra.mxu0 0.0
        %4479 = vmatprep.subr.mxu0 0.0
        %4480 = vmatpush1.msra.mxu0 0.0
        %4481 = vmatprep.subr.mxu0 0.0
        %4482 = vmatpush1.msra.mxu0 0.0
        %4483 = vmatprep.subr.mxu0 0.0
        %4484 = vmatpush1.msra.mxu0 %v4451
        %4485 = vmatprep.subr.mxu0 0.0
        %4486 = vmatpush2.msra.mxu0 0.0
        %4487 = vmatprep.subr.mxu0 0.0
        %4488 = vmatpush2.msra.mxu0 0.0
        %4489 = vmatprep.subr.mxu0 0.0
        %4490 = vmatpush2.msra.mxu0 0.0
        %4491 = vmatprep.subr.mxu0 0.0
        %4492 = vmatpush2.msra.mxu0 0.0
        %4493 = vmatprep.subr.mxu0 0.0
        %4494 = vmatpush2.msra.mxu0 0.0
        %4495 = vmatprep.subr.mxu0 0.0
        %4496 = vmatpush2.msra.mxu0 0.0
        %4497 = vmatprep.subr.mxu0 0.0
        %4498 = vmatpush2.msra.mxu0 0.0
        %4499 = vmatprep.subr.mxu0 0.0
        %4500 = vmatpush2.msra.mxu0 0.0
        %4501 = vmatprep.subr.mxu0 0.0
        %4502 = vmatpush2.msra.mxu0 0.0
        %4503 = vmatprep.subr.mxu0 0.0
        %4504 = vmatpush2.msra.mxu0 0.0
        %4505 = vmatprep.subr.mxu0 0.0
        %4506 = vmatpush2.msra.mxu0 0.0
        %4507 = vmatprep.subr.mxu0 0.0
        %4508 = vmatpush2.msra.mxu0 0.0
        %4509 = vmatprep.subr.mxu0 0.0
        %4510 = vmatpush2.msra.mxu0 0.0
        %4511 = vmatprep.subr.mxu0 0.0
        %4512 = vmatpush2.msra.mxu0 0.0
        %4513 = vmatprep.subr.mxu0 0.0
        %4514 = vmatpush2.msra.mxu0 0.0
        %4515 = vmatprep.subr.mxu0 0.0
        %4516 = vmatpush2.msra.mxu0 0.0
        %4517 = vmatprep.mubr.f32.mxu0 0.0
        %4518 = vmatmul.mubr.f32.gmra.mxu0 %v4449
        %v4519 = vpop.f32.mrf.mxu0
        %v4520 = vadd.f32 0.0, %v4519
        %v4521 = vpop.f32.mrf.mxu0
        %4522 = vdwg.mxu0
        %4523 = vrot.lane.b32.xlu0 %v4092, 64
        %v4524 = vpop.permute.xlu0 %4523
        %v4526 = vsel %vm1022, %v4443, 0
        %v4528 = vsel %vm1026, %v4524, 0
        %4530 = vmatprep.subr.mxu0 0.0
        %4531 = vmatpush1.msra.mxu0 0.0
        %4532 = vmatprep.subr.mxu0 0.0
        %4533 = vmatpush1.msra.mxu0 0.0
        %4534 = vmatprep.subr.mxu0 0.0
        %4535 = vmatpush1.msra.mxu0 0.0
        %4536 = vmatprep.subr.mxu0 0.0
        %4537 = vmatpush1.msra.mxu0 0.0
        %4538 = vmatprep.subr.mxu0 0.0
        %4539 = vmatpush1.msra.mxu0 0.0
        %4540 = vmatprep.subr.mxu0 0.0
        %4541 = vmatpush1.msra.mxu0 0.0
        %4542 = vmatprep.subr.mxu0 0.0
        %4543 = vmatpush1.msra.mxu0 0.0
        %4544 = vmatprep.subr.mxu0 0.0
        %4545 = vmatpush1.msra.mxu0 0.0
        %4546 = vmatprep.subr.mxu0 0.0
        %4547 = vmatpush1.msra.mxu0 0.0
        %4548 = vmatprep.subr.mxu0 0.0
        %4549 = vmatpush1.msra.mxu0 0.0
        %4550 = vmatprep.subr.mxu0 0.0
        %4551 = vmatpush1.msra.mxu0 0.0
        %4552 = vmatprep.subr.mxu0 0.0
        %4553 = vmatpush1.msra.mxu0 0.0
        %4554 = vmatprep.subr.mxu0 0.0
        %4555 = vmatpush1.msra.mxu0 0.0
        %4556 = vmatprep.subr.mxu0 0.0
        %4557 = vmatpush1.msra.mxu0 0.0
        %4558 = vmatprep.subr.mxu0 0.0
        %4559 = vmatpush1.msra.mxu0 0.0
        %4560 = vmatprep.subr.mxu0 0.0
        %4561 = vmatpush1.msra.mxu0 %v4528
        %4562 = vmatprep.subr.mxu0 0.0
        %4563 = vmatpush2.msra.mxu0 0.0
        %4564 = vmatprep.subr.mxu0 0.0
        %4565 = vmatpush2.msra.mxu0 0.0
        %4566 = vmatprep.subr.mxu0 0.0
        %4567 = vmatpush2.msra.mxu0 0.0
        %4568 = vmatprep.subr.mxu0 0.0
        %4569 = vmatpush2.msra.mxu0 0.0
        %4570 = vmatprep.subr.mxu0 0.0
        %4571 = vmatpush2.msra.mxu0 0.0
        %4572 = vmatprep.subr.mxu0 0.0
        %4573 = vmatpush2.msra.mxu0 0.0
        %4574 = vmatprep.subr.mxu0 0.0
        %4575 = vmatpush2.msra.mxu0 0.0
        %4576 = vmatprep.subr.mxu0 0.0
        %4577 = vmatpush2.msra.mxu0 0.0
        %4578 = vmatprep.subr.mxu0 0.0
        %4579 = vmatpush2.msra.mxu0 0.0
        %4580 = vmatprep.subr.mxu0 0.0
        %4581 = vmatpush2.msra.mxu0 0.0
        %4582 = vmatprep.subr.mxu0 0.0
        %4583 = vmatpush2.msra.mxu0 0.0
        %4584 = vmatprep.subr.mxu0 0.0
        %4585 = vmatpush2.msra.mxu0 0.0
        %4586 = vmatprep.subr.mxu0 0.0
        %4587 = vmatpush2.msra.mxu0 0.0
        %4588 = vmatprep.subr.mxu0 0.0
        %4589 = vmatpush2.msra.mxu0 0.0
        %4590 = vmatprep.subr.mxu0 0.0
        %4591 = vmatpush2.msra.mxu0 0.0
        %4592 = vmatprep.subr.mxu0 0.0
        %4593 = vmatpush2.msra.mxu0 0.0
        %4594 = vmatprep.mubr.f32.mxu0 0.0
        %4595 = vmatmul.mubr.f32.gmra.mxu0 %v4526
        %v4596 = vpop.f32.mrf.mxu0
        %v4597 = vadd.f32 0.0, %v4596
        %v4598 = vpop.f32.mrf.mxu0
        %4599 = vdwg.mxu0
        %4600 = vrot.lane.b32.xlu0 %v4087, 64
        %v4601 = vpop.permute.xlu0 %4600
        %v4603 = vsel %vm1022, %v4444, 0
        %v4605 = vsel %vm1026, %v4601, 0
        %4607 = vmatprep.subr.mxu0 0.0
        %4608 = vmatpush1.msra.mxu0 0.0
        %4609 = vmatprep.subr.mxu0 0.0
        %4610 = vmatpush1.msra.mxu0 0.0
        %4611 = vmatprep.subr.mxu0 0.0
        %4612 = vmatpush1.msra.mxu0 0.0
        %4613 = vmatprep.subr.mxu0 0.0
        %4614 = vmatpush1.msra.mxu0 0.0
        %4615 = vmatprep.subr.mxu0 0.0
        %4616 = vmatpush1.msra.mxu0 0.0
        %4617 = vmatprep.subr.mxu0 0.0
        %4618 = vmatpush1.msra.mxu0 0.0
        %4619 = vmatprep.subr.mxu0 0.0
        %4620 = vmatpush1.msra.mxu0 0.0
        %4621 = vmatprep.subr.mxu0 0.0
        %4622 = vmatpush1.msra.mxu0 0.0
        %4623 = vmatprep.subr.mxu0 0.0
        %4624 = vmatpush1.msra.mxu0 0.0
        %4625 = vmatprep.subr.mxu0 0.0
        %4626 = vmatpush1.msra.mxu0 0.0
        %4627 = vmatprep.subr.mxu0 0.0
        %4628 = vmatpush1.msra.mxu0 0.0
        %4629 = vmatprep.subr.mxu0 0.0
        %4630 = vmatpush1.msra.mxu0 0.0
        %4631 = vmatprep.subr.mxu0 0.0
        %4632 = vmatpush1.msra.mxu0 0.0
        %4633 = vmatprep.subr.mxu0 0.0
        %4634 = vmatpush1.msra.mxu0 0.0
        %4635 = vmatprep.subr.mxu0 0.0
        %4636 = vmatpush1.msra.mxu0 0.0
        %4637 = vmatprep.subr.mxu0 0.0
        %4638 = vmatpush1.msra.mxu0 %v4605
        %4639 = vmatprep.subr.mxu0 0.0
        %4640 = vmatpush2.msra.mxu0 0.0
        %4641 = vmatprep.subr.mxu0 0.0
        %4642 = vmatpush2.msra.mxu0 0.0
        %4643 = vmatprep.subr.mxu0 0.0
        %4644 = vmatpush2.msra.mxu0 0.0
        %4645 = vmatprep.subr.mxu0 0.0
        %4646 = vmatpush2.msra.mxu0 0.0
        %4647 = vmatprep.subr.mxu0 0.0
        %4648 = vmatpush2.msra.mxu0 0.0
        %4649 = vmatprep.subr.mxu0 0.0
        %4650 = vmatpush2.msra.mxu0 0.0
        %4651 = vmatprep.subr.mxu0 0.0
        %4652 = vmatpush2.msra.mxu0 0.0
        %4653 = vmatprep.subr.mxu0 0.0
        %4654 = vmatpush2.msra.mxu0 0.0
        %4655 = vmatprep.subr.mxu0 0.0
        %4656 = vmatpush2.msra.mxu0 0.0
        %4657 = vmatprep.subr.mxu0 0.0
        %4658 = vmatpush2.msra.mxu0 0.0
        %4659 = vmatprep.subr.mxu0 0.0
        %4660 = vmatpush2.msra.mxu0 0.0
        %4661 = vmatprep.subr.mxu0 0.0
        %4662 = vmatpush2.msra.mxu0 0.0
        %4663 = vmatprep.subr.mxu0 0.0
        %4664 = vmatpush2.msra.mxu0 0.0
        %4665 = vmatprep.subr.mxu0 0.0
        %4666 = vmatpush2.msra.mxu0 0.0
        %4667 = vmatprep.subr.mxu0 0.0
        %4668 = vmatpush2.msra.mxu0 0.0
        %4669 = vmatprep.subr.mxu0 0.0
        %4670 = vmatpush2.msra.mxu0 0.0
        %4671 = vmatprep.mubr.f32.mxu0 0.0
        %4672 = vmatmul.mubr.f32.gmra.mxu0 %v4603
        %v4673 = vpop.f32.mrf.mxu0
        %v4674 = vadd.f32 0.0, %v4673
        %v4675 = vpop.f32.mrf.mxu0
        %4676 = vdwg.mxu0
        %4677 = vrot.lane.b32.xlu0 %v4093, 64
        %v4678 = vpop.permute.xlu0 %4677
        %v4680 = vsel %vm1022, %v4445, 0
        %v4682 = vsel %vm1026, %v4678, 0
        %4684 = vmatprep.subr.mxu0 0.0
        %4685 = vmatpush1.msra.mxu0 0.0
        %4686 = vmatprep.subr.mxu0 0.0
        %4687 = vmatpush1.msra.mxu0 0.0
        %4688 = vmatprep.subr.mxu0 0.0
        %4689 = vmatpush1.msra.mxu0 0.0
        %4690 = vmatprep.subr.mxu0 0.0
        %4691 = vmatpush1.msra.mxu0 0.0
        %4692 = vmatprep.subr.mxu0 0.0
        %4693 = vmatpush1.msra.mxu0 0.0
        %4694 = vmatprep.subr.mxu0 0.0
        %4695 = vmatpush1.msra.mxu0 0.0
        %4696 = vmatprep.subr.mxu0 0.0
        %4697 = vmatpush1.msra.mxu0 0.0
        %4698 = vmatprep.subr.mxu0 0.0
        %4699 = vmatpush1.msra.mxu0 0.0
        %4700 = vmatprep.subr.mxu0 0.0
        %4701 = vmatpush1.msra.mxu0 0.0
        %4702 = vmatprep.subr.mxu0 0.0
        %4703 = vmatpush1.msra.mxu0 0.0
        %4704 = vmatprep.subr.mxu0 0.0
        %4705 = vmatpush1.msra.mxu0 0.0
        %4706 = vmatprep.subr.mxu0 0.0
        %4707 = vmatpush1.msra.mxu0 0.0
        %4708 = vmatprep.subr.mxu0 0.0
        %4709 = vmatpush1.msra.mxu0 0.0
        %4710 = vmatprep.subr.mxu0 0.0
        %4711 = vmatpush1.msra.mxu0 0.0
        %4712 = vmatprep.subr.mxu0 0.0
        %4713 = vmatpush1.msra.mxu0 0.0
        %4714 = vmatprep.subr.mxu0 0.0
        %4715 = vmatpush1.msra.mxu0 %v4682
        %4716 = vmatprep.subr.mxu0 0.0
        %4717 = vmatpush2.msra.mxu0 0.0
        %4718 = vmatprep.subr.mxu0 0.0
        %4719 = vmatpush2.msra.mxu0 0.0
        %4720 = vmatprep.subr.mxu0 0.0
        %4721 = vmatpush2.msra.mxu0 0.0
        %4722 = vmatprep.subr.mxu0 0.0
        %4723 = vmatpush2.msra.mxu0 0.0
        %4724 = vmatprep.subr.mxu0 0.0
        %4725 = vmatpush2.msra.mxu0 0.0
        %4726 = vmatprep.subr.mxu0 0.0
        %4727 = vmatpush2.msra.mxu0 0.0
        %4728 = vmatprep.subr.mxu0 0.0
        %4729 = vmatpush2.msra.mxu0 0.0
        %4730 = vmatprep.subr.mxu0 0.0
        %4731 = vmatpush2.msra.mxu0 0.0
        %4732 = vmatprep.subr.mxu0 0.0
        %4733 = vmatpush2.msra.mxu0 0.0
        %4734 = vmatprep.subr.mxu0 0.0
        %4735 = vmatpush2.msra.mxu0 0.0
        %4736 = vmatprep.subr.mxu0 0.0
        %4737 = vmatpush2.msra.mxu0 0.0
        %4738 = vmatprep.subr.mxu0 0.0
        %4739 = vmatpush2.msra.mxu0 0.0
        %4740 = vmatprep.subr.mxu0 0.0
        %4741 = vmatpush2.msra.mxu0 0.0
        %4742 = vmatprep.subr.mxu0 0.0
        %4743 = vmatpush2.msra.mxu0 0.0
        %4744 = vmatprep.subr.mxu0 0.0
        %4745 = vmatpush2.msra.mxu0 0.0
        %4746 = vmatprep.subr.mxu0 0.0
        %4747 = vmatpush2.msra.mxu0 0.0
        %4748 = vmatprep.mubr.f32.mxu0 0.0
        %4749 = vmatmul.mubr.f32.gmra.mxu0 %v4680
        %v4750 = vpop.f32.mrf.mxu0
        %v4751 = vadd.f32 0.0, %v4750
        %v4752 = vpop.f32.mrf.mxu0
        %4753 = vdwg.mxu0
        %4754 = vrot.lane.b32.xlu0 %v4082, 120
        %v4755 = vpop.permute.xlu0 %4754
        %4756 = vrot.lane.b32.xlu0 %v4082, 88
        %v4757 = vpop.permute.xlu0 %4756
        %v4758 = vsel %vm668, %v4755, 0
        %v4760 = vsel %vm668, %v4757, 0
        %4762 = vmatprep.subr.mxu0 0.0
        %4763 = vmatpush1.xpose.msra.mxu0 0.0
        %4764 = vmatprep.subr.mxu0 0.0
        %4765 = vmatpush1.xpose.msra.mxu0 0.0
        %4766 = vmatprep.subr.mxu0 0.0
        %4767 = vmatpush1.xpose.msra.mxu0 0.0
        %4768 = vmatprep.subr.mxu0 0.0
        %4769 = vmatpush1.xpose.msra.mxu0 0.0
        %4770 = vmatprep.subr.mxu0 0.0
        %4771 = vmatpush1.xpose.msra.mxu0 0.0
        %4772 = vmatprep.subr.mxu0 0.0
        %4773 = vmatpush1.xpose.msra.mxu0 0.0
        %4774 = vmatprep.subr.mxu0 0.0
        %4775 = vmatpush1.xpose.msra.mxu0 0.0
        %4776 = vmatprep.subr.mxu0 0.0
        %4777 = vmatpush1.xpose.msra.mxu0 0.0
        %4778 = vmatprep.subr.mxu0 0.0
        %4779 = vmatpush1.xpose.msra.mxu0 0.0
        %4780 = vmatprep.subr.mxu0 0.0
        %4781 = vmatpush1.xpose.msra.mxu0 0.0
        %4782 = vmatprep.subr.mxu0 0.0
        %4783 = vmatpush1.xpose.msra.mxu0 0.0
        %4784 = vmatprep.subr.mxu0 0.0
        %4785 = vmatpush1.xpose.msra.mxu0 0.0
        %4786 = vmatprep.subr.mxu0 0.0
        %4787 = vmatpush1.xpose.msra.mxu0 0.0
        %4788 = vmatprep.subr.mxu0 0.0
        %4789 = vmatpush1.xpose.msra.mxu0 0.0
        %4790 = vmatprep.subr.mxu0 0.0
        %4791 = vmatpush1.xpose.msra.mxu0 0.0
        %4792 = vmatprep.subr.mxu0 0.0
        %4793 = vmatpush1.xpose.msra.mxu0 %v4760
        %4794 = vmatprep.subr.mxu0 0.0
        %4795 = vmatpush2.xpose.msra.mxu0 0.0
        %4796 = vmatprep.subr.mxu0 0.0
        %4797 = vmatpush2.xpose.msra.mxu0 0.0
        %4798 = vmatprep.subr.mxu0 0.0
        %4799 = vmatpush2.xpose.msra.mxu0 0.0
        %4800 = vmatprep.subr.mxu0 0.0
        %4801 = vmatpush2.xpose.msra.mxu0 0.0
        %4802 = vmatprep.subr.mxu0 0.0
        %4803 = vmatpush2.xpose.msra.mxu0 0.0
        %4804 = vmatprep.subr.mxu0 0.0
        %4805 = vmatpush2.xpose.msra.mxu0 0.0
        %4806 = vmatprep.subr.mxu0 0.0
        %4807 = vmatpush2.xpose.msra.mxu0 0.0
        %4808 = vmatprep.subr.mxu0 0.0
        %4809 = vmatpush2.xpose.msra.mxu0 0.0
        %4810 = vmatprep.subr.mxu0 0.0
        %4811 = vmatpush2.xpose.msra.mxu0 0.0
        %4812 = vmatprep.subr.mxu0 0.0
        %4813 = vmatpush2.xpose.msra.mxu0 0.0
        %4814 = vmatprep.subr.mxu0 0.0
        %4815 = vmatpush2.xpose.msra.mxu0 0.0
        %4816 = vmatprep.subr.mxu0 0.0
        %4817 = vmatpush2.xpose.msra.mxu0 0.0
        %4818 = vmatprep.subr.mxu0 0.0
        %4819 = vmatpush2.xpose.msra.mxu0 0.0
        %4820 = vmatprep.subr.mxu0 0.0
        %4821 = vmatpush2.xpose.msra.mxu0 0.0
        %4822 = vmatprep.subr.mxu0 0.0
        %4823 = vmatpush2.xpose.msra.mxu0 0.0
        %4824 = vmatprep.subr.mxu0 0.0
        %4825 = vmatpush2.xpose.msra.mxu0 0.0
        %4826 = vmatprep.mubr.f32.mxu0 0.0
        %4827 = vmatmul.mubr.f32.gmra.mxu0 %v4758
        %v4828 = vpop.f32.mrf.mxu0
        %v4829 = vadd.f32 0.0, %v4828
        %v4830 = vpop.f32.mrf.mxu0
        %4831 = vdwg.mxu0
        %4832 = vrot.lane.b32.xlu0 %v4092, 120
        %v4833 = vpop.permute.xlu0 %4832
        %4834 = vrot.lane.b32.xlu0 %v4092, 88
        %v4835 = vpop.permute.xlu0 %4834
        %v4836 = vsel %vm668, %v4833, 0
        %v4838 = vsel %vm668, %v4835, 0
        %4840 = vmatprep.subr.mxu0 0.0
        %4841 = vmatpush1.xpose.msra.mxu0 0.0
        %4842 = vmatprep.subr.mxu0 0.0
        %4843 = vmatpush1.xpose.msra.mxu0 0.0
        %4844 = vmatprep.subr.mxu0 0.0
        %4845 = vmatpush1.xpose.msra.mxu0 0.0
        %4846 = vmatprep.subr.mxu0 0.0
        %4847 = vmatpush1.xpose.msra.mxu0 0.0
        %4848 = vmatprep.subr.mxu0 0.0
        %4849 = vmatpush1.xpose.msra.mxu0 0.0
        %4850 = vmatprep.subr.mxu0 0.0
        %4851 = vmatpush1.xpose.msra.mxu0 0.0
        %4852 = vmatprep.subr.mxu0 0.0
        %4853 = vmatpush1.xpose.msra.mxu0 0.0
        %4854 = vmatprep.subr.mxu0 0.0
        %4855 = vmatpush1.xpose.msra.mxu0 0.0
        %4856 = vmatprep.subr.mxu0 0.0
        %4857 = vmatpush1.xpose.msra.mxu0 0.0
        %4858 = vmatprep.subr.mxu0 0.0
        %4859 = vmatpush1.xpose.msra.mxu0 0.0
        %4860 = vmatprep.subr.mxu0 0.0
        %4861 = vmatpush1.xpose.msra.mxu0 0.0
        %4862 = vmatprep.subr.mxu0 0.0
        %4863 = vmatpush1.xpose.msra.mxu0 0.0
        %4864 = vmatprep.subr.mxu0 0.0
        %4865 = vmatpush1.xpose.msra.mxu0 0.0
        %4866 = vmatprep.subr.mxu0 0.0
        %4867 = vmatpush1.xpose.msra.mxu0 0.0
        %4868 = vmatprep.subr.mxu0 0.0
        %4869 = vmatpush1.xpose.msra.mxu0 0.0
        %4870 = vmatprep.subr.mxu0 0.0
        %4871 = vmatpush1.xpose.msra.mxu0 %v4838
        %4872 = vmatprep.subr.mxu0 0.0
        %4873 = vmatpush2.xpose.msra.mxu0 0.0
        %4874 = vmatprep.subr.mxu0 0.0
        %4875 = vmatpush2.xpose.msra.mxu0 0.0
        %4876 = vmatprep.subr.mxu0 0.0
        %4877 = vmatpush2.xpose.msra.mxu0 0.0
        %4878 = vmatprep.subr.mxu0 0.0
        %4879 = vmatpush2.xpose.msra.mxu0 0.0
        %4880 = vmatprep.subr.mxu0 0.0
        %4881 = vmatpush2.xpose.msra.mxu0 0.0
        %4882 = vmatprep.subr.mxu0 0.0
        %4883 = vmatpush2.xpose.msra.mxu0 0.0
        %4884 = vmatprep.subr.mxu0 0.0
        %4885 = vmatpush2.xpose.msra.mxu0 0.0
        %4886 = vmatprep.subr.mxu0 0.0
        %4887 = vmatpush2.xpose.msra.mxu0 0.0
        %4888 = vmatprep.subr.mxu0 0.0
        %4889 = vmatpush2.xpose.msra.mxu0 0.0
        %4890 = vmatprep.subr.mxu0 0.0
        %4891 = vmatpush2.xpose.msra.mxu0 0.0
        %4892 = vmatprep.subr.mxu0 0.0
        %4893 = vmatpush2.xpose.msra.mxu0 0.0
        %4894 = vmatprep.subr.mxu0 0.0
        %4895 = vmatpush2.xpose.msra.mxu0 0.0
        %4896 = vmatprep.subr.mxu0 0.0
        %4897 = vmatpush2.xpose.msra.mxu0 0.0
        %4898 = vmatprep.subr.mxu0 0.0
        %4899 = vmatpush2.xpose.msra.mxu0 0.0
        %4900 = vmatprep.subr.mxu0 0.0
        %4901 = vmatpush2.xpose.msra.mxu0 0.0
        %4902 = vmatprep.subr.mxu0 0.0
        %4903 = vmatpush2.xpose.msra.mxu0 0.0
        %4904 = vmatprep.mubr.f32.mxu0 0.0
        %4905 = vmatmul.mubr.f32.gmra.mxu0 %v4836
        %v4906 = vpop.f32.mrf.mxu0
        %v4907 = vadd.f32 0.0, %v4906
        %v4908 = vpop.f32.mrf.mxu0
        %4909 = vdwg.mxu0
        %4910 = vrot.lane.b32.xlu0 %v4087, 120
        %v4911 = vpop.permute.xlu0 %4910
        %4912 = vrot.lane.b32.xlu0 %v4087, 88
        %v4913 = vpop.permute.xlu0 %4912
        %v4914 = vsel %vm668, %v4911, 0
        %v4916 = vsel %vm668, %v4913, 0
        %4918 = vmatprep.subr.mxu0 0.0
        %4919 = vmatpush1.xpose.msra.mxu0 0.0
        %4920 = vmatprep.subr.mxu0 0.0
        %4921 = vmatpush1.xpose.msra.mxu0 0.0
        %4922 = vmatprep.subr.mxu0 0.0
        %4923 = vmatpush1.xpose.msra.mxu0 0.0
        %4924 = vmatprep.subr.mxu0 0.0
        %4925 = vmatpush1.xpose.msra.mxu0 0.0
        %4926 = vmatprep.subr.mxu0 0.0
        %4927 = vmatpush1.xpose.msra.mxu0 0.0
        %4928 = vmatprep.subr.mxu0 0.0
        %4929 = vmatpush1.xpose.msra.mxu0 0.0
        %4930 = vmatprep.subr.mxu0 0.0
        %4931 = vmatpush1.xpose.msra.mxu0 0.0
        %4932 = vmatprep.subr.mxu0 0.0
        %4933 = vmatpush1.xpose.msra.mxu0 0.0
        %4934 = vmatprep.subr.mxu0 0.0
        %4935 = vmatpush1.xpose.msra.mxu0 0.0
        %4936 = vmatprep.subr.mxu0 0.0
        %4937 = vmatpush1.xpose.msra.mxu0 0.0
        %4938 = vmatprep.subr.mxu0 0.0
        %4939 = vmatpush1.xpose.msra.mxu0 0.0
        %4940 = vmatprep.subr.mxu0 0.0
        %4941 = vmatpush1.xpose.msra.mxu0 0.0
        %4942 = vmatprep.subr.mxu0 0.0
        %4943 = vmatpush1.xpose.msra.mxu0 0.0
        %4944 = vmatprep.subr.mxu0 0.0
        %4945 = vmatpush1.xpose.msra.mxu0 0.0
        %4946 = vmatprep.subr.mxu0 0.0
        %4947 = vmatpush1.xpose.msra.mxu0 0.0
        %4948 = vmatprep.subr.mxu0 0.0
        %4949 = vmatpush1.xpose.msra.mxu0 %v4916
        %4950 = vmatprep.subr.mxu0 0.0
        %4951 = vmatpush2.xpose.msra.mxu0 0.0
        %4952 = vmatprep.subr.mxu0 0.0
        %4953 = vmatpush2.xpose.msra.mxu0 0.0
        %4954 = vmatprep.subr.mxu0 0.0
        %4955 = vmatpush2.xpose.msra.mxu0 0.0
        %4956 = vmatprep.subr.mxu0 0.0
        %4957 = vmatpush2.xpose.msra.mxu0 0.0
        %4958 = vmatprep.subr.mxu0 0.0
        %4959 = vmatpush2.xpose.msra.mxu0 0.0
        %4960 = vmatprep.subr.mxu0 0.0
        %4961 = vmatpush2.xpose.msra.mxu0 0.0
        %4962 = vmatprep.subr.mxu0 0.0
        %4963 = vmatpush2.xpose.msra.mxu0 0.0
        %4964 = vmatprep.subr.mxu0 0.0
        %4965 = vmatpush2.xpose.msra.mxu0 0.0
        %4966 = vmatprep.subr.mxu0 0.0
        %4967 = vmatpush2.xpose.msra.mxu0 0.0
        %4968 = vmatprep.subr.mxu0 0.0
        %4969 = vmatpush2.xpose.msra.mxu0 0.0
        %4970 = vmatprep.subr.mxu0 0.0
        %4971 = vmatpush2.xpose.msra.mxu0 0.0
        %4972 = vmatprep.subr.mxu0 0.0
        %4973 = vmatpush2.xpose.msra.mxu0 0.0
        %4974 = vmatprep.subr.mxu0 0.0
        %4975 = vmatpush2.xpose.msra.mxu0 0.0
        %4976 = vmatprep.subr.mxu0 0.0
        %4977 = vmatpush2.xpose.msra.mxu0 0.0
        %4978 = vmatprep.subr.mxu0 0.0
        %4979 = vmatpush2.xpose.msra.mxu0 0.0
        %4980 = vmatprep.subr.mxu0 0.0
        %4981 = vmatpush2.xpose.msra.mxu0 0.0
        %4982 = vmatprep.mubr.f32.mxu0 0.0
        %4983 = vmatmul.mubr.f32.gmra.mxu0 %v4914
        %v4984 = vpop.f32.mrf.mxu0
        %v4985 = vadd.f32 0.0, %v4984
        %v4986 = vpop.f32.mrf.mxu0
        %4987 = vdwg.mxu0
        %4988 = vrot.lane.b32.xlu0 %v4093, 120
        %v4989 = vpop.permute.xlu0 %4988
        %4990 = vrot.lane.b32.xlu0 %v4093, 88
        %v4991 = vpop.permute.xlu0 %4990
        %v4992 = vsel %vm668, %v4989, 0
        %v4994 = vsel %vm668, %v4991, 0
        %4996 = vmatprep.subr.mxu0 0.0
        %4997 = vmatpush1.xpose.msra.mxu0 0.0
        %4998 = vmatprep.subr.mxu0 0.0
        %4999 = vmatpush1.xpose.msra.mxu0 0.0
        %5000 = vmatprep.subr.mxu0 0.0
        %5001 = vmatpush1.xpose.msra.mxu0 0.0
        %5002 = vmatprep.subr.mxu0 0.0
        %5003 = vmatpush1.xpose.msra.mxu0 0.0
        %5004 = vmatprep.subr.mxu0 0.0
        %5005 = vmatpush1.xpose.msra.mxu0 0.0
        %5006 = vmatprep.subr.mxu0 0.0
        %5007 = vmatpush1.xpose.msra.mxu0 0.0
        %5008 = vmatprep.subr.mxu0 0.0
        %5009 = vmatpush1.xpose.msra.mxu0 0.0
        %5010 = vmatprep.subr.mxu0 0.0
        %5011 = vmatpush1.xpose.msra.mxu0 0.0
        %5012 = vmatprep.subr.mxu0 0.0
        %5013 = vmatpush1.xpose.msra.mxu0 0.0
        %5014 = vmatprep.subr.mxu0 0.0
        %5015 = vmatpush1.xpose.msra.mxu0 0.0
        %5016 = vmatprep.subr.mxu0 0.0
        %5017 = vmatpush1.xpose.msra.mxu0 0.0
        %5018 = vmatprep.subr.mxu0 0.0
        %5019 = vmatpush1.xpose.msra.mxu0 0.0
        %5020 = vmatprep.subr.mxu0 0.0
        %5021 = vmatpush1.xpose.msra.mxu0 0.0
        %5022 = vmatprep.subr.mxu0 0.0
        %5023 = vmatpush1.xpose.msra.mxu0 0.0
        %5024 = vmatprep.subr.mxu0 0.0
        %5025 = vmatpush1.xpose.msra.mxu0 0.0
        %5026 = vmatprep.subr.mxu0 0.0
        %5027 = vmatpush1.xpose.msra.mxu0 %v4994
        %5028 = vmatprep.subr.mxu0 0.0
        %5029 = vmatpush2.xpose.msra.mxu0 0.0
        %5030 = vmatprep.subr.mxu0 0.0
        %5031 = vmatpush2.xpose.msra.mxu0 0.0
        %5032 = vmatprep.subr.mxu0 0.0
        %5033 = vmatpush2.xpose.msra.mxu0 0.0
        %5034 = vmatprep.subr.mxu0 0.0
        %5035 = vmatpush2.xpose.msra.mxu0 0.0
        %5036 = vmatprep.subr.mxu0 0.0
        %5037 = vmatpush2.xpose.msra.mxu0 0.0
        %5038 = vmatprep.subr.mxu0 0.0
        %5039 = vmatpush2.xpose.msra.mxu0 0.0
        %5040 = vmatprep.subr.mxu0 0.0
        %5041 = vmatpush2.xpose.msra.mxu0 0.0
        %5042 = vmatprep.subr.mxu0 0.0
        %5043 = vmatpush2.xpose.msra.mxu0 0.0
        %5044 = vmatprep.subr.mxu0 0.0
        %5045 = vmatpush2.xpose.msra.mxu0 0.0
        %5046 = vmatprep.subr.mxu0 0.0
        %5047 = vmatpush2.xpose.msra.mxu0 0.0
        %5048 = vmatprep.subr.mxu0 0.0
        %5049 = vmatpush2.xpose.msra.mxu0 0.0
        %5050 = vmatprep.subr.mxu0 0.0
        %5051 = vmatpush2.xpose.msra.mxu0 0.0
        %5052 = vmatprep.subr.mxu0 0.0
        %5053 = vmatpush2.xpose.msra.mxu0 0.0
        %5054 = vmatprep.subr.mxu0 0.0
        %5055 = vmatpush2.xpose.msra.mxu0 0.0
        %5056 = vmatprep.subr.mxu0 0.0
        %5057 = vmatpush2.xpose.msra.mxu0 0.0
        %5058 = vmatprep.subr.mxu0 0.0
        %5059 = vmatpush2.xpose.msra.mxu0 0.0
        %5060 = vmatprep.mubr.f32.mxu0 0.0
        %5061 = vmatmul.mubr.f32.gmra.mxu0 %v4992
        %v5062 = vpop.f32.mrf.mxu0
        %v5063 = vadd.f32 0.0, %v5062
        %v5064 = vpop.f32.mrf.mxu0
        %5065 = vdwg.mxu0
        %v5066 = vmul.f32 %v4829, 0.35355338
        %v5067 = vmul.f32 %v4907, 0.35355338
        %v5068 = vmul.f32 %v4985, 0.35355338
        %v5069 = vmul.f32 %v5063, 0.35355338
        %v5070 = vsel %vm975, %v5066, -inf
        %5071 = vmax.xlane.f32.xlu0 %v5070
        %v5072 = vpop.xlane.xlu0 %5071
        %v5073 = vsel %vm975, %v5067, -inf
        %5074 = vmax.xlane.f32.xlu0 %v5073
        %v5075 = vpop.xlane.xlu0 %5074
        %v5076 = vsel %vm975, %v5068, -inf
        %5077 = vmax.xlane.f32.xlu0 %v5076
        %v5078 = vpop.xlane.xlu0 %5077
        %v5079 = vsel %vm975, %v5069, -inf
        %5080 = vmax.xlane.f32.xlu0 %v5079
        %v5081 = vpop.xlane.xlu0 %5080
        %v5082 = vsub.f32 %v5066, %v5072
        %v5083 = vsub.f32 %v5067, %v5075
        %v5084 = vsub.f32 %v5068, %v5078
        %v5085 = vsub.f32 %v5069, %v5081
        %v5086 = vmul.f32 %v5082, 1.442695
        %v5087 = vpow.pop %v5086
        %v5088 = vmul.f32 %v5083, 1.442695
        %v5089 = vpow.pop %v5088
        %v5090 = vmul.f32 %v5084, 1.442695
        %v5091 = vpow.pop %v5090
        %v5092 = vmul.f32 %v5085, 1.442695
        %v5093 = vpow.pop %v5092
        %v5094 = vsel %vm975, %v5087, 0.0
        %5095 = vadd.xlane.f32.xlu0 %v5094
        %v5096 = vpop.xlane.xlu0 %5095
        %v5097 = vsel %vm975, %v5089, 0.0
        %5098 = vadd.xlane.f32.xlu0 %v5097
        %v5099 = vpop.xlane.xlu0 %5098
        %v5100 = vsel %vm975, %v5091, 0.0
        %5101 = vadd.xlane.f32.xlu0 %v5100
        %v5102 = vpop.xlane.xlu0 %5101
        %v5103 = vsel %vm975, %v5093, 0.0
        %5104 = vadd.xlane.f32.xlu0 %v5103
        %v5105 = vpop.xlane.xlu0 %5104
        %v5106 = vrcp.pop %v5096
        %v5107 = vrcp.pop %v5099
        %v5108 = vrcp.pop %v5102
        %v5109 = vrcp.pop %v5105
        %v5110 = vmul.f32 %v5087, %v5106
        %v5111 = vmul.f32 %v5089, %v5107
        %v5112 = vmul.f32 %v5091, %v5108
        %v5113 = vmul.f32 %v5093, %v5109
        %5114 = vrot.lane.b32.xlu0 %v4082, 56
        %v5115 = vpop.permute.xlu0 %5114
        %v5117 = vsel %vm1022, %v5110, 0
        %v5119 = vsel %vm1026, %v5115, 0
        %5121 = vmatprep.subr.mxu0 0.0
        %5122 = vmatpush1.msra.mxu0 0.0
        %5123 = vmatprep.subr.mxu0 0.0
        %5124 = vmatpush1.msra.mxu0 0.0
        %5125 = vmatprep.subr.mxu0 0.0
        %5126 = vmatpush1.msra.mxu0 0.0
        %5127 = vmatprep.subr.mxu0 0.0
        %5128 = vmatpush1.msra.mxu0 0.0
        %5129 = vmatprep.subr.mxu0 0.0
        %5130 = vmatpush1.msra.mxu0 0.0
        %5131 = vmatprep.subr.mxu0 0.0
        %5132 = vmatpush1.msra.mxu0 0.0
        %5133 = vmatprep.subr.mxu0 0.0
        %5134 = vmatpush1.msra.mxu0 0.0
        %5135 = vmatprep.subr.mxu0 0.0
        %5136 = vmatpush1.msra.mxu0 0.0
        %5137 = vmatprep.subr.mxu0 0.0
        %5138 = vmatpush1.msra.mxu0 0.0
        %5139 = vmatprep.subr.mxu0 0.0
        %5140 = vmatpush1.msra.mxu0 0.0
        %5141 = vmatprep.subr.mxu0 0.0
        %5142 = vmatpush1.msra.mxu0 0.0
        %5143 = vmatprep.subr.mxu0 0.0
        %5144 = vmatpush1.msra.mxu0 0.0
        %5145 = vmatprep.subr.mxu0 0.0
        %5146 = vmatpush1.msra.mxu0 0.0
        %5147 = vmatprep.subr.mxu0 0.0
        %5148 = vmatpush1.msra.mxu0 0.0
        %5149 = vmatprep.subr.mxu0 0.0
        %5150 = vmatpush1.msra.mxu0 0.0
        %5151 = vmatprep.subr.mxu0 0.0
        %5152 = vmatpush1.msra.mxu0 %v5119
        %5153 = vmatprep.subr.mxu0 0.0
        %5154 = vmatpush2.msra.mxu0 0.0
        %5155 = vmatprep.subr.mxu0 0.0
        %5156 = vmatpush2.msra.mxu0 0.0
        %5157 = vmatprep.subr.mxu0 0.0
        %5158 = vmatpush2.msra.mxu0 0.0
        %5159 = vmatprep.subr.mxu0 0.0
        %5160 = vmatpush2.msra.mxu0 0.0
        %5161 = vmatprep.subr.mxu0 0.0
        %5162 = vmatpush2.msra.mxu0 0.0
        %5163 = vmatprep.subr.mxu0 0.0
        %5164 = vmatpush2.msra.mxu0 0.0
        %5165 = vmatprep.subr.mxu0 0.0
        %5166 = vmatpush2.msra.mxu0 0.0
        %5167 = vmatprep.subr.mxu0 0.0
        %5168 = vmatpush2.msra.mxu0 0.0
        %5169 = vmatprep.subr.mxu0 0.0
        %5170 = vmatpush2.msra.mxu0 0.0
        %5171 = vmatprep.subr.mxu0 0.0
        %5172 = vmatpush2.msra.mxu0 0.0
        %5173 = vmatprep.subr.mxu0 0.0
        %5174 = vmatpush2.msra.mxu0 0.0
        %5175 = vmatprep.subr.mxu0 0.0
        %5176 = vmatpush2.msra.mxu0 0.0
        %5177 = vmatprep.subr.mxu0 0.0
        %5178 = vmatpush2.msra.mxu0 0.0
        %5179 = vmatprep.subr.mxu0 0.0
        %5180 = vmatpush2.msra.mxu0 0.0
        %5181 = vmatprep.subr.mxu0 0.0
        %5182 = vmatpush2.msra.mxu0 0.0
        %5183 = vmatprep.subr.mxu0 0.0
        %5184 = vmatpush2.msra.mxu0 0.0
        %5185 = vmatprep.mubr.f32.mxu0 0.0
        %5186 = vmatmul.mubr.f32.gmra.mxu0 %v5117
        %v5187 = vpop.f32.mrf.mxu0
        %v5188 = vadd.f32 0.0, %v5187
        %v5189 = vpop.f32.mrf.mxu0
        %5190 = vdwg.mxu0
        %5191 = vrot.lane.b32.xlu0 %v4092, 56
        %v5192 = vpop.permute.xlu0 %5191
        %v5194 = vsel %vm1022, %v5111, 0
        %v5196 = vsel %vm1026, %v5192, 0
        %5198 = vmatprep.subr.mxu0 0.0
        %5199 = vmatpush1.msra.mxu0 0.0
        %5200 = vmatprep.subr.mxu0 0.0
        %5201 = vmatpush1.msra.mxu0 0.0
        %5202 = vmatprep.subr.mxu0 0.0
        %5203 = vmatpush1.msra.mxu0 0.0
        %5204 = vmatprep.subr.mxu0 0.0
        %5205 = vmatpush1.msra.mxu0 0.0
        %5206 = vmatprep.subr.mxu0 0.0
        %5207 = vmatpush1.msra.mxu0 0.0
        %5208 = vmatprep.subr.mxu0 0.0
        %5209 = vmatpush1.msra.mxu0 0.0
        %5210 = vmatprep.subr.mxu0 0.0
        %5211 = vmatpush1.msra.mxu0 0.0
        %5212 = vmatprep.subr.mxu0 0.0
        %5213 = vmatpush1.msra.mxu0 0.0
        %5214 = vmatprep.subr.mxu0 0.0
        %5215 = vmatpush1.msra.mxu0 0.0
        %5216 = vmatprep.subr.mxu0 0.0
        %5217 = vmatpush1.msra.mxu0 0.0
        %5218 = vmatprep.subr.mxu0 0.0
        %5219 = vmatpush1.msra.mxu0 0.0
        %5220 = vmatprep.subr.mxu0 0.0
        %5221 = vmatpush1.msra.mxu0 0.0
        %5222 = vmatprep.subr.mxu0 0.0
        %5223 = vmatpush1.msra.mxu0 0.0
        %5224 = vmatprep.subr.mxu0 0.0
        %5225 = vmatpush1.msra.mxu0 0.0
        %5226 = vmatprep.subr.mxu0 0.0
        %5227 = vmatpush1.msra.mxu0 0.0
        %5228 = vmatprep.subr.mxu0 0.0
        %5229 = vmatpush1.msra.mxu0 %v5196
        %5230 = vmatprep.subr.mxu0 0.0
        %5231 = vmatpush2.msra.mxu0 0.0
        %5232 = vmatprep.subr.mxu0 0.0
        %5233 = vmatpush2.msra.mxu0 0.0
        %5234 = vmatprep.subr.mxu0 0.0
        %5235 = vmatpush2.msra.mxu0 0.0
        %5236 = vmatprep.subr.mxu0 0.0
        %5237 = vmatpush2.msra.mxu0 0.0
        %5238 = vmatprep.subr.mxu0 0.0
        %5239 = vmatpush2.msra.mxu0 0.0
        %5240 = vmatprep.subr.mxu0 0.0
        %5241 = vmatpush2.msra.mxu0 0.0
        %5242 = vmatprep.subr.mxu0 0.0
        %5243 = vmatpush2.msra.mxu0 0.0
        %5244 = vmatprep.subr.mxu0 0.0
        %5245 = vmatpush2.msra.mxu0 0.0
        %5246 = vmatprep.subr.mxu0 0.0
        %5247 = vmatpush2.msra.mxu0 0.0
        %5248 = vmatprep.subr.mxu0 0.0
        %5249 = vmatpush2.msra.mxu0 0.0
        %5250 = vmatprep.subr.mxu0 0.0
        %5251 = vmatpush2.msra.mxu0 0.0
        %5252 = vmatprep.subr.mxu0 0.0
        %5253 = vmatpush2.msra.mxu0 0.0
        %5254 = vmatprep.subr.mxu0 0.0
        %5255 = vmatpush2.msra.mxu0 0.0
        %5256 = vmatprep.subr.mxu0 0.0
        %5257 = vmatpush2.msra.mxu0 0.0
        %5258 = vmatprep.subr.mxu0 0.0
        %5259 = vmatpush2.msra.mxu0 0.0
        %5260 = vmatprep.subr.mxu0 0.0
        %5261 = vmatpush2.msra.mxu0 0.0
        %5262 = vmatprep.mubr.f32.mxu0 0.0
        %5263 = vmatmul.mubr.f32.gmra.mxu0 %v5194
        %v5264 = vpop.f32.mrf.mxu0
        %v5265 = vadd.f32 0.0, %v5264
        %v5266 = vpop.f32.mrf.mxu0
        %5267 = vdwg.mxu0
        %5268 = vrot.lane.b32.xlu0 %v4087, 56
        %v5269 = vpop.permute.xlu0 %5268
        %v5271 = vsel %vm1022, %v5112, 0
        %v5273 = vsel %vm1026, %v5269, 0
        %5275 = vmatprep.subr.mxu0 0.0
        %5276 = vmatpush1.msra.mxu0 0.0
        %5277 = vmatprep.subr.mxu0 0.0
        %5278 = vmatpush1.msra.mxu0 0.0
        %5279 = vmatprep.subr.mxu0 0.0
        %5280 = vmatpush1.msra.mxu0 0.0
        %5281 = vmatprep.subr.mxu0 0.0
        %5282 = vmatpush1.msra.mxu0 0.0
        %5283 = vmatprep.subr.mxu0 0.0
        %5284 = vmatpush1.msra.mxu0 0.0
        %5285 = vmatprep.subr.mxu0 0.0
        %5286 = vmatpush1.msra.mxu0 0.0
        %5287 = vmatprep.subr.mxu0 0.0
        %5288 = vmatpush1.msra.mxu0 0.0
        %5289 = vmatprep.subr.mxu0 0.0
        %5290 = vmatpush1.msra.mxu0 0.0
        %5291 = vmatprep.subr.mxu0 0.0
        %5292 = vmatpush1.msra.mxu0 0.0
        %5293 = vmatprep.subr.mxu0 0.0
        %5294 = vmatpush1.msra.mxu0 0.0
        %5295 = vmatprep.subr.mxu0 0.0
        %5296 = vmatpush1.msra.mxu0 0.0
        %5297 = vmatprep.subr.mxu0 0.0
        %5298 = vmatpush1.msra.mxu0 0.0
        %5299 = vmatprep.subr.mxu0 0.0
        %5300 = vmatpush1.msra.mxu0 0.0
        %5301 = vmatprep.subr.mxu0 0.0
        %5302 = vmatpush1.msra.mxu0 0.0
        %5303 = vmatprep.subr.mxu0 0.0
        %5304 = vmatpush1.msra.mxu0 0.0
        %5305 = vmatprep.subr.mxu0 0.0
        %5306 = vmatpush1.msra.mxu0 %v5273
        %5307 = vmatprep.subr.mxu0 0.0
        %5308 = vmatpush2.msra.mxu0 0.0
        %5309 = vmatprep.subr.mxu0 0.0
        %5310 = vmatpush2.msra.mxu0 0.0
        %5311 = vmatprep.subr.mxu0 0.0
        %5312 = vmatpush2.msra.mxu0 0.0
        %5313 = vmatprep.subr.mxu0 0.0
        %5314 = vmatpush2.msra.mxu0 0.0
        %5315 = vmatprep.subr.mxu0 0.0
        %5316 = vmatpush2.msra.mxu0 0.0
        %5317 = vmatprep.subr.mxu0 0.0
        %5318 = vmatpush2.msra.mxu0 0.0
        %5319 = vmatprep.subr.mxu0 0.0
        %5320 = vmatpush2.msra.mxu0 0.0
        %5321 = vmatprep.subr.mxu0 0.0
        %5322 = vmatpush2.msra.mxu0 0.0
        %5323 = vmatprep.subr.mxu0 0.0
        %5324 = vmatpush2.msra.mxu0 0.0
        %5325 = vmatprep.subr.mxu0 0.0
        %5326 = vmatpush2.msra.mxu0 0.0
        %5327 = vmatprep.subr.mxu0 0.0
        %5328 = vmatpush2.msra.mxu0 0.0
        %5329 = vmatprep.subr.mxu0 0.0
        %5330 = vmatpush2.msra.mxu0 0.0
        %5331 = vmatprep.subr.mxu0 0.0
        %5332 = vmatpush2.msra.mxu0 0.0
        %5333 = vmatprep.subr.mxu0 0.0
        %5334 = vmatpush2.msra.mxu0 0.0
        %5335 = vmatprep.subr.mxu0 0.0
        %5336 = vmatpush2.msra.mxu0 0.0
        %5337 = vmatprep.subr.mxu0 0.0
        %5338 = vmatpush2.msra.mxu0 0.0
        %5339 = vmatprep.mubr.f32.mxu0 0.0
        %5340 = vmatmul.mubr.f32.gmra.mxu0 %v5271
        %v5341 = vpop.f32.mrf.mxu0
        %v5342 = vadd.f32 0.0, %v5341
        %v5343 = vpop.f32.mrf.mxu0
        %5344 = vdwg.mxu0
        %5345 = vrot.lane.b32.xlu0 %v4093, 56
        %v5346 = vpop.permute.xlu0 %5345
        %v5348 = vsel %vm1022, %v5113, 0
        %v5350 = vsel %vm1026, %v5346, 0
        %5352 = vmatprep.subr.mxu0 0.0
        %5353 = vmatpush1.msra.mxu0 0.0
        %5354 = vmatprep.subr.mxu0 0.0
        %5355 = vmatpush1.msra.mxu0 0.0
        %5356 = vmatprep.subr.mxu0 0.0
        %5357 = vmatpush1.msra.mxu0 0.0
        %5358 = vmatprep.subr.mxu0 0.0
        %5359 = vmatpush1.msra.mxu0 0.0
        %5360 = vmatprep.subr.mxu0 0.0
        %5361 = vmatpush1.msra.mxu0 0.0
        %5362 = vmatprep.subr.mxu0 0.0
        %5363 = vmatpush1.msra.mxu0 0.0
        %5364 = vmatprep.subr.mxu0 0.0
        %5365 = vmatpush1.msra.mxu0 0.0
        %5366 = vmatprep.subr.mxu0 0.0
        %5367 = vmatpush1.msra.mxu0 0.0
        %5368 = vmatprep.subr.mxu0 0.0
        %5369 = vmatpush1.msra.mxu0 0.0
        %5370 = vmatprep.subr.mxu0 0.0
        %5371 = vmatpush1.msra.mxu0 0.0
        %5372 = vmatprep.subr.mxu0 0.0
        %5373 = vmatpush1.msra.mxu0 0.0
        %5374 = vmatprep.subr.mxu0 0.0
        %5375 = vmatpush1.msra.mxu0 0.0
        %5376 = vmatprep.subr.mxu0 0.0
        %5377 = vmatpush1.msra.mxu0 0.0
        %5378 = vmatprep.subr.mxu0 0.0
        %5379 = vmatpush1.msra.mxu0 0.0
        %5380 = vmatprep.subr.mxu0 0.0
        %5381 = vmatpush1.msra.mxu0 0.0
        %5382 = vmatprep.subr.mxu0 0.0
        %5383 = vmatpush1.msra.mxu0 %v5350
        %5384 = vmatprep.subr.mxu0 0.0
        %5385 = vmatpush2.msra.mxu0 0.0
        %5386 = vmatprep.subr.mxu0 0.0
        %5387 = vmatpush2.msra.mxu0 0.0
        %5388 = vmatprep.subr.mxu0 0.0
        %5389 = vmatpush2.msra.mxu0 0.0
        %5390 = vmatprep.subr.mxu0 0.0
        %5391 = vmatpush2.msra.mxu0 0.0
        %5392 = vmatprep.subr.mxu0 0.0
        %5393 = vmatpush2.msra.mxu0 0.0
        %5394 = vmatprep.subr.mxu0 0.0
        %5395 = vmatpush2.msra.mxu0 0.0
        %5396 = vmatprep.subr.mxu0 0.0
        %5397 = vmatpush2.msra.mxu0 0.0
        %5398 = vmatprep.subr.mxu0 0.0
        %5399 = vmatpush2.msra.mxu0 0.0
        %5400 = vmatprep.subr.mxu0 0.0
        %5401 = vmatpush2.msra.mxu0 0.0
        %5402 = vmatprep.subr.mxu0 0.0
        %5403 = vmatpush2.msra.mxu0 0.0
        %5404 = vmatprep.subr.mxu0 0.0
        %5405 = vmatpush2.msra.mxu0 0.0
        %5406 = vmatprep.subr.mxu0 0.0
        %5407 = vmatpush2.msra.mxu0 0.0
        %5408 = vmatprep.subr.mxu0 0.0
        %5409 = vmatpush2.msra.mxu0 0.0
        %5410 = vmatprep.subr.mxu0 0.0
        %5411 = vmatpush2.msra.mxu0 0.0
        %5412 = vmatprep.subr.mxu0 0.0
        %5413 = vmatpush2.msra.mxu0 0.0
        %5414 = vmatprep.subr.mxu0 0.0
        %5415 = vmatpush2.msra.mxu0 0.0
        %5416 = vmatprep.mubr.f32.mxu0 0.0
        %5417 = vmatmul.mubr.f32.gmra.mxu0 %v5348
        %v5418 = vpop.f32.mrf.mxu0
        %v5419 = vadd.f32 0.0, %v5418
        %v5420 = vpop.f32.mrf.mxu0
        %5421 = vdwg.mxu0
        %5422 = vrot.lane.b32.xlu0 %v4082, 112
        %v5423 = vpop.permute.xlu0 %5422
        %5424 = vrot.lane.b32.xlu0 %v4082, 80
        %v5425 = vpop.permute.xlu0 %5424
        %v5426 = vsel %vm668, %v5423, 0
        %v5428 = vsel %vm668, %v5425, 0
        %5430 = vmatprep.subr.mxu0 0.0
        %5431 = vmatpush1.xpose.msra.mxu0 0.0
        %5432 = vmatprep.subr.mxu0 0.0
        %5433 = vmatpush1.xpose.msra.mxu0 0.0
        %5434 = vmatprep.subr.mxu0 0.0
        %5435 = vmatpush1.xpose.msra.mxu0 0.0
        %5436 = vmatprep.subr.mxu0 0.0
        %5437 = vmatpush1.xpose.msra.mxu0 0.0
        %5438 = vmatprep.subr.mxu0 0.0
        %5439 = vmatpush1.xpose.msra.mxu0 0.0
        %5440 = vmatprep.subr.mxu0 0.0
        %5441 = vmatpush1.xpose.msra.mxu0 0.0
        %5442 = vmatprep.subr.mxu0 0.0
        %5443 = vmatpush1.xpose.msra.mxu0 0.0
        %5444 = vmatprep.subr.mxu0 0.0
        %5445 = vmatpush1.xpose.msra.mxu0 0.0
        %5446 = vmatprep.subr.mxu0 0.0
        %5447 = vmatpush1.xpose.msra.mxu0 0.0
        %5448 = vmatprep.subr.mxu0 0.0
        %5449 = vmatpush1.xpose.msra.mxu0 0.0
        %5450 = vmatprep.subr.mxu0 0.0
        %5451 = vmatpush1.xpose.msra.mxu0 0.0
        %5452 = vmatprep.subr.mxu0 0.0
        %5453 = vmatpush1.xpose.msra.mxu0 0.0
        %5454 = vmatprep.subr.mxu0 0.0
        %5455 = vmatpush1.xpose.msra.mxu0 0.0
        %5456 = vmatprep.subr.mxu0 0.0
        %5457 = vmatpush1.xpose.msra.mxu0 0.0
        %5458 = vmatprep.subr.mxu0 0.0
        %5459 = vmatpush1.xpose.msra.mxu0 0.0
        %5460 = vmatprep.subr.mxu0 0.0
        %5461 = vmatpush1.xpose.msra.mxu0 %v5428
        %5462 = vmatprep.subr.mxu0 0.0
        %5463 = vmatpush2.xpose.msra.mxu0 0.0
        %5464 = vmatprep.subr.mxu0 0.0
        %5465 = vmatpush2.xpose.msra.mxu0 0.0
        %5466 = vmatprep.subr.mxu0 0.0
        %5467 = vmatpush2.xpose.msra.mxu0 0.0
        %5468 = vmatprep.subr.mxu0 0.0
        %5469 = vmatpush2.xpose.msra.mxu0 0.0
        %5470 = vmatprep.subr.mxu0 0.0
        %5471 = vmatpush2.xpose.msra.mxu0 0.0
        %5472 = vmatprep.subr.mxu0 0.0
        %5473 = vmatpush2.xpose.msra.mxu0 0.0
        %5474 = vmatprep.subr.mxu0 0.0
        %5475 = vmatpush2.xpose.msra.mxu0 0.0
        %5476 = vmatprep.subr.mxu0 0.0
        %5477 = vmatpush2.xpose.msra.mxu0 0.0
        %5478 = vmatprep.subr.mxu0 0.0
        %5479 = vmatpush2.xpose.msra.mxu0 0.0
        %5480 = vmatprep.subr.mxu0 0.0
        %5481 = vmatpush2.xpose.msra.mxu0 0.0
        %5482 = vmatprep.subr.mxu0 0.0
        %5483 = vmatpush2.xpose.msra.mxu0 0.0
        %5484 = vmatprep.subr.mxu0 0.0
        %5485 = vmatpush2.xpose.msra.mxu0 0.0
        %5486 = vmatprep.subr.mxu0 0.0
        %5487 = vmatpush2.xpose.msra.mxu0 0.0
        %5488 = vmatprep.subr.mxu0 0.0
        %5489 = vmatpush2.xpose.msra.mxu0 0.0
        %5490 = vmatprep.subr.mxu0 0.0
        %5491 = vmatpush2.xpose.msra.mxu0 0.0
        %5492 = vmatprep.subr.mxu0 0.0
        %5493 = vmatpush2.xpose.msra.mxu0 0.0
        %5494 = vmatprep.mubr.f32.mxu0 0.0
        %5495 = vmatmul.mubr.f32.gmra.mxu0 %v5426
        %v5496 = vpop.f32.mrf.mxu0
        %v5497 = vadd.f32 0.0, %v5496
        %v5498 = vpop.f32.mrf.mxu0
        %5499 = vdwg.mxu0
        %5500 = vrot.lane.b32.xlu0 %v4092, 112
        %v5501 = vpop.permute.xlu0 %5500
        %5502 = vrot.lane.b32.xlu0 %v4092, 80
        %v5503 = vpop.permute.xlu0 %5502
        %v5504 = vsel %vm668, %v5501, 0
        %v5506 = vsel %vm668, %v5503, 0
        %5508 = vmatprep.subr.mxu0 0.0
        %5509 = vmatpush1.xpose.msra.mxu0 0.0
        %5510 = vmatprep.subr.mxu0 0.0
        %5511 = vmatpush1.xpose.msra.mxu0 0.0
        %5512 = vmatprep.subr.mxu0 0.0
        %5513 = vmatpush1.xpose.msra.mxu0 0.0
        %5514 = vmatprep.subr.mxu0 0.0
        %5515 = vmatpush1.xpose.msra.mxu0 0.0
        %5516 = vmatprep.subr.mxu0 0.0
        %5517 = vmatpush1.xpose.msra.mxu0 0.0
        %5518 = vmatprep.subr.mxu0 0.0
        %5519 = vmatpush1.xpose.msra.mxu0 0.0
        %5520 = vmatprep.subr.mxu0 0.0
        %5521 = vmatpush1.xpose.msra.mxu0 0.0
        %5522 = vmatprep.subr.mxu0 0.0
        %5523 = vmatpush1.xpose.msra.mxu0 0.0
        %5524 = vmatprep.subr.mxu0 0.0
        %5525 = vmatpush1.xpose.msra.mxu0 0.0
        %5526 = vmatprep.subr.mxu0 0.0
        %5527 = vmatpush1.xpose.msra.mxu0 0.0
        %5528 = vmatprep.subr.mxu0 0.0
        %5529 = vmatpush1.xpose.msra.mxu0 0.0
        %5530 = vmatprep.subr.mxu0 0.0
        %5531 = vmatpush1.xpose.msra.mxu0 0.0
        %5532 = vmatprep.subr.mxu0 0.0
        %5533 = vmatpush1.xpose.msra.mxu0 0.0
        %5534 = vmatprep.subr.mxu0 0.0
        %5535 = vmatpush1.xpose.msra.mxu0 0.0
        %5536 = vmatprep.subr.mxu0 0.0
        %5537 = vmatpush1.xpose.msra.mxu0 0.0
        %5538 = vmatprep.subr.mxu0 0.0
        %5539 = vmatpush1.xpose.msra.mxu0 %v5506
        %5540 = vmatprep.subr.mxu0 0.0
        %5541 = vmatpush2.xpose.msra.mxu0 0.0
        %5542 = vmatprep.subr.mxu0 0.0
        %5543 = vmatpush2.xpose.msra.mxu0 0.0
        %5544 = vmatprep.subr.mxu0 0.0
        %5545 = vmatpush2.xpose.msra.mxu0 0.0
        %5546 = vmatprep.subr.mxu0 0.0
        %5547 = vmatpush2.xpose.msra.mxu0 0.0
        %5548 = vmatprep.subr.mxu0 0.0
        %5549 = vmatpush2.xpose.msra.mxu0 0.0
        %5550 = vmatprep.subr.mxu0 0.0
        %5551 = vmatpush2.xpose.msra.mxu0 0.0
        %5552 = vmatprep.subr.mxu0 0.0
        %5553 = vmatpush2.xpose.msra.mxu0 0.0
        %5554 = vmatprep.subr.mxu0 0.0
        %5555 = vmatpush2.xpose.msra.mxu0 0.0
        %5556 = vmatprep.subr.mxu0 0.0
        %5557 = vmatpush2.xpose.msra.mxu0 0.0
        %5558 = vmatprep.subr.mxu0 0.0
        %5559 = vmatpush2.xpose.msra.mxu0 0.0
        %5560 = vmatprep.subr.mxu0 0.0
        %5561 = vmatpush2.xpose.msra.mxu0 0.0
        %5562 = vmatprep.subr.mxu0 0.0
        %5563 = vmatpush2.xpose.msra.mxu0 0.0
        %5564 = vmatprep.subr.mxu0 0.0
        %5565 = vmatpush2.xpose.msra.mxu0 0.0
        %5566 = vmatprep.subr.mxu0 0.0
        %5567 = vmatpush2.xpose.msra.mxu0 0.0
        %5568 = vmatprep.subr.mxu0 0.0
        %5569 = vmatpush2.xpose.msra.mxu0 0.0
        %5570 = vmatprep.subr.mxu0 0.0
        %5571 = vmatpush2.xpose.msra.mxu0 0.0
        %5572 = vmatprep.mubr.f32.mxu0 0.0
        %5573 = vmatmul.mubr.f32.gmra.mxu0 %v5504
        %v5574 = vpop.f32.mrf.mxu0
        %v5575 = vadd.f32 0.0, %v5574
        %v5576 = vpop.f32.mrf.mxu0
        %5577 = vdwg.mxu0
        %5578 = vrot.lane.b32.xlu0 %v4087, 112
        %v5579 = vpop.permute.xlu0 %5578
        %5580 = vrot.lane.b32.xlu0 %v4087, 80
        %v5581 = vpop.permute.xlu0 %5580
        %v5582 = vsel %vm668, %v5579, 0
        %v5584 = vsel %vm668, %v5581, 0
        %5586 = vmatprep.subr.mxu0 0.0
        %5587 = vmatpush1.xpose.msra.mxu0 0.0
        %5588 = vmatprep.subr.mxu0 0.0
        %5589 = vmatpush1.xpose.msra.mxu0 0.0
        %5590 = vmatprep.subr.mxu0 0.0
        %5591 = vmatpush1.xpose.msra.mxu0 0.0
        %5592 = vmatprep.subr.mxu0 0.0
        %5593 = vmatpush1.xpose.msra.mxu0 0.0
        %5594 = vmatprep.subr.mxu0 0.0
        %5595 = vmatpush1.xpose.msra.mxu0 0.0
        %5596 = vmatprep.subr.mxu0 0.0
        %5597 = vmatpush1.xpose.msra.mxu0 0.0
        %5598 = vmatprep.subr.mxu0 0.0
        %5599 = vmatpush1.xpose.msra.mxu0 0.0
        %5600 = vmatprep.subr.mxu0 0.0
        %5601 = vmatpush1.xpose.msra.mxu0 0.0
        %5602 = vmatprep.subr.mxu0 0.0
        %5603 = vmatpush1.xpose.msra.mxu0 0.0
        %5604 = vmatprep.subr.mxu0 0.0
        %5605 = vmatpush1.xpose.msra.mxu0 0.0
        %5606 = vmatprep.subr.mxu0 0.0
        %5607 = vmatpush1.xpose.msra.mxu0 0.0
        %5608 = vmatprep.subr.mxu0 0.0
        %5609 = vmatpush1.xpose.msra.mxu0 0.0
        %5610 = vmatprep.subr.mxu0 0.0
        %5611 = vmatpush1.xpose.msra.mxu0 0.0
        %5612 = vmatprep.subr.mxu0 0.0
        %5613 = vmatpush1.xpose.msra.mxu0 0.0
        %5614 = vmatprep.subr.mxu0 0.0
        %5615 = vmatpush1.xpose.msra.mxu0 0.0
        %5616 = vmatprep.subr.mxu0 0.0
        %5617 = vmatpush1.xpose.msra.mxu0 %v5584
        %5618 = vmatprep.subr.mxu0 0.0
        %5619 = vmatpush2.xpose.msra.mxu0 0.0
        %5620 = vmatprep.subr.mxu0 0.0
        %5621 = vmatpush2.xpose.msra.mxu0 0.0
        %5622 = vmatprep.subr.mxu0 0.0
        %5623 = vmatpush2.xpose.msra.mxu0 0.0
        %5624 = vmatprep.subr.mxu0 0.0
        %5625 = vmatpush2.xpose.msra.mxu0 0.0
        %5626 = vmatprep.subr.mxu0 0.0
        %5627 = vmatpush2.xpose.msra.mxu0 0.0
        %5628 = vmatprep.subr.mxu0 0.0
        %5629 = vmatpush2.xpose.msra.mxu0 0.0
        %5630 = vmatprep.subr.mxu0 0.0
        %5631 = vmatpush2.xpose.msra.mxu0 0.0
        %5632 = vmatprep.subr.mxu0 0.0
        %5633 = vmatpush2.xpose.msra.mxu0 0.0
        %5634 = vmatprep.subr.mxu0 0.0
        %5635 = vmatpush2.xpose.msra.mxu0 0.0
        %5636 = vmatprep.subr.mxu0 0.0
        %5637 = vmatpush2.xpose.msra.mxu0 0.0
        %5638 = vmatprep.subr.mxu0 0.0
        %5639 = vmatpush2.xpose.msra.mxu0 0.0
        %5640 = vmatprep.subr.mxu0 0.0
        %5641 = vmatpush2.xpose.msra.mxu0 0.0
        %5642 = vmatprep.subr.mxu0 0.0
        %5643 = vmatpush2.xpose.msra.mxu0 0.0
        %5644 = vmatprep.subr.mxu0 0.0
        %5645 = vmatpush2.xpose.msra.mxu0 0.0
        %5646 = vmatprep.subr.mxu0 0.0
        %5647 = vmatpush2.xpose.msra.mxu0 0.0
        %5648 = vmatprep.subr.mxu0 0.0
        %5649 = vmatpush2.xpose.msra.mxu0 0.0
        %5650 = vmatprep.mubr.f32.mxu0 0.0
        %5651 = vmatmul.mubr.f32.gmra.mxu0 %v5582
        %v5652 = vpop.f32.mrf.mxu0
        %v5653 = vadd.f32 0.0, %v5652
        %v5654 = vpop.f32.mrf.mxu0
        %5655 = vdwg.mxu0
        %5656 = vrot.lane.b32.xlu0 %v4093, 112
        %v5657 = vpop.permute.xlu0 %5656
        %5658 = vrot.lane.b32.xlu0 %v4093, 80
        %v5659 = vpop.permute.xlu0 %5658
        %v5660 = vsel %vm668, %v5657, 0
        %v5662 = vsel %vm668, %v5659, 0
        %5664 = vmatprep.subr.mxu0 0.0
        %5665 = vmatpush1.xpose.msra.mxu0 0.0
        %5666 = vmatprep.subr.mxu0 0.0
        %5667 = vmatpush1.xpose.msra.mxu0 0.0
        %5668 = vmatprep.subr.mxu0 0.0
        %5669 = vmatpush1.xpose.msra.mxu0 0.0
        %5670 = vmatprep.subr.mxu0 0.0
        %5671 = vmatpush1.xpose.msra.mxu0 0.0
        %5672 = vmatprep.subr.mxu0 0.0
        %5673 = vmatpush1.xpose.msra.mxu0 0.0
        %5674 = vmatprep.subr.mxu0 0.0
        %5675 = vmatpush1.xpose.msra.mxu0 0.0
        %5676 = vmatprep.subr.mxu0 0.0
        %5677 = vmatpush1.xpose.msra.mxu0 0.0
        %5678 = vmatprep.subr.mxu0 0.0
        %5679 = vmatpush1.xpose.msra.mxu0 0.0
        %5680 = vmatprep.subr.mxu0 0.0
        %5681 = vmatpush1.xpose.msra.mxu0 0.0
        %5682 = vmatprep.subr.mxu0 0.0
        %5683 = vmatpush1.xpose.msra.mxu0 0.0
        %5684 = vmatprep.subr.mxu0 0.0
        %5685 = vmatpush1.xpose.msra.mxu0 0.0
        %5686 = vmatprep.subr.mxu0 0.0
        %5687 = vmatpush1.xpose.msra.mxu0 0.0
        %5688 = vmatprep.subr.mxu0 0.0
        %5689 = vmatpush1.xpose.msra.mxu0 0.0
        %5690 = vmatprep.subr.mxu0 0.0
        %5691 = vmatpush1.xpose.msra.mxu0 0.0
        %5692 = vmatprep.subr.mxu0 0.0
        %5693 = vmatpush1.xpose.msra.mxu0 0.0
        %5694 = vmatprep.subr.mxu0 0.0
        %5695 = vmatpush1.xpose.msra.mxu0 %v5662
        %5696 = vmatprep.subr.mxu0 0.0
        %5697 = vmatpush2.xpose.msra.mxu0 0.0
        %5698 = vmatprep.subr.mxu0 0.0
        %5699 = vmatpush2.xpose.msra.mxu0 0.0
        %5700 = vmatprep.subr.mxu0 0.0
        %5701 = vmatpush2.xpose.msra.mxu0 0.0
        %5702 = vmatprep.subr.mxu0 0.0
        %5703 = vmatpush2.xpose.msra.mxu0 0.0
        %5704 = vmatprep.subr.mxu0 0.0
        %5705 = vmatpush2.xpose.msra.mxu0 0.0
        %5706 = vmatprep.subr.mxu0 0.0
        %5707 = vmatpush2.xpose.msra.mxu0 0.0
        %5708 = vmatprep.subr.mxu0 0.0
        %5709 = vmatpush2.xpose.msra.mxu0 0.0
        %5710 = vmatprep.subr.mxu0 0.0
        %5711 = vmatpush2.xpose.msra.mxu0 0.0
        %5712 = vmatprep.subr.mxu0 0.0
        %5713 = vmatpush2.xpose.msra.mxu0 0.0
        %5714 = vmatprep.subr.mxu0 0.0
        %5715 = vmatpush2.xpose.msra.mxu0 0.0
        %5716 = vmatprep.subr.mxu0 0.0
        %5717 = vmatpush2.xpose.msra.mxu0 0.0
        %5718 = vmatprep.subr.mxu0 0.0
        %5719 = vmatpush2.xpose.msra.mxu0 0.0
        %5720 = vmatprep.subr.mxu0 0.0
        %5721 = vmatpush2.xpose.msra.mxu0 0.0
        %5722 = vmatprep.subr.mxu0 0.0
        %5723 = vmatpush2.xpose.msra.mxu0 0.0
        %5724 = vmatprep.subr.mxu0 0.0
        %5725 = vmatpush2.xpose.msra.mxu0 0.0
        %5726 = vmatprep.subr.mxu0 0.0
        %5727 = vmatpush2.xpose.msra.mxu0 0.0
        %5728 = vmatprep.mubr.f32.mxu0 0.0
        %5729 = vmatmul.mubr.f32.gmra.mxu0 %v5660
        %v5730 = vpop.f32.mrf.mxu0
        %v5731 = vadd.f32 0.0, %v5730
        %v5732 = vpop.f32.mrf.mxu0
        %5733 = vdwg.mxu0
        %v5734 = vmul.f32 %v5497, 0.35355338
        %v5735 = vmul.f32 %v5575, 0.35355338
        %v5736 = vmul.f32 %v5653, 0.35355338
        %v5737 = vmul.f32 %v5731, 0.35355338
        %v5738 = vsel %vm975, %v5734, -inf
        %5739 = vmax.xlane.f32.xlu0 %v5738
        %v5740 = vpop.xlane.xlu0 %5739
        %v5741 = vsel %vm975, %v5735, -inf
        %5742 = vmax.xlane.f32.xlu0 %v5741
        %v5743 = vpop.xlane.xlu0 %5742
        %v5744 = vsel %vm975, %v5736, -inf
        %5745 = vmax.xlane.f32.xlu0 %v5744
        %v5746 = vpop.xlane.xlu0 %5745
        %v5747 = vsel %vm975, %v5737, -inf
        %5748 = vmax.xlane.f32.xlu0 %v5747
        %v5749 = vpop.xlane.xlu0 %5748
        %v5750 = vsub.f32 %v5734, %v5740
        %v5751 = vsub.f32 %v5735, %v5743
        %v5752 = vsub.f32 %v5736, %v5746
        %v5753 = vsub.f32 %v5737, %v5749
        %v5754 = vmul.f32 %v5750, 1.442695
        %v5755 = vpow.pop %v5754
        %v5756 = vmul.f32 %v5751, 1.442695
        %v5757 = vpow.pop %v5756
        %v5758 = vmul.f32 %v5752, 1.442695
        %v5759 = vpow.pop %v5758
        %v5760 = vmul.f32 %v5753, 1.442695
        %v5761 = vpow.pop %v5760
        %v5762 = vsel %vm975, %v5755, 0.0
        %5763 = vadd.xlane.f32.xlu0 %v5762
        %v5764 = vpop.xlane.xlu0 %5763
        %v5765 = vsel %vm975, %v5757, 0.0
        %5766 = vadd.xlane.f32.xlu0 %v5765
        %v5767 = vpop.xlane.xlu0 %5766
        %v5768 = vsel %vm975, %v5759, 0.0
        %5769 = vadd.xlane.f32.xlu0 %v5768
        %v5770 = vpop.xlane.xlu0 %5769
        %v5771 = vsel %vm975, %v5761, 0.0
        %5772 = vadd.xlane.f32.xlu0 %v5771
        %v5773 = vpop.xlane.xlu0 %5772
        %v5774 = vrcp.pop %v5764
        %v5775 = vrcp.pop %v5767
        %v5776 = vrcp.pop %v5770
        %v5777 = vrcp.pop %v5773
        %v5778 = vmul.f32 %v5755, %v5774
        %v5779 = vmul.f32 %v5757, %v5775
        %v5780 = vmul.f32 %v5759, %v5776
        %v5781 = vmul.f32 %v5761, %v5777
        %5782 = vrot.lane.b32.xlu0 %v4082, 48
        %v5783 = vpop.permute.xlu0 %5782
        %v5785 = vsel %vm1022, %v5778, 0
        %v5787 = vsel %vm1026, %v5783, 0
        %5789 = vmatprep.subr.mxu0 0.0
        %5790 = vmatpush1.msra.mxu0 0.0
        %5791 = vmatprep.subr.mxu0 0.0
        %5792 = vmatpush1.msra.mxu0 0.0
        %5793 = vmatprep.subr.mxu0 0.0
        %5794 = vmatpush1.msra.mxu0 0.0
        %5795 = vmatprep.subr.mxu0 0.0
        %5796 = vmatpush1.msra.mxu0 0.0
        %5797 = vmatprep.subr.mxu0 0.0
        %5798 = vmatpush1.msra.mxu0 0.0
        %5799 = vmatprep.subr.mxu0 0.0
        %5800 = vmatpush1.msra.mxu0 0.0
        %5801 = vmatprep.subr.mxu0 0.0
        %5802 = vmatpush1.msra.mxu0 0.0
        %5803 = vmatprep.subr.mxu0 0.0
        %5804 = vmatpush1.msra.mxu0 0.0
        %5805 = vmatprep.subr.mxu0 0.0
        %5806 = vmatpush1.msra.mxu0 0.0
        %5807 = vmatprep.subr.mxu0 0.0
        %5808 = vmatpush1.msra.mxu0 0.0
        %5809 = vmatprep.subr.mxu0 0.0
        %5810 = vmatpush1.msra.mxu0 0.0
        %5811 = vmatprep.subr.mxu0 0.0
        %5812 = vmatpush1.msra.mxu0 0.0
        %5813 = vmatprep.subr.mxu0 0.0
        %5814 = vmatpush1.msra.mxu0 0.0
        %5815 = vmatprep.subr.mxu0 0.0
        %5816 = vmatpush1.msra.mxu0 0.0
        %5817 = vmatprep.subr.mxu0 0.0
        %5818 = vmatpush1.msra.mxu0 0.0
        %5819 = vmatprep.subr.mxu0 0.0
        %5820 = vmatpush1.msra.mxu0 %v5787
        %5821 = vmatprep.subr.mxu0 0.0
        %5822 = vmatpush2.msra.mxu0 0.0
        %5823 = vmatprep.subr.mxu0 0.0
        %5824 = vmatpush2.msra.mxu0 0.0
        %5825 = vmatprep.subr.mxu0 0.0
        %5826 = vmatpush2.msra.mxu0 0.0
        %5827 = vmatprep.subr.mxu0 0.0
        %5828 = vmatpush2.msra.mxu0 0.0
        %5829 = vmatprep.subr.mxu0 0.0
        %5830 = vmatpush2.msra.mxu0 0.0
        %5831 = vmatprep.subr.mxu0 0.0
        %5832 = vmatpush2.msra.mxu0 0.0
        %5833 = vmatprep.subr.mxu0 0.0
        %5834 = vmatpush2.msra.mxu0 0.0
        %5835 = vmatprep.subr.mxu0 0.0
        %5836 = vmatpush2.msra.mxu0 0.0
        %5837 = vmatprep.subr.mxu0 0.0
        %5838 = vmatpush2.msra.mxu0 0.0
        %5839 = vmatprep.subr.mxu0 0.0
        %5840 = vmatpush2.msra.mxu0 0.0
        %5841 = vmatprep.subr.mxu0 0.0
        %5842 = vmatpush2.msra.mxu0 0.0
        %5843 = vmatprep.subr.mxu0 0.0
        %5844 = vmatpush2.msra.mxu0 0.0
        %5845 = vmatprep.subr.mxu0 0.0
        %5846 = vmatpush2.msra.mxu0 0.0
        %5847 = vmatprep.subr.mxu0 0.0
        %5848 = vmatpush2.msra.mxu0 0.0
        %5849 = vmatprep.subr.mxu0 0.0
        %5850 = vmatpush2.msra.mxu0 0.0
        %5851 = vmatprep.subr.mxu0 0.0
        %5852 = vmatpush2.msra.mxu0 0.0
        %5853 = vmatprep.mubr.f32.mxu0 0.0
        %5854 = vmatmul.mubr.f32.gmra.mxu0 %v5785
        %v5855 = vpop.f32.mrf.mxu0
        %v5856 = vadd.f32 0.0, %v5855
        %v5857 = vpop.f32.mrf.mxu0
        %5858 = vdwg.mxu0
        %5859 = vrot.lane.b32.xlu0 %v4092, 48
        %v5860 = vpop.permute.xlu0 %5859
        %v5862 = vsel %vm1022, %v5779, 0
        %v5864 = vsel %vm1026, %v5860, 0
        %5866 = vmatprep.subr.mxu0 0.0
        %5867 = vmatpush1.msra.mxu0 0.0
        %5868 = vmatprep.subr.mxu0 0.0
        %5869 = vmatpush1.msra.mxu0 0.0
        %5870 = vmatprep.subr.mxu0 0.0
        %5871 = vmatpush1.msra.mxu0 0.0
        %5872 = vmatprep.subr.mxu0 0.0
        %5873 = vmatpush1.msra.mxu0 0.0
        %5874 = vmatprep.subr.mxu0 0.0
        %5875 = vmatpush1.msra.mxu0 0.0
        %5876 = vmatprep.subr.mxu0 0.0
        %5877 = vmatpush1.msra.mxu0 0.0
        %5878 = vmatprep.subr.mxu0 0.0
        %5879 = vmatpush1.msra.mxu0 0.0
        %5880 = vmatprep.subr.mxu0 0.0
        %5881 = vmatpush1.msra.mxu0 0.0
        %5882 = vmatprep.subr.mxu0 0.0
        %5883 = vmatpush1.msra.mxu0 0.0
        %5884 = vmatprep.subr.mxu0 0.0
        %5885 = vmatpush1.msra.mxu0 0.0
        %5886 = vmatprep.subr.mxu0 0.0
        %5887 = vmatpush1.msra.mxu0 0.0
        %5888 = vmatprep.subr.mxu0 0.0
        %5889 = vmatpush1.msra.mxu0 0.0
        %5890 = vmatprep.subr.mxu0 0.0
        %5891 = vmatpush1.msra.mxu0 0.0
        %5892 = vmatprep.subr.mxu0 0.0
        %5893 = vmatpush1.msra.mxu0 0.0
        %5894 = vmatprep.subr.mxu0 0.0
        %5895 = vmatpush1.msra.mxu0 0.0
        %5896 = vmatprep.subr.mxu0 0.0
        %5897 = vmatpush1.msra.mxu0 %v5864
        %5898 = vmatprep.subr.mxu0 0.0
        %5899 = vmatpush2.msra.mxu0 0.0
        %5900 = vmatprep.subr.mxu0 0.0
        %5901 = vmatpush2.msra.mxu0 0.0
        %5902 = vmatprep.subr.mxu0 0.0
        %5903 = vmatpush2.msra.mxu0 0.0
        %5904 = vmatprep.subr.mxu0 0.0
        %5905 = vmatpush2.msra.mxu0 0.0
        %5906 = vmatprep.subr.mxu0 0.0
        %5907 = vmatpush2.msra.mxu0 0.0
        %5908 = vmatprep.subr.mxu0 0.0
        %5909 = vmatpush2.msra.mxu0 0.0
        %5910 = vmatprep.subr.mxu0 0.0
        %5911 = vmatpush2.msra.mxu0 0.0
        %5912 = vmatprep.subr.mxu0 0.0
        %5913 = vmatpush2.msra.mxu0 0.0
        %5914 = vmatprep.subr.mxu0 0.0
        %5915 = vmatpush2.msra.mxu0 0.0
        %5916 = vmatprep.subr.mxu0 0.0
        %5917 = vmatpush2.msra.mxu0 0.0
        %5918 = vmatprep.subr.mxu0 0.0
        %5919 = vmatpush2.msra.mxu0 0.0
        %5920 = vmatprep.subr.mxu0 0.0
        %5921 = vmatpush2.msra.mxu0 0.0
        %5922 = vmatprep.subr.mxu0 0.0
        %5923 = vmatpush2.msra.mxu0 0.0
        %5924 = vmatprep.subr.mxu0 0.0
        %5925 = vmatpush2.msra.mxu0 0.0
        %5926 = vmatprep.subr.mxu0 0.0
        %5927 = vmatpush2.msra.mxu0 0.0
        %5928 = vmatprep.subr.mxu0 0.0
        %5929 = vmatpush2.msra.mxu0 0.0
        %5930 = vmatprep.mubr.f32.mxu0 0.0
        %5931 = vmatmul.mubr.f32.gmra.mxu0 %v5862
        %v5932 = vpop.f32.mrf.mxu0
        %v5933 = vadd.f32 0.0, %v5932
        %v5934 = vpop.f32.mrf.mxu0
        %5935 = vdwg.mxu0
        %5936 = vrot.lane.b32.xlu0 %v4087, 48
        %v5937 = vpop.permute.xlu0 %5936
        %v5939 = vsel %vm1022, %v5780, 0
        %v5941 = vsel %vm1026, %v5937, 0
        %5943 = vmatprep.subr.mxu0 0.0
        %5944 = vmatpush1.msra.mxu0 0.0
        %5945 = vmatprep.subr.mxu0 0.0
        %5946 = vmatpush1.msra.mxu0 0.0
        %5947 = vmatprep.subr.mxu0 0.0
        %5948 = vmatpush1.msra.mxu0 0.0
        %5949 = vmatprep.subr.mxu0 0.0
        %5950 = vmatpush1.msra.mxu0 0.0
        %5951 = vmatprep.subr.mxu0 0.0
        %5952 = vmatpush1.msra.mxu0 0.0
        %5953 = vmatprep.subr.mxu0 0.0
        %5954 = vmatpush1.msra.mxu0 0.0
        %5955 = vmatprep.subr.mxu0 0.0
        %5956 = vmatpush1.msra.mxu0 0.0
        %5957 = vmatprep.subr.mxu0 0.0
        %5958 = vmatpush1.msra.mxu0 0.0
        %5959 = vmatprep.subr.mxu0 0.0
        %5960 = vmatpush1.msra.mxu0 0.0
        %5961 = vmatprep.subr.mxu0 0.0
        %5962 = vmatpush1.msra.mxu0 0.0
        %5963 = vmatprep.subr.mxu0 0.0
        %5964 = vmatpush1.msra.mxu0 0.0
        %5965 = vmatprep.subr.mxu0 0.0
        %5966 = vmatpush1.msra.mxu0 0.0
        %5967 = vmatprep.subr.mxu0 0.0
        %5968 = vmatpush1.msra.mxu0 0.0
        %5969 = vmatprep.subr.mxu0 0.0
        %5970 = vmatpush1.msra.mxu0 0.0
        %5971 = vmatprep.subr.mxu0 0.0
        %5972 = vmatpush1.msra.mxu0 0.0
        %5973 = vmatprep.subr.mxu0 0.0
        %5974 = vmatpush1.msra.mxu0 %v5941
        %5975 = vmatprep.subr.mxu0 0.0
        %5976 = vmatpush2.msra.mxu0 0.0
        %5977 = vmatprep.subr.mxu0 0.0
        %5978 = vmatpush2.msra.mxu0 0.0
        %5979 = vmatprep.subr.mxu0 0.0
        %5980 = vmatpush2.msra.mxu0 0.0
        %5981 = vmatprep.subr.mxu0 0.0
        %5982 = vmatpush2.msra.mxu0 0.0
        %5983 = vmatprep.subr.mxu0 0.0
        %5984 = vmatpush2.msra.mxu0 0.0
        %5985 = vmatprep.subr.mxu0 0.0
        %5986 = vmatpush2.msra.mxu0 0.0
        %5987 = vmatprep.subr.mxu0 0.0
        %5988 = vmatpush2.msra.mxu0 0.0
        %5989 = vmatprep.subr.mxu0 0.0
        %5990 = vmatpush2.msra.mxu0 0.0
        %5991 = vmatprep.subr.mxu0 0.0
        %5992 = vmatpush2.msra.mxu0 0.0
        %5993 = vmatprep.subr.mxu0 0.0
        %5994 = vmatpush2.msra.mxu0 0.0
        %5995 = vmatprep.subr.mxu0 0.0
        %5996 = vmatpush2.msra.mxu0 0.0
        %5997 = vmatprep.subr.mxu0 0.0
        %5998 = vmatpush2.msra.mxu0 0.0
        %5999 = vmatprep.subr.mxu0 0.0
        %6000 = vmatpush2.msra.mxu0 0.0
        %6001 = vmatprep.subr.mxu0 0.0
        %6002 = vmatpush2.msra.mxu0 0.0
        %6003 = vmatprep.subr.mxu0 0.0
        %6004 = vmatpush2.msra.mxu0 0.0
        %6005 = vmatprep.subr.mxu0 0.0
        %6006 = vmatpush2.msra.mxu0 0.0
        %6007 = vmatprep.mubr.f32.mxu0 0.0
        %6008 = vmatmul.mubr.f32.gmra.mxu0 %v5939
        %v6009 = vpop.f32.mrf.mxu0
        %v6010 = vadd.f32 0.0, %v6009
        %v6011 = vpop.f32.mrf.mxu0
        %6012 = vdwg.mxu0
        %6013 = vrot.lane.b32.xlu0 %v4093, 48
        %v6014 = vpop.permute.xlu0 %6013
        %v6016 = vsel %vm1022, %v5781, 0
        %v6018 = vsel %vm1026, %v6014, 0
        %6020 = vmatprep.subr.mxu0 0.0
        %6021 = vmatpush1.msra.mxu0 0.0
        %6022 = vmatprep.subr.mxu0 0.0
        %6023 = vmatpush1.msra.mxu0 0.0
        %6024 = vmatprep.subr.mxu0 0.0
        %6025 = vmatpush1.msra.mxu0 0.0
        %6026 = vmatprep.subr.mxu0 0.0
        %6027 = vmatpush1.msra.mxu0 0.0
        %6028 = vmatprep.subr.mxu0 0.0
        %6029 = vmatpush1.msra.mxu0 0.0
        %6030 = vmatprep.subr.mxu0 0.0
        %6031 = vmatpush1.msra.mxu0 0.0
        %6032 = vmatprep.subr.mxu0 0.0
        %6033 = vmatpush1.msra.mxu0 0.0
        %6034 = vmatprep.subr.mxu0 0.0
        %6035 = vmatpush1.msra.mxu0 0.0
        %6036 = vmatprep.subr.mxu0 0.0
        %6037 = vmatpush1.msra.mxu0 0.0
        %6038 = vmatprep.subr.mxu0 0.0
        %6039 = vmatpush1.msra.mxu0 0.0
        %6040 = vmatprep.subr.mxu0 0.0
        %6041 = vmatpush1.msra.mxu0 0.0
        %6042 = vmatprep.subr.mxu0 0.0
        %6043 = vmatpush1.msra.mxu0 0.0
        %6044 = vmatprep.subr.mxu0 0.0
        %6045 = vmatpush1.msra.mxu0 0.0
        %6046 = vmatprep.subr.mxu0 0.0
        %6047 = vmatpush1.msra.mxu0 0.0
        %6048 = vmatprep.subr.mxu0 0.0
        %6049 = vmatpush1.msra.mxu0 0.0
        %6050 = vmatprep.subr.mxu0 0.0
        %6051 = vmatpush1.msra.mxu0 %v6018
        %6052 = vmatprep.subr.mxu0 0.0
        %6053 = vmatpush2.msra.mxu0 0.0
        %6054 = vmatprep.subr.mxu0 0.0
        %6055 = vmatpush2.msra.mxu0 0.0
        %6056 = vmatprep.subr.mxu0 0.0
        %6057 = vmatpush2.msra.mxu0 0.0
        %6058 = vmatprep.subr.mxu0 0.0
        %6059 = vmatpush2.msra.mxu0 0.0
        %6060 = vmatprep.subr.mxu0 0.0
        %6061 = vmatpush2.msra.mxu0 0.0
        %6062 = vmatprep.subr.mxu0 0.0
        %6063 = vmatpush2.msra.mxu0 0.0
        %6064 = vmatprep.subr.mxu0 0.0
        %6065 = vmatpush2.msra.mxu0 0.0
        %6066 = vmatprep.subr.mxu0 0.0
        %6067 = vmatpush2.msra.mxu0 0.0
        %6068 = vmatprep.subr.mxu0 0.0
        %6069 = vmatpush2.msra.mxu0 0.0
        %6070 = vmatprep.subr.mxu0 0.0
        %6071 = vmatpush2.msra.mxu0 0.0
        %6072 = vmatprep.subr.mxu0 0.0
        %6073 = vmatpush2.msra.mxu0 0.0
        %6074 = vmatprep.subr.mxu0 0.0
        %6075 = vmatpush2.msra.mxu0 0.0
        %6076 = vmatprep.subr.mxu0 0.0
        %6077 = vmatpush2.msra.mxu0 0.0
        %6078 = vmatprep.subr.mxu0 0.0
        %6079 = vmatpush2.msra.mxu0 0.0
        %6080 = vmatprep.subr.mxu0 0.0
        %6081 = vmatpush2.msra.mxu0 0.0
        %6082 = vmatprep.subr.mxu0 0.0
        %6083 = vmatpush2.msra.mxu0 0.0
        %6084 = vmatprep.mubr.f32.mxu0 0.0
        %6085 = vmatmul.mubr.f32.gmra.mxu0 %v6016
        %v6086 = vpop.f32.mrf.mxu0
        %v6087 = vadd.f32 0.0, %v6086
        %v6088 = vpop.f32.mrf.mxu0
        %6089 = vdwg.mxu0
        %6090 = vrot.lane.b32.xlu0 %v4082, 104
        %v6091 = vpop.permute.xlu0 %6090
        %6092 = vrot.lane.b32.xlu0 %v4082, 72
        %v6093 = vpop.permute.xlu0 %6092
        %v6094 = vsel %vm668, %v6091, 0
        %v6096 = vsel %vm668, %v6093, 0
        %6098 = vmatprep.subr.mxu0 0.0
        %6099 = vmatpush1.xpose.msra.mxu0 0.0
        %6100 = vmatprep.subr.mxu0 0.0
        %6101 = vmatpush1.xpose.msra.mxu0 0.0
        %6102 = vmatprep.subr.mxu0 0.0
        %6103 = vmatpush1.xpose.msra.mxu0 0.0
        %6104 = vmatprep.subr.mxu0 0.0
        %6105 = vmatpush1.xpose.msra.mxu0 0.0
        %6106 = vmatprep.subr.mxu0 0.0
        %6107 = vmatpush1.xpose.msra.mxu0 0.0
        %6108 = vmatprep.subr.mxu0 0.0
        %6109 = vmatpush1.xpose.msra.mxu0 0.0
        %6110 = vmatprep.subr.mxu0 0.0
        %6111 = vmatpush1.xpose.msra.mxu0 0.0
        %6112 = vmatprep.subr.mxu0 0.0
        %6113 = vmatpush1.xpose.msra.mxu0 0.0
        %6114 = vmatprep.subr.mxu0 0.0
        %6115 = vmatpush1.xpose.msra.mxu0 0.0
        %6116 = vmatprep.subr.mxu0 0.0
        %6117 = vmatpush1.xpose.msra.mxu0 0.0
        %6118 = vmatprep.subr.mxu0 0.0
        %6119 = vmatpush1.xpose.msra.mxu0 0.0
        %6120 = vmatprep.subr.mxu0 0.0
        %6121 = vmatpush1.xpose.msra.mxu0 0.0
        %6122 = vmatprep.subr.mxu0 0.0
        %6123 = vmatpush1.xpose.msra.mxu0 0.0
        %6124 = vmatprep.subr.mxu0 0.0
        %6125 = vmatpush1.xpose.msra.mxu0 0.0
        %6126 = vmatprep.subr.mxu0 0.0
        %6127 = vmatpush1.xpose.msra.mxu0 0.0
        %6128 = vmatprep.subr.mxu0 0.0
        %6129 = vmatpush1.xpose.msra.mxu0 %v6096
        %6130 = vmatprep.subr.mxu0 0.0
        %6131 = vmatpush2.xpose.msra.mxu0 0.0
        %6132 = vmatprep.subr.mxu0 0.0
        %6133 = vmatpush2.xpose.msra.mxu0 0.0
        %6134 = vmatprep.subr.mxu0 0.0
        %6135 = vmatpush2.xpose.msra.mxu0 0.0
        %6136 = vmatprep.subr.mxu0 0.0
        %6137 = vmatpush2.xpose.msra.mxu0 0.0
        %6138 = vmatprep.subr.mxu0 0.0
        %6139 = vmatpush2.xpose.msra.mxu0 0.0
        %6140 = vmatprep.subr.mxu0 0.0
        %6141 = vmatpush2.xpose.msra.mxu0 0.0
        %6142 = vmatprep.subr.mxu0 0.0
        %6143 = vmatpush2.xpose.msra.mxu0 0.0
        %6144 = vmatprep.subr.mxu0 0.0
        %6145 = vmatpush2.xpose.msra.mxu0 0.0
        %6146 = vmatprep.subr.mxu0 0.0
        %6147 = vmatpush2.xpose.msra.mxu0 0.0
        %6148 = vmatprep.subr.mxu0 0.0
        %6149 = vmatpush2.xpose.msra.mxu0 0.0
        %6150 = vmatprep.subr.mxu0 0.0
        %6151 = vmatpush2.xpose.msra.mxu0 0.0
        %6152 = vmatprep.subr.mxu0 0.0
        %6153 = vmatpush2.xpose.msra.mxu0 0.0
        %6154 = vmatprep.subr.mxu0 0.0
        %6155 = vmatpush2.xpose.msra.mxu0 0.0
        %6156 = vmatprep.subr.mxu0 0.0
        %6157 = vmatpush2.xpose.msra.mxu0 0.0
        %6158 = vmatprep.subr.mxu0 0.0
        %6159 = vmatpush2.xpose.msra.mxu0 0.0
        %6160 = vmatprep.subr.mxu0 0.0
        %6161 = vmatpush2.xpose.msra.mxu0 0.0
        %6162 = vmatprep.mubr.f32.mxu0 0.0
        %6163 = vmatmul.mubr.f32.gmra.mxu0 %v6094
        %v6164 = vpop.f32.mrf.mxu0
        %v6165 = vadd.f32 0.0, %v6164
        %v6166 = vpop.f32.mrf.mxu0
        %6167 = vdwg.mxu0
        %6168 = vrot.lane.b32.xlu0 %v4092, 104
        %v6169 = vpop.permute.xlu0 %6168
        %6170 = vrot.lane.b32.xlu0 %v4092, 72
        %v6171 = vpop.permute.xlu0 %6170
        %v6172 = vsel %vm668, %v6169, 0
        %v6174 = vsel %vm668, %v6171, 0
        %6176 = vmatprep.subr.mxu0 0.0
        %6177 = vmatpush1.xpose.msra.mxu0 0.0
        %6178 = vmatprep.subr.mxu0 0.0
        %6179 = vmatpush1.xpose.msra.mxu0 0.0
        %6180 = vmatprep.subr.mxu0 0.0
        %6181 = vmatpush1.xpose.msra.mxu0 0.0
        %6182 = vmatprep.subr.mxu0 0.0
        %6183 = vmatpush1.xpose.msra.mxu0 0.0
        %6184 = vmatprep.subr.mxu0 0.0
        %6185 = vmatpush1.xpose.msra.mxu0 0.0
        %6186 = vmatprep.subr.mxu0 0.0
        %6187 = vmatpush1.xpose.msra.mxu0 0.0
        %6188 = vmatprep.subr.mxu0 0.0
        %6189 = vmatpush1.xpose.msra.mxu0 0.0
        %6190 = vmatprep.subr.mxu0 0.0
        %6191 = vmatpush1.xpose.msra.mxu0 0.0
        %6192 = vmatprep.subr.mxu0 0.0
        %6193 = vmatpush1.xpose.msra.mxu0 0.0
        %6194 = vmatprep.subr.mxu0 0.0
        %6195 = vmatpush1.xpose.msra.mxu0 0.0
        %6196 = vmatprep.subr.mxu0 0.0
        %6197 = vmatpush1.xpose.msra.mxu0 0.0
        %6198 = vmatprep.subr.mxu0 0.0
        %6199 = vmatpush1.xpose.msra.mxu0 0.0
        %6200 = vmatprep.subr.mxu0 0.0
        %6201 = vmatpush1.xpose.msra.mxu0 0.0
        %6202 = vmatprep.subr.mxu0 0.0
        %6203 = vmatpush1.xpose.msra.mxu0 0.0
        %6204 = vmatprep.subr.mxu0 0.0
        %6205 = vmatpush1.xpose.msra.mxu0 0.0
        %6206 = vmatprep.subr.mxu0 0.0
        %6207 = vmatpush1.xpose.msra.mxu0 %v6174
        %6208 = vmatprep.subr.mxu0 0.0
        %6209 = vmatpush2.xpose.msra.mxu0 0.0
        %6210 = vmatprep.subr.mxu0 0.0
        %6211 = vmatpush2.xpose.msra.mxu0 0.0
        %6212 = vmatprep.subr.mxu0 0.0
        %6213 = vmatpush2.xpose.msra.mxu0 0.0
        %6214 = vmatprep.subr.mxu0 0.0
        %6215 = vmatpush2.xpose.msra.mxu0 0.0
        %6216 = vmatprep.subr.mxu0 0.0
        %6217 = vmatpush2.xpose.msra.mxu0 0.0
        %6218 = vmatprep.subr.mxu0 0.0
        %6219 = vmatpush2.xpose.msra.mxu0 0.0
        %6220 = vmatprep.subr.mxu0 0.0
        %6221 = vmatpush2.xpose.msra.mxu0 0.0
        %6222 = vmatprep.subr.mxu0 0.0
        %6223 = vmatpush2.xpose.msra.mxu0 0.0
        %6224 = vmatprep.subr.mxu0 0.0
        %6225 = vmatpush2.xpose.msra.mxu0 0.0
        %6226 = vmatprep.subr.mxu0 0.0
        %6227 = vmatpush2.xpose.msra.mxu0 0.0
        %6228 = vmatprep.subr.mxu0 0.0
        %6229 = vmatpush2.xpose.msra.mxu0 0.0
        %6230 = vmatprep.subr.mxu0 0.0
        %6231 = vmatpush2.xpose.msra.mxu0 0.0
        %6232 = vmatprep.subr.mxu0 0.0
        %6233 = vmatpush2.xpose.msra.mxu0 0.0
        %6234 = vmatprep.subr.mxu0 0.0
        %6235 = vmatpush2.xpose.msra.mxu0 0.0
        %6236 = vmatprep.subr.mxu0 0.0
        %6237 = vmatpush2.xpose.msra.mxu0 0.0
        %6238 = vmatprep.subr.mxu0 0.0
        %6239 = vmatpush2.xpose.msra.mxu0 0.0
        %6240 = vmatprep.mubr.f32.mxu0 0.0
        %6241 = vmatmul.mubr.f32.gmra.mxu0 %v6172
        %v6242 = vpop.f32.mrf.mxu0
        %v6243 = vadd.f32 0.0, %v6242
        %v6244 = vpop.f32.mrf.mxu0
        %6245 = vdwg.mxu0
        %6246 = vrot.lane.b32.xlu0 %v4087, 104
        %v6247 = vpop.permute.xlu0 %6246
        %6248 = vrot.lane.b32.xlu0 %v4087, 72
        %v6249 = vpop.permute.xlu0 %6248
        %v6250 = vsel %vm668, %v6247, 0
        %v6252 = vsel %vm668, %v6249, 0
        %6254 = vmatprep.subr.mxu0 0.0
        %6255 = vmatpush1.xpose.msra.mxu0 0.0
        %6256 = vmatprep.subr.mxu0 0.0
        %6257 = vmatpush1.xpose.msra.mxu0 0.0
        %6258 = vmatprep.subr.mxu0 0.0
        %6259 = vmatpush1.xpose.msra.mxu0 0.0
        %6260 = vmatprep.subr.mxu0 0.0
        %6261 = vmatpush1.xpose.msra.mxu0 0.0
        %6262 = vmatprep.subr.mxu0 0.0
        %6263 = vmatpush1.xpose.msra.mxu0 0.0
        %6264 = vmatprep.subr.mxu0 0.0
        %6265 = vmatpush1.xpose.msra.mxu0 0.0
        %6266 = vmatprep.subr.mxu0 0.0
        %6267 = vmatpush1.xpose.msra.mxu0 0.0
        %6268 = vmatprep.subr.mxu0 0.0
        %6269 = vmatpush1.xpose.msra.mxu0 0.0
        %6270 = vmatprep.subr.mxu0 0.0
        %6271 = vmatpush1.xpose.msra.mxu0 0.0
        %6272 = vmatprep.subr.mxu0 0.0
        %6273 = vmatpush1.xpose.msra.mxu0 0.0
        %6274 = vmatprep.subr.mxu0 0.0
        %6275 = vmatpush1.xpose.msra.mxu0 0.0
        %6276 = vmatprep.subr.mxu0 0.0
        %6277 = vmatpush1.xpose.msra.mxu0 0.0
        %6278 = vmatprep.subr.mxu0 0.0
        %6279 = vmatpush1.xpose.msra.mxu0 0.0
        %6280 = vmatprep.subr.mxu0 0.0
        %6281 = vmatpush1.xpose.msra.mxu0 0.0
        %6282 = vmatprep.subr.mxu0 0.0
        %6283 = vmatpush1.xpose.msra.mxu0 0.0
        %6284 = vmatprep.subr.mxu0 0.0
        %6285 = vmatpush1.xpose.msra.mxu0 %v6252
        %6286 = vmatprep.subr.mxu0 0.0
        %6287 = vmatpush2.xpose.msra.mxu0 0.0
        %6288 = vmatprep.subr.mxu0 0.0
        %6289 = vmatpush2.xpose.msra.mxu0 0.0
        %6290 = vmatprep.subr.mxu0 0.0
        %6291 = vmatpush2.xpose.msra.mxu0 0.0
        %6292 = vmatprep.subr.mxu0 0.0
        %6293 = vmatpush2.xpose.msra.mxu0 0.0
        %6294 = vmatprep.subr.mxu0 0.0
        %6295 = vmatpush2.xpose.msra.mxu0 0.0
        %6296 = vmatprep.subr.mxu0 0.0
        %6297 = vmatpush2.xpose.msra.mxu0 0.0
        %6298 = vmatprep.subr.mxu0 0.0
        %6299 = vmatpush2.xpose.msra.mxu0 0.0
        %6300 = vmatprep.subr.mxu0 0.0
        %6301 = vmatpush2.xpose.msra.mxu0 0.0
        %6302 = vmatprep.subr.mxu0 0.0
        %6303 = vmatpush2.xpose.msra.mxu0 0.0
        %6304 = vmatprep.subr.mxu0 0.0
        %6305 = vmatpush2.xpose.msra.mxu0 0.0
        %6306 = vmatprep.subr.mxu0 0.0
        %6307 = vmatpush2.xpose.msra.mxu0 0.0
        %6308 = vmatprep.subr.mxu0 0.0
        %6309 = vmatpush2.xpose.msra.mxu0 0.0
        %6310 = vmatprep.subr.mxu0 0.0
        %6311 = vmatpush2.xpose.msra.mxu0 0.0
        %6312 = vmatprep.subr.mxu0 0.0
        %6313 = vmatpush2.xpose.msra.mxu0 0.0
        %6314 = vmatprep.subr.mxu0 0.0
        %6315 = vmatpush2.xpose.msra.mxu0 0.0
        %6316 = vmatprep.subr.mxu0 0.0
        %6317 = vmatpush2.xpose.msra.mxu0 0.0
        %6318 = vmatprep.mubr.f32.mxu0 0.0
        %6319 = vmatmul.mubr.f32.gmra.mxu0 %v6250
        %v6320 = vpop.f32.mrf.mxu0
        %v6321 = vadd.f32 0.0, %v6320
        %v6322 = vpop.f32.mrf.mxu0
        %6323 = vdwg.mxu0
        %6324 = vrot.lane.b32.xlu0 %v4093, 104
        %v6325 = vpop.permute.xlu0 %6324
        %6326 = vrot.lane.b32.xlu0 %v4093, 72
        %v6327 = vpop.permute.xlu0 %6326
        %v6328 = vsel %vm668, %v6325, 0
        %v6330 = vsel %vm668, %v6327, 0
        %6332 = vmatprep.subr.mxu0 0.0
        %6333 = vmatpush1.xpose.msra.mxu0 0.0
        %6334 = vmatprep.subr.mxu0 0.0
        %6335 = vmatpush1.xpose.msra.mxu0 0.0
        %6336 = vmatprep.subr.mxu0 0.0
        %6337 = vmatpush1.xpose.msra.mxu0 0.0
        %6338 = vmatprep.subr.mxu0 0.0
        %6339 = vmatpush1.xpose.msra.mxu0 0.0
        %6340 = vmatprep.subr.mxu0 0.0
        %6341 = vmatpush1.xpose.msra.mxu0 0.0
        %6342 = vmatprep.subr.mxu0 0.0
        %6343 = vmatpush1.xpose.msra.mxu0 0.0
        %6344 = vmatprep.subr.mxu0 0.0
        %6345 = vmatpush1.xpose.msra.mxu0 0.0
        %6346 = vmatprep.subr.mxu0 0.0
        %6347 = vmatpush1.xpose.msra.mxu0 0.0
        %6348 = vmatprep.subr.mxu0 0.0
        %6349 = vmatpush1.xpose.msra.mxu0 0.0
        %6350 = vmatprep.subr.mxu0 0.0
        %6351 = vmatpush1.xpose.msra.mxu0 0.0
        %6352 = vmatprep.subr.mxu0 0.0
        %6353 = vmatpush1.xpose.msra.mxu0 0.0
        %6354 = vmatprep.subr.mxu0 0.0
        %6355 = vmatpush1.xpose.msra.mxu0 0.0
        %6356 = vmatprep.subr.mxu0 0.0
        %6357 = vmatpush1.xpose.msra.mxu0 0.0
        %6358 = vmatprep.subr.mxu0 0.0
        %6359 = vmatpush1.xpose.msra.mxu0 0.0
        %6360 = vmatprep.subr.mxu0 0.0
        %6361 = vmatpush1.xpose.msra.mxu0 0.0
        %6362 = vmatprep.subr.mxu0 0.0
        %6363 = vmatpush1.xpose.msra.mxu0 %v6330
        %6364 = vmatprep.subr.mxu0 0.0
        %6365 = vmatpush2.xpose.msra.mxu0 0.0
        %6366 = vmatprep.subr.mxu0 0.0
        %6367 = vmatpush2.xpose.msra.mxu0 0.0
        %6368 = vmatprep.subr.mxu0 0.0
        %6369 = vmatpush2.xpose.msra.mxu0 0.0
        %6370 = vmatprep.subr.mxu0 0.0
        %6371 = vmatpush2.xpose.msra.mxu0 0.0
        %6372 = vmatprep.subr.mxu0 0.0
        %6373 = vmatpush2.xpose.msra.mxu0 0.0
        %6374 = vmatprep.subr.mxu0 0.0
        %6375 = vmatpush2.xpose.msra.mxu0 0.0
        %6376 = vmatprep.subr.mxu0 0.0
        %6377 = vmatpush2.xpose.msra.mxu0 0.0
        %6378 = vmatprep.subr.mxu0 0.0
        %6379 = vmatpush2.xpose.msra.mxu0 0.0
        %6380 = vmatprep.subr.mxu0 0.0
        %6381 = vmatpush2.xpose.msra.mxu0 0.0
        %6382 = vmatprep.subr.mxu0 0.0
        %6383 = vmatpush2.xpose.msra.mxu0 0.0
        %6384 = vmatprep.subr.mxu0 0.0
        %6385 = vmatpush2.xpose.msra.mxu0 0.0
        %6386 = vmatprep.subr.mxu0 0.0
        %6387 = vmatpush2.xpose.msra.mxu0 0.0
        %6388 = vmatprep.subr.mxu0 0.0
        %6389 = vmatpush2.xpose.msra.mxu0 0.0
        %6390 = vmatprep.subr.mxu0 0.0
        %6391 = vmatpush2.xpose.msra.mxu0 0.0
        %6392 = vmatprep.subr.mxu0 0.0
        %6393 = vmatpush2.xpose.msra.mxu0 0.0
        %6394 = vmatprep.subr.mxu0 0.0
        %6395 = vmatpush2.xpose.msra.mxu0 0.0
        %6396 = vmatprep.mubr.f32.mxu0 0.0
        %6397 = vmatmul.mubr.f32.gmra.mxu0 %v6328
        %v6398 = vpop.f32.mrf.mxu0
        %v6399 = vadd.f32 0.0, %v6398
        %v6400 = vpop.f32.mrf.mxu0
        %6401 = vdwg.mxu0
        %v6402 = vmul.f32 %v6165, 0.35355338
        %v6403 = vmul.f32 %v6243, 0.35355338
        %v6404 = vmul.f32 %v6321, 0.35355338
        %v6405 = vmul.f32 %v6399, 0.35355338
        %v6406 = vsel %vm975, %v6402, -inf
        %6407 = vmax.xlane.f32.xlu0 %v6406
        %v6408 = vpop.xlane.xlu0 %6407
        %v6409 = vsel %vm975, %v6403, -inf
        %6410 = vmax.xlane.f32.xlu0 %v6409
        %v6411 = vpop.xlane.xlu0 %6410
        %v6412 = vsel %vm975, %v6404, -inf
        %6413 = vmax.xlane.f32.xlu0 %v6412
        %v6414 = vpop.xlane.xlu0 %6413
        %v6415 = vsel %vm975, %v6405, -inf
        %6416 = vmax.xlane.f32.xlu0 %v6415
        %v6417 = vpop.xlane.xlu0 %6416
        %v6418 = vsub.f32 %v6402, %v6408
        %v6419 = vsub.f32 %v6403, %v6411
        %v6420 = vsub.f32 %v6404, %v6414
        %v6421 = vsub.f32 %v6405, %v6417
        %v6422 = vmul.f32 %v6418, 1.442695
        %v6423 = vpow.pop %v6422
        %v6424 = vmul.f32 %v6419, 1.442695
        %v6425 = vpow.pop %v6424
        %v6426 = vmul.f32 %v6420, 1.442695
        %v6427 = vpow.pop %v6426
        %v6428 = vmul.f32 %v6421, 1.442695
        %v6429 = vpow.pop %v6428
        %v6430 = vsel %vm975, %v6423, 0.0
        %6431 = vadd.xlane.f32.xlu0 %v6430
        %v6432 = vpop.xlane.xlu0 %6431
        %v6433 = vsel %vm975, %v6425, 0.0
        %6434 = vadd.xlane.f32.xlu0 %v6433
        %v6435 = vpop.xlane.xlu0 %6434
        %v6436 = vsel %vm975, %v6427, 0.0
        %6437 = vadd.xlane.f32.xlu0 %v6436
        %v6438 = vpop.xlane.xlu0 %6437
        %v6439 = vsel %vm975, %v6429, 0.0
        %6440 = vadd.xlane.f32.xlu0 %v6439
        %v6441 = vpop.xlane.xlu0 %6440
        %v6442 = vrcp.pop %v6432
        %v6443 = vrcp.pop %v6435
        %v6444 = vrcp.pop %v6438
        %v6445 = vrcp.pop %v6441
        %v6446 = vmul.f32 %v6423, %v6442
        %v6447 = vmul.f32 %v6425, %v6443
        %v6448 = vmul.f32 %v6427, %v6444
        %v6449 = vmul.f32 %v6429, %v6445
        %6450 = vrot.lane.b32.xlu0 %v4082, 40
        %v6451 = vpop.permute.xlu0 %6450
        %v6453 = vsel %vm1022, %v6446, 0
        %v6455 = vsel %vm1026, %v6451, 0
        %6457 = vmatprep.subr.mxu0 0.0
        %6458 = vmatpush1.msra.mxu0 0.0
        %6459 = vmatprep.subr.mxu0 0.0
        %6460 = vmatpush1.msra.mxu0 0.0
        %6461 = vmatprep.subr.mxu0 0.0
        %6462 = vmatpush1.msra.mxu0 0.0
        %6463 = vmatprep.subr.mxu0 0.0
        %6464 = vmatpush1.msra.mxu0 0.0
        %6465 = vmatprep.subr.mxu0 0.0
        %6466 = vmatpush1.msra.mxu0 0.0
        %6467 = vmatprep.subr.mxu0 0.0
        %6468 = vmatpush1.msra.mxu0 0.0
        %6469 = vmatprep.subr.mxu0 0.0
        %6470 = vmatpush1.msra.mxu0 0.0
        %6471 = vmatprep.subr.mxu0 0.0
        %6472 = vmatpush1.msra.mxu0 0.0
        %6473 = vmatprep.subr.mxu0 0.0
        %6474 = vmatpush1.msra.mxu0 0.0
        %6475 = vmatprep.subr.mxu0 0.0
        %6476 = vmatpush1.msra.mxu0 0.0
        %6477 = vmatprep.subr.mxu0 0.0
        %6478 = vmatpush1.msra.mxu0 0.0
        %6479 = vmatprep.subr.mxu0 0.0
        %6480 = vmatpush1.msra.mxu0 0.0
        %6481 = vmatprep.subr.mxu0 0.0
        %6482 = vmatpush1.msra.mxu0 0.0
        %6483 = vmatprep.subr.mxu0 0.0
        %6484 = vmatpush1.msra.mxu0 0.0
        %6485 = vmatprep.subr.mxu0 0.0
        %6486 = vmatpush1.msra.mxu0 0.0
        %6487 = vmatprep.subr.mxu0 0.0
        %6488 = vmatpush1.msra.mxu0 %v6455
        %6489 = vmatprep.subr.mxu0 0.0
        %6490 = vmatpush2.msra.mxu0 0.0
        %6491 = vmatprep.subr.mxu0 0.0
        %6492 = vmatpush2.msra.mxu0 0.0
        %6493 = vmatprep.subr.mxu0 0.0
        %6494 = vmatpush2.msra.mxu0 0.0
        %6495 = vmatprep.subr.mxu0 0.0
        %6496 = vmatpush2.msra.mxu0 0.0
        %6497 = vmatprep.subr.mxu0 0.0
        %6498 = vmatpush2.msra.mxu0 0.0
        %6499 = vmatprep.subr.mxu0 0.0
        %6500 = vmatpush2.msra.mxu0 0.0
        %6501 = vmatprep.subr.mxu0 0.0
        %6502 = vmatpush2.msra.mxu0 0.0
        %6503 = vmatprep.subr.mxu0 0.0
        %6504 = vmatpush2.msra.mxu0 0.0
        %6505 = vmatprep.subr.mxu0 0.0
        %6506 = vmatpush2.msra.mxu0 0.0
        %6507 = vmatprep.subr.mxu0 0.0
        %6508 = vmatpush2.msra.mxu0 0.0
        %6509 = vmatprep.subr.mxu0 0.0
        %6510 = vmatpush2.msra.mxu0 0.0
        %6511 = vmatprep.subr.mxu0 0.0
        %6512 = vmatpush2.msra.mxu0 0.0
        %6513 = vmatprep.subr.mxu0 0.0
        %6514 = vmatpush2.msra.mxu0 0.0
        %6515 = vmatprep.subr.mxu0 0.0
        %6516 = vmatpush2.msra.mxu0 0.0
        %6517 = vmatprep.subr.mxu0 0.0
        %6518 = vmatpush2.msra.mxu0 0.0
        %6519 = vmatprep.subr.mxu0 0.0
        %6520 = vmatpush2.msra.mxu0 0.0
        %6521 = vmatprep.mubr.f32.mxu0 0.0
        %6522 = vmatmul.mubr.f32.gmra.mxu0 %v6453
        %v6523 = vpop.f32.mrf.mxu0
        %v6524 = vadd.f32 0.0, %v6523
        %v6525 = vpop.f32.mrf.mxu0
        %6526 = vdwg.mxu0
        %6527 = vrot.lane.b32.xlu0 %v4092, 40
        %v6528 = vpop.permute.xlu0 %6527
        %v6530 = vsel %vm1022, %v6447, 0
        %v6532 = vsel %vm1026, %v6528, 0
        %6534 = vmatprep.subr.mxu0 0.0
        %6535 = vmatpush1.msra.mxu0 0.0
        %6536 = vmatprep.subr.mxu0 0.0
        %6537 = vmatpush1.msra.mxu0 0.0
        %6538 = vmatprep.subr.mxu0 0.0
        %6539 = vmatpush1.msra.mxu0 0.0
        %6540 = vmatprep.subr.mxu0 0.0
        %6541 = vmatpush1.msra.mxu0 0.0
        %6542 = vmatprep.subr.mxu0 0.0
        %6543 = vmatpush1.msra.mxu0 0.0
        %6544 = vmatprep.subr.mxu0 0.0
        %6545 = vmatpush1.msra.mxu0 0.0
        %6546 = vmatprep.subr.mxu0 0.0
        %6547 = vmatpush1.msra.mxu0 0.0
        %6548 = vmatprep.subr.mxu0 0.0
        %6549 = vmatpush1.msra.mxu0 0.0
        %6550 = vmatprep.subr.mxu0 0.0
        %6551 = vmatpush1.msra.mxu0 0.0
        %6552 = vmatprep.subr.mxu0 0.0
        %6553 = vmatpush1.msra.mxu0 0.0
        %6554 = vmatprep.subr.mxu0 0.0
        %6555 = vmatpush1.msra.mxu0 0.0
        %6556 = vmatprep.subr.mxu0 0.0
        %6557 = vmatpush1.msra.mxu0 0.0
        %6558 = vmatprep.subr.mxu0 0.0
        %6559 = vmatpush1.msra.mxu0 0.0
        %6560 = vmatprep.subr.mxu0 0.0
        %6561 = vmatpush1.msra.mxu0 0.0
        %6562 = vmatprep.subr.mxu0 0.0
        %6563 = vmatpush1.msra.mxu0 0.0
        %6564 = vmatprep.subr.mxu0 0.0
        %6565 = vmatpush1.msra.mxu0 %v6532
        %6566 = vmatprep.subr.mxu0 0.0
        %6567 = vmatpush2.msra.mxu0 0.0
        %6568 = vmatprep.subr.mxu0 0.0
        %6569 = vmatpush2.msra.mxu0 0.0
        %6570 = vmatprep.subr.mxu0 0.0
        %6571 = vmatpush2.msra.mxu0 0.0
        %6572 = vmatprep.subr.mxu0 0.0
        %6573 = vmatpush2.msra.mxu0 0.0
        %6574 = vmatprep.subr.mxu0 0.0
        %6575 = vmatpush2.msra.mxu0 0.0
        %6576 = vmatprep.subr.mxu0 0.0
        %6577 = vmatpush2.msra.mxu0 0.0
        %6578 = vmatprep.subr.mxu0 0.0
        %6579 = vmatpush2.msra.mxu0 0.0
        %6580 = vmatprep.subr.mxu0 0.0
        %6581 = vmatpush2.msra.mxu0 0.0
        %6582 = vmatprep.subr.mxu0 0.0
        %6583 = vmatpush2.msra.mxu0 0.0
        %6584 = vmatprep.subr.mxu0 0.0
        %6585 = vmatpush2.msra.mxu0 0.0
        %6586 = vmatprep.subr.mxu0 0.0
        %6587 = vmatpush2.msra.mxu0 0.0
        %6588 = vmatprep.subr.mxu0 0.0
        %6589 = vmatpush2.msra.mxu0 0.0
        %6590 = vmatprep.subr.mxu0 0.0
        %6591 = vmatpush2.msra.mxu0 0.0
        %6592 = vmatprep.subr.mxu0 0.0
        %6593 = vmatpush2.msra.mxu0 0.0
        %6594 = vmatprep.subr.mxu0 0.0
        %6595 = vmatpush2.msra.mxu0 0.0
        %6596 = vmatprep.subr.mxu0 0.0
        %6597 = vmatpush2.msra.mxu0 0.0
        %6598 = vmatprep.mubr.f32.mxu0 0.0
        %6599 = vmatmul.mubr.f32.gmra.mxu0 %v6530
        %v6600 = vpop.f32.mrf.mxu0
        %v6601 = vadd.f32 0.0, %v6600
        %v6602 = vpop.f32.mrf.mxu0
        %6603 = vdwg.mxu0
        %6604 = vrot.lane.b32.xlu0 %v4087, 40
        %v6605 = vpop.permute.xlu0 %6604
        %v6607 = vsel %vm1022, %v6448, 0
        %v6609 = vsel %vm1026, %v6605, 0
        %6611 = vmatprep.subr.mxu0 0.0
        %6612 = vmatpush1.msra.mxu0 0.0
        %6613 = vmatprep.subr.mxu0 0.0
        %6614 = vmatpush1.msra.mxu0 0.0
        %6615 = vmatprep.subr.mxu0 0.0
        %6616 = vmatpush1.msra.mxu0 0.0
        %6617 = vmatprep.subr.mxu0 0.0
        %6618 = vmatpush1.msra.mxu0 0.0
        %6619 = vmatprep.subr.mxu0 0.0
        %6620 = vmatpush1.msra.mxu0 0.0
        %6621 = vmatprep.subr.mxu0 0.0
        %6622 = vmatpush1.msra.mxu0 0.0
        %6623 = vmatprep.subr.mxu0 0.0
        %6624 = vmatpush1.msra.mxu0 0.0
        %6625 = vmatprep.subr.mxu0 0.0
        %6626 = vmatpush1.msra.mxu0 0.0
        %6627 = vmatprep.subr.mxu0 0.0
        %6628 = vmatpush1.msra.mxu0 0.0
        %6629 = vmatprep.subr.mxu0 0.0
        %6630 = vmatpush1.msra.mxu0 0.0
        %6631 = vmatprep.subr.mxu0 0.0
        %6632 = vmatpush1.msra.mxu0 0.0
        %6633 = vmatprep.subr.mxu0 0.0
        %6634 = vmatpush1.msra.mxu0 0.0
        %6635 = vmatprep.subr.mxu0 0.0
        %6636 = vmatpush1.msra.mxu0 0.0
        %6637 = vmatprep.subr.mxu0 0.0
        %6638 = vmatpush1.msra.mxu0 0.0
        %6639 = vmatprep.subr.mxu0 0.0
        %6640 = vmatpush1.msra.mxu0 0.0
        %6641 = vmatprep.subr.mxu0 0.0
        %6642 = vmatpush1.msra.mxu0 %v6609
        %6643 = vmatprep.subr.mxu0 0.0
        %6644 = vmatpush2.msra.mxu0 0.0
        %6645 = vmatprep.subr.mxu0 0.0
        %6646 = vmatpush2.msra.mxu0 0.0
        %6647 = vmatprep.subr.mxu0 0.0
        %6648 = vmatpush2.msra.mxu0 0.0
        %6649 = vmatprep.subr.mxu0 0.0
        %6650 = vmatpush2.msra.mxu0 0.0
        %6651 = vmatprep.subr.mxu0 0.0
        %6652 = vmatpush2.msra.mxu0 0.0
        %6653 = vmatprep.subr.mxu0 0.0
        %6654 = vmatpush2.msra.mxu0 0.0
        %6655 = vmatprep.subr.mxu0 0.0
        %6656 = vmatpush2.msra.mxu0 0.0
        %6657 = vmatprep.subr.mxu0 0.0
        %6658 = vmatpush2.msra.mxu0 0.0
        %6659 = vmatprep.subr.mxu0 0.0
        %6660 = vmatpush2.msra.mxu0 0.0
        %6661 = vmatprep.subr.mxu0 0.0
        %6662 = vmatpush2.msra.mxu0 0.0
        %6663 = vmatprep.subr.mxu0 0.0
        %6664 = vmatpush2.msra.mxu0 0.0
        %6665 = vmatprep.subr.mxu0 0.0
        %6666 = vmatpush2.msra.mxu0 0.0
        %6667 = vmatprep.subr.mxu0 0.0
        %6668 = vmatpush2.msra.mxu0 0.0
        %6669 = vmatprep.subr.mxu0 0.0
        %6670 = vmatpush2.msra.mxu0 0.0
        %6671 = vmatprep.subr.mxu0 0.0
        %6672 = vmatpush2.msra.mxu0 0.0
        %6673 = vmatprep.subr.mxu0 0.0
        %6674 = vmatpush2.msra.mxu0 0.0
        %6675 = vmatprep.mubr.f32.mxu0 0.0
        %6676 = vmatmul.mubr.f32.gmra.mxu0 %v6607
        %v6677 = vpop.f32.mrf.mxu0
        %v6678 = vadd.f32 0.0, %v6677
        %v6679 = vpop.f32.mrf.mxu0
        %6680 = vdwg.mxu0
        %6681 = vrot.lane.b32.xlu0 %v4093, 40
        %v6682 = vpop.permute.xlu0 %6681
        %v6684 = vsel %vm1022, %v6449, 0
        %v6686 = vsel %vm1026, %v6682, 0
        %6688 = vmatprep.subr.mxu0 0.0
        %6689 = vmatpush1.msra.mxu0 0.0
        %6690 = vmatprep.subr.mxu0 0.0
        %6691 = vmatpush1.msra.mxu0 0.0
        %6692 = vmatprep.subr.mxu0 0.0
        %6693 = vmatpush1.msra.mxu0 0.0
        %6694 = vmatprep.subr.mxu0 0.0
        %6695 = vmatpush1.msra.mxu0 0.0
        %6696 = vmatprep.subr.mxu0 0.0
        %6697 = vmatpush1.msra.mxu0 0.0
        %6698 = vmatprep.subr.mxu0 0.0
        %6699 = vmatpush1.msra.mxu0 0.0
        %6700 = vmatprep.subr.mxu0 0.0
        %6701 = vmatpush1.msra.mxu0 0.0
        %6702 = vmatprep.subr.mxu0 0.0
        %6703 = vmatpush1.msra.mxu0 0.0
        %6704 = vmatprep.subr.mxu0 0.0
        %6705 = vmatpush1.msra.mxu0 0.0
        %6706 = vmatprep.subr.mxu0 0.0
        %6707 = vmatpush1.msra.mxu0 0.0
        %6708 = vmatprep.subr.mxu0 0.0
        %6709 = vmatpush1.msra.mxu0 0.0
        %6710 = vmatprep.subr.mxu0 0.0
        %6711 = vmatpush1.msra.mxu0 0.0
        %6712 = vmatprep.subr.mxu0 0.0
        %6713 = vmatpush1.msra.mxu0 0.0
        %6714 = vmatprep.subr.mxu0 0.0
        %6715 = vmatpush1.msra.mxu0 0.0
        %6716 = vmatprep.subr.mxu0 0.0
        %6717 = vmatpush1.msra.mxu0 0.0
        %6718 = vmatprep.subr.mxu0 0.0
        %6719 = vmatpush1.msra.mxu0 %v6686
        %6720 = vmatprep.subr.mxu0 0.0
        %6721 = vmatpush2.msra.mxu0 0.0
        %6722 = vmatprep.subr.mxu0 0.0
        %6723 = vmatpush2.msra.mxu0 0.0
        %6724 = vmatprep.subr.mxu0 0.0
        %6725 = vmatpush2.msra.mxu0 0.0
        %6726 = vmatprep.subr.mxu0 0.0
        %6727 = vmatpush2.msra.mxu0 0.0
        %6728 = vmatprep.subr.mxu0 0.0
        %6729 = vmatpush2.msra.mxu0 0.0
        %6730 = vmatprep.subr.mxu0 0.0
        %6731 = vmatpush2.msra.mxu0 0.0
        %6732 = vmatprep.subr.mxu0 0.0
        %6733 = vmatpush2.msra.mxu0 0.0
        %6734 = vmatprep.subr.mxu0 0.0
        %6735 = vmatpush2.msra.mxu0 0.0
        %6736 = vmatprep.subr.mxu0 0.0
        %6737 = vmatpush2.msra.mxu0 0.0
        %6738 = vmatprep.subr.mxu0 0.0
        %6739 = vmatpush2.msra.mxu0 0.0
        %6740 = vmatprep.subr.mxu0 0.0
        %6741 = vmatpush2.msra.mxu0 0.0
        %6742 = vmatprep.subr.mxu0 0.0
        %6743 = vmatpush2.msra.mxu0 0.0
        %6744 = vmatprep.subr.mxu0 0.0
        %6745 = vmatpush2.msra.mxu0 0.0
        %6746 = vmatprep.subr.mxu0 0.0
        %6747 = vmatpush2.msra.mxu0 0.0
        %6748 = vmatprep.subr.mxu0 0.0
        %6749 = vmatpush2.msra.mxu0 0.0
        %6750 = vmatprep.subr.mxu0 0.0
        %6751 = vmatpush2.msra.mxu0 0.0
        %6752 = vmatprep.mubr.f32.mxu0 0.0
        %6753 = vmatmul.mubr.f32.gmra.mxu0 %v6684
        %v6754 = vpop.f32.mrf.mxu0
        %v6755 = vadd.f32 0.0, %v6754
        %v6756 = vpop.f32.mrf.mxu0
        %6757 = vdwg.mxu0
        %6762 = vrot.lane.b32.xlu0 %v5188, 8
        %v6763 = vpop.permute.xlu0 %6762
        %6764 = vrot.lane.b32.xlu0 %v5265, 8
        %v6765 = vpop.permute.xlu0 %6764
        %6766 = vrot.lane.b32.xlu0 %v5342, 8
        %v6767 = vpop.permute.xlu0 %6766
        %6768 = vrot.lane.b32.xlu0 %v5419, 8
        %v6769 = vpop.permute.xlu0 %6768
        %6778 = vrot.lane.b32.xlu0 %v5856, 16
        %v6779 = vpop.permute.xlu0 %6778
        %6780 = vrot.lane.b32.xlu0 %v5933, 16
        %v6781 = vpop.permute.xlu0 %6780
        %6782 = vrot.lane.b32.xlu0 %v6010, 16
        %v6783 = vpop.permute.xlu0 %6782
        %6784 = vrot.lane.b32.xlu0 %v6087, 16
        %v6785 = vpop.permute.xlu0 %6784
        %6794 = vrot.lane.b32.xlu0 %v6524, 24
        %v6795 = vpop.permute.xlu0 %6794
        %6796 = vrot.lane.b32.xlu0 %v6601, 24
        %v6797 = vpop.permute.xlu0 %6796
        %6798 = vrot.lane.b32.xlu0 %v6678, 24
        %v6799 = vpop.permute.xlu0 %6798
        %6800 = vrot.lane.b32.xlu0 %v6755, 24
        %v6801 = vpop.permute.xlu0 %6800
        %v6806 = vsel %vm668, %v4520, %v6763
        %v6807 = vsel %vm668, %v4597, %v6765
        %v6808 = vsel %vm668, %v4674, %v6767
        %v6809 = vsel %vm668, %v4751, %v6769
        %v6810 = vsel %vm3386, %v6806, %v6779
        %v6811 = vsel %vm3386, %v6807, %v6781
        %v6812 = vsel %vm3386, %v6808, %v6783
        %v6813 = vsel %vm3386, %v6809, %v6785
        %v6814 = vsel %vm3391, %v6810, %v6795
        %v6815 = vsel %vm3391, %v6811, %v6797
        %v6816 = vsel %vm3391, %v6812, %v6799
        %v6817 = vsel %vm3391, %v6813, %v6801
        %s6818 = scalar_lea.vmem %s4, 32
        %v6819 = vld [vmem:[%s6818] sm:$0xff]
        %v6820 = vld [vmem:[%s6818 + $0x8] sm:$0xff]
        %v6821 = vld [vmem:[%s6818 + $0x10] sm:$0xff]
        %v6822 = vld [vmem:[%s6818 + $0x18] sm:$0xff]
        %s6823 = scalar_lea.vmem %s5, 1
        %v6824 = vld [vmem:[%s6823] sm:$0x1]
        %v6826 = vlaneseq
        %v6827 = vshrl.u32 %v6826, 7
        %v6828 = vsub.s32 0, %v6827
        %v6829 = vrot.slane %v6824, %v6828
        %v6835 = vcombine.low %v6814, %v6815
        %v6836 = vcombine.low %v6816, %v6817
        %v6837 = vsel %vm582, %v6835, 0
        %v6839 = vsel %vm582, %v6836, 0
        %6841 = vmatprep.subr.mxu0 0.0
        %6842 = vmatpush1.msra.mxu0 0.0
        %6843 = vmatprep.subr.mxu0 0.0
        %6844 = vmatpush1.msra.mxu0 0.0
        %6845 = vmatprep.subr.mxu0 0.0
        %6846 = vmatpush1.msra.mxu0 0.0
        %6847 = vmatprep.subr.mxu0 0.0
        %6848 = vmatpush1.msra.mxu0 0.0
        %6849 = vmatprep.subr.mxu0 0.0
        %6850 = vmatpush1.msra.mxu0 0.0
        %6851 = vmatprep.subr.mxu0 0.0
        %6852 = vmatpush1.msra.mxu0 0.0
        %6853 = vmatprep.subr.mxu0 0.0
        %6854 = vmatpush1.msra.mxu0 0.0
        %6855 = vmatprep.subr.mxu0 0.0
        %6856 = vmatpush1.msra.mxu0 0.0
        %6857 = vmatprep.subr.mxu0 0.0
        %6858 = vmatpush1.msra.mxu0 0.0
        %6859 = vmatprep.subr.mxu0 0.0
        %6860 = vmatpush1.msra.mxu0 0.0
        %6861 = vmatprep.subr.mxu0 0.0
        %6862 = vmatpush1.msra.mxu0 0.0
        %6863 = vmatprep.subr.mxu0 0.0
        %6864 = vmatpush1.msra.mxu0 0.0
        %6865 = vmatprep.subr.mxu0 0.0
        %6866 = vmatpush1.msra.mxu0 %v6822
        %6867 = vmatprep.subr.mxu0 0.0
        %6868 = vmatpush1.msra.mxu0 %v6821
        %6869 = vmatprep.subr.mxu0 0.0
        %6870 = vmatpush1.msra.mxu0 %v6820
        %6871 = vmatprep.subr.mxu0 0.0
        %6872 = vmatpush1.msra.mxu0 %v6819
        %6873 = vmatprep.subr.mxu0 0.0
        %6874 = vmatpush2.msra.mxu0 0.0
        %6875 = vmatprep.subr.mxu0 0.0
        %6876 = vmatpush2.msra.mxu0 0.0
        %6877 = vmatprep.subr.mxu0 0.0
        %6878 = vmatpush2.msra.mxu0 0.0
        %6879 = vmatprep.subr.mxu0 0.0
        %6880 = vmatpush2.msra.mxu0 0.0
        %6881 = vmatprep.subr.mxu0 0.0
        %6882 = vmatpush2.msra.mxu0 0.0
        %6883 = vmatprep.subr.mxu0 0.0
        %6884 = vmatpush2.msra.mxu0 0.0
        %6885 = vmatprep.subr.mxu0 0.0
        %6886 = vmatpush2.msra.mxu0 0.0
        %6887 = vmatprep.subr.mxu0 0.0
        %6888 = vmatpush2.msra.mxu0 0.0
        %6889 = vmatprep.subr.mxu0 0.0
        %6890 = vmatpush2.msra.mxu0 0.0
        %6891 = vmatprep.subr.mxu0 0.0
        %6892 = vmatpush2.msra.mxu0 0.0
        %6893 = vmatprep.subr.mxu0 0.0
        %6894 = vmatpush2.msra.mxu0 0.0
        %6895 = vmatprep.subr.mxu0 0.0
        %6896 = vmatpush2.msra.mxu0 0.0
        %6897 = vmatprep.subr.mxu0 0.0
        %6898 = vmatpush2.msra.mxu0 0.0
        %6899 = vmatprep.subr.mxu0 0.0
        %6900 = vmatpush2.msra.mxu0 0.0
        %6901 = vmatprep.subr.mxu0 0.0
        %6902 = vmatpush2.msra.mxu0 0.0
        %6903 = vmatprep.subr.mxu0 0.0
        %6904 = vmatpush2.msra.mxu0 0.0
        %6905 = vmatprep.mubr.f32.mxu0 0.0
        %6906 = vmatmul.mubr.f32.gmra.mxu0 %v6837
        %v6907 = vpop.f32.mrf.mxu0
        %v6908 = vadd.f32 %v6829, %v6907
        %v6909 = vpop.f32.mrf.mxu0
        %6910 = vmatprep.mubr.f32.mxu0 0.0
        %6911 = vmatmul.mubr.f32.gmra.mxu0 %v6839
        %v6912 = vpop.f32.mrf.mxu0
        %v6913 = vadd.f32 %v6829, %v6912
        %v6914 = vpop.f32.mrf.mxu0
        %6915 = vdwg.mxu0
        %v6918 = vcombine.high %v6908, %v6908
        %v6919 = vcombine.high %v6913, %v6913
        %v6922 = vadd.f32 %v3988, %v6908
        %v6923 = vadd.f32 %v3989, %v6918
        %v6924 = vadd.f32 %v3990, %v6913
        %v6925 = vadd.f32 %v3991, %v6919
        %s6926 = scalar_lea.vmem %s6, 1
        %v6927 = vld [vmem:[%s6926] sm:$0x1]
        %s6928 = scalar_lea.vmem %s7, 1
        %v6929 = vld [vmem:[%s6928] sm:$0x1]
        %v6934 = vcombine.low %v6922, %v6923
        %v6935 = vcombine.low %v6924, %v6925
        %v6938 = vsel %vm582, %v6934, 0.0
        %6939 = vadd.xlane.f32.xlu0 %v6938
        %v6940 = vpop.xlane.xlu0 %6939
        %v6941 = vsel %vm582, %v6935, 0.0
        %6942 = vadd.xlane.f32.xlu0 %v6941
        %v6943 = vpop.xlane.xlu0 %6942
        %v6944 = vmul.f32 %v6940, %v3518
        %v6945 = vmul.f32 %v6943, %v3518
        %v6949 = vunpack.c.l.s4 839922192
        %v6950 = vunpack.c.0.s8 %v6949
        %v6951 = vlaneseq
        %v6952 = vshrl.u32 %v6951, 7
        %v6953 = vsub.s32 %v6950, %v6952
        %v6954 = vrot.slane %v6944, %v6953
        %v6956 = vunpack.c.l.s4 1985246804
        %v6957 = vunpack.c.0.s8 %v6956
        %v6958 = vlaneseq
        %v6959 = vshrl.u32 %v6958, 7
        %v6960 = vsub.s32 %v6957, %v6959
        %v6961 = vrot.slane %v6944, %v6960
        %v6963 = vunpack.c.l.s4 839922192
        %v6964 = vunpack.c.0.s8 %v6963
        %v6965 = vlaneseq
        %v6966 = vshrl.u32 %v6965, 7
        %v6967 = vsub.s32 %v6964, %v6966
        %v6968 = vrot.slane %v6945, %v6967
        %v6970 = vunpack.c.l.s4 1985246804
        %v6971 = vunpack.c.0.s8 %v6970
        %v6972 = vlaneseq
        %v6973 = vshrl.u32 %v6972, 7
        %v6974 = vsub.s32 %v6971, %v6973
        %v6975 = vrot.slane %v6945, %v6974
        %v6980 = vsub.f32 %v6922, %v6954
        %v6981 = vsub.f32 %v6923, %v6961
        %v6982 = vsub.f32 %v6924, %v6968
        %v6983 = vsub.f32 %v6925, %v6975
        %v6984 = vmul.f32 %v6980, %v6980
        %v6985 = vmul.f32 %v6981, %v6981
        %v6986 = vmul.f32 %v6982, %v6982
        %v6987 = vmul.f32 %v6983, %v6983
        %v6992 = vcombine.low %v6984, %v6985
        %v6993 = vcombine.low %v6986, %v6987
        %v6996 = vsel %vm582, %v6992, 0.0
        %6997 = vadd.xlane.f32.xlu0 %v6996
        %v6998 = vpop.xlane.xlu0 %6997
        %v6999 = vsel %vm582, %v6993, 0.0
        %7000 = vadd.xlane.f32.xlu0 %v6999
        %v7001 = vpop.xlane.xlu0 %7000
        %v7002 = vmul.f32 %v6998, %v3518
        %v7003 = vmul.f32 %v7001, %v3518
        %v7004 = vadd.f32 %v7002, 1e-05
        %v7005 = vadd.f32 %v7003, 1e-05
        %v7006 = vrsqrt.pop %v7004
        %v7007 = vrsqrt.pop %v7005
        %v7011 = vunpack.c.l.s4 839922192
        %v7012 = vunpack.c.0.s8 %v7011
        %v7013 = vlaneseq
        %v7014 = vshrl.u32 %v7013, 7
        %v7015 = vsub.s32 %v7012, %v7014
        %v7016 = vrot.slane %v7006, %v7015
        %v7018 = vunpack.c.l.s4 1985246804
        %v7019 = vunpack.c.0.s8 %v7018
        %v7020 = vlaneseq
        %v7021 = vshrl.u32 %v7020, 7
        %v7022 = vsub.s32 %v7019, %v7021
        %v7023 = vrot.slane %v7006, %v7022
        %v7025 = vunpack.c.l.s4 839922192
        %v7026 = vunpack.c.0.s8 %v7025
        %v7027 = vlaneseq
        %v7028 = vshrl.u32 %v7027, 7
        %v7029 = vsub.s32 %v7026, %v7028
        %v7030 = vrot.slane %v7007, %v7029
        %v7032 = vunpack.c.l.s4 1985246804
        %v7033 = vunpack.c.0.s8 %v7032
        %v7034 = vlaneseq
        %v7035 = vshrl.u32 %v7034, 7
        %v7036 = vsub.s32 %v7033, %v7035
        %v7037 = vrot.slane %v7007, %v7036
        %v7042 = vmul.f32 %v6980, %v7016
        %v7043 = vmul.f32 %v6981, %v7023
        %v7044 = vmul.f32 %v6982, %v7030
        %v7045 = vmul.f32 %v6983, %v7037
        %v7047 = vlaneseq
        %v7048 = vshrl.u32 %v7047, 7
        %v7049 = vsub.s32 0, %v7048
        %v7050 = vrot.slane %v6927, %v7049
        %v7052 = vcombine.high %v7050, %v7050
        %v7054 = vmul.f32 %v7042, %v7050
        %v7055 = vmul.f32 %v7043, %v7052
        %v7056 = vmul.f32 %v7044, %v7050
        %v7057 = vmul.f32 %v7045, %v7052
        %v7059 = vlaneseq
        %v7060 = vshrl.u32 %v7059, 7
        %v7061 = vsub.s32 0, %v7060
        %v7062 = vrot.slane %v6929, %v7061
        %v7064 = vcombine.high %v7062, %v7062
        %v7066 = vadd.f32 %v7054, %v7062
        %v7067 = vadd.f32 %v7055, %v7064
        %v7068 = vadd.f32 %v7056, %v7062
        %v7069 = vadd.f32 %v7057, %v7064
        %s7070 = scalar_lea.vmem %s8, 32
        %v7071 = vld [vmem:[%s7070] sm:$0xff]
        %v7072 = vld [vmem:[%s7070 + $0x8] sm:$0xff]
        %v7073 = vld [vmem:[%s7070 + $0x10] sm:$0xff]
        %v7074 = vld [vmem:[%s7070 + $0x18] sm:$0xff]
        %s7075 = scalar_lea.vmem %s9, 1
        %v7076 = vld [vmem:[%s7075] sm:$0x1]
        %v7078 = vlaneseq
        %v7079 = vshrl.u32 %v7078, 7
        %v7080 = vsub.s32 0, %v7079
        %v7081 = vrot.slane %v7076, %v7080
        %v7087 = vcombine.low %v7066, %v7067
        %v7088 = vcombine.low %v7068, %v7069
        %v7089 = vsel %vm582, %v7087, 0
        %v7091 = vsel %vm582, %v7088, 0
        %7093 = vmatprep.subr.mxu0 0.0
        %7094 = vmatpush1.msra.mxu0 0.0
        %7095 = vmatprep.subr.mxu0 0.0
        %7096 = vmatpush1.msra.mxu0 0.0
        %7097 = vmatprep.subr.mxu0 0.0
        %7098 = vmatpush1.msra.mxu0 0.0
        %7099 = vmatprep.subr.mxu0 0.0
        %7100 = vmatpush1.msra.mxu0 0.0
        %7101 = vmatprep.subr.mxu0 0.0
        %7102 = vmatpush1.msra.mxu0 0.0
        %7103 = vmatprep.subr.mxu0 0.0
        %7104 = vmatpush1.msra.mxu0 0.0
        %7105 = vmatprep.subr.mxu0 0.0
        %7106 = vmatpush1.msra.mxu0 0.0
        %7107 = vmatprep.subr.mxu0 0.0
        %7108 = vmatpush1.msra.mxu0 0.0
        %7109 = vmatprep.subr.mxu0 0.0
        %7110 = vmatpush1.msra.mxu0 0.0
        %7111 = vmatprep.subr.mxu0 0.0
        %7112 = vmatpush1.msra.mxu0 0.0
        %7113 = vmatprep.subr.mxu0 0.0
        %7114 = vmatpush1.msra.mxu0 0.0
        %7115 = vmatprep.subr.mxu0 0.0
        %7116 = vmatpush1.msra.mxu0 0.0
        %7117 = vmatprep.subr.mxu0 0.0
        %7118 = vmatpush1.msra.mxu0 %v7074
        %7119 = vmatprep.subr.mxu0 0.0
        %7120 = vmatpush1.msra.mxu0 %v7073
        %7121 = vmatprep.subr.mxu0 0.0
        %7122 = vmatpush1.msra.mxu0 %v7072
        %7123 = vmatprep.subr.mxu0 0.0
        %7124 = vmatpush1.msra.mxu0 %v7071
        %7125 = vmatprep.subr.mxu0 0.0
        %7126 = vmatpush2.msra.mxu0 0.0
        %7127 = vmatprep.subr.mxu0 0.0
        %7128 = vmatpush2.msra.mxu0 0.0
        %7129 = vmatprep.subr.mxu0 0.0
        %7130 = vmatpush2.msra.mxu0 0.0
        %7131 = vmatprep.subr.mxu0 0.0
        %7132 = vmatpush2.msra.mxu0 0.0
        %7133 = vmatprep.subr.mxu0 0.0
        %7134 = vmatpush2.msra.mxu0 0.0
        %7135 = vmatprep.subr.mxu0 0.0
        %7136 = vmatpush2.msra.mxu0 0.0
        %7137 = vmatprep.subr.mxu0 0.0
        %7138 = vmatpush2.msra.mxu0 0.0
        %7139 = vmatprep.subr.mxu0 0.0
        %7140 = vmatpush2.msra.mxu0 0.0
        %7141 = vmatprep.subr.mxu0 0.0
        %7142 = vmatpush2.msra.mxu0 0.0
        %7143 = vmatprep.subr.mxu0 0.0
        %7144 = vmatpush2.msra.mxu0 0.0
        %7145 = vmatprep.subr.mxu0 0.0
        %7146 = vmatpush2.msra.mxu0 0.0
        %7147 = vmatprep.subr.mxu0 0.0
        %7148 = vmatpush2.msra.mxu0 0.0
        %7149 = vmatprep.subr.mxu0 0.0
        %7150 = vmatpush2.msra.mxu0 0.0
        %7151 = vmatprep.subr.mxu0 0.0
        %7152 = vmatpush2.msra.mxu0 0.0
        %7153 = vmatprep.subr.mxu0 0.0
        %7154 = vmatpush2.msra.mxu0 0.0
        %7155 = vmatprep.subr.mxu0 0.0
        %7156 = vmatpush2.msra.mxu0 0.0
        %7157 = vmatprep.mubr.f32.mxu0 0.0
        %7158 = vmatmul.mubr.f32.gmra.mxu0 %v7089
        %v7159 = vpop.f32.mrf.mxu0
        %v7160 = vadd.f32 %v7081, %v7159
        %v7161 = vpop.f32.mrf.mxu0
        %7162 = vmatprep.mubr.f32.mxu0 0.0
        %7163 = vmatmul.mubr.f32.gmra.mxu0 %v7091
        %v7164 = vpop.f32.mrf.mxu0
        %v7165 = vadd.f32 %v7081, %v7164
        %v7166 = vpop.f32.mrf.mxu0
        %7167 = vdwg.mxu0
        %v7168 = vmax.f32 %v7160, 0.0
        %v7169 = vmax.f32 %v7165, 0.0
        %s7170 = scalar_lea.vmem %s10, 64
        %v7171 = vld [vmem:[%s7170] sm:$0xff]
        %v7172 = vld [vmem:[%s7170 + $0x8] sm:$0xff]
        %v7173 = vld [vmem:[%s7170 + $0x10] sm:$0xff]
        %v7174 = vld [vmem:[%s7170 + $0x18] sm:$0xff]
        %v7175 = vld [vmem:[%s7170 + $0x20] sm:$0xff]
        %v7176 = vld [vmem:[%s7170 + $0x28] sm:$0xff]
        %v7177 = vld [vmem:[%s7170 + $0x30] sm:$0xff]
        %v7178 = vld [vmem:[%s7170 + $0x38] sm:$0xff]
        %s7179 = scalar_lea.vmem %s11, 1
        %v7180 = vld [vmem:[%s7179] sm:$0x1]
        %v7182 = vlaneseq
        %v7183 = vshrl.u32 %v7182, 7
        %v7184 = vsub.s32 0, %v7183
        %v7185 = vrot.slane %v7180, %v7184
        %v7188 = vsel %vm3758, %v7168, 0
        %v7191 = vsel %vm3758, %v7169, 0
        %7193 = vmatprep.subr.mxu0 0.0
        %7194 = vmatpush1.msra.mxu0 0.0
        %7195 = vmatprep.subr.mxu0 0.0
        %7196 = vmatpush1.msra.mxu0 0.0
        %7197 = vmatprep.subr.mxu0 0.0
        %7198 = vmatpush1.msra.mxu0 0.0
        %7199 = vmatprep.subr.mxu0 0.0
        %7200 = vmatpush1.msra.mxu0 0.0
        %7201 = vmatprep.subr.mxu0 0.0
        %7202 = vmatpush1.msra.mxu0 0.0
        %7203 = vmatprep.subr.mxu0 0.0
        %7204 = vmatpush1.msra.mxu0 0.0
        %7205 = vmatprep.subr.mxu0 0.0
        %7206 = vmatpush1.msra.mxu0 0.0
        %7207 = vmatprep.subr.mxu0 0.0
        %7208 = vmatpush1.msra.mxu0 0.0
        %7209 = vmatprep.subr.mxu0 0.0
        %7210 = vmatpush1.msra.mxu0 %v7178
        %7211 = vmatprep.subr.mxu0 0.0
        %7212 = vmatpush1.msra.mxu0 %v7177
        %7213 = vmatprep.subr.mxu0 0.0
        %7214 = vmatpush1.msra.mxu0 %v7176
        %7215 = vmatprep.subr.mxu0 0.0
        %7216 = vmatpush1.msra.mxu0 %v7175
        %7217 = vmatprep.subr.mxu0 0.0
        %7218 = vmatpush1.msra.mxu0 %v7174
        %7219 = vmatprep.subr.mxu0 0.0
        %7220 = vmatpush1.msra.mxu0 %v7173
        %7221 = vmatprep.subr.mxu0 0.0
        %7222 = vmatpush1.msra.mxu0 %v7172
        %7223 = vmatprep.subr.mxu0 0.0
        %7224 = vmatpush1.msra.mxu0 %v7171
        %7225 = vmatprep.subr.mxu0 0.0
        %7226 = vmatpush2.msra.mxu0 0.0
        %7227 = vmatprep.subr.mxu0 0.0
        %7228 = vmatpush2.msra.mxu0 0.0
        %7229 = vmatprep.subr.mxu0 0.0
        %7230 = vmatpush2.msra.mxu0 0.0
        %7231 = vmatprep.subr.mxu0 0.0
        %7232 = vmatpush2.msra.mxu0 0.0
        %7233 = vmatprep.subr.mxu0 0.0
        %7234 = vmatpush2.msra.mxu0 0.0
        %7235 = vmatprep.subr.mxu0 0.0
        %7236 = vmatpush2.msra.mxu0 0.0
        %7237 = vmatprep.subr.mxu0 0.0
        %7238 = vmatpush2.msra.mxu0 0.0
        %7239 = vmatprep.subr.mxu0 0.0
        %7240 = vmatpush2.msra.mxu0 0.0
        %7241 = vmatprep.subr.mxu0 0.0
        %7242 = vmatpush2.msra.mxu0 0.0
        %7243 = vmatprep.subr.mxu0 0.0
        %7244 = vmatpush2.msra.mxu0 0.0
        %7245 = vmatprep.subr.mxu0 0.0
        %7246 = vmatpush2.msra.mxu0 0.0
        %7247 = vmatprep.subr.mxu0 0.0
        %7248 = vmatpush2.msra.mxu0 0.0
        %7249 = vmatprep.subr.mxu0 0.0
        %7250 = vmatpush2.msra.mxu0 0.0
        %7251 = vmatprep.subr.mxu0 0.0
        %7252 = vmatpush2.msra.mxu0 0.0
        %7253 = vmatprep.subr.mxu0 0.0
        %7254 = vmatpush2.msra.mxu0 0.0
        %7255 = vmatprep.subr.mxu0 0.0
        %7256 = vmatpush2.msra.mxu0 0.0
        %7257 = vmatprep.mubr.f32.mxu0 0.0
        %7258 = vmatmul.mubr.f32.gmra.mxu0 %v7188
        %v7259 = vpop.f32.mrf.mxu0
        %v7260 = vadd.f32 %v7185, %v7259
        %v7261 = vpop.f32.mrf.mxu0
        %7262 = vmatprep.mubr.f32.mxu0 0.0
        %7263 = vmatmul.mubr.f32.gmra.mxu0 %v7191
        %v7264 = vpop.f32.mrf.mxu0
        %v7265 = vadd.f32 %v7185, %v7264
        %v7266 = vpop.f32.mrf.mxu0
        %7267 = vdwg.mxu0
        %v7270 = vcombine.high %v7260, %v7260
        %v7271 = vcombine.high %v7265, %v7265
        %v7274 = vadd.f32 %v7066, %v7260
        %v7275 = vadd.f32 %v7067, %v7270
        %v7276 = vadd.f32 %v7068, %v7265
        %v7277 = vadd.f32 %v7069, %v7271
        %s7278 = scalar_lea.vmem %s12, 1
        %v7279 = vld [vmem:[%s7278] sm:$0x1]
        %s7280 = scalar_lea.vmem %s13, 1
        %v7281 = vld [vmem:[%s7280] sm:$0x1]
        %v7286 = vcombine.low %v7274, %v7275
        %v7287 = vcombine.low %v7276, %v7277
        %v7290 = vsel %vm582, %v7286, 0.0
        %7291 = vadd.xlane.f32.xlu0 %v7290
        %v7292 = vpop.xlane.xlu0 %7291
        %v7293 = vsel %vm582, %v7287, 0.0
        %7294 = vadd.xlane.f32.xlu0 %v7293
        %v7295 = vpop.xlane.xlu0 %7294
        %v7296 = vmul.f32 %v7292, %v3518
        %v7297 = vmul.f32 %v7295, %v3518
        %v7301 = vunpack.c.l.s4 839922192
        %v7302 = vunpack.c.0.s8 %v7301
        %v7303 = vlaneseq
        %v7304 = vshrl.u32 %v7303, 7
        %v7305 = vsub.s32 %v7302, %v7304
        %v7306 = vrot.slane %v7296, %v7305
        %v7308 = vunpack.c.l.s4 1985246804
        %v7309 = vunpack.c.0.s8 %v7308
        %v7310 = vlaneseq
        %v7311 = vshrl.u32 %v7310, 7
        %v7312 = vsub.s32 %v7309, %v7311
        %v7313 = vrot.slane %v7296, %v7312
        %v7315 = vunpack.c.l.s4 839922192
        %v7316 = vunpack.c.0.s8 %v7315
        %v7317 = vlaneseq
        %v7318 = vshrl.u32 %v7317, 7
        %v7319 = vsub.s32 %v7316, %v7318
        %v7320 = vrot.slane %v7297, %v7319
        %v7322 = vunpack.c.l.s4 1985246804
        %v7323 = vunpack.c.0.s8 %v7322
        %v7324 = vlaneseq
        %v7325 = vshrl.u32 %v7324, 7
        %v7326 = vsub.s32 %v7323, %v7325
        %v7327 = vrot.slane %v7297, %v7326
        %v7332 = vsub.f32 %v7274, %v7306
        %v7333 = vsub.f32 %v7275, %v7313
        %v7334 = vsub.f32 %v7276, %v7320
        %v7335 = vsub.f32 %v7277, %v7327
        %v7336 = vmul.f32 %v7332, %v7332
        %v7337 = vmul.f32 %v7333, %v7333
        %v7338 = vmul.f32 %v7334, %v7334
        %v7339 = vmul.f32 %v7335, %v7335
        %v7344 = vcombine.low %v7336, %v7337
        %v7345 = vcombine.low %v7338, %v7339
        %v7348 = vsel %vm582, %v7344, 0.0
        %7349 = vadd.xlane.f32.xlu0 %v7348
        %v7350 = vpop.xlane.xlu0 %7349
        %v7351 = vsel %vm582, %v7345, 0.0
        %7352 = vadd.xlane.f32.xlu0 %v7351
        %v7353 = vpop.xlane.xlu0 %7352
        %v7354 = vmul.f32 %v7350, %v3518
        %v7355 = vmul.f32 %v7353, %v3518
        %v7356 = vadd.f32 %v7354, 1e-05
        %v7357 = vadd.f32 %v7355, 1e-05
        %v7358 = vrsqrt.pop %v7356
        %v7359 = vrsqrt.pop %v7357
        %v7363 = vunpack.c.l.s4 839922192
        %v7364 = vunpack.c.0.s8 %v7363
        %v7365 = vlaneseq
        %v7366 = vshrl.u32 %v7365, 7
        %v7367 = vsub.s32 %v7364, %v7366
        %v7368 = vrot.slane %v7358, %v7367
        %v7370 = vunpack.c.l.s4 1985246804
        %v7371 = vunpack.c.0.s8 %v7370
        %v7372 = vlaneseq
        %v7373 = vshrl.u32 %v7372, 7
        %v7374 = vsub.s32 %v7371, %v7373
        %v7375 = vrot.slane %v7358, %v7374
        %v7377 = vunpack.c.l.s4 839922192
        %v7378 = vunpack.c.0.s8 %v7377
        %v7379 = vlaneseq
        %v7380 = vshrl.u32 %v7379, 7
        %v7381 = vsub.s32 %v7378, %v7380
        %v7382 = vrot.slane %v7359, %v7381
        %v7384 = vunpack.c.l.s4 1985246804
        %v7385 = vunpack.c.0.s8 %v7384
        %v7386 = vlaneseq
        %v7387 = vshrl.u32 %v7386, 7
        %v7388 = vsub.s32 %v7385, %v7387
        %v7389 = vrot.slane %v7359, %v7388
        %v7394 = vmul.f32 %v7332, %v7368
        %v7395 = vmul.f32 %v7333, %v7375
        %v7396 = vmul.f32 %v7334, %v7382
        %v7397 = vmul.f32 %v7335, %v7389
        %v7399 = vlaneseq
        %v7400 = vshrl.u32 %v7399, 7
        %v7401 = vsub.s32 0, %v7400
        %v7402 = vrot.slane %v7279, %v7401
        %v7404 = vcombine.high %v7402, %v7402
        %v7406 = vmul.f32 %v7394, %v7402
        %v7407 = vmul.f32 %v7395, %v7404
        %v7408 = vmul.f32 %v7396, %v7402
        %v7409 = vmul.f32 %v7397, %v7404
        %v7411 = vlaneseq
        %v7412 = vshrl.u32 %v7411, 7
        %v7413 = vsub.s32 0, %v7412
        %v7414 = vrot.slane %v7281, %v7413
        %v7416 = vcombine.high %v7414, %v7414
        %v7418 = vadd.f32 %v7406, %v7414
        %v7419 = vadd.f32 %v7407, %v7416
        %v7420 = vadd.f32 %v7408, %v7414
        %v7421 = vadd.f32 %v7409, %v7416
        %vm7422 = vcmask 257024
        %v7423 = vsel %vm7422, %v7418, 0.0
        %v7424 = vrot.slane %v7423, 4
        %v7425 = vadd.f32 %v7423, %v7424
        %v7426 = vrot.slane %v7425, 2
        %v7427 = vadd.f32 %v7425, %v7426
        %v7428 = vrot.slane %v7427, 1
        %v7429 = vadd.f32 %v7427, %v7428
        %v7430 = vsel %vm7422, %v7419, 0.0
        %v7431 = vrot.slane %v7430, 4
        %v7432 = vadd.f32 %v7430, %v7431
        %v7433 = vrot.slane %v7432, 2
        %v7434 = vadd.f32 %v7432, %v7433
        %v7435 = vrot.slane %v7434, 1
        %v7436 = vadd.f32 %v7434, %v7435
        %v7437 = vsel %vm7422, %v7420, 0.0
        %v7438 = vrot.slane %v7437, 4
        %v7439 = vadd.f32 %v7437, %v7438
        %v7440 = vrot.slane %v7439, 2
        %v7441 = vadd.f32 %v7439, %v7440
        %v7442 = vrot.slane %v7441, 1
        %v7443 = vadd.f32 %v7441, %v7442
        %v7444 = vsel %vm7422, %v7421, 0.0
        %v7445 = vrot.slane %v7444, 4
        %v7446 = vadd.f32 %v7444, %v7445
        %v7447 = vrot.slane %v7446, 2
        %v7448 = vadd.f32 %v7446, %v7447
        %v7449 = vrot.slane %v7448, 1
        %v7450 = vadd.f32 %v7448, %v7449
        %v7451 = vrcp.pop 4.0
        %v7452 = vmul.f32 %v7429, %v7451
        %v7453 = vmul.f32 %v7436, %v7451
        %v7454 = vmul.f32 %v7443, %v7451
        %v7455 = vmul.f32 %v7450, %v7451
        %vm7456 = vcmask 253952
        %7457 = vst.msk [vmem:[%s525] sm:$0x1] %vm7456, %v7452
        %7458 = vst.msk [vmem:[%s525 + $0x1] sm:$0x1] %vm7456, %v7453
        %7459 = vst.msk [vmem:[%s525 + $0x2] sm:$0x1] %vm7456, %v7454
        %7460 = vst.msk [vmem:[%s525 + $0x3] sm:$0x1] %vm7456, %v7455
        %s7461 = sand.u32 %s346, 1
        %s7462 = scalar_lea.sflag [#allocation4], %s7461
        %s7463 = sand.u32 %s346, 1
        %s7464 = smul.addr %s7463, 4
        %s7465 = scalar_lea.vmem [#allocation7], %s7464
        // Predicated region
        $region85: #{tpu_custom_call.1} parent=75 // pred_check
          %p7466 = pneg %p356
        $region86: #{tpu_custom_call.1} parent=75 // pred_check_branch
          %7468 = sbr.rel (%p7466) target = $region88
        $region87: #{tpu_custom_call.1} parent=75 // pred_region
          %s7469 = smul.u32 4, %s34
          %s7471 = ssub.s32 64, 64
          %7472 = vsyncadd %s7462, %s7471
          %s7473 = smul.addr %s7469, 16
          %s7474 = scalar_lea.hbm %s14, %s7473
          %s7475 = sshll.u32 %s7465, 4
          %s7476 = int_to_ptr.vmem [resolvable:$true] %s7475
          %7481 = dma.vmem_to_hbm [thread:$0]  %s7476, 64, %s7474, %s7462, 16, 16, 1
        $region88: #{tpu_custom_call.1} parent=75 // pred_fallthru
          _
      $region76: #{tpu_custom_call.1} parent=5 // pred_fallthru
        _
      %p7482 = scmp.le.s32.totalorder 2, %s29
      // Predicated region
      $region89: #{tpu_custom_call.1} parent=5 // pred_check
        %p7483 = pneg %p7482
      $region90: #{tpu_custom_call.1} parent=5 // pred_check_branch
        %7485 = sbr.rel (%p7483) target = $region92
      $region91: #{tpu_custom_call.1} parent=5 // pred_region
        %s7486 = ssub.s32 %s29, 2
        // Predicated region
        $region93: #{tpu_custom_call.1} parent=91 // pred_check
          %p7487 = pneg %p362
        $region94: #{tpu_custom_call.1} parent=91 // pred_check_branch
          %7489 = sbr.rel (%p7487) target = $region96
        $region95: #{tpu_custom_call.1} parent=91 // pred_region
          %s7490 = sand.u32 %s347, 1
          %s7491 = scalar_lea.sflag [#allocation4], %s7490
          %s7492 = sand.u32 %s347, 1
          %s7493 = smul.addr %s7492, 4
          %s7494 = scalar_lea.vmem [#allocation7], %s7493
          %7495 = dma.done %s7491, 64
        $region96: #{tpu_custom_call.1} parent=91 // pred_fallthru
          _
      $region92: #{tpu_custom_call.1} parent=5 // pred_fallthru
        _
    $region6: #{tpu_custom_call.1} parent=1 // loop_footer
      %s33 = sadd.s32 1, %s29
    $region7: #{tpu_custom_call.1} parent=1 // loop_footer_branch
      %28 = sbr.rel target = $region3
    $region8: #{tpu_custom_call.1} parent=1 // loop_exit
      _
    %7496 = vsyncpa [#allocation3], 1
    %s7497 = scalar_lea.sflag [#allocation3], 1
    %7498 = vsyncpa %s7497, 1
    %7499 = vsyncpa [#allocation6], 1
    %s7500 = scalar_lea.sflag [#allocation6], 1
    %7501 = vsyncpa %s7500, 1
    %7502 = vsyncpa [#allocation4], 1
    %s7503 = scalar_lea.sflag [#allocation4], 1
    %7504 = vsyncpa %s7503, 1

</llo_original>
